<compile_context>
chip_gen: v7x
topology: tpu7x:2x2x1
jax: 0.10.0
libtpu: 0.0.40
codegen_flags: <defaults>
</compile_context>

<pallas_src>
import numpy as np
import jax
import jax.numpy as jnp
from jax.experimental import pallas as pl
from jax.experimental.pallas import tpu as pltpu

# ---- hyperparameters (mirror gwnet.__init__) -------------------------------
HYP_BLOCKS = 2
HYP_LAYERS = 2
HYP_KERNEL = 3

BATCH = 2
NUM_NODES = 8            # V  (>= 8 because nodevec embedding dim is 8)
IN_DIM = 1               # channel dim produced by unsqueeze/transpose in forward
OUT_DIM = 2
H_DIM = 16               # residual_channels == dilation_channels == h_dim
SKIP_CH = 32
END_CH = 32
ROLLING_SIZE = 12        # time length fed to forward -> padded length 13 == receptive field

V = NUM_NODES
H = H_DIM
VH = V * H               # 128 lanes
VS = V * SKIP_CH         # 256 lanes


def _receptive_field():
    rf = 1
    for _ in range(HYP_BLOCKS):
        scope = HYP_KERNEL - 1
        for _ in range(HYP_LAYERS):
            rf += scope
            scope *= 2
    return rf


def _dilations():
    ds = []
    for _ in range(HYP_BLOCKS):
        d = 1
        for _ in range(HYP_LAYERS):
            ds.append(d)
            d *= 2
    return ds


RECEPTIVE_FIELD = _receptive_field()   # == 13
DILATIONS = _dilations()               # == [1, 2, 1, 2]


# ---- BlockSpec helper (grid of 1: whole arrays resident in VMEM) ------------
def _const_spec(shape):
    nd = len(shape)
    return pl.BlockSpec(tuple(shape), lambda i: (0,) * nd)


# ---- single fused Pallas kernel ---------------------------------------------
def _gwnet_fused_kernel(x_ref, n1_ref, n2_ref, e_ref, et_ref, t_ref,
                        ws_ref, bs_ref,
                        wfg_ref, bfg_ref, wsk_ref, bsk_ref,
                        wgc_ref, bgc_ref, scl_ref,
                        w1_ref, b1_ref, w2_ref, b2_ref,
                        o_ref, m1_ref, m2_ref):
    f32 = jnp.float32

    # ---- adaptive adjacency: adp = softmax(relu(nodevec1 @ nodevec2), dim=1)
    m = jnp.dot(n1_ref[...], n2_ref[...], preferred_element_type=f32)
    m = jnp.maximum(m, 0.0)
    m = m - jnp.max(m, axis=1, keepdims=True)
    ex = jnp.exp(m)
    adp = ex * pl.reciprocal(jnp.sum(ex, axis=1, keepdims=True), approx=True)
    adp2 = jnp.dot(adp, adp, preferred_element_type=f32)   # 2nd-order support

    # ---- node-mixing matrices on the lane-dense (node, channel) layout:
    #      kron(A, I_H)[v*H+ci, w*H+co] = A[v, w] * (ci == co)
    def lane_mix(a):
        big = jnp.dot(et_ref[...],
                      jnp.dot(a, e_ref[...], preferred_element_type=f32),
                      preferred_element_type=f32)          # A[i//H, j//H]
        return big * t_ref[...]                            # mask to kron(A, I_H)

    m1_ref[...] = lane_mix(adp)        # computed once, reused by every layer/batch
    m2_ref[...] = lane_mix(adp2)

    w_start = ws_ref[...]
    b_start = bs_ref[...]
    skips = []

    for b in range(BATCH):             # B == 2, unrolled; everything stays in VMEM
        # start_conv (1x1, C 1->H) as block-diagonal matmul: (L, V) -> (L, V*H)
        x = jnp.dot(x_ref[b], w_start, preferred_element_type=f32) + b_start
        L = x.shape[0]
        skip = None
        skip_len = 0
        for i, d in enumerate(DILATIONS):
            Lo = L - d * (HYP_KERNEL - 1)
            residual = x
            # dilated (1,K) filter+gate convs as ONE im2col matmul:
            # lanes of xcat ordered (k, v, ci); output lanes [filter | gate]
            xcat = jnp.concatenate(
                [x[k * d:k * d + Lo, :] for k in range(HYP_KERNEL)], axis=1)
            fg = (jnp.dot(xcat, wfg_ref[i], preferred_element_type=f32)
                  + bfg_ref[i])
            xg = jnp.tanh(fg[:, :VH]) * jax.nn.sigmoid(fg[:, VH:])
            # skip conv (1x1, H->32) + accumulate over time-cropped previous skip
            s = jnp.dot(xg, wsk_ref[i], preferred_element_type=f32) + bsk_ref[i]
            skip = s if skip is None else s + skip[skip_len - Lo:, :]
            skip_len = Lo
            # gcn (order 2, adaptive support) -> 1x1 mlp (+ eval BN folded)
            # -> + residual (time-cropped, BN scale applied)
            x1 = jnp.dot(xg, m1_ref[...], preferred_element_type=f32)
            x2 = jnp.dot(xg, m2_ref[...], preferred_element_type=f32)
            cat = jnp.concatenate([xg, x1, x2], axis=1)
            x = (jnp.dot(cat, wgc_ref[i], preferred_element_type=f32)
                 + bgc_ref[i]
                 + residual[L - Lo:, :] * scl_ref[i])
            L = Lo
        skips.append(skip)             # (1, V*SKIP_CH): final time length == 1

    # ---- head: LeakyReLU -> end_conv_1 (kernel (V,1)) -> LeakyReLU -> end_conv_2
    #      (final skip time length is 1, so torch.mean(dim=-1) is the identity)
    sk = jnp.concatenate(skips, axis=0)                    # (B, V*SKIP_CH)
    sk = jnp.where(sk > 0, sk, 0.01 * sk)
    y1 = jnp.dot(sk, w1_ref[...], preferred_element_type=f32) + b1_ref[...]
    y1 = jnp.where(y1 > 0, y1, 0.01 * y1)
    # TODO(synk): dropout is identity (inference mode)
    y2 = jnp.dot(y1, w2_ref[...], preferred_element_type=f32) + b2_ref[...]
    o_ref[...] = y2                                        # (B, OUT_DIM * V)


def gwnet_pallas(packed, x_in):
    B = x_in.shape[0]
    n_out = OUT_DIM * NUM_NODES
    operands = (
        x_in, packed["nodevec1"], packed["nodevec2"],
        packed["E"], packed["ET"], packed["T"],
        packed["start_w"], packed["start_b"],
        packed["wfg"], packed["bfg"], packed["wsk"], packed["bsk"],
        packed["wgc"], packed["bgc"], packed["scale"],
        packed["end1_w"], packed["end1_b"], packed["end2_w"], packed["end2_b"],
    )
    return pl.pallas_call(
        _gwnet_fused_kernel,
        grid=(1,),
        in_specs=[_const_spec(o.shape) for o in operands],
        out_specs=_const_spec((B, n_out)),
        out_shape=jax.ShapeDtypeStruct((B, n_out), jnp.float32),
        scratch_shapes=[pltpu.VMEM((VH, VH), jnp.float32),
                        pltpu.VMEM((VH, VH), jnp.float32)],
        compiler_params=pltpu.CompilerParams(
            dimension_semantics=("arbitrary",)),
    )(*operands)


# ---- parameter construction (deterministic, synthetic, PyTorch-like) --------
def init_params(key):
    ks = iter(jax.random.split(key, 96))

    def nrm(shape, scale=0.1):
        return scale * jax.random.normal(next(ks), shape, dtype=jnp.float32)

    def uni(shape, lo, hi):
        return jax.random.uniform(next(ks), shape, jnp.float32, lo, hi)

    params = {}

    # adaptive-adjacency node embeddings from SVD of graph_init (torch.svd path)
    graph_init = np.asarray(uni((V, V), 0.0, 1.0))
    u, s, vh = np.linalg.svd(graph_init)
    sq = np.sqrt(s[:8])
    params["nodevec1"] = jnp.asarray(u[:, :8] * sq[None, :], jnp.float32)
    params["nodevec2"] = jnp.asarray(sq[:, None] * vh[:8, :], jnp.float32)

    params["start_w"] = nrm((IN_DIM, H), 0.5)      # Conv2d(1, H, 1x1) weight
    params["start_b"] = nrm((1, H))

    layers = []
    for _ in DILATIONS:
        lp = {
            "filt_w": nrm((HYP_KERNEL, H, H)), "filt_b": nrm((1, H)),
            "gate_w": nrm((HYP_KERNEL, H, H)), "gate_b": nrm((1, H)),
            "skip_w": nrm((H, SKIP_CH)), "skip_b": nrm((1, SKIP_CH)),
            "gw0": nrm((H, H)), "gw1": nrm((H, H)), "gw2": nrm((H, H)),
            "gb": nrm((1, H)),
        }
        gamma = uni((1, H), 0.5, 1.5)
        beta = nrm((1, H))
        rmean = nrm((1, H))
        rvar = uni((1, H), 0.5, 1.5)
        lp["bn_scale"] = gamma / jnp.sqrt(rvar + 1e-5)     # eval-mode BatchNorm2d
        lp["bn_shift"] = beta - rmean * lp["bn_scale"]
        layers.append(lp)
    params["layers"] = layers

    end1_out = END_CH * NUM_NODES // 32                    # == NUM_NODES
    params["end1_w"] = nrm((V * SKIP_CH, end1_out))        # (V,1)-kernel conv, rows = (v, c)
    params["end1_b"] = nrm((1, end1_out))
    params["end2_w"] = nrm((end1_out, OUT_DIM * NUM_NODES))
    params["end2_b"] = nrm((1, OUT_DIM * NUM_NODES))
    return params


# ---- one-time weight packing into lane-dense / block-diagonal operands ------
def pack_params(params):
    I_V = jnp.eye(V, dtype=jnp.float32)

    def tile_lanes(vec):                 # (1, C) -> (1, V*C), lane order (v, c)
        return jnp.tile(vec.reshape(1, -1), (1, V))

    packed = {
        "nodevec1": params["nodevec1"],
        "nodevec2": params["nodevec2"],
        # constants used to build kron(adp, I_H) inside the kernel
        "E": jnp.asarray(np.kron(np.eye(V, dtype=np.float32),
                                 np.ones((1, H), np.float32))),          # (V, V*H)
        "ET": jnp.asarray(np.kron(np.eye(V, dtype=np.float32),
                                  np.ones((H, 1), np.float32))),         # (V*H, V)
        "T": jnp.asarray(np.tile(np.eye(H, dtype=np.float32), (V, V))),  # (V*H, V*H)
        # start conv as block-diagonal matmul (V, V*H)
        "start_w": jnp.kron(I_V, params["start_w"]),
        "start_b": tile_lanes(params["start_b"]),
        "end1_w": params["end1_w"], "end1_b": params["end1_b"],
        "end2_w": params["end2_w"], "end2_b": params["end2_b"],
    }

    wfg, bfg, wsk, bsk, wgc, bgc, scl = [], [], [], [], [], [], []
    for lp in params["layers"]:
        # filter/gate fused: rows ordered (k, v, ci), cols [filter(V*H) | gate(V*H)]
        wf = jnp.concatenate([jnp.kron(I_V, lp["filt_w"][k])
                              for k in range(HYP_KERNEL)], axis=0)       # (K*V*H, V*H)
        wg = jnp.concatenate([jnp.kron(I_V, lp["gate_w"][k])
                              for k in range(HYP_KERNEL)], axis=0)
        wfg.append(jnp.concatenate([wf, wg], axis=1))                    # (K*V*H, 2*V*H)
        bfg.append(jnp.concatenate([tile_lanes(lp["filt_b"]),
                                    tile_lanes(lp["gate_b"])], axis=1))  # (1, 2*V*H)

        wsk.append(jnp.kron(I_V, lp["skip_w"]))                          # (V*H, V*SKIP)
        bsk.append(tile_lanes(lp["skip_b"]))                             # (1, V*SKIP)

        # gcn mlp [w0;w1;w2] with eval-BatchNorm folded in
        scale, shift = lp["bn_scale"], lp["bn_shift"]
        w3 = jnp.concatenate([jnp.kron(I_V, lp["gw0"]),
                              jnp.kron(I_V, lp["gw1"]),
                              jnp.kron(I_V, lp["gw2"])], axis=0)         # (3*V*H, V*H)
        wgc.append(w3 * tile_lanes(scale))
        bgc.append(tile_lanes(lp["gb"] * scale + shift))                 # (1, V*H)
        scl.append(tile_lanes(scale))                                    # residual path scale

    packed["wfg"] = jnp.stack(wfg)
    packed["bfg"] = jnp.stack(bfg)
    packed["wsk"] = jnp.stack(wsk)
    packed["bsk"] = jnp.stack(bsk)
    packed["wgc"] = jnp.stack(wgc)
    packed["bgc"] = jnp.stack(bgc)
    packed["scale"] = jnp.stack(scl)
    return packed


# ---- forward (glue: time padding only; all compute is inside the kernel) ----
@jax.jit
def gwnet_forward(packed, inp):
    # inp: (B, rolling_size, num_nodes) == the tensor passed to gwnet.forward
    B = inp.shape[0]
    x = inp.astype(jnp.float32)
    # unsqueeze(3)/transpose(1,3) in the reference only relabel axes; we keep
    # (B, time, V) and pad time on the left to the receptive field.
    x = jnp.pad(x, ((0, 0), (1, 0), (0, 0)))               # F.pad(input, (1,0,0,0))
    if x.shape[1] < RECEPTIVE_FIELD:
        x = jnp.pad(x, ((0, 0), (RECEPTIVE_FIELD - x.shape[1], 0), (0, 0)))
    out = gwnet_pallas(packed, x)                          # (B, OUT_DIM * V)
    return out.reshape(B, OUT_DIM, NUM_NODES)


if __name__ == "__main__":
    key = jax.random.PRNGKey(0)
    pkey, xkey = jax.random.split(key)
    params = init_params(pkey)
    packed = pack_params(params)
    inp = jax.random.normal(xkey, (BATCH, ROLLING_SIZE, NUM_NODES), jnp.float32)

    out = gwnet_forward(packed, inp)
    out = jax.block_until_ready(out)

    assert out.shape == (BATCH, OUT_DIM, NUM_NODES), out.shape
    assert bool(jnp.all(jnp.isfinite(out)))
    print("KERNEL_OK")
</pallas_src>

<mosaic_0001>
module attributes {stable_mosaic.version = 11 : i64} {
  func.func @_gwnet_fused_kernel(%arg0: i32, %arg1: memref<2x13x8xf32, #tpu.memory_space<vmem>>, %arg2: memref<8x8xf32, #tpu.memory_space<vmem>>, %arg3: memref<8x8xf32, #tpu.memory_space<vmem>>, %arg4: memref<8x128xf32, #tpu.memory_space<vmem>>, %arg5: memref<128x8xf32, #tpu.memory_space<vmem>>, %arg6: memref<128x128xf32, #tpu.memory_space<vmem>>, %arg7: memref<8x128xf32, #tpu.memory_space<vmem>>, %arg8: memref<1x128xf32, #tpu.memory_space<vmem>>, %arg9: memref<4x384x256xf32, #tpu.memory_space<vmem>>, %arg10: memref<4x1x256xf32, #tpu.memory_space<vmem>>, %arg11: memref<4x128x256xf32, #tpu.memory_space<vmem>>, %arg12: memref<4x1x256xf32, #tpu.memory_space<vmem>>, %arg13: memref<4x384x128xf32, #tpu.memory_space<vmem>>, %arg14: memref<4x1x128xf32, #tpu.memory_space<vmem>>, %arg15: memref<4x1x128xf32, #tpu.memory_space<vmem>>, %arg16: memref<256x8xf32, #tpu.memory_space<vmem>>, %arg17: memref<1x8xf32, #tpu.memory_space<vmem>>, %arg18: memref<8x16xf32, #tpu.memory_space<vmem>>, %arg19: memref<1x16xf32, #tpu.memory_space<vmem>>, %arg20: memref<2x16xf32, #tpu.memory_space<vmem>>, %arg21: memref<128x128xf32, #tpu.memory_space<vmem>>, %arg22: memref<128x128xf32, #tpu.memory_space<vmem>>) attributes {dimension_semantics = [#tpu.dimension_semantics<arbitrary>], iteration_bounds = array<i64: 1>, scalar_prefetch = 0 : i64, scratch_operands = 2 : i64, tpu.core_type = #tpu.core_type<tc>, window_params = [{pipeline_mode = #tpu.pipeline_mode<synchronous>, transform_indices = @transform_0, window_bounds = array<i64: 2, 13, 8>}, {pipeline_mode = #tpu.pipeline_mode<synchronous>, transform_indices = @transform_1, window_bounds = array<i64: 8, 8>}, {pipeline_mode = #tpu.pipeline_mode<synchronous>, transform_indices = @transform_2, window_bounds = array<i64: 8, 8>}, {pipeline_mode = #tpu.pipeline_mode<synchronous>, transform_indices = @transform_3, window_bounds = array<i64: 8, 128>}, {pipeline_mode = #tpu.pipeline_mode<synchronous>, transform_indices = @transform_4, window_bounds = array<i64: 128, 8>}, {pipeline_mode = #tpu.pipeline_mode<synchronous>, transform_indices = @transform_5, window_bounds = array<i64: 128, 128>}, {pipeline_mode = #tpu.pipeline_mode<synchronous>, transform_indices = @transform_6, window_bounds = array<i64: 8, 128>}, {pipeline_mode = #tpu.pipeline_mode<synchronous>, transform_indices = @transform_7, window_bounds = array<i64: 1, 128>}, {pipeline_mode = #tpu.pipeline_mode<synchronous>, transform_indices = @transform_8, window_bounds = array<i64: 4, 384, 256>}, {pipeline_mode = #tpu.pipeline_mode<synchronous>, transform_indices = @transform_9, window_bounds = array<i64: 4, 1, 256>}, {pipeline_mode = #tpu.pipeline_mode<synchronous>, transform_indices = @transform_10, window_bounds = array<i64: 4, 128, 256>}, {pipeline_mode = #tpu.pipeline_mode<synchronous>, transform_indices = @transform_11, window_bounds = array<i64: 4, 1, 256>}, {pipeline_mode = #tpu.pipeline_mode<synchronous>, transform_indices = @transform_12, window_bounds = array<i64: 4, 384, 128>}, {pipeline_mode = #tpu.pipeline_mode<synchronous>, transform_indices = @transform_13, window_bounds = array<i64: 4, 1, 128>}, {pipeline_mode = #tpu.pipeline_mode<synchronous>, transform_indices = @transform_14, window_bounds = array<i64: 4, 1, 128>}, {pipeline_mode = #tpu.pipeline_mode<synchronous>, transform_indices = @transform_15, window_bounds = array<i64: 256, 8>}, {pipeline_mode = #tpu.pipeline_mode<synchronous>, transform_indices = @transform_16, window_bounds = array<i64: 1, 8>}, {pipeline_mode = #tpu.pipeline_mode<synchronous>, transform_indices = @transform_17, window_bounds = array<i64: 8, 16>}, {pipeline_mode = #tpu.pipeline_mode<synchronous>, transform_indices = @transform_18, window_bounds = array<i64: 1, 16>}, {pipeline_mode = #tpu.pipeline_mode<synchronous>, transform_indices = @transform_19, window_bounds = array<i64: 2, 16>}]} {
    %c0 = arith.constant 0 : index
    %c0_0 = arith.constant 0 : index
    %0 = vector.load %arg2[%c0, %c0_0] : memref<8x8xf32, #tpu.memory_space<vmem>>, vector<8x8xf32>
    %c0_1 = arith.constant 0 : index
    %c0_2 = arith.constant 0 : index
    %1 = vector.load %arg3[%c0_1, %c0_2] : memref<8x8xf32, #tpu.memory_space<vmem>>, vector<8x8xf32>
    %cst = arith.constant dense<0.000000e+00> : vector<8x8xf32>
    %2 = tpu.matmul %0, %1, %cst {dimension_numbers = #tpu.dot_dimension_numbers<[1], [0], [0], [1], [0, 0, 1, 1], [], []>} : vector<8x8xf32>, vector<8x8xf32>, vector<8x8xf32> -> vector<8x8xf32>
    %cst_3 = arith.constant 0.000000e+00 : f32
    %3 = vector.broadcast %cst_3 : f32 to vector<8x8xf32>
    %4 = arith.maximumf %2, %3 : vector<8x8xf32>
    %cst_4 = arith.constant dense<0xFF800000> : vector<8xf32>
    %5 = vector.multi_reduction <maximumf>, %4, %cst_4 [1] : vector<8x8xf32> to vector<8xf32>
    %6 = vector.shape_cast %5 : vector<8xf32> to vector<8x1xf32>
    %7 = vector.broadcast %6 : vector<8x1xf32> to vector<8x8xf32>
    %8 = arith.subf %4, %7 : vector<8x8xf32>
    %9 = math.exp %8 : vector<8x8xf32>
    %cst_5 = arith.constant dense<0.000000e+00> : vector<8xf32>
    %10 = vector.multi_reduction <add>, %9, %cst_5 [1] : vector<8x8xf32> to vector<8xf32>
    %11 = vector.shape_cast %10 : vector<8xf32> to vector<8x1xf32>
    %12 = tpu.reciprocal %11 {approx = true} : vector<8x1xf32> -> vector<8x1xf32>
    %13 = vector.broadcast %12 : vector<8x1xf32> to vector<8x8xf32>
    %14 = arith.mulf %9, %13 : vector<8x8xf32>
    %cst_6 = arith.constant dense<0.000000e+00> : vector<8x8xf32>
    %15 = tpu.matmul %14, %14, %cst_6 {dimension_numbers = #tpu.dot_dimension_numbers<[1], [0], [0], [1], [0, 0, 1, 1], [], []>} : vector<8x8xf32>, vector<8x8xf32>, vector<8x8xf32> -> vector<8x8xf32>
    %c0_7 = arith.constant 0 : index
    %c0_8 = arith.constant 0 : index
    %16 = vector.load %arg5[%c0_7, %c0_8] : memref<128x8xf32, #tpu.memory_space<vmem>>, vector<128x8xf32>
    %c0_9 = arith.constant 0 : index
    %c0_10 = arith.constant 0 : index
    %17 = vector.load %arg4[%c0_9, %c0_10] : memref<8x128xf32, #tpu.memory_space<vmem>>, vector<8x128xf32>
    %cst_11 = arith.constant dense<0.000000e+00> : vector<8x128xf32>
    %18 = tpu.matmul %14, %17, %cst_11 {dimension_numbers = #tpu.dot_dimension_numbers<[1], [0], [0], [1], [0, 0, 1, 1], [], []>} : vector<8x8xf32>, vector<8x128xf32>, vector<8x128xf32> -> vector<8x128xf32>
    %cst_12 = arith.constant dense<0.000000e+00> : vector<128x128xf32>
    %19 = tpu.matmul %16, %18, %cst_12 {dimension_numbers = #tpu.dot_dimension_numbers<[1], [0], [0], [1], [0, 0, 1, 1], [], []>} : vector<128x8xf32>, vector<8x128xf32>, vector<128x128xf32> -> vector<128x128xf32>
    %c0_13 = arith.constant 0 : index
    %c0_14 = arith.constant 0 : index
    %20 = vector.load %arg6[%c0_13, %c0_14] : memref<128x128xf32, #tpu.memory_space<vmem>>, vector<128x128xf32>
    %21 = arith.mulf %19, %20 : vector<128x128xf32>
    %c0_15 = arith.constant 0 : index
    %c0_16 = arith.constant 0 : index
    %22 = vector.load %arg21[%c0_15, %c0_16] : memref<128x128xf32, #tpu.memory_space<vmem>>, vector<128x128xf32>
    tpu.vector_store %arg21[%c0_15, %c0_16], %21 {strides = array<i32>} : memref<128x128xf32, #tpu.memory_space<vmem>>, vector<128x128xf32>,
    %c0_17 = arith.constant 0 : index
    %c0_18 = arith.constant 0 : index
    %23 = vector.load %arg5[%c0_17, %c0_18] : memref<128x8xf32, #tpu.memory_space<vmem>>, vector<128x8xf32>
    %c0_19 = arith.constant 0 : index
    %c0_20 = arith.constant 0 : index
    %24 = vector.load %arg4[%c0_19, %c0_20] : memref<8x128xf32, #tpu.memory_space<vmem>>, vector<8x128xf32>
    %cst_21 = arith.constant dense<0.000000e+00> : vector<8x128xf32>
    %25 = tpu.matmul %15, %24, %cst_21 {dimension_numbers = #tpu.dot_dimension_numbers<[1], [0], [0], [1], [0, 0, 1, 1], [], []>} : vector<8x8xf32>, vector<8x128xf32>, vector<8x128xf32> -> vector<8x128xf32>
    %cst_22 = arith.constant dense<0.000000e+00> : vector<128x128xf32>
    %26 = tpu.matmul %23, %25, %cst_22 {dimension_numbers = #tpu.dot_dimension_numbers<[1], [0], [0], [1], [0, 0, 1, 1], [], []>} : vector<128x8xf32>, vector<8x128xf32>, vector<128x128xf32> -> vector<128x128xf32>
    %c0_23 = arith.constant 0 : index
    %c0_24 = arith.constant 0 : index
    %27 = vector.load %arg6[%c0_23, %c0_24] : memref<128x128xf32, #tpu.memory_space<vmem>>, vector<128x128xf32>
    %28 = arith.mulf %26, %27 : vector<128x128xf32>
    %c0_25 = arith.constant 0 : index
    %c0_26 = arith.constant 0 : index
    %29 = vector.load %arg22[%c0_25, %c0_26] : memref<128x128xf32, #tpu.memory_space<vmem>>, vector<128x128xf32>
    tpu.vector_store %arg22[%c0_25, %c0_26], %28 {strides = array<i32>} : memref<128x128xf32, #tpu.memory_space<vmem>>, vector<128x128xf32>,
    %c0_27 = arith.constant 0 : index
    %c0_28 = arith.constant 0 : index
    %30 = vector.load %arg7[%c0_27, %c0_28] : memref<8x128xf32, #tpu.memory_space<vmem>>, vector<8x128xf32>
    %c0_29 = arith.constant 0 : index
    %c0_30 = arith.constant 0 : index
    %31 = vector.load %arg8[%c0_29, %c0_30] : memref<1x128xf32, #tpu.memory_space<vmem>>, vector<1x128xf32>
    %c0_31 = arith.constant 0 : index
    %c0_32 = arith.constant 0 : index
    %c0_33 = arith.constant 0 : index
    %32 = vector.load %arg1[%c0_31, %c0_32, %c0_33] : memref<2x13x8xf32, #tpu.memory_space<vmem>>, vector<1x13x8xf32>
    %33 = vector.shape_cast %32 : vector<1x13x8xf32> to vector<13x8xf32>
    %cst_34 = arith.constant dense<0.000000e+00> : vector<13x128xf32>
    %34 = tpu.matmul %33, %30, %cst_34 {dimension_numbers = #tpu.dot_dimension_numbers<[1], [0], [0], [1], [0, 0, 1, 1], [], []>} : vector<13x8xf32>, vector<8x128xf32>, vector<13x128xf32> -> vector<13x128xf32>
    %35 = vector.broadcast %31 : vector<1x128xf32> to vector<13x128xf32>
    %36 = arith.addf %34, %35 : vector<13x128xf32>
    %37 = vector.extract_strided_slice %36 {offsets = [0, 0], sizes = [11, 128], strides = [1, 1]} : vector<13x128xf32> to vector<11x128xf32>
    %38 = vector.extract_strided_slice %36 {offsets = [1, 0], sizes = [11, 128], strides = [1, 1]} : vector<13x128xf32> to vector<11x128xf32>
    %39 = vector.extract_strided_slice %36 {offsets = [2, 0], sizes = [11, 128], strides = [1, 1]} : vector<13x128xf32> to vector<11x128xf32>
    %40 = tpu.concatenate %37, %38, %39 in 1 : vector<11x128xf32>, vector<11x128xf32>, vector<11x128xf32> -> vector<11x384xf32>
    %c0_35 = arith.constant 0 : index
    %c0_36 = arith.constant 0 : index
    %c0_37 = arith.constant 0 : index
    %41 = vector.load %arg9[%c0_35, %c0_36, %c0_37] : memref<4x384x256xf32, #tpu.memory_space<vmem>>, vector<1x384x256xf32>
    %42 = vector.shape_cast %41 : vector<1x384x256xf32> to vector<384x256xf32>
    %cst_38 = arith.constant dense<0.000000e+00> : vector<11x256xf32>
    %43 = tpu.matmul %40, %42, %cst_38 {dimension_numbers = #tpu.dot_dimension_numbers<[1], [0], [0], [1], [0, 0, 1, 1], [], []>} : vector<11x384xf32>, vector<384x256xf32>, vector<11x256xf32> -> vector<11x256xf32>
    %c0_39 = arith.constant 0 : index
    %c0_40 = arith.constant 0 : index
    %c0_41 = arith.constant 0 : index
    %44 = vector.load %arg10[%c0_39, %c0_40, %c0_41] : memref<4x1x256xf32, #tpu.memory_space<vmem>>, vector<1x1x256xf32>
    %45 = vector.shape_cast %44 : vector<1x1x256xf32> to vector<1x256xf32>
    %46 = vector.broadcast %45 : vector<1x256xf32> to vector<11x256xf32>
    %47 = arith.addf %43, %46 : vector<11x256xf32>
    %48 = vector.extract_strided_slice %47 {offsets = [0, 0], sizes = [11, 128], strides = [1, 1]} : vector<11x256xf32> to vector<11x128xf32>
    %49 = math.tanh %48 : vector<11x128xf32>
    %50 = vector.extract_strided_slice %47 {offsets = [0, 128], sizes = [11, 128], strides = [1, 1]} : vector<11x256xf32> to vector<11x128xf32>
    %51 = arith.negf %50 : vector<11x128xf32>
    %52 = math.exp %51 : vector<11x128xf32>
    %cst_42 = arith.constant 1.000000e+00 : f32
    %53 = vector.broadcast %cst_42 : f32 to vector<11x128xf32>
    %54 = arith.addf %53, %52 : vector<11x128xf32>
    %55 = arith.divf %53, %54 : vector<11x128xf32>
    %56 = arith.mulf %49, %55 : vector<11x128xf32>
    %c0_43 = arith.constant 0 : index
    %c0_44 = arith.constant 0 : index
    %c0_45 = arith.constant 0 : index
    %57 = vector.load %arg11[%c0_43, %c0_44, %c0_45] : memref<4x128x256xf32, #tpu.memory_space<vmem>>, vector<1x128x256xf32>
    %58 = vector.shape_cast %57 : vector<1x128x256xf32> to vector<128x256xf32>
    %cst_46 = arith.constant dense<0.000000e+00> : vector<11x256xf32>
    %59 = tpu.matmul %56, %58, %cst_46 {dimension_numbers = #tpu.dot_dimension_numbers<[1], [0], [0], [1], [0, 0, 1, 1], [], []>} : vector<11x128xf32>, vector<128x256xf32>, vector<11x256xf32> -> vector<11x256xf32>
    %c0_47 = arith.constant 0 : index
    %c0_48 = arith.constant 0 : index
    %c0_49 = arith.constant 0 : index
    %60 = vector.load %arg12[%c0_47, %c0_48, %c0_49] : memref<4x1x256xf32, #tpu.memory_space<vmem>>, vector<1x1x256xf32>
    %61 = vector.shape_cast %60 : vector<1x1x256xf32> to vector<1x256xf32>
    %62 = vector.broadcast %61 : vector<1x256xf32> to vector<11x256xf32>
    %63 = arith.addf %59, %62 : vector<11x256xf32>
    %c0_50 = arith.constant 0 : index
    %c0_51 = arith.constant 0 : index
    %64 = vector.load %arg21[%c0_50, %c0_51] : memref<128x128xf32, #tpu.memory_space<vmem>>, vector<128x128xf32>
    %cst_52 = arith.constant dense<0.000000e+00> : vector<11x128xf32>
    %65 = tpu.matmul %56, %64, %cst_52 {dimension_numbers = #tpu.dot_dimension_numbers<[1], [0], [0], [1], [0, 0, 1, 1], [], []>} : vector<11x128xf32>, vector<128x128xf32>, vector<11x128xf32> -> vector<11x128xf32>
    %c0_53 = arith.constant 0 : index
    %c0_54 = arith.constant 0 : index
    %66 = vector.load %arg22[%c0_53, %c0_54] : memref<128x128xf32, #tpu.memory_space<vmem>>, vector<128x128xf32>
    %cst_55 = arith.constant dense<0.000000e+00> : vector<11x128xf32>
    %67 = tpu.matmul %56, %66, %cst_55 {dimension_numbers = #tpu.dot_dimension_numbers<[1], [0], [0], [1], [0, 0, 1, 1], [], []>} : vector<11x128xf32>, vector<128x128xf32>, vector<11x128xf32> -> vector<11x128xf32>
    %68 = tpu.concatenate %56, %65, %67 in 1 : vector<11x128xf32>, vector<11x128xf32>, vector<11x128xf32> -> vector<11x384xf32>
    %c0_56 = arith.constant 0 : index
    %c0_57 = arith.constant 0 : index
    %c0_58 = arith.constant 0 : index
    %69 = vector.load %arg13[%c0_56, %c0_57, %c0_58] : memref<4x384x128xf32, #tpu.memory_space<vmem>>, vector<1x384x128xf32>
    %70 = vector.shape_cast %69 : vector<1x384x128xf32> to vector<384x128xf32>
    %cst_59 = arith.constant dense<0.000000e+00> : vector<11x128xf32>
    %71 = tpu.matmul %68, %70, %cst_59 {dimension_numbers = #tpu.dot_dimension_numbers<[1], [0], [0], [1], [0, 0, 1, 1], [], []>} : vector<11x384xf32>, vector<384x128xf32>, vector<11x128xf32> -> vector<11x128xf32>
    %c0_60 = arith.constant 0 : index
    %c0_61 = arith.constant 0 : index
    %c0_62 = arith.constant 0 : index
    %72 = vector.load %arg14[%c0_60, %c0_61, %c0_62] : memref<4x1x128xf32, #tpu.memory_space<vmem>>, vector<1x1x128xf32>
    %73 = vector.shape_cast %72 : vector<1x1x128xf32> to vector<1x128xf32>
    %74 = vector.broadcast %73 : vector<1x128xf32> to vector<11x128xf32>
    %75 = arith.addf %71, %74 : vector<11x128xf32>
    %76 = vector.extract_strided_slice %36 {offsets = [2, 0], sizes = [11, 128], strides = [1, 1]} : vector<13x128xf32> to vector<11x128xf32>
    %c0_63 = arith.constant 0 : index
    %c0_64 = arith.constant 0 : index
    %c0_65 = arith.constant 0 : index
    %77 = vector.load %arg15[%c0_63, %c0_64, %c0_65] : memref<4x1x128xf32, #tpu.memory_space<vmem>>, vector<1x1x128xf32>
    %78 = vector.shape_cast %77 : vector<1x1x128xf32> to vector<1x128xf32>
    %79 = vector.broadcast %78 : vector<1x128xf32> to vector<11x128xf32>
    %80 = arith.mulf %76, %79 : vector<11x128xf32>
    %81 = arith.addf %75, %80 : vector<11x128xf32>
    %82 = vector.extract_strided_slice %81 {offsets = [0, 0], sizes = [7, 128], strides = [1, 1]} : vector<11x128xf32> to vector<7x128xf32>
    %83 = vector.extract_strided_slice %81 {offsets = [2, 0], sizes = [7, 128], strides = [1, 1]} : vector<11x128xf32> to vector<7x128xf32>
    %84 = vector.extract_strided_slice %81 {offsets = [4, 0], sizes = [7, 128], strides = [1, 1]} : vector<11x128xf32> to vector<7x128xf32>
    %85 = tpu.concatenate %82, %83, %84 in 1 : vector<7x128xf32>, vector<7x128xf32>, vector<7x128xf32> -> vector<7x384xf32>
    %c1 = arith.constant 1 : index
    %c0_66 = arith.constant 0 : index
    %c0_67 = arith.constant 0 : index
    %86 = vector.load %arg9[%c1, %c0_66, %c0_67] : memref<4x384x256xf32, #tpu.memory_space<vmem>>, vector<1x384x256xf32>
    %87 = vector.shape_cast %86 : vector<1x384x256xf32> to vector<384x256xf32>
    %cst_68 = arith.constant dense<0.000000e+00> : vector<7x256xf32>
    %88 = tpu.matmul %85, %87, %cst_68 {dimension_numbers = #tpu.dot_dimension_numbers<[1], [0], [0], [1], [0, 0, 1, 1], [], []>} : vector<7x384xf32>, vector<384x256xf32>, vector<7x256xf32> -> vector<7x256xf32>
    %c1_69 = arith.constant 1 : index
    %c0_70 = arith.constant 0 : index
    %c0_71 = arith.constant 0 : index
    %89 = vector.load %arg10[%c1_69, %c0_70, %c0_71] : memref<4x1x256xf32, #tpu.memory_space<vmem>>, vector<1x1x256xf32>
    %90 = vector.shape_cast %89 : vector<1x1x256xf32> to vector<1x256xf32>
    %91 = vector.broadcast %90 : vector<1x256xf32> to vector<7x256xf32>
    %92 = arith.addf %88, %91 : vector<7x256xf32>
    %93 = vector.extract_strided_slice %92 {offsets = [0, 0], sizes = [7, 128], strides = [1, 1]} : vector<7x256xf32> to vector<7x128xf32>
    %94 = math.tanh %93 : vector<7x128xf32>
    %95 = vector.extract_strided_slice %92 {offsets = [0, 128], sizes = [7, 128], strides = [1, 1]} : vector<7x256xf32> to vector<7x128xf32>
    %96 = arith.negf %95 : vector<7x128xf32>
    %97 = math.exp %96 : vector<7x128xf32>
    %cst_72 = arith.constant 1.000000e+00 : f32
    %98 = vector.broadcast %cst_72 : f32 to vector<7x128xf32>
    %99 = arith.addf %98, %97 : vector<7x128xf32>
    %100 = arith.divf %98, %99 : vector<7x128xf32>
    %101 = arith.mulf %94, %100 : vector<7x128xf32>
    %c1_73 = arith.constant 1 : index
    %c0_74 = arith.constant 0 : index
    %c0_75 = arith.constant 0 : index
    %102 = vector.load %arg11[%c1_73, %c0_74, %c0_75] : memref<4x128x256xf32, #tpu.memory_space<vmem>>, vector<1x128x256xf32>
    %103 = vector.shape_cast %102 : vector<1x128x256xf32> to vector<128x256xf32>
    %cst_76 = arith.constant dense<0.000000e+00> : vector<7x256xf32>
    %104 = tpu.matmul %101, %103, %cst_76 {dimension_numbers = #tpu.dot_dimension_numbers<[1], [0], [0], [1], [0, 0, 1, 1], [], []>} : vector<7x128xf32>, vector<128x256xf32>, vector<7x256xf32> -> vector<7x256xf32>
    %c1_77 = arith.constant 1 : index
    %c0_78 = arith.constant 0 : index
    %c0_79 = arith.constant 0 : index
    %105 = vector.load %arg12[%c1_77, %c0_78, %c0_79] : memref<4x1x256xf32, #tpu.memory_space<vmem>>, vector<1x1x256xf32>
    %106 = vector.shape_cast %105 : vector<1x1x256xf32> to vector<1x256xf32>
    %107 = vector.broadcast %106 : vector<1x256xf32> to vector<7x256xf32>
    %108 = arith.addf %104, %107 : vector<7x256xf32>
    %109 = vector.extract_strided_slice %63 {offsets = [4, 0], sizes = [7, 256], strides = [1, 1]} : vector<11x256xf32> to vector<7x256xf32>
    %110 = arith.addf %108, %109 : vector<7x256xf32>
    %c0_80 = arith.constant 0 : index
    %c0_81 = arith.constant 0 : index
    %111 = vector.load %arg21[%c0_80, %c0_81] : memref<128x128xf32, #tpu.memory_space<vmem>>, vector<128x128xf32>
    %cst_82 = arith.constant dense<0.000000e+00> : vector<7x128xf32>
    %112 = tpu.matmul %101, %111, %cst_82 {dimension_numbers = #tpu.dot_dimension_numbers<[1], [0], [0], [1], [0, 0, 1, 1], [], []>} : vector<7x128xf32>, vector<128x128xf32>, vector<7x128xf32> -> vector<7x128xf32>
    %c0_83 = arith.constant 0 : index
    %c0_84 = arith.constant 0 : index
    %113 = vector.load %arg22[%c0_83, %c0_84] : memref<128x128xf32, #tpu.memory_space<vmem>>, vector<128x128xf32>
    %cst_85 = arith.constant dense<0.000000e+00> : vector<7x128xf32>
    %114 = tpu.matmul %101, %113, %cst_85 {dimension_numbers = #tpu.dot_dimension_numbers<[1], [0], [0], [1], [0, 0, 1, 1], [], []>} : vector<7x128xf32>, vector<128x128xf32>, vector<7x128xf32> -> vector<7x128xf32>
    %115 = tpu.concatenate %101, %112, %114 in 1 : vector<7x128xf32>, vector<7x128xf32>, vector<7x128xf32> -> vector<7x384xf32>
    %c1_86 = arith.constant 1 : index
    %c0_87 = arith.constant 0 : index
    %c0_88 = arith.constant 0 : index
    %116 = vector.load %arg13[%c1_86, %c0_87, %c0_88] : memref<4x384x128xf32, #tpu.memory_space<vmem>>, vector<1x384x128xf32>
    %117 = vector.shape_cast %116 : vector<1x384x128xf32> to vector<384x128xf32>
    %cst_89 = arith.constant dense<0.000000e+00> : vector<7x128xf32>
    %118 = tpu.matmul %115, %117, %cst_89 {dimension_numbers = #tpu.dot_dimension_numbers<[1], [0], [0], [1], [0, 0, 1, 1], [], []>} : vector<7x384xf32>, vector<384x128xf32>, vector<7x128xf32> -> vector<7x128xf32>
    %c1_90 = arith.constant 1 : index
    %c0_91 = arith.constant 0 : index
    %c0_92 = arith.constant 0 : index
    %119 = vector.load %arg14[%c1_90, %c0_91, %c0_92] : memref<4x1x128xf32, #tpu.memory_space<vmem>>, vector<1x1x128xf32>
    %120 = vector.shape_cast %119 : vector<1x1x128xf32> to vector<1x128xf32>
    %121 = vector.broadcast %120 : vector<1x128xf32> to vector<7x128xf32>
    %122 = arith.addf %118, %121 : vector<7x128xf32>
    %123 = vector.extract_strided_slice %81 {offsets = [4, 0], sizes = [7, 128], strides = [1, 1]} : vector<11x128xf32> to vector<7x128xf32>
    %c1_93 = arith.constant 1 : index
    %c0_94 = arith.constant 0 : index
    %c0_95 = arith.constant 0 : index
    %124 = vector.load %arg15[%c1_93, %c0_94, %c0_95] : memref<4x1x128xf32, #tpu.memory_space<vmem>>, vector<1x1x128xf32>
    %125 = vector.shape_cast %124 : vector<1x1x128xf32> to vector<1x128xf32>
    %126 = vector.broadcast %125 : vector<1x128xf32> to vector<7x128xf32>
    %127 = arith.mulf %123, %126 : vector<7x128xf32>
    %128 = arith.addf %122, %127 : vector<7x128xf32>
    %129 = vector.extract_strided_slice %128 {offsets = [0, 0], sizes = [5, 128], strides = [1, 1]} : vector<7x128xf32> to vector<5x128xf32>
    %130 = vector.extract_strided_slice %128 {offsets = [1, 0], sizes = [5, 128], strides = [1, 1]} : vector<7x128xf32> to vector<5x128xf32>
    %131 = vector.extract_strided_slice %128 {offsets = [2, 0], sizes = [5, 128], strides = [1, 1]} : vector<7x128xf32> to vector<5x128xf32>
    %132 = tpu.concatenate %129, %130, %131 in 1 : vector<5x128xf32>, vector<5x128xf32>, vector<5x128xf32> -> vector<5x384xf32>
    %c2 = arith.constant 2 : index
    %c0_96 = arith.constant 0 : index
    %c0_97 = arith.constant 0 : index
    %133 = vector.load %arg9[%c2, %c0_96, %c0_97] : memref<4x384x256xf32, #tpu.memory_space<vmem>>, vector<1x384x256xf32>
    %134 = vector.shape_cast %133 : vector<1x384x256xf32> to vector<384x256xf32>
    %cst_98 = arith.constant dense<0.000000e+00> : vector<5x256xf32>
    %135 = tpu.matmul %132, %134, %cst_98 {dimension_numbers = #tpu.dot_dimension_numbers<[1], [0], [0], [1], [0, 0, 1, 1], [], []>} : vector<5x384xf32>, vector<384x256xf32>, vector<5x256xf32> -> vector<5x256xf32>
    %c2_99 = arith.constant 2 : index
    %c0_100 = arith.constant 0 : index
    %c0_101 = arith.constant 0 : index
    %136 = vector.load %arg10[%c2_99, %c0_100, %c0_101] : memref<4x1x256xf32, #tpu.memory_space<vmem>>, vector<1x1x256xf32>
    %137 = vector.shape_cast %136 : vector<1x1x256xf32> to vector<1x256xf32>
    %138 = vector.broadcast %137 : vector<1x256xf32> to vector<5x256xf32>
    %139 = arith.addf %135, %138 : vector<5x256xf32>
    %140 = vector.extract_strided_slice %139 {offsets = [0, 0], sizes = [5, 128], strides = [1, 1]} : vector<5x256xf32> to vector<5x128xf32>
    %141 = math.tanh %140 : vector<5x128xf32>
    %142 = vector.extract_strided_slice %139 {offsets = [0, 128], sizes = [5, 128], strides = [1, 1]} : vector<5x256xf32> to vector<5x128xf32>
    %143 = arith.negf %142 : vector<5x128xf32>
    %144 = math.exp %143 : vector<5x128xf32>
    %cst_102 = arith.constant 1.000000e+00 : f32
    %145 = vector.broadcast %cst_102 : f32 to vector<5x128xf32>
    %146 = arith.addf %145, %144 : vector<5x128xf32>
    %147 = arith.divf %145, %146 : vector<5x128xf32>
    %148 = arith.mulf %141, %147 : vector<5x128xf32>
    %c2_103 = arith.constant 2 : index
    %c0_104 = arith.constant 0 : index
    %c0_105 = arith.constant 0 : index
    %149 = vector.load %arg11[%c2_103, %c0_104, %c0_105] : memref<4x128x256xf32, #tpu.memory_space<vmem>>, vector<1x128x256xf32>
    %150 = vector.shape_cast %149 : vector<1x128x256xf32> to vector<128x256xf32>
    %cst_106 = arith.constant dense<0.000000e+00> : vector<5x256xf32>
    %151 = tpu.matmul %148, %150, %cst_106 {dimension_numbers = #tpu.dot_dimension_numbers<[1], [0], [0], [1], [0, 0, 1, 1], [], []>} : vector<5x128xf32>, vector<128x256xf32>, vector<5x256xf32> -> vector<5x256xf32>
    %c2_107 = arith.constant 2 : index
    %c0_108 = arith.constant 0 : index
    %c0_109 = arith.constant 0 : index
    %152 = vector.load %arg12[%c2_107, %c0_108, %c0_109] : memref<4x1x256xf32, #tpu.memory_space<vmem>>, vector<1x1x256xf32>
    %153 = vector.shape_cast %152 : vector<1x1x256xf32> to vector<1x256xf32>
    %154 = vector.broadcast %153 : vector<1x256xf32> to vector<5x256xf32>
    %155 = arith.addf %151, %154 : vector<5x256xf32>
    %156 = vector.extract_strided_slice %110 {offsets = [2, 0], sizes = [5, 256], strides = [1, 1]} : vector<7x256xf32> to vector<5x256xf32>
    %157 = arith.addf %155, %156 : vector<5x256xf32>
    %c0_110 = arith.constant 0 : index
    %c0_111 = arith.constant 0 : index
    %158 = vector.load %arg21[%c0_110, %c0_111] : memref<128x128xf32, #tpu.memory_space<vmem>>, vector<128x128xf32>
    %cst_112 = arith.constant dense<0.000000e+00> : vector<5x128xf32>
    %159 = tpu.matmul %148, %158, %cst_112 {dimension_numbers = #tpu.dot_dimension_numbers<[1], [0], [0], [1], [0, 0, 1, 1], [], []>} : vector<5x128xf32>, vector<128x128xf32>, vector<5x128xf32> -> vector<5x128xf32>
    %c0_113 = arith.constant 0 : index
    %c0_114 = arith.constant 0 : index
    %160 = vector.load %arg22[%c0_113, %c0_114] : memref<128x128xf32, #tpu.memory_space<vmem>>, vector<128x128xf32>
    %cst_115 = arith.constant dense<0.000000e+00> : vector<5x128xf32>
    %161 = tpu.matmul %148, %160, %cst_115 {dimension_numbers = #tpu.dot_dimension_numbers<[1], [0], [0], [1], [0, 0, 1, 1], [], []>} : vector<5x128xf32>, vector<128x128xf32>, vector<5x128xf32> -> vector<5x128xf32>
    %162 = tpu.concatenate %148, %159, %161 in 1 : vector<5x128xf32>, vector<5x128xf32>, vector<5x128xf32> -> vector<5x384xf32>
    %c2_116 = arith.constant 2 : index
    %c0_117 = arith.constant 0 : index
    %c0_118 = arith.constant 0 : index
    %163 = vector.load %arg13[%c2_116, %c0_117, %c0_118] : memref<4x384x128xf32, #tpu.memory_space<vmem>>, vector<1x384x128xf32>
    %164 = vector.shape_cast %163 : vector<1x384x128xf32> to vector<384x128xf32>
    %cst_119 = arith.constant dense<0.000000e+00> : vector<5x128xf32>
    %165 = tpu.matmul %162, %164, %cst_119 {dimension_numbers = #tpu.dot_dimension_numbers<[1], [0], [0], [1], [0, 0, 1, 1], [], []>} : vector<5x384xf32>, vector<384x128xf32>, vector<5x128xf32> -> vector<5x128xf32>
    %c2_120 = arith.constant 2 : index
    %c0_121 = arith.constant 0 : index
    %c0_122 = arith.constant 0 : index
    %166 = vector.load %arg14[%c2_120, %c0_121, %c0_122] : memref<4x1x128xf32, #tpu.memory_space<vmem>>, vector<1x1x128xf32>
    %167 = vector.shape_cast %166 : vector<1x1x128xf32> to vector<1x128xf32>
    %168 = vector.broadcast %167 : vector<1x128xf32> to vector<5x128xf32>
    %169 = arith.addf %165, %168 : vector<5x128xf32>
    %170 = vector.extract_strided_slice %128 {offsets = [2, 0], sizes = [5, 128], strides = [1, 1]} : vector<7x128xf32> to vector<5x128xf32>
    %c2_123 = arith.constant 2 : index
    %c0_124 = arith.constant 0 : index
    %c0_125 = arith.constant 0 : index
    %171 = vector.load %arg15[%c2_123, %c0_124, %c0_125] : memref<4x1x128xf32, #tpu.memory_space<vmem>>, vector<1x1x128xf32>
    %172 = vector.shape_cast %171 : vector<1x1x128xf32> to vector<1x128xf32>
    %173 = vector.broadcast %172 : vector<1x128xf32> to vector<5x128xf32>
    %174 = arith.mulf %170, %173 : vector<5x128xf32>
    %175 = arith.addf %169, %174 : vector<5x128xf32>
    %176 = vector.extract_strided_slice %175 {offsets = [0, 0], sizes = [1, 128], strides = [1, 1]} : vector<5x128xf32> to vector<1x128xf32>
    %177 = vector.extract_strided_slice %175 {offsets = [2, 0], sizes = [1, 128], strides = [1, 1]} : vector<5x128xf32> to vector<1x128xf32>
    %178 = vector.extract_strided_slice %175 {offsets = [4, 0], sizes = [1, 128], strides = [1, 1]} : vector<5x128xf32> to vector<1x128xf32>
    %179 = tpu.concatenate %176, %177, %178 in 1 : vector<1x128xf32>, vector<1x128xf32>, vector<1x128xf32> -> vector<1x384xf32>
    %c3 = arith.constant 3 : index
    %c0_126 = arith.constant 0 : index
    %c0_127 = arith.constant 0 : index
    %180 = vector.load %arg9[%c3, %c0_126, %c0_127] : memref<4x384x256xf32, #tpu.memory_space<vmem>>, vector<1x384x256xf32>
    %181 = vector.shape_cast %180 : vector<1x384x256xf32> to vector<384x256xf32>
    %cst_128 = arith.constant dense<0.000000e+00> : vector<1x256xf32>
    %182 = tpu.matmul %179, %181, %cst_128 {dimension_numbers = #tpu.dot_dimension_numbers<[1], [0], [0], [1], [0, 0, 1, 1], [], []>} : vector<1x384xf32>, vector<384x256xf32>, vector<1x256xf32> -> vector<1x256xf32>
    %c3_129 = arith.constant 3 : index
    %c0_130 = arith.constant 0 : index
    %c0_131 = arith.constant 0 : index
    %183 = vector.load %arg10[%c3_129, %c0_130, %c0_131] : memref<4x1x256xf32, #tpu.memory_space<vmem>>, vector<1x1x256xf32>
    %184 = vector.shape_cast %183 : vector<1x1x256xf32> to vector<1x256xf32>
    %185 = arith.addf %182, %184 : vector<1x256xf32>
    %186 = vector.extract_strided_slice %185 {offsets = [0, 0], sizes = [1, 128], strides = [1, 1]} : vector<1x256xf32> to vector<1x128xf32>
    %187 = math.tanh %186 : vector<1x128xf32>
    %188 = vector.extract_strided_slice %185 {offsets = [0, 128], sizes = [1, 128], strides = [1, 1]} : vector<1x256xf32> to vector<1x128xf32>
    %189 = arith.negf %188 : vector<1x128xf32>
    %190 = math.exp %189 : vector<1x128xf32>
    %cst_132 = arith.constant 1.000000e+00 : f32
    %191 = vector.broadcast %cst_132 : f32 to vector<1x128xf32>
    %192 = arith.addf %191, %190 : vector<1x128xf32>
    %193 = arith.divf %191, %192 : vector<1x128xf32>
    %194 = arith.mulf %187, %193 : vector<1x128xf32>
    %c3_133 = arith.constant 3 : index
    %c0_134 = arith.constant 0 : index
    %c0_135 = arith.constant 0 : index
    %195 = vector.load %arg11[%c3_133, %c0_134, %c0_135] : memref<4x128x256xf32, #tpu.memory_space<vmem>>, vector<1x128x256xf32>
    %196 = vector.shape_cast %195 : vector<1x128x256xf32> to vector<128x256xf32>
    %cst_136 = arith.constant dense<0.000000e+00> : vector<1x256xf32>
    %197 = tpu.matmul %194, %196, %cst_136 {dimension_numbers = #tpu.dot_dimension_numbers<[1], [0], [0], [1], [0, 0, 1, 1], [], []>} : vector<1x128xf32>, vector<128x256xf32>, vector<1x256xf32> -> vector<1x256xf32>
    %c3_137 = arith.constant 3 : index
    %c0_138 = arith.constant 0 : index
    %c0_139 = arith.constant 0 : index
    %198 = vector.load %arg12[%c3_137, %c0_138, %c0_139] : memref<4x1x256xf32, #tpu.memory_space<vmem>>, vector<1x1x256xf32>
    %199 = vector.shape_cast %198 : vector<1x1x256xf32> to vector<1x256xf32>
    %200 = arith.addf %197, %199 : vector<1x256xf32>
    %201 = vector.extract_strided_slice %157 {offsets = [4, 0], sizes = [1, 256], strides = [1, 1]} : vector<5x256xf32> to vector<1x256xf32>
    %202 = arith.addf %200, %201 : vector<1x256xf32>
    %c1_140 = arith.constant 1 : index
    %c0_141 = arith.constant 0 : index
    %c0_142 = arith.constant 0 : index
    %203 = vector.load %arg1[%c1_140, %c0_141, %c0_142] : memref<2x13x8xf32, #tpu.memory_space<vmem>>, vector<1x13x8xf32>
    %204 = vector.shape_cast %203 : vector<1x13x8xf32> to vector<13x8xf32>
    %cst_143 = arith.constant dense<0.000000e+00> : vector<13x128xf32>
    %205 = tpu.matmul %204, %30, %cst_143 {dimension_numbers = #tpu.dot_dimension_numbers<[1], [0], [0], [1], [0, 0, 1, 1], [], []>} : vector<13x8xf32>, vector<8x128xf32>, vector<13x128xf32> -> vector<13x128xf32>
    %206 = vector.broadcast %31 : vector<1x128xf32> to vector<13x128xf32>
    %207 = arith.addf %205, %206 : vector<13x128xf32>
    %208 = vector.extract_strided_slice %207 {offsets = [0, 0], sizes = [11, 128], strides = [1, 1]} : vector<13x128xf32> to vector<11x128xf32>
    %209 = vector.extract_strided_slice %207 {offsets = [1, 0], sizes = [11, 128], strides = [1, 1]} : vector<13x128xf32> to vector<11x128xf32>
    %210 = vector.extract_strided_slice %207 {offsets = [2, 0], sizes = [11, 128], strides = [1, 1]} : vector<13x128xf32> to vector<11x128xf32>
    %211 = tpu.concatenate %208, %209, %210 in 1 : vector<11x128xf32>, vector<11x128xf32>, vector<11x128xf32> -> vector<11x384xf32>
    %c0_144 = arith.constant 0 : index
    %c0_145 = arith.constant 0 : index
    %c0_146 = arith.constant 0 : index
    %212 = vector.load %arg9[%c0_144, %c0_145, %c0_146] : memref<4x384x256xf32, #tpu.memory_space<vmem>>, vector<1x384x256xf32>
    %213 = vector.shape_cast %212 : vector<1x384x256xf32> to vector<384x256xf32>
    %cst_147 = arith.constant dense<0.000000e+00> : vector<11x256xf32>
    %214 = tpu.matmul %211, %213, %cst_147 {dimension_numbers = #tpu.dot_dimension_numbers<[1], [0], [0], [1], [0, 0, 1, 1], [], []>} : vector<11x384xf32>, vector<384x256xf32>, vector<11x256xf32> -> vector<11x256xf32>
    %c0_148 = arith.constant 0 : index
    %c0_149 = arith.constant 0 : index
    %c0_150 = arith.constant 0 : index
    %215 = vector.load %arg10[%c0_148, %c0_149, %c0_150] : memref<4x1x256xf32, #tpu.memory_space<vmem>>, vector<1x1x256xf32>
    %216 = vector.shape_cast %215 : vector<1x1x256xf32> to vector<1x256xf32>
    %217 = vector.broadcast %216 : vector<1x256xf32> to vector<11x256xf32>
    %218 = arith.addf %214, %217 : vector<11x256xf32>
    %219 = vector.extract_strided_slice %218 {offsets = [0, 0], sizes = [11, 128], strides = [1, 1]} : vector<11x256xf32> to vector<11x128xf32>
    %220 = math.tanh %219 : vector<11x128xf32>
    %221 = vector.extract_strided_slice %218 {offsets = [0, 128], sizes = [11, 128], strides = [1, 1]} : vector<11x256xf32> to vector<11x128xf32>
    %222 = arith.negf %221 : vector<11x128xf32>
    %223 = math.exp %222 : vector<11x128xf32>
    %cst_151 = arith.constant 1.000000e+00 : f32
    %224 = vector.broadcast %cst_151 : f32 to vector<11x128xf32>
    %225 = arith.addf %224, %223 : vector<11x128xf32>
    %226 = arith.divf %224, %225 : vector<11x128xf32>
    %227 = arith.mulf %220, %226 : vector<11x128xf32>
    %c0_152 = arith.constant 0 : index
    %c0_153 = arith.constant 0 : index
    %c0_154 = arith.constant 0 : index
    %228 = vector.load %arg11[%c0_152, %c0_153, %c0_154] : memref<4x128x256xf32, #tpu.memory_space<vmem>>, vector<1x128x256xf32>
    %229 = vector.shape_cast %228 : vector<1x128x256xf32> to vector<128x256xf32>
    %cst_155 = arith.constant dense<0.000000e+00> : vector<11x256xf32>
    %230 = tpu.matmul %227, %229, %cst_155 {dimension_numbers = #tpu.dot_dimension_numbers<[1], [0], [0], [1], [0, 0, 1, 1], [], []>} : vector<11x128xf32>, vector<128x256xf32>, vector<11x256xf32> -> vector<11x256xf32>
    %c0_156 = arith.constant 0 : index
    %c0_157 = arith.constant 0 : index
    %c0_158 = arith.constant 0 : index
    %231 = vector.load %arg12[%c0_156, %c0_157, %c0_158] : memref<4x1x256xf32, #tpu.memory_space<vmem>>, vector<1x1x256xf32>
    %232 = vector.shape_cast %231 : vector<1x1x256xf32> to vector<1x256xf32>
    %233 = vector.broadcast %232 : vector<1x256xf32> to vector<11x256xf32>
    %234 = arith.addf %230, %233 : vector<11x256xf32>
    %c0_159 = arith.constant 0 : index
    %c0_160 = arith.constant 0 : index
    %235 = vector.load %arg21[%c0_159, %c0_160] : memref<128x128xf32, #tpu.memory_space<vmem>>, vector<128x128xf32>
    %cst_161 = arith.constant dense<0.000000e+00> : vector<11x128xf32>
    %236 = tpu.matmul %227, %235, %cst_161 {dimension_numbers = #tpu.dot_dimension_numbers<[1], [0], [0], [1], [0, 0, 1, 1], [], []>} : vector<11x128xf32>, vector<128x128xf32>, vector<11x128xf32> -> vector<11x128xf32>
    %c0_162 = arith.constant 0 : index
    %c0_163 = arith.constant 0 : index
    %237 = vector.load %arg22[%c0_162, %c0_163] : memref<128x128xf32, #tpu.memory_space<vmem>>, vector<128x128xf32>
    %cst_164 = arith.constant dense<0.000000e+00> : vector<11x128xf32>
    %238 = tpu.matmul %227, %237, %cst_164 {dimension_numbers = #tpu.dot_dimension_numbers<[1], [0], [0], [1], [0, 0, 1, 1], [], []>} : vector<11x128xf32>, vector<128x128xf32>, vector<11x128xf32> -> vector<11x128xf32>
    %239 = tpu.concatenate %227, %236, %238 in 1 : vector<11x128xf32>, vector<11x128xf32>, vector<11x128xf32> -> vector<11x384xf32>
    %c0_165 = arith.constant 0 : index
    %c0_166 = arith.constant 0 : index
    %c0_167 = arith.constant 0 : index
    %240 = vector.load %arg13[%c0_165, %c0_166, %c0_167] : memref<4x384x128xf32, #tpu.memory_space<vmem>>, vector<1x384x128xf32>
    %241 = vector.shape_cast %240 : vector<1x384x128xf32> to vector<384x128xf32>
    %cst_168 = arith.constant dense<0.000000e+00> : vector<11x128xf32>
    %242 = tpu.matmul %239, %241, %cst_168 {dimension_numbers = #tpu.dot_dimension_numbers<[1], [0], [0], [1], [0, 0, 1, 1], [], []>} : vector<11x384xf32>, vector<384x128xf32>, vector<11x128xf32> -> vector<11x128xf32>
    %c0_169 = arith.constant 0 : index
    %c0_170 = arith.constant 0 : index
    %c0_171 = arith.constant 0 : index
    %243 = vector.load %arg14[%c0_169, %c0_170, %c0_171] : memref<4x1x128xf32, #tpu.memory_space<vmem>>, vector<1x1x128xf32>
    %244 = vector.shape_cast %243 : vector<1x1x128xf32> to vector<1x128xf32>
    %245 = vector.broadcast %244 : vector<1x128xf32> to vector<11x128xf32>
    %246 = arith.addf %242, %245 : vector<11x128xf32>
    %247 = vector.extract_strided_slice %207 {offsets = [2, 0], sizes = [11, 128], strides = [1, 1]} : vector<13x128xf32> to vector<11x128xf32>
    %c0_172 = arith.constant 0 : index
    %c0_173 = arith.constant 0 : index
    %c0_174 = arith.constant 0 : index
    %248 = vector.load %arg15[%c0_172, %c0_173, %c0_174] : memref<4x1x128xf32, #tpu.memory_space<vmem>>, vector<1x1x128xf32>
    %249 = vector.shape_cast %248 : vector<1x1x128xf32> to vector<1x128xf32>
    %250 = vector.broadcast %249 : vector<1x128xf32> to vector<11x128xf32>
    %251 = arith.mulf %247, %250 : vector<11x128xf32>
    %252 = arith.addf %246, %251 : vector<11x128xf32>
    %253 = vector.extract_strided_slice %252 {offsets = [0, 0], sizes = [7, 128], strides = [1, 1]} : vector<11x128xf32> to vector<7x128xf32>
    %254 = vector.extract_strided_slice %252 {offsets = [2, 0], sizes = [7, 128], strides = [1, 1]} : vector<11x128xf32> to vector<7x128xf32>
    %255 = vector.extract_strided_slice %252 {offsets = [4, 0], sizes = [7, 128], strides = [1, 1]} : vector<11x128xf32> to vector<7x128xf32>
    %256 = tpu.concatenate %253, %254, %255 in 1 : vector<7x128xf32>, vector<7x128xf32>, vector<7x128xf32> -> vector<7x384xf32>
    %c1_175 = arith.constant 1 : index
    %c0_176 = arith.constant 0 : index
    %c0_177 = arith.constant 0 : index
    %257 = vector.load %arg9[%c1_175, %c0_176, %c0_177] : memref<4x384x256xf32, #tpu.memory_space<vmem>>, vector<1x384x256xf32>
    %258 = vector.shape_cast %257 : vector<1x384x256xf32> to vector<384x256xf32>
    %cst_178 = arith.constant dense<0.000000e+00> : vector<7x256xf32>
    %259 = tpu.matmul %256, %258, %cst_178 {dimension_numbers = #tpu.dot_dimension_numbers<[1], [0], [0], [1], [0, 0, 1, 1], [], []>} : vector<7x384xf32>, vector<384x256xf32>, vector<7x256xf32> -> vector<7x256xf32>
    %c1_179 = arith.constant 1 : index
    %c0_180 = arith.constant 0 : index
    %c0_181 = arith.constant 0 : index
    %260 = vector.load %arg10[%c1_179, %c0_180, %c0_181] : memref<4x1x256xf32, #tpu.memory_space<vmem>>, vector<1x1x256xf32>
    %261 = vector.shape_cast %260 : vector<1x1x256xf32> to vector<1x256xf32>
    %262 = vector.broadcast %261 : vector<1x256xf32> to vector<7x256xf32>
    %263 = arith.addf %259, %262 : vector<7x256xf32>
    %264 = vector.extract_strided_slice %263 {offsets = [0, 0], sizes = [7, 128], strides = [1, 1]} : vector<7x256xf32> to vector<7x128xf32>
    %265 = math.tanh %264 : vector<7x128xf32>
    %266 = vector.extract_strided_slice %263 {offsets = [0, 128], sizes = [7, 128], strides = [1, 1]} : vector<7x256xf32> to vector<7x128xf32>
    %267 = arith.negf %266 : vector<7x128xf32>
    %268 = math.exp %267 : vector<7x128xf32>
    %cst_182 = arith.constant 1.000000e+00 : f32
    %269 = vector.broadcast %cst_182 : f32 to vector<7x128xf32>
    %270 = arith.addf %269, %268 : vector<7x128xf32>
    %271 = arith.divf %269, %270 : vector<7x128xf32>
    %272 = arith.mulf %265, %271 : vector<7x128xf32>
    %c1_183 = arith.constant 1 : index
    %c0_184 = arith.constant 0 : index
    %c0_185 = arith.constant 0 : index
    %273 = vector.load %arg11[%c1_183, %c0_184, %c0_185] : memref<4x128x256xf32, #tpu.memory_space<vmem>>, vector<1x128x256xf32>
    %274 = vector.shape_cast %273 : vector<1x128x256xf32> to vector<128x256xf32>
    %cst_186 = arith.constant dense<0.000000e+00> : vector<7x256xf32>
    %275 = tpu.matmul %272, %274, %cst_186 {dimension_numbers = #tpu.dot_dimension_numbers<[1], [0], [0], [1], [0, 0, 1, 1], [], []>} : vector<7x128xf32>, vector<128x256xf32>, vector<7x256xf32> -> vector<7x256xf32>
    %c1_187 = arith.constant 1 : index
    %c0_188 = arith.constant 0 : index
    %c0_189 = arith.constant 0 : index
    %276 = vector.load %arg12[%c1_187, %c0_188, %c0_189] : memref<4x1x256xf32, #tpu.memory_space<vmem>>, vector<1x1x256xf32>
    %277 = vector.shape_cast %276 : vector<1x1x256xf32> to vector<1x256xf32>
    %278 = vector.broadcast %277 : vector<1x256xf32> to vector<7x256xf32>
    %279 = arith.addf %275, %278 : vector<7x256xf32>
    %280 = vector.extract_strided_slice %234 {offsets = [4, 0], sizes = [7, 256], strides = [1, 1]} : vector<11x256xf32> to vector<7x256xf32>
    %281 = arith.addf %279, %280 : vector<7x256xf32>
    %c0_190 = arith.constant 0 : index
    %c0_191 = arith.constant 0 : index
    %282 = vector.load %arg21[%c0_190, %c0_191] : memref<128x128xf32, #tpu.memory_space<vmem>>, vector<128x128xf32>
    %cst_192 = arith.constant dense<0.000000e+00> : vector<7x128xf32>
    %283 = tpu.matmul %272, %282, %cst_192 {dimension_numbers = #tpu.dot_dimension_numbers<[1], [0], [0], [1], [0, 0, 1, 1], [], []>} : vector<7x128xf32>, vector<128x128xf32>, vector<7x128xf32> -> vector<7x128xf32>
    %c0_193 = arith.constant 0 : index
    %c0_194 = arith.constant 0 : index
    %284 = vector.load %arg22[%c0_193, %c0_194] : memref<128x128xf32, #tpu.memory_space<vmem>>, vector<128x128xf32>
    %cst_195 = arith.constant dense<0.000000e+00> : vector<7x128xf32>
    %285 = tpu.matmul %272, %284, %cst_195 {dimension_numbers = #tpu.dot_dimension_numbers<[1], [0], [0], [1], [0, 0, 1, 1], [], []>} : vector<7x128xf32>, vector<128x128xf32>, vector<7x128xf32> -> vector<7x128xf32>
    %286 = tpu.concatenate %272, %283, %285 in 1 : vector<7x128xf32>, vector<7x128xf32>, vector<7x128xf32> -> vector<7x384xf32>
    %c1_196 = arith.constant 1 : index
    %c0_197 = arith.constant 0 : index
    %c0_198 = arith.constant 0 : index
    %287 = vector.load %arg13[%c1_196, %c0_197, %c0_198] : memref<4x384x128xf32, #tpu.memory_space<vmem>>, vector<1x384x128xf32>
    %288 = vector.shape_cast %287 : vector<1x384x128xf32> to vector<384x128xf32>
    %cst_199 = arith.constant dense<0.000000e+00> : vector<7x128xf32>
    %289 = tpu.matmul %286, %288, %cst_199 {dimension_numbers = #tpu.dot_dimension_numbers<[1], [0], [0], [1], [0, 0, 1, 1], [], []>} : vector<7x384xf32>, vector<384x128xf32>, vector<7x128xf32> -> vector<7x128xf32>
    %c1_200 = arith.constant 1 : index
    %c0_201 = arith.constant 0 : index
    %c0_202 = arith.constant 0 : index
    %290 = vector.load %arg14[%c1_200, %c0_201, %c0_202] : memref<4x1x128xf32, #tpu.memory_space<vmem>>, vector<1x1x128xf32>
    %291 = vector.shape_cast %290 : vector<1x1x128xf32> to vector<1x128xf32>
    %292 = vector.broadcast %291 : vector<1x128xf32> to vector<7x128xf32>
    %293 = arith.addf %289, %292 : vector<7x128xf32>
    %294 = vector.extract_strided_slice %252 {offsets = [4, 0], sizes = [7, 128], strides = [1, 1]} : vector<11x128xf32> to vector<7x128xf32>
    %c1_203 = arith.constant 1 : index
    %c0_204 = arith.constant 0 : index
    %c0_205 = arith.constant 0 : index
    %295 = vector.load %arg15[%c1_203, %c0_204, %c0_205] : memref<4x1x128xf32, #tpu.memory_space<vmem>>, vector<1x1x128xf32>
    %296 = vector.shape_cast %295 : vector<1x1x128xf32> to vector<1x128xf32>
    %297 = vector.broadcast %296 : vector<1x128xf32> to vector<7x128xf32>
    %298 = arith.mulf %294, %297 : vector<7x128xf32>
    %299 = arith.addf %293, %298 : vector<7x128xf32>
    %300 = vector.extract_strided_slice %299 {offsets = [0, 0], sizes = [5, 128], strides = [1, 1]} : vector<7x128xf32> to vector<5x128xf32>
    %301 = vector.extract_strided_slice %299 {offsets = [1, 0], sizes = [5, 128], strides = [1, 1]} : vector<7x128xf32> to vector<5x128xf32>
    %302 = vector.extract_strided_slice %299 {offsets = [2, 0], sizes = [5, 128], strides = [1, 1]} : vector<7x128xf32> to vector<5x128xf32>
    %303 = tpu.concatenate %300, %301, %302 in 1 : vector<5x128xf32>, vector<5x128xf32>, vector<5x128xf32> -> vector<5x384xf32>
    %c2_206 = arith.constant 2 : index
    %c0_207 = arith.constant 0 : index
    %c0_208 = arith.constant 0 : index
    %304 = vector.load %arg9[%c2_206, %c0_207, %c0_208] : memref<4x384x256xf32, #tpu.memory_space<vmem>>, vector<1x384x256xf32>
    %305 = vector.shape_cast %304 : vector<1x384x256xf32> to vector<384x256xf32>
    %cst_209 = arith.constant dense<0.000000e+00> : vector<5x256xf32>
    %306 = tpu.matmul %303, %305, %cst_209 {dimension_numbers = #tpu.dot_dimension_numbers<[1], [0], [0], [1], [0, 0, 1, 1], [], []>} : vector<5x384xf32>, vector<384x256xf32>, vector<5x256xf32> -> vector<5x256xf32>
    %c2_210 = arith.constant 2 : index
    %c0_211 = arith.constant 0 : index
    %c0_212 = arith.constant 0 : index
    %307 = vector.load %arg10[%c2_210, %c0_211, %c0_212] : memref<4x1x256xf32, #tpu.memory_space<vmem>>, vector<1x1x256xf32>
    %308 = vector.shape_cast %307 : vector<1x1x256xf32> to vector<1x256xf32>
    %309 = vector.broadcast %308 : vector<1x256xf32> to vector<5x256xf32>
    %310 = arith.addf %306, %309 : vector<5x256xf32>
    %311 = vector.extract_strided_slice %310 {offsets = [0, 0], sizes = [5, 128], strides = [1, 1]} : vector<5x256xf32> to vector<5x128xf32>
    %312 = math.tanh %311 : vector<5x128xf32>
    %313 = vector.extract_strided_slice %310 {offsets = [0, 128], sizes = [5, 128], strides = [1, 1]} : vector<5x256xf32> to vector<5x128xf32>
    %314 = arith.negf %313 : vector<5x128xf32>
    %315 = math.exp %314 : vector<5x128xf32>
    %cst_213 = arith.constant 1.000000e+00 : f32
    %316 = vector.broadcast %cst_213 : f32 to vector<5x128xf32>
    %317 = arith.addf %316, %315 : vector<5x128xf32>
    %318 = arith.divf %316, %317 : vector<5x128xf32>
    %319 = arith.mulf %312, %318 : vector<5x128xf32>
    %c2_214 = arith.constant 2 : index
    %c0_215 = arith.constant 0 : index
    %c0_216 = arith.constant 0 : index
    %320 = vector.load %arg11[%c2_214, %c0_215, %c0_216] : memref<4x128x256xf32, #tpu.memory_space<vmem>>, vector<1x128x256xf32>
    %321 = vector.shape_cast %320 : vector<1x128x256xf32> to vector<128x256xf32>
    %cst_217 = arith.constant dense<0.000000e+00> : vector<5x256xf32>
    %322 = tpu.matmul %319, %321, %cst_217 {dimension_numbers = #tpu.dot_dimension_numbers<[1], [0], [0], [1], [0, 0, 1, 1], [], []>} : vector<5x128xf32>, vector<128x256xf32>, vector<5x256xf32> -> vector<5x256xf32>
    %c2_218 = arith.constant 2 : index
    %c0_219 = arith.constant 0 : index
    %c0_220 = arith.constant 0 : index
    %323 = vector.load %arg12[%c2_218, %c0_219, %c0_220] : memref<4x1x256xf32, #tpu.memory_space<vmem>>, vector<1x1x256xf32>
    %324 = vector.shape_cast %323 : vector<1x1x256xf32> to vector<1x256xf32>
    %325 = vector.broadcast %324 : vector<1x256xf32> to vector<5x256xf32>
    %326 = arith.addf %322, %325 : vector<5x256xf32>
    %327 = vector.extract_strided_slice %281 {offsets = [2, 0], sizes = [5, 256], strides = [1, 1]} : vector<7x256xf32> to vector<5x256xf32>
    %328 = arith.addf %326, %327 : vector<5x256xf32>
    %c0_221 = arith.constant 0 : index
    %c0_222 = arith.constant 0 : index
    %329 = vector.load %arg21[%c0_221, %c0_222] : memref<128x128xf32, #tpu.memory_space<vmem>>, vector<128x128xf32>
    %cst_223 = arith.constant dense<0.000000e+00> : vector<5x128xf32>
    %330 = tpu.matmul %319, %329, %cst_223 {dimension_numbers = #tpu.dot_dimension_numbers<[1], [0], [0], [1], [0, 0, 1, 1], [], []>} : vector<5x128xf32>, vector<128x128xf32>, vector<5x128xf32> -> vector<5x128xf32>
    %c0_224 = arith.constant 0 : index
    %c0_225 = arith.constant 0 : index
    %331 = vector.load %arg22[%c0_224, %c0_225] : memref<128x128xf32, #tpu.memory_space<vmem>>, vector<128x128xf32>
    %cst_226 = arith.constant dense<0.000000e+00> : vector<5x128xf32>
    %332 = tpu.matmul %319, %331, %cst_226 {dimension_numbers = #tpu.dot_dimension_numbers<[1], [0], [0], [1], [0, 0, 1, 1], [], []>} : vector<5x128xf32>, vector<128x128xf32>, vector<5x128xf32> -> vector<5x128xf32>
    %333 = tpu.concatenate %319, %330, %332 in 1 : vector<5x128xf32>, vector<5x128xf32>, vector<5x128xf32> -> vector<5x384xf32>
    %c2_227 = arith.constant 2 : index
    %c0_228 = arith.constant 0 : index
    %c0_229 = arith.constant 0 : index
    %334 = vector.load %arg13[%c2_227, %c0_228, %c0_229] : memref<4x384x128xf32, #tpu.memory_space<vmem>>, vector<1x384x128xf32>
    %335 = vector.shape_cast %334 : vector<1x384x128xf32> to vector<384x128xf32>
    %cst_230 = arith.constant dense<0.000000e+00> : vector<5x128xf32>
    %336 = tpu.matmul %333, %335, %cst_230 {dimension_numbers = #tpu.dot_dimension_numbers<[1], [0], [0], [1], [0, 0, 1, 1], [], []>} : vector<5x384xf32>, vector<384x128xf32>, vector<5x128xf32> -> vector<5x128xf32>
    %c2_231 = arith.constant 2 : index
    %c0_232 = arith.constant 0 : index
    %c0_233 = arith.constant 0 : index
    %337 = vector.load %arg14[%c2_231, %c0_232, %c0_233] : memref<4x1x128xf32, #tpu.memory_space<vmem>>, vector<1x1x128xf32>
    %338 = vector.shape_cast %337 : vector<1x1x128xf32> to vector<1x128xf32>
    %339 = vector.broadcast %338 : vector<1x128xf32> to vector<5x128xf32>
    %340 = arith.addf %336, %339 : vector<5x128xf32>
    %341 = vector.extract_strided_slice %299 {offsets = [2, 0], sizes = [5, 128], strides = [1, 1]} : vector<7x128xf32> to vector<5x128xf32>
    %c2_234 = arith.constant 2 : index
    %c0_235 = arith.constant 0 : index
    %c0_236 = arith.constant 0 : index
    %342 = vector.load %arg15[%c2_234, %c0_235, %c0_236] : memref<4x1x128xf32, #tpu.memory_space<vmem>>, vector<1x1x128xf32>
    %343 = vector.shape_cast %342 : vector<1x1x128xf32> to vector<1x128xf32>
    %344 = vector.broadcast %343 : vector<1x128xf32> to vector<5x128xf32>
    %345 = arith.mulf %341, %344 : vector<5x128xf32>
    %346 = arith.addf %340, %345 : vector<5x128xf32>
    %347 = vector.extract_strided_slice %346 {offsets = [0, 0], sizes = [1, 128], strides = [1, 1]} : vector<5x128xf32> to vector<1x128xf32>
    %348 = vector.extract_strided_slice %346 {offsets = [2, 0], sizes = [1, 128], strides = [1, 1]} : vector<5x128xf32> to vector<1x128xf32>
    %349 = vector.extract_strided_slice %346 {offsets = [4, 0], sizes = [1, 128], strides = [1, 1]} : vector<5x128xf32> to vector<1x128xf32>
    %350 = tpu.concatenate %347, %348, %349 in 1 : vector<1x128xf32>, vector<1x128xf32>, vector<1x128xf32> -> vector<1x384xf32>
    %c3_237 = arith.constant 3 : index
    %c0_238 = arith.constant 0 : index
    %c0_239 = arith.constant 0 : index
    %351 = vector.load %arg9[%c3_237, %c0_238, %c0_239] : memref<4x384x256xf32, #tpu.memory_space<vmem>>, vector<1x384x256xf32>
    %352 = vector.shape_cast %351 : vector<1x384x256xf32> to vector<384x256xf32>
    %cst_240 = arith.constant dense<0.000000e+00> : vector<1x256xf32>
    %353 = tpu.matmul %350, %352, %cst_240 {dimension_numbers = #tpu.dot_dimension_numbers<[1], [0], [0], [1], [0, 0, 1, 1], [], []>} : vector<1x384xf32>, vector<384x256xf32>, vector<1x256xf32> -> vector<1x256xf32>
    %c3_241 = arith.constant 3 : index
    %c0_242 = arith.constant 0 : index
    %c0_243 = arith.constant 0 : index
    %354 = vector.load %arg10[%c3_241, %c0_242, %c0_243] : memref<4x1x256xf32, #tpu.memory_space<vmem>>, vector<1x1x256xf32>
    %355 = vector.shape_cast %354 : vector<1x1x256xf32> to vector<1x256xf32>
    %356 = arith.addf %353, %355 : vector<1x256xf32>
    %357 = vector.extract_strided_slice %356 {offsets = [0, 0], sizes = [1, 128], strides = [1, 1]} : vector<1x256xf32> to vector<1x128xf32>
    %358 = math.tanh %357 : vector<1x128xf32>
    %359 = vector.extract_strided_slice %356 {offsets = [0, 128], sizes = [1, 128], strides = [1, 1]} : vector<1x256xf32> to vector<1x128xf32>
    %360 = arith.negf %359 : vector<1x128xf32>
    %361 = math.exp %360 : vector<1x128xf32>
    %cst_244 = arith.constant 1.000000e+00 : f32
    %362 = vector.broadcast %cst_244 : f32 to vector<1x128xf32>
    %363 = arith.addf %362, %361 : vector<1x128xf32>
    %364 = arith.divf %362, %363 : vector<1x128xf32>
    %365 = arith.mulf %358, %364 : vector<1x128xf32>
    %c3_245 = arith.constant 3 : index
    %c0_246 = arith.constant 0 : index
    %c0_247 = arith.constant 0 : index
    %366 = vector.load %arg11[%c3_245, %c0_246, %c0_247] : memref<4x128x256xf32, #tpu.memory_space<vmem>>, vector<1x128x256xf32>
    %367 = vector.shape_cast %366 : vector<1x128x256xf32> to vector<128x256xf32>
    %cst_248 = arith.constant dense<0.000000e+00> : vector<1x256xf32>
    %368 = tpu.matmul %365, %367, %cst_248 {dimension_numbers = #tpu.dot_dimension_numbers<[1], [0], [0], [1], [0, 0, 1, 1], [], []>} : vector<1x128xf32>, vector<128x256xf32>, vector<1x256xf32> -> vector<1x256xf32>
    %c3_249 = arith.constant 3 : index
    %c0_250 = arith.constant 0 : index
    %c0_251 = arith.constant 0 : index
    %369 = vector.load %arg12[%c3_249, %c0_250, %c0_251] : memref<4x1x256xf32, #tpu.memory_space<vmem>>, vector<1x1x256xf32>
    %370 = vector.shape_cast %369 : vector<1x1x256xf32> to vector<1x256xf32>
    %371 = arith.addf %368, %370 : vector<1x256xf32>
    %372 = vector.extract_strided_slice %328 {offsets = [4, 0], sizes = [1, 256], strides = [1, 1]} : vector<5x256xf32> to vector<1x256xf32>
    %373 = arith.addf %371, %372 : vector<1x256xf32>
    %374 = tpu.concatenate %202, %373 in 0 : vector<1x256xf32>, vector<1x256xf32> -> vector<2x256xf32>
    %cst_252 = arith.constant 0.000000e+00 : f32
    %375 = vector.broadcast %cst_252 : f32 to vector<2x256xf32>
    %376 = arith.cmpf ogt, %374, %375 : vector<2x256xf32>
    %cst_253 = arith.constant 0.00999999977 : f32
    %377 = vector.broadcast %cst_253 : f32 to vector<2x256xf32>
    %378 = arith.mulf %377, %374 : vector<2x256xf32>
    %379 = arith.select %376, %374, %378 : vector<2x256xi1>, vector<2x256xf32>
    %c0_254 = arith.constant 0 : index
    %c0_255 = arith.constant 0 : index
    %380 = vector.load %arg16[%c0_254, %c0_255] : memref<256x8xf32, #tpu.memory_space<vmem>>, vector<256x8xf32>
    %cst_256 = arith.constant dense<0.000000e+00> : vector<2x8xf32>
    %381 = tpu.matmul %379, %380, %cst_256 {dimension_numbers = #tpu.dot_dimension_numbers<[1], [0], [0], [1], [0, 0, 1, 1], [], []>} : vector<2x256xf32>, vector<256x8xf32>, vector<2x8xf32> -> vector<2x8xf32>
    %c0_257 = arith.constant 0 : index
    %c0_258 = arith.constant 0 : index
    %382 = vector.load %arg17[%c0_257, %c0_258] : memref<1x8xf32, #tpu.memory_space<vmem>>, vector<1x8xf32>
    %383 = vector.broadcast %382 : vector<1x8xf32> to vector<2x8xf32>
    %384 = arith.addf %381, %383 : vector<2x8xf32>
    %cst_259 = arith.constant 0.000000e+00 : f32
    %385 = vector.broadcast %cst_259 : f32 to vector<2x8xf32>
    %386 = arith.cmpf ogt, %384, %385 : vector<2x8xf32>
    %cst_260 = arith.constant 0.00999999977 : f32
    %387 = vector.broadcast %cst_260 : f32 to vector<2x8xf32>
    %388 = arith.mulf %387, %384 : vector<2x8xf32>
    %389 = arith.select %386, %384, %388 : vector<2x8xi1>, vector<2x8xf32>
    %c0_261 = arith.constant 0 : index
    %c0_262 = arith.constant 0 : index
    %390 = vector.load %arg18[%c0_261, %c0_262] : memref<8x16xf32, #tpu.memory_space<vmem>>, vector<8x16xf32>
    %cst_263 = arith.constant dense<0.000000e+00> : vector<2x16xf32>
    %391 = tpu.matmul %389, %390, %cst_263 {dimension_numbers = #tpu.dot_dimension_numbers<[1], [0], [0], [1], [0, 0, 1, 1], [], []>} : vector<2x8xf32>, vector<8x16xf32>, vector<2x16xf32> -> vector<2x16xf32>
    %c0_264 = arith.constant 0 : index
    %c0_265 = arith.constant 0 : index
    %392 = vector.load %arg19[%c0_264, %c0_265] : memref<1x16xf32, #tpu.memory_space<vmem>>, vector<1x16xf32>
    %393 = vector.broadcast %392 : vector<1x16xf32> to vector<2x16xf32>
    %394 = arith.addf %391, %393 : vector<2x16xf32>
    %c0_266 = arith.constant 0 : index
    %c0_267 = arith.constant 0 : index
    %395 = vector.load %arg20[%c0_266, %c0_267] : memref<2x16xf32, #tpu.memory_space<vmem>>, vector<2x16xf32>
    tpu.vector_store %arg20[%c0_266, %c0_267], %394 {strides = array<i32>} : memref<2x16xf32, #tpu.memory_space<vmem>>, vector<2x16xf32>,
    return
  }
  func.func @transform_0(%arg0: i32) -> (i32, i32, i32) {
    %c0_i32 = arith.constant 0 : i32
    %c0_i32_0 = arith.constant 0 : i32
    %c0_i32_1 = arith.constant 0 : i32
    %c0_i32_2 = arith.constant 0 : i32
    return %c0_i32, %c0_i32_0, %c0_i32_1 : i32, i32, i32
  }
  func.func @transform_1(%arg0: i32) -> (i32, i32) {
    %c0_i32 = arith.constant 0 : i32
    %c0_i32_0 = arith.constant 0 : i32
    %c0_i32_1 = arith.constant 0 : i32
    return %c0_i32, %c0_i32_0 : i32, i32
  }
  func.func @transform_2(%arg0: i32) -> (i32, i32) {
    %c0_i32 = arith.constant 0 : i32
    %c0_i32_0 = arith.constant 0 : i32
    %c0_i32_1 = arith.constant 0 : i32
    return %c0_i32, %c0_i32_0 : i32, i32
  }
  func.func @transform_3(%arg0: i32) -> (i32, i32) {
    %c0_i32 = arith.constant 0 : i32
    %c0_i32_0 = arith.constant 0 : i32
    %c0_i32_1 = arith.constant 0 : i32
    return %c0_i32, %c0_i32_0 : i32, i32
  }
  func.func @transform_4(%arg0: i32) -> (i32, i32) {
    %c0_i32 = arith.constant 0 : i32
    %c0_i32_0 = arith.constant 0 : i32
    %c0_i32_1 = arith.constant 0 : i32
    return %c0_i32, %c0_i32_0 : i32, i32
  }
  func.func @transform_5(%arg0: i32) -> (i32, i32) {
    %c0_i32 = arith.constant 0 : i32
    %c0_i32_0 = arith.constant 0 : i32
    %c0_i32_1 = arith.constant 0 : i32
    return %c0_i32, %c0_i32_0 : i32, i32
  }
  func.func @transform_6(%arg0: i32) -> (i32, i32) {
    %c0_i32 = arith.constant 0 : i32
    %c0_i32_0 = arith.constant 0 : i32
    %c0_i32_1 = arith.constant 0 : i32
    return %c0_i32, %c0_i32_0 : i32, i32
  }
  func.func @transform_7(%arg0: i32) -> (i32, i32) {
    %c0_i32 = arith.constant 0 : i32
    %c0_i32_0 = arith.constant 0 : i32
    %c0_i32_1 = arith.constant 0 : i32
    return %c0_i32, %c0_i32_0 : i32, i32
  }
  func.func @transform_8(%arg0: i32) -> (i32, i32, i32) {
    %c0_i32 = arith.constant 0 : i32
    %c0_i32_0 = arith.constant 0 : i32
    %c0_i32_1 = arith.constant 0 : i32
    %c0_i32_2 = arith.constant 0 : i32
    return %c0_i32, %c0_i32_0, %c0_i32_1 : i32, i32, i32
  }
  func.func @transform_9(%arg0: i32) -> (i32, i32, i32) {
    %c0_i32 = arith.constant 0 : i32
    %c0_i32_0 = arith.constant 0 : i32
    %c0_i32_1 = arith.constant 0 : i32
    %c0_i32_2 = arith.constant 0 : i32
    return %c0_i32, %c0_i32_0, %c0_i32_1 : i32, i32, i32
  }
  func.func @transform_10(%arg0: i32) -> (i32, i32, i32) {
    %c0_i32 = arith.constant 0 : i32
    %c0_i32_0 = arith.constant 0 : i32
    %c0_i32_1 = arith.constant 0 : i32
    %c0_i32_2 = arith.constant 0 : i32
    return %c0_i32, %c0_i32_0, %c0_i32_1 : i32, i32, i32
  }
  func.func @transform_11(%arg0: i32) -> (i32, i32, i32) {
    %c0_i32 = arith.constant 0 : i32
    %c0_i32_0 = arith.constant 0 : i32
    %c0_i32_1 = arith.constant 0 : i32
    %c0_i32_2 = arith.constant 0 : i32
    return %c0_i32, %c0_i32_0, %c0_i32_1 : i32, i32, i32
  }
  func.func @transform_12(%arg0: i32) -> (i32, i32, i32) {
    %c0_i32 = arith.constant 0 : i32
    %c0_i32_0 = arith.constant 0 : i32
    %c0_i32_1 = arith.constant 0 : i32
    %c0_i32_2 = arith.constant 0 : i32
    return %c0_i32, %c0_i32_0, %c0_i32_1 : i32, i32, i32
  }
  func.func @transform_13(%arg0: i32) -> (i32, i32, i32) {
    %c0_i32 = arith.constant 0 : i32
    %c0_i32_0 = arith.constant 0 : i32
    %c0_i32_1 = arith.constant 0 : i32
    %c0_i32_2 = arith.constant 0 : i32
    return %c0_i32, %c0_i32_0, %c0_i32_1 : i32, i32, i32
  }
  func.func @transform_14(%arg0: i32) -> (i32, i32, i32) {
    %c0_i32 = arith.constant 0 : i32
    %c0_i32_0 = arith.constant 0 : i32
    %c0_i32_1 = arith.constant 0 : i32
    %c0_i32_2 = arith.constant 0 : i32
    return %c0_i32, %c0_i32_0, %c0_i32_1 : i32, i32, i32
  }
  func.func @transform_15(%arg0: i32) -> (i32, i32) {
    %c0_i32 = arith.constant 0 : i32
    %c0_i32_0 = arith.constant 0 : i32
    %c0_i32_1 = arith.constant 0 : i32
    return %c0_i32, %c0_i32_0 : i32, i32
  }
  func.func @transform_16(%arg0: i32) -> (i32, i32) {
    %c0_i32 = arith.constant 0 : i32
    %c0_i32_0 = arith.constant 0 : i32
    %c0_i32_1 = arith.constant 0 : i32
    return %c0_i32, %c0_i32_0 : i32, i32
  }
  func.func @transform_17(%arg0: i32) -> (i32, i32) {
    %c0_i32 = arith.constant 0 : i32
    %c0_i32_0 = arith.constant 0 : i32
    %c0_i32_1 = arith.constant 0 : i32
    return %c0_i32, %c0_i32_0 : i32, i32
  }
  func.func @transform_18(%arg0: i32) -> (i32, i32) {
    %c0_i32 = arith.constant 0 : i32
    %c0_i32_0 = arith.constant 0 : i32
    %c0_i32_1 = arith.constant 0 : i32
    return %c0_i32, %c0_i32_0 : i32, i32
  }
  func.func @transform_19(%arg0: i32) -> (i32, i32) {
    %c0_i32 = arith.constant 0 : i32
    %c0_i32_0 = arith.constant 0 : i32
    %c0_i32_1 = arith.constant 0 : i32
    return %c0_i32, %c0_i32_0 : i32, i32
  }
}

</mosaic_0001>

<llo_original>
// kernel: gwnet_forward.1
$region0: #{gwnet_forward.1}
  #allocation0 [shape = 'u32[]', space=smem, size = 0x4, offset = 0x4, fixed_abs, tag = 'smem constant byte address 0x4 - core index']
  #allocation1 [shape = 'u32[144,128]{1,0:T(1,128)}', space=vmem, size = 0x12000, scoped, tag = 'internal scratch']
  #allocation2 [shape = 'f32[128,128]{1,0:T(8,128)}', space=vmem, size = 0x10000, scoped, tag = 'scratch operand']
  #allocation3 [shape = 'f32[128,128]{1,0:T(8,128)}', space=vmem, size = 0x10000, scoped, tag = 'scratch operand']
  %s0 = inlined_call_operand.vmem [shape: f32[2,13,8], index: 0, kind: input, shape index: {}]
  %s1 = inlined_call_operand.hbm [shape: f32[8,8], index: 1, kind: input, shape index: {}]
  %s2 = inlined_call_operand.hbm [shape: f32[8,8], index: 2, kind: input, shape index: {}]
  %s3 = inlined_call_operand.hbm [shape: f32[8,128], index: 3, kind: input, shape index: {}]
  %s4 = inlined_call_operand.vmem [shape: f32[128,8], index: 4, kind: input, shape index: {}]
  %s5 = inlined_call_operand.hbm [shape: f32[128,128], index: 5, kind: input, shape index: {}]
  %s6 = inlined_call_operand.hbm [shape: f32[8,128], index: 6, kind: input, shape index: {}]
  %s7 = inlined_call_operand.hbm [shape: f32[1,128], index: 7, kind: input, shape index: {}]
  %s8 = inlined_call_operand.hbm [shape: f32[4,384,256], index: 8, kind: input, shape index: {}]
  %s9 = inlined_call_operand.hbm [shape: f32[4,1,256], index: 9, kind: input, shape index: {}]
  %s10 = inlined_call_operand.hbm [shape: f32[4,128,256], index: 10, kind: input, shape index: {}]
  %s11 = inlined_call_operand.hbm [shape: f32[4,1,256], index: 11, kind: input, shape index: {}]
  %s12 = inlined_call_operand.hbm [shape: f32[4,384,128], index: 12, kind: input, shape index: {}]
  %s13 = inlined_call_operand.hbm [shape: f32[4,1,128], index: 13, kind: input, shape index: {}]
  %s14 = inlined_call_operand.hbm [shape: f32[4,1,128], index: 14, kind: input, shape index: {}]
  %s15 = inlined_call_operand.vmem [shape: f32[256,8], index: 15, kind: input, shape index: {}]
  %s16 = inlined_call_operand.hbm [shape: f32[1,8], index: 16, kind: input, shape index: {}]
  %s17 = inlined_call_operand.hbm [shape: f32[8,16], index: 17, kind: input, shape index: {}]
  %s18 = inlined_call_operand.hbm [shape: f32[1,16], index: 18, kind: input, shape index: {}]
  %s19 = inlined_call_operand.vmem [shape: f32[2,16], index: 19, kind: output, shape index: {}]
  %s20 = sld [smem:[#allocation0]]
  $region150: #{gwnet_forward.1} parent=0
    _
  %s22 = ssub.s32 1, %s20
  %s23 = scalar_select 0, %s22, %s20
  $region1: #{gwnet_forward.1} parent=0
    #allocation4 [shape = 'u8[4096]{0}', space=vmem, size = 0x1000, scoped, tag = 'input window, operand 1, single buffered']
    #allocation5 [shape = 's32[1]{0}', space=sflag, size = 0x4, scoped, tag = 'scoped memory for gwnet_forward.1']
    #allocation6 [shape = 'u8[4096]{0}', space=vmem, size = 0x1000, scoped, tag = 'input window, operand 2, single buffered']
    #allocation7 [shape = 's32[1]{0}', space=sflag, size = 0x4, scoped, tag = 'scoped memory for gwnet_forward.1']
    #allocation8 [shape = 'u8[4096]{0}', space=vmem, size = 0x1000, scoped, tag = 'input window, operand 3, single buffered']
    #allocation9 [shape = 'u8[65536]{0}', space=vmem, size = 0x10000, scoped, tag = 'input window, operand 5, single buffered']
    #allocation10 [shape = 's32[1]{0}', space=sflag, size = 0x4, scoped, tag = 'scoped memory for gwnet_forward.1']
    #allocation11 [shape = 'u8[4096]{0}', space=vmem, size = 0x1000, scoped, tag = 'input window, operand 6, single buffered']
    #allocation12 [shape = 'u8[512]{0}', space=vmem, size = 0x400, scoped, tag = 'input window, operand 7, single buffered']
    #allocation13 [shape = 's32[1]{0}', space=sflag, size = 0x4, scoped, tag = 'scoped memory for gwnet_forward.1']
    #allocation14 [shape = 'u8[1572864]{0}', space=vmem, size = 0x180000, scoped, tag = 'input window, operand 8, single buffered']
    #allocation15 [shape = 'u8[4096]{0}', space=vmem, size = 0x1000, scoped, tag = 'input window, operand 9, single buffered']
    #allocation16 [shape = 's32[1]{0}', space=sflag, size = 0x4, scoped, tag = 'scoped memory for gwnet_forward.1']
    #allocation17 [shape = 'u8[524288]{0}', space=vmem, size = 0x80000, scoped, tag = 'input window, operand 10, single buffered']
    #allocation18 [shape = 'u8[4096]{0}', space=vmem, size = 0x1000, scoped, tag = 'input window, operand 11, single buffered']
    #allocation19 [shape = 's32[1]{0}', space=sflag, size = 0x4, scoped, tag = 'scoped memory for gwnet_forward.1']
    #allocation20 [shape = 'u8[786432]{0}', space=vmem, size = 0xc0000, scoped, tag = 'input window, operand 12, single buffered']
    #allocation21 [shape = 'u8[2048]{0}', space=vmem, size = 0x800, scoped, tag = 'input window, operand 13, single buffered']
    #allocation22 [shape = 's32[1]{0}', space=sflag, size = 0x4, scoped, tag = 'scoped memory for gwnet_forward.1']
    #allocation23 [shape = 'u8[2048]{0}', space=vmem, size = 0x800, scoped, tag = 'input window, operand 14, single buffered']
    #allocation24 [shape = 'u8[512]{0}', space=vmem, size = 0x400, scoped, tag = 'input window, operand 16, single buffered']
    #allocation25 [shape = 's32[1]{0}', space=sflag, size = 0x4, scoped, tag = 'scoped memory for gwnet_forward.1']
    #allocation26 [shape = 'u8[4096]{0}', space=vmem, size = 0x1000, scoped, tag = 'input window, operand 17, single buffered']
    #allocation27 [shape = 'u8[512]{0}', space=vmem, size = 0x400, scoped, tag = 'input window, operand 18, single buffered']
    #allocation28 [shape = 's32[1]{0}', space=sflag, size = 0x4, scoped, tag = 'scoped memory for gwnet_forward.1']
    %24 = vsyncpa [#allocation5], 0
    %25 = vsyncpa [#allocation7], 0
    %26 = vsyncpa [#allocation10], 0
    %27 = vsyncpa [#allocation13], 0
    %28 = vsyncpa [#allocation16], 0
    %29 = vsyncpa [#allocation19], 0
    %30 = vsyncpa [#allocation22], 0
    %31 = vsyncpa [#allocation25], 0
    %32 = vsyncpa [#allocation28], 0
    // Predicated region
    $region2: #{gwnet_forward.1} parent=1 // pred_check
      _
    $region3: #{gwnet_forward.1} parent=1 // pred_check_branch
      %34 = sbr.rel (0) target = $region5
    $region4: #{gwnet_forward.1} parent=1 // pred_region
      _
    $region5: #{gwnet_forward.1} parent=1 // pred_fallthru
      _
    // Predicated region
    $region6: #{gwnet_forward.1} parent=1 // pred_check
      _
    $region7: #{gwnet_forward.1} parent=1 // pred_check_branch
      %36 = sbr.rel (0) target = $region9
    $region8: #{gwnet_forward.1} parent=1 // pred_region
      %s38 = ssub.s32 128, 128
      %39 = vsyncadd [#allocation5], %s38
      %s41 = sshll.u32 [#allocation4], 4
      %s42 = int_to_ptr.vmem [resolvable:$true] %s41
      %44 = dma.hbm_to_vmem [thread:$0]  %s1, 128, %s42, [#allocation5]
    $region9: #{gwnet_forward.1} parent=1 // pred_fallthru
      _
    // Predicated region
    $region10: #{gwnet_forward.1} parent=1 // pred_check
      _
    $region11: #{gwnet_forward.1} parent=1 // pred_check_branch
      %46 = sbr.rel (0) target = $region13
    $region12: #{gwnet_forward.1} parent=1 // pred_region
      %s48 = ssub.s32 128, 128
      %49 = vsyncadd [#allocation7], %s48
      %s51 = sshll.u32 [#allocation6], 4
      %s52 = int_to_ptr.vmem [resolvable:$true] %s51
      %54 = dma.hbm_to_vmem [thread:$0]  %s2, 128, %s52, [#allocation7]
    $region13: #{gwnet_forward.1} parent=1 // pred_fallthru
      _
    // Predicated region
    $region14: #{gwnet_forward.1} parent=1 // pred_check
      _
    $region15: #{gwnet_forward.1} parent=1 // pred_check_branch
      %56 = sbr.rel (0) target = $region17
    $region16: #{gwnet_forward.1} parent=1 // pred_region
      %s58 = ssub.s32 128, 128
      %59 = vsyncadd [#allocation7], %s58
      %s61 = sshll.u32 [#allocation8], 4
      %s62 = int_to_ptr.vmem [resolvable:$true] %s61
      %64 = dma.hbm_to_vmem [thread:$0]  %s3, 128, %s62, [#allocation7]
    $region17: #{gwnet_forward.1} parent=1 // pred_fallthru
      _
    // Predicated region
    $region18: #{gwnet_forward.1} parent=1 // pred_check
      _
    $region19: #{gwnet_forward.1} parent=1 // pred_check_branch
      %66 = sbr.rel (0) target = $region21
    $region20: #{gwnet_forward.1} parent=1 // pred_region
      _
    $region21: #{gwnet_forward.1} parent=1 // pred_fallthru
      _
    // Predicated region
    $region22: #{gwnet_forward.1} parent=1 // pred_check
      _
    $region23: #{gwnet_forward.1} parent=1 // pred_check_branch
      %68 = sbr.rel (0) target = $region25
    $region24: #{gwnet_forward.1} parent=1 // pred_region
      %s70 = ssub.s32 2048, 2048
      %71 = vsyncadd [#allocation10], %s70
      %s72 = sshll.u32 [#allocation9], 4
      %s73 = int_to_ptr.vmem [resolvable:$true] %s72
      %78 = dma.hbm_to_vmem [thread:$0]  %s5, 2048, %s73, [#allocation10], 128, 128, 8
    $region25: #{gwnet_forward.1} parent=1 // pred_fallthru
      _
    // Predicated region
    $region26: #{gwnet_forward.1} parent=1 // pred_check
      _
    $region27: #{gwnet_forward.1} parent=1 // pred_check_branch
      %80 = sbr.rel (0) target = $region29
    $region28: #{gwnet_forward.1} parent=1 // pred_region
      %s82 = ssub.s32 128, 128
      %83 = vsyncadd [#allocation10], %s82
      %s85 = sshll.u32 [#allocation11], 4
      %s86 = int_to_ptr.vmem [resolvable:$true] %s85
      %88 = dma.hbm_to_vmem [thread:$0]  %s6, 128, %s86, [#allocation10]
    $region29: #{gwnet_forward.1} parent=1 // pred_fallthru
      _
    // Predicated region
    $region30: #{gwnet_forward.1} parent=1 // pred_check
      _
    $region31: #{gwnet_forward.1} parent=1 // pred_check_branch
      %90 = sbr.rel (0) target = $region33
    $region32: #{gwnet_forward.1} parent=1 // pred_region
      %s92 = ssub.s32 16, 16
      %93 = vsyncadd [#allocation13], %s92
      %s95 = sshll.u32 [#allocation12], 4
      %s96 = int_to_ptr.vmem [resolvable:$true] %s95
      %98 = dma.hbm_to_vmem [thread:$0]  %s7, 16, %s96, [#allocation13]
    $region33: #{gwnet_forward.1} parent=1 // pred_fallthru
      _
    // Predicated region
    $region34: #{gwnet_forward.1} parent=1 // pred_check
      _
    $region35: #{gwnet_forward.1} parent=1 // pred_check_branch
      %100 = sbr.rel (0) target = $region37
    $region36: #{gwnet_forward.1} parent=1 // pred_region
      %s102 = ssub.s32 49152, 49152
      %103 = vsyncadd [#allocation13], %s102
      %s104 = sshll.u32 [#allocation14], 4
      %s105 = int_to_ptr.vmem [resolvable:$true] %s104
      %110 = dma.hbm_to_vmem [thread:$0]  %s8, 49152, %s105, [#allocation13], 256, 256, 16
    $region37: #{gwnet_forward.1} parent=1 // pred_fallthru
      _
    // Predicated region
    $region38: #{gwnet_forward.1} parent=1 // pred_check
      _
    $region39: #{gwnet_forward.1} parent=1 // pred_check_branch
      %112 = sbr.rel (0) target = $region41
    $region40: #{gwnet_forward.1} parent=1 // pred_region
      %s114 = ssub.s32 128, 128
      %115 = vsyncadd [#allocation16], %s114
      %s116 = sshll.u32 [#allocation15], 4
      %s117 = int_to_ptr.vmem [resolvable:$true] %s116
      %122 = dma.hbm_to_vmem [thread:$0]  %s9, 128, %s117, [#allocation16], 32, 32, 2
    $region41: #{gwnet_forward.1} parent=1 // pred_fallthru
      _
    // Predicated region
    $region42: #{gwnet_forward.1} parent=1 // pred_check
      _
    $region43: #{gwnet_forward.1} parent=1 // pred_check_branch
      %124 = sbr.rel (0) target = $region45
    $region44: #{gwnet_forward.1} parent=1 // pred_region
      %s126 = ssub.s32 16384, 16384
      %127 = vsyncadd [#allocation16], %s126
      %s128 = sshll.u32 [#allocation17], 4
      %s129 = int_to_ptr.vmem [resolvable:$true] %s128
      %134 = dma.hbm_to_vmem [thread:$0]  %s10, 16384, %s129, [#allocation16], 256, 256, 16
    $region45: #{gwnet_forward.1} parent=1 // pred_fallthru
      _
    // Predicated region
    $region46: #{gwnet_forward.1} parent=1 // pred_check
      _
    $region47: #{gwnet_forward.1} parent=1 // pred_check_branch
      %136 = sbr.rel (0) target = $region49
    $region48: #{gwnet_forward.1} parent=1 // pred_region
      %s138 = ssub.s32 128, 128
      %139 = vsyncadd [#allocation19], %s138
      %s140 = sshll.u32 [#allocation18], 4
      %s141 = int_to_ptr.vmem [resolvable:$true] %s140
      %146 = dma.hbm_to_vmem [thread:$0]  %s11, 128, %s141, [#allocation19], 32, 32, 2
    $region49: #{gwnet_forward.1} parent=1 // pred_fallthru
      _
    // Predicated region
    $region50: #{gwnet_forward.1} parent=1 // pred_check
      _
    $region51: #{gwnet_forward.1} parent=1 // pred_check_branch
      %148 = sbr.rel (0) target = $region53
    $region52: #{gwnet_forward.1} parent=1 // pred_region
      %s150 = ssub.s32 24576, 24576
      %151 = vsyncadd [#allocation19], %s150
      %s152 = sshll.u32 [#allocation20], 4
      %s153 = int_to_ptr.vmem [resolvable:$true] %s152
      %158 = dma.hbm_to_vmem [thread:$0]  %s12, 24576, %s153, [#allocation19], 128, 128, 8
    $region53: #{gwnet_forward.1} parent=1 // pred_fallthru
      _
    // Predicated region
    $region54: #{gwnet_forward.1} parent=1 // pred_check
      _
    $region55: #{gwnet_forward.1} parent=1 // pred_check_branch
      %160 = sbr.rel (0) target = $region57
    $region56: #{gwnet_forward.1} parent=1 // pred_region
      %s162 = ssub.s32 64, 64
      %163 = vsyncadd [#allocation22], %s162
      %s164 = sshll.u32 [#allocation21], 4
      %s165 = int_to_ptr.vmem [resolvable:$true] %s164
      %170 = dma.hbm_to_vmem [thread:$0]  %s13, 64, %s165, [#allocation22], 16, 16, 1
    $region57: #{gwnet_forward.1} parent=1 // pred_fallthru
      _
    // Predicated region
    $region58: #{gwnet_forward.1} parent=1 // pred_check
      _
    $region59: #{gwnet_forward.1} parent=1 // pred_check_branch
      %172 = sbr.rel (0) target = $region61
    $region60: #{gwnet_forward.1} parent=1 // pred_region
      %s174 = ssub.s32 64, 64
      %175 = vsyncadd [#allocation22], %s174
      %s176 = sshll.u32 [#allocation23], 4
      %s177 = int_to_ptr.vmem [resolvable:$true] %s176
      %182 = dma.hbm_to_vmem [thread:$0]  %s14, 64, %s177, [#allocation22], 16, 16, 1
    $region61: #{gwnet_forward.1} parent=1 // pred_fallthru
      _
    // Predicated region
    $region62: #{gwnet_forward.1} parent=1 // pred_check
      _
    $region63: #{gwnet_forward.1} parent=1 // pred_check_branch
      %184 = sbr.rel (0) target = $region65
    $region64: #{gwnet_forward.1} parent=1 // pred_region
      _
    $region65: #{gwnet_forward.1} parent=1 // pred_fallthru
      _
    // Predicated region
    $region66: #{gwnet_forward.1} parent=1 // pred_check
      _
    $region67: #{gwnet_forward.1} parent=1 // pred_check_branch
      %186 = sbr.rel (0) target = $region69
    $region68: #{gwnet_forward.1} parent=1 // pred_region
      %s188 = ssub.s32 16, 16
      %189 = vsyncadd [#allocation25], %s188
      %s191 = sshll.u32 [#allocation24], 4
      %s192 = int_to_ptr.vmem [resolvable:$true] %s191
      %194 = dma.hbm_to_vmem [thread:$0]  %s16, 16, %s192, [#allocation25]
    $region69: #{gwnet_forward.1} parent=1 // pred_fallthru
      _
    // Predicated region
    $region70: #{gwnet_forward.1} parent=1 // pred_check
      _
    $region71: #{gwnet_forward.1} parent=1 // pred_check_branch
      %196 = sbr.rel (0) target = $region73
    $region72: #{gwnet_forward.1} parent=1 // pred_region
      %s198 = ssub.s32 128, 128
      %199 = vsyncadd [#allocation25], %s198
      %s201 = sshll.u32 [#allocation26], 4
      %s202 = int_to_ptr.vmem [resolvable:$true] %s201
      %204 = dma.hbm_to_vmem [thread:$0]  %s17, 128, %s202, [#allocation25]
    $region73: #{gwnet_forward.1} parent=1 // pred_fallthru
      _
    // Predicated region
    $region74: #{gwnet_forward.1} parent=1 // pred_check
      _
    $region75: #{gwnet_forward.1} parent=1 // pred_check_branch
      %206 = sbr.rel (0) target = $region77
    $region76: #{gwnet_forward.1} parent=1 // pred_region
      %s208 = ssub.s32 16, 16
      %209 = vsyncadd [#allocation28], %s208
      %s211 = sshll.u32 [#allocation27], 4
      %s212 = int_to_ptr.vmem [resolvable:$true] %s211
      %214 = dma.hbm_to_vmem [thread:$0]  %s18, 16, %s212, [#allocation28]
    $region77: #{gwnet_forward.1} parent=1 // pred_fallthru
      _
    // Predicated region
    $region78: #{gwnet_forward.1} parent=1 // pred_check
      _
    $region79: #{gwnet_forward.1} parent=1 // pred_check_branch
      %216 = sbr.rel (0) target = $region81
    $region80: #{gwnet_forward.1} parent=1 // pred_region
      %217 = dma.done [#allocation5], 128
    $region81: #{gwnet_forward.1} parent=1 // pred_fallthru
      _
    // Predicated region
    $region82: #{gwnet_forward.1} parent=1 // pred_check
      _
    $region83: #{gwnet_forward.1} parent=1 // pred_check_branch
      %219 = sbr.rel (0) target = $region85
    $region84: #{gwnet_forward.1} parent=1 // pred_region
      %220 = dma.done [#allocation7], 128
    $region85: #{gwnet_forward.1} parent=1 // pred_fallthru
      _
    // Predicated region
    $region86: #{gwnet_forward.1} parent=1 // pred_check
      _
    $region87: #{gwnet_forward.1} parent=1 // pred_check_branch
      %222 = sbr.rel (0) target = $region89
    $region88: #{gwnet_forward.1} parent=1 // pred_region
      %223 = dma.done [#allocation7], 128
    $region89: #{gwnet_forward.1} parent=1 // pred_fallthru
      _
    // Predicated region
    $region90: #{gwnet_forward.1} parent=1 // pred_check
      _
    $region91: #{gwnet_forward.1} parent=1 // pred_check_branch
      %225 = sbr.rel (0) target = $region93
    $region92: #{gwnet_forward.1} parent=1 // pred_region
      %226 = dma.done [#allocation10], 2048
    $region93: #{gwnet_forward.1} parent=1 // pred_fallthru
      _
    // Predicated region
    $region94: #{gwnet_forward.1} parent=1 // pred_check
      _
    $region95: #{gwnet_forward.1} parent=1 // pred_check_branch
      %228 = sbr.rel (0) target = $region97
    $region96: #{gwnet_forward.1} parent=1 // pred_region
      %229 = dma.done [#allocation10], 128
    $region97: #{gwnet_forward.1} parent=1 // pred_fallthru
      _
    // Predicated region
    $region98: #{gwnet_forward.1} parent=1 // pred_check
      _
    $region99: #{gwnet_forward.1} parent=1 // pred_check_branch
      %231 = sbr.rel (0) target = $region101
    $region100: #{gwnet_forward.1} parent=1 // pred_region
      %232 = dma.done [#allocation13], 16
    $region101: #{gwnet_forward.1} parent=1 // pred_fallthru
      _
    // Predicated region
    $region102: #{gwnet_forward.1} parent=1 // pred_check
      _
    $region103: #{gwnet_forward.1} parent=1 // pred_check_branch
      %234 = sbr.rel (0) target = $region105
    $region104: #{gwnet_forward.1} parent=1 // pred_region
      %235 = dma.done [#allocation13], 49152
    $region105: #{gwnet_forward.1} parent=1 // pred_fallthru
      _
    // Predicated region
    $region106: #{gwnet_forward.1} parent=1 // pred_check
      _
    $region107: #{gwnet_forward.1} parent=1 // pred_check_branch
      %237 = sbr.rel (0) target = $region109
    $region108: #{gwnet_forward.1} parent=1 // pred_region
      %238 = dma.done [#allocation16], 128
    $region109: #{gwnet_forward.1} parent=1 // pred_fallthru
      _
    // Predicated region
    $region110: #{gwnet_forward.1} parent=1 // pred_check
      _
    $region111: #{gwnet_forward.1} parent=1 // pred_check_branch
      %240 = sbr.rel (0) target = $region113
    $region112: #{gwnet_forward.1} parent=1 // pred_region
      %241 = dma.done [#allocation16], 16384
    $region113: #{gwnet_forward.1} parent=1 // pred_fallthru
      _
    // Predicated region
    $region114: #{gwnet_forward.1} parent=1 // pred_check
      _
    $region115: #{gwnet_forward.1} parent=1 // pred_check_branch
      %243 = sbr.rel (0) target = $region117
    $region116: #{gwnet_forward.1} parent=1 // pred_region
      %244 = dma.done [#allocation19], 128
    $region117: #{gwnet_forward.1} parent=1 // pred_fallthru
      _
    // Predicated region
    $region118: #{gwnet_forward.1} parent=1 // pred_check
      _
    $region119: #{gwnet_forward.1} parent=1 // pred_check_branch
      %246 = sbr.rel (0) target = $region121
    $region120: #{gwnet_forward.1} parent=1 // pred_region
      %247 = dma.done [#allocation19], 24576
    $region121: #{gwnet_forward.1} parent=1 // pred_fallthru
      _
    // Predicated region
    $region122: #{gwnet_forward.1} parent=1 // pred_check
      _
    $region123: #{gwnet_forward.1} parent=1 // pred_check_branch
      %249 = sbr.rel (0) target = $region125
    $region124: #{gwnet_forward.1} parent=1 // pred_region
      %250 = dma.done [#allocation22], 64
    $region125: #{gwnet_forward.1} parent=1 // pred_fallthru
      _
    // Predicated region
    $region126: #{gwnet_forward.1} parent=1 // pred_check
      _
    $region127: #{gwnet_forward.1} parent=1 // pred_check_branch
      %252 = sbr.rel (0) target = $region129
    $region128: #{gwnet_forward.1} parent=1 // pred_region
      %253 = dma.done [#allocation22], 64
    $region129: #{gwnet_forward.1} parent=1 // pred_fallthru
      _
    // Predicated region
    $region130: #{gwnet_forward.1} parent=1 // pred_check
      _
    $region131: #{gwnet_forward.1} parent=1 // pred_check_branch
      %255 = sbr.rel (0) target = $region133
    $region132: #{gwnet_forward.1} parent=1 // pred_region
      %256 = dma.done [#allocation25], 16
    $region133: #{gwnet_forward.1} parent=1 // pred_fallthru
      _
    // Predicated region
    $region134: #{gwnet_forward.1} parent=1 // pred_check
      _
    $region135: #{gwnet_forward.1} parent=1 // pred_check_branch
      %258 = sbr.rel (0) target = $region137
    $region136: #{gwnet_forward.1} parent=1 // pred_region
      %259 = dma.done [#allocation25], 128
    $region137: #{gwnet_forward.1} parent=1 // pred_fallthru
      _
    // Predicated region
    $region138: #{gwnet_forward.1} parent=1 // pred_check
      _
    $region139: #{gwnet_forward.1} parent=1 // pred_check_branch
      %261 = sbr.rel (0) target = $region141
    $region140: #{gwnet_forward.1} parent=1 // pred_region
      %262 = dma.done [#allocation28], 16
    $region141: #{gwnet_forward.1} parent=1 // pred_fallthru
      _
    %v263 = vld [vmem:[#allocation4] sm:$0xff]
    %v264 = vld [vmem:[#allocation6] sm:$0xff]
    %vm265 = vcmask 64512
    %v267 = vsel %vm265, %v263, 0
    %269 = vmatprep.subr.mxu0 0.0
    %270 = vmatpush1.msra.mxu0 %v264
    %271 = vmatprep.subr.mxu0 0.0
    %272 = vmatpush1.msra.mxu0 0.0
    %273 = vmatprep.subr.mxu0 0.0
    %274 = vmatpush1.msra.mxu0 0.0
    %275 = vmatprep.subr.mxu0 0.0
    %276 = vmatpush1.msra.mxu0 0.0
    %277 = vmatprep.subr.mxu0 0.0
    %278 = vmatpush1.msra.mxu0 0.0
    %279 = vmatprep.subr.mxu0 0.0
    %280 = vmatpush1.msra.mxu0 0.0
    %281 = vmatprep.subr.mxu0 0.0
    %282 = vmatpush1.msra.mxu0 0.0
    %283 = vmatprep.subr.mxu0 0.0
    %284 = vmatpush1.msra.mxu0 0.0
    %285 = vmatprep.subr.mxu0 0.0
    %286 = vmatpush1.msra.mxu0 0.0
    %287 = vmatprep.subr.mxu0 0.0
    %288 = vmatpush1.msra.mxu0 0.0
    %289 = vmatprep.subr.mxu0 0.0
    %290 = vmatpush1.msra.mxu0 0.0
    %291 = vmatprep.subr.mxu0 0.0
    %292 = vmatpush1.msra.mxu0 0.0
    %293 = vmatprep.subr.mxu0 0.0
    %294 = vmatpush1.msra.mxu0 0.0
    %295 = vmatprep.subr.mxu0 0.0
    %296 = vmatpush1.msra.mxu0 0.0
    %297 = vmatprep.subr.mxu0 0.0
    %298 = vmatpush1.msra.mxu0 0.0
    %299 = vmatprep.subr.mxu0 0.0
    %300 = vmatpush1.msra.mxu0 0.0
    %301 = vmatprep.subr.mxu0 0.0
    %302 = vmatpush1.msra.mxu0 0.0
    %303 = vmatprep.subr.mxu0 0.0
    %304 = vmatpush1.msra.mxu0 0.0
    %305 = vmatprep.subr.mxu0 0.0
    %306 = vmatpush1.msra.mxu0 0.0
    %307 = vmatprep.subr.mxu0 0.0
    %308 = vmatpush1.msra.mxu0 0.0
    %309 = vmatprep.subr.mxu0 0.0
    %310 = vmatpush1.msra.mxu0 0.0
    %311 = vmatprep.subr.mxu0 0.0
    %312 = vmatpush1.msra.mxu0 0.0
    %313 = vmatprep.subr.mxu0 0.0
    %314 = vmatpush1.msra.mxu0 0.0
    %315 = vmatprep.subr.mxu0 0.0
    %316 = vmatpush1.msra.mxu0 0.0
    %317 = vmatprep.subr.mxu0 0.0
    %318 = vmatpush1.msra.mxu0 0.0
    %319 = vmatprep.subr.mxu0 0.0
    %320 = vmatpush1.msra.mxu0 0.0
    %321 = vmatprep.subr.mxu0 0.0
    %322 = vmatpush1.msra.mxu0 0.0
    %323 = vmatprep.subr.mxu0 0.0
    %324 = vmatpush1.msra.mxu0 0.0
    %325 = vmatprep.subr.mxu0 0.0
    %326 = vmatpush1.msra.mxu0 0.0
    %327 = vmatprep.subr.mxu0 0.0
    %328 = vmatpush1.msra.mxu0 0.0
    %329 = vmatprep.subr.mxu0 0.0
    %330 = vmatpush1.msra.mxu0 0.0
    %331 = vmatprep.subr.mxu0 0.0
    %332 = vmatpush1.msra.mxu0 0.0
    %333 = vmatprep.mubr.f32.mxu0 0.0
    %334 = vmatmul.mubr.f32.gmra.mrb[0].mxu0 %v267
    %v335 = vpop.f32.mrb[0].mxu0
    %v336 = vadd.f32 0.0, %v335
    %v337 = vpop.f32.mrb[0].mxu0
    %338 = vdwg.mxu0
    %v339 = vmax.f32 %v336, 0.0
    %v340 = vsel %vm265, %v339, -inf
    %341 = vmax.xlane.f32.xlu0 %v340
    %v342 = vpop.xlane.xlu0 %341
    %v343 = vsub.f32 %v339, %v342
    %v344 = vmul.f32 %v343, 1.442695
    %v345 = vpow.pop %v344
    %v346 = vsel %vm265, %v345, 0.0
    %347 = vadd.xlane.f32.xlu0 %v346
    %v348 = vpop.xlane.xlu0 %347
    %v349 = vrcp.pop %v348
    %v350 = vmul.f32 %v345, %v349
    %v352 = vsel %vm265, %v350, 0
    %354 = vmatprep.subr.mxu0 0.0
    %355 = vmatpush1.msra.mxu0 %v350
    %356 = vmatprep.subr.mxu0 0.0
    %357 = vmatpush1.msra.mxu0 0.0
    %358 = vmatprep.subr.mxu0 0.0
    %359 = vmatpush1.msra.mxu0 0.0
    %360 = vmatprep.subr.mxu0 0.0
    %361 = vmatpush1.msra.mxu0 0.0
    %362 = vmatprep.subr.mxu0 0.0
    %363 = vmatpush1.msra.mxu0 0.0
    %364 = vmatprep.subr.mxu0 0.0
    %365 = vmatpush1.msra.mxu0 0.0
    %366 = vmatprep.subr.mxu0 0.0
    %367 = vmatpush1.msra.mxu0 0.0
    %368 = vmatprep.subr.mxu0 0.0
    %369 = vmatpush1.msra.mxu0 0.0
    %370 = vmatprep.subr.mxu0 0.0
    %371 = vmatpush1.msra.mxu0 0.0
    %372 = vmatprep.subr.mxu0 0.0
    %373 = vmatpush1.msra.mxu0 0.0
    %374 = vmatprep.subr.mxu0 0.0
    %375 = vmatpush1.msra.mxu0 0.0
    %376 = vmatprep.subr.mxu0 0.0
    %377 = vmatpush1.msra.mxu0 0.0
    %378 = vmatprep.subr.mxu0 0.0
    %379 = vmatpush1.msra.mxu0 0.0
    %380 = vmatprep.subr.mxu0 0.0
    %381 = vmatpush1.msra.mxu0 0.0
    %382 = vmatprep.subr.mxu0 0.0
    %383 = vmatpush1.msra.mxu0 0.0
    %384 = vmatprep.subr.mxu0 0.0
    %385 = vmatpush1.msra.mxu0 0.0
    %386 = vmatprep.subr.mxu0 0.0
    %387 = vmatpush1.msra.mxu0 0.0
    %388 = vmatprep.subr.mxu0 0.0
    %389 = vmatpush1.msra.mxu0 0.0
    %390 = vmatprep.subr.mxu0 0.0
    %391 = vmatpush1.msra.mxu0 0.0
    %392 = vmatprep.subr.mxu0 0.0
    %393 = vmatpush1.msra.mxu0 0.0
    %394 = vmatprep.subr.mxu0 0.0
    %395 = vmatpush1.msra.mxu0 0.0
    %396 = vmatprep.subr.mxu0 0.0
    %397 = vmatpush1.msra.mxu0 0.0
    %398 = vmatprep.subr.mxu0 0.0
    %399 = vmatpush1.msra.mxu0 0.0
    %400 = vmatprep.subr.mxu0 0.0
    %401 = vmatpush1.msra.mxu0 0.0
    %402 = vmatprep.subr.mxu0 0.0
    %403 = vmatpush1.msra.mxu0 0.0
    %404 = vmatprep.subr.mxu0 0.0
    %405 = vmatpush1.msra.mxu0 0.0
    %406 = vmatprep.subr.mxu0 0.0
    %407 = vmatpush1.msra.mxu0 0.0
    %408 = vmatprep.subr.mxu0 0.0
    %409 = vmatpush1.msra.mxu0 0.0
    %410 = vmatprep.subr.mxu0 0.0
    %411 = vmatpush1.msra.mxu0 0.0
    %412 = vmatprep.subr.mxu0 0.0
    %413 = vmatpush1.msra.mxu0 0.0
    %414 = vmatprep.subr.mxu0 0.0
    %415 = vmatpush1.msra.mxu0 0.0
    %416 = vmatprep.subr.mxu0 0.0
    %417 = vmatpush1.msra.mxu0 0.0
    %418 = vmatprep.mubr.f32.mxu0 0.0
    %419 = vmatmul.mubr.f32.gmra.mrb[0].mxu0 %v352
    %v420 = vpop.f32.mrb[0].mxu0
    %v421 = vadd.f32 0.0, %v420
    %v422 = vpop.f32.mrb[0].mxu0
    %423 = vdwg.mxu0
    %v424 = vld [vmem:[%s4] sm:$0xff]
    %v425 = vld [vmem:[%s4 + $0x8] sm:$0xff]
    %v426 = vld [vmem:[%s4 + $0x10] sm:$0xff]
    %v427 = vld [vmem:[%s4 + $0x18] sm:$0xff]
    %v428 = vld [vmem:[%s4 + $0x20] sm:$0xff]
    %v429 = vld [vmem:[%s4 + $0x28] sm:$0xff]
    %v430 = vld [vmem:[%s4 + $0x30] sm:$0xff]
    %v431 = vld [vmem:[%s4 + $0x38] sm:$0xff]
    %v432 = vld [vmem:[%s4 + $0x40] sm:$0xff]
    %v433 = vld [vmem:[%s4 + $0x48] sm:$0xff]
    %v434 = vld [vmem:[%s4 + $0x50] sm:$0xff]
    %v435 = vld [vmem:[%s4 + $0x58] sm:$0xff]
    %v436 = vld [vmem:[%s4 + $0x60] sm:$0xff]
    %v437 = vld [vmem:[%s4 + $0x68] sm:$0xff]
    %v438 = vld [vmem:[%s4 + $0x70] sm:$0xff]
    %v439 = vld [vmem:[%s4 + $0x78] sm:$0xff]
    %v440 = vld [vmem:[#allocation8] sm:$0xff]
    %441 = vmatprep.subr.mxu0 0.0
    %442 = vmatpush1.msra.mxu0 %v440
    %443 = vmatprep.subr.mxu0 0.0
    %444 = vmatpush1.msra.mxu0 0.0
    %445 = vmatprep.subr.mxu0 0.0
    %446 = vmatpush1.msra.mxu0 0.0
    %447 = vmatprep.subr.mxu0 0.0
    %448 = vmatpush1.msra.mxu0 0.0
    %449 = vmatprep.subr.mxu0 0.0
    %450 = vmatpush1.msra.mxu0 0.0
    %451 = vmatprep.subr.mxu0 0.0
    %452 = vmatpush1.msra.mxu0 0.0
    %453 = vmatprep.subr.mxu0 0.0
    %454 = vmatpush1.msra.mxu0 0.0
    %455 = vmatprep.subr.mxu0 0.0
    %456 = vmatpush1.msra.mxu0 0.0
    %457 = vmatprep.subr.mxu0 0.0
    %458 = vmatpush1.msra.mxu0 0.0
    %459 = vmatprep.subr.mxu0 0.0
    %460 = vmatpush1.msra.mxu0 0.0
    %461 = vmatprep.subr.mxu0 0.0
    %462 = vmatpush1.msra.mxu0 0.0
    %463 = vmatprep.subr.mxu0 0.0
    %464 = vmatpush1.msra.mxu0 0.0
    %465 = vmatprep.subr.mxu0 0.0
    %466 = vmatpush1.msra.mxu0 0.0
    %467 = vmatprep.subr.mxu0 0.0
    %468 = vmatpush1.msra.mxu0 0.0
    %469 = vmatprep.subr.mxu0 0.0
    %470 = vmatpush1.msra.mxu0 0.0
    %471 = vmatprep.subr.mxu0 0.0
    %472 = vmatpush1.msra.mxu0 0.0
    %473 = vmatprep.subr.mxu0 0.0
    %474 = vmatpush1.msra.mxu0 0.0
    %475 = vmatprep.subr.mxu0 0.0
    %476 = vmatpush1.msra.mxu0 0.0
    %477 = vmatprep.subr.mxu0 0.0
    %478 = vmatpush1.msra.mxu0 0.0
    %479 = vmatprep.subr.mxu0 0.0
    %480 = vmatpush1.msra.mxu0 0.0
    %481 = vmatprep.subr.mxu0 0.0
    %482 = vmatpush1.msra.mxu0 0.0
    %483 = vmatprep.subr.mxu0 0.0
    %484 = vmatpush1.msra.mxu0 0.0
    %485 = vmatprep.subr.mxu0 0.0
    %486 = vmatpush1.msra.mxu0 0.0
    %487 = vmatprep.subr.mxu0 0.0
    %488 = vmatpush1.msra.mxu0 0.0
    %489 = vmatprep.subr.mxu0 0.0
    %490 = vmatpush1.msra.mxu0 0.0
    %491 = vmatprep.subr.mxu0 0.0
    %492 = vmatpush1.msra.mxu0 0.0
    %493 = vmatprep.subr.mxu0 0.0
    %494 = vmatpush1.msra.mxu0 0.0
    %495 = vmatprep.subr.mxu0 0.0
    %496 = vmatpush1.msra.mxu0 0.0
    %497 = vmatprep.subr.mxu0 0.0
    %498 = vmatpush1.msra.mxu0 0.0
    %499 = vmatprep.subr.mxu0 0.0
    %500 = vmatpush1.msra.mxu0 0.0
    %501 = vmatprep.subr.mxu0 0.0
    %502 = vmatpush1.msra.mxu0 0.0
    %503 = vmatprep.subr.mxu0 0.0
    %504 = vmatpush1.msra.mxu0 0.0
    %505 = vmatprep.mubr.f32.mxu0 0.0
    %506 = vmatmul.mubr.f32.gmra.mrb[0].mxu0 %v352
    %v507 = vpop.f32.mrb[0].mxu0
    %v508 = vadd.f32 0.0, %v507
    %v509 = vpop.f32.mrb[0].mxu0
    %510 = vdwg.mxu0
    %v512 = vsel %vm265, %v424, 0
    %v515 = vsel %vm265, %v425, 0
    %v518 = vsel %vm265, %v426, 0
    %v521 = vsel %vm265, %v427, 0
    %v524 = vsel %vm265, %v428, 0
    %v527 = vsel %vm265, %v429, 0
    %v530 = vsel %vm265, %v430, 0
    %v533 = vsel %vm265, %v431, 0
    %v536 = vsel %vm265, %v432, 0
    %v539 = vsel %vm265, %v433, 0
    %v542 = vsel %vm265, %v434, 0
    %v545 = vsel %vm265, %v435, 0
    %v548 = vsel %vm265, %v436, 0
    %v551 = vsel %vm265, %v437, 0
    %v554 = vsel %vm265, %v438, 0
    %v557 = vsel %vm265, %v439, 0
    %559 = vmatprep.subr.mxu0 0.0
    %560 = vmatpush1.msra.mxu0 %v508
    %561 = vmatprep.subr.mxu0 0.0
    %562 = vmatpush1.msra.mxu0 0.0
    %563 = vmatprep.subr.mxu0 0.0
    %564 = vmatpush1.msra.mxu0 0.0
    %565 = vmatprep.subr.mxu0 0.0
    %566 = vmatpush1.msra.mxu0 0.0
    %567 = vmatprep.subr.mxu0 0.0
    %568 = vmatpush1.msra.mxu0 0.0
    %569 = vmatprep.subr.mxu0 0.0
    %570 = vmatpush1.msra.mxu0 0.0
    %571 = vmatprep.subr.mxu0 0.0
    %572 = vmatpush1.msra.mxu0 0.0
    %573 = vmatprep.subr.mxu0 0.0
    %574 = vmatpush1.msra.mxu0 0.0
    %575 = vmatprep.subr.mxu0 0.0
    %576 = vmatpush1.msra.mxu0 0.0
    %577 = vmatprep.subr.mxu0 0.0
    %578 = vmatpush1.msra.mxu0 0.0
    %579 = vmatprep.subr.mxu0 0.0
    %580 = vmatpush1.msra.mxu0 0.0
    %581 = vmatprep.subr.mxu0 0.0
    %582 = vmatpush1.msra.mxu0 0.0
    %583 = vmatprep.subr.mxu0 0.0
    %584 = vmatpush1.msra.mxu0 0.0
    %585 = vmatprep.subr.mxu0 0.0
    %586 = vmatpush1.msra.mxu0 0.0
    %587 = vmatprep.subr.mxu0 0.0
    %588 = vmatpush1.msra.mxu0 0.0
    %589 = vmatprep.subr.mxu0 0.0
    %590 = vmatpush1.msra.mxu0 0.0
    %591 = vmatprep.subr.mxu0 0.0
    %592 = vmatpush1.msra.mxu0 0.0
    %593 = vmatprep.subr.mxu0 0.0
    %594 = vmatpush1.msra.mxu0 0.0
    %595 = vmatprep.subr.mxu0 0.0
    %596 = vmatpush1.msra.mxu0 0.0
    %597 = vmatprep.subr.mxu0 0.0
    %598 = vmatpush1.msra.mxu0 0.0
    %599 = vmatprep.subr.mxu0 0.0
    %600 = vmatpush1.msra.mxu0 0.0
    %601 = vmatprep.subr.mxu0 0.0
    %602 = vmatpush1.msra.mxu0 0.0
    %603 = vmatprep.subr.mxu0 0.0
    %604 = vmatpush1.msra.mxu0 0.0
    %605 = vmatprep.subr.mxu0 0.0
    %606 = vmatpush1.msra.mxu0 0.0
    %607 = vmatprep.subr.mxu0 0.0
    %608 = vmatpush1.msra.mxu0 0.0
    %609 = vmatprep.subr.mxu0 0.0
    %610 = vmatpush1.msra.mxu0 0.0
    %611 = vmatprep.subr.mxu0 0.0
    %612 = vmatpush1.msra.mxu0 0.0
    %613 = vmatprep.subr.mxu0 0.0
    %614 = vmatpush1.msra.mxu0 0.0
    %615 = vmatprep.subr.mxu0 0.0
    %616 = vmatpush1.msra.mxu0 0.0
    %617 = vmatprep.subr.mxu0 0.0
    %618 = vmatpush1.msra.mxu0 0.0
    %619 = vmatprep.subr.mxu0 0.0
    %620 = vmatpush1.msra.mxu0 0.0
    %621 = vmatprep.subr.mxu0 0.0
    %622 = vmatpush1.msra.mxu0 0.0
    %623 = vmatprep.mubr.f32.mxu0 0.0
    %624 = vmatmul.mubr.f32.gmra.mrb[0].mxu0 %v512
    %v625 = vpop.f32.mrb[0].mxu0
    %v626 = vadd.f32 0.0, %v625
    %v627 = vpop.f32.mrb[0].mxu0
    %628 = vmatprep.mubr.f32.mxu0 0.0
    %629 = vmatmul.mubr.f32.gmra.mrb[0].mxu0 %v515
    %v630 = vpop.f32.mrb[0].mxu0
    %v631 = vadd.f32 0.0, %v630
    %v632 = vpop.f32.mrb[0].mxu0
    %633 = vmatprep.mubr.f32.mxu0 0.0
    %634 = vmatmul.mubr.f32.gmra.mrb[0].mxu0 %v518
    %v635 = vpop.f32.mrb[0].mxu0
    %v636 = vadd.f32 0.0, %v635
    %v637 = vpop.f32.mrb[0].mxu0
    %638 = vmatprep.mubr.f32.mxu0 0.0
    %639 = vmatmul.mubr.f32.gmra.mrb[0].mxu0 %v521
    %v640 = vpop.f32.mrb[0].mxu0
    %v641 = vadd.f32 0.0, %v640
    %v642 = vpop.f32.mrb[0].mxu0
    %643 = vmatprep.mubr.f32.mxu0 0.0
    %644 = vmatmul.mubr.f32.gmra.mrb[0].mxu0 %v524
    %v645 = vpop.f32.mrb[0].mxu0
    %v646 = vadd.f32 0.0, %v645
    %v647 = vpop.f32.mrb[0].mxu0
    %648 = vmatprep.mubr.f32.mxu0 0.0
    %649 = vmatmul.mubr.f32.gmra.mrb[0].mxu0 %v527
    %v650 = vpop.f32.mrb[0].mxu0
    %v651 = vadd.f32 0.0, %v650
    %v652 = vpop.f32.mrb[0].mxu0
    %653 = vmatprep.mubr.f32.mxu0 0.0
    %654 = vmatmul.mubr.f32.gmra.mrb[0].mxu0 %v530
    %v655 = vpop.f32.mrb[0].mxu0
    %v656 = vadd.f32 0.0, %v655
    %v657 = vpop.f32.mrb[0].mxu0
    %658 = vmatprep.mubr.f32.mxu0 0.0
    %659 = vmatmul.mubr.f32.gmra.mrb[0].mxu0 %v533
    %v660 = vpop.f32.mrb[0].mxu0
    %v661 = vadd.f32 0.0, %v660
    %v662 = vpop.f32.mrb[0].mxu0
    %663 = vmatprep.mubr.f32.mxu0 0.0
    %664 = vmatmul.mubr.f32.gmra.mrb[0].mxu0 %v536
    %v665 = vpop.f32.mrb[0].mxu0
    %v666 = vadd.f32 0.0, %v665
    %v667 = vpop.f32.mrb[0].mxu0
    %668 = vmatprep.mubr.f32.mxu0 0.0
    %669 = vmatmul.mubr.f32.gmra.mrb[0].mxu0 %v539
    %v670 = vpop.f32.mrb[0].mxu0
    %v671 = vadd.f32 0.0, %v670
    %v672 = vpop.f32.mrb[0].mxu0
    %673 = vmatprep.mubr.f32.mxu0 0.0
    %674 = vmatmul.mubr.f32.gmra.mrb[0].mxu0 %v542
    %v675 = vpop.f32.mrb[0].mxu0
    %v676 = vadd.f32 0.0, %v675
    %v677 = vpop.f32.mrb[0].mxu0
    %678 = vmatprep.mubr.f32.mxu0 0.0
    %679 = vmatmul.mubr.f32.gmra.mrb[0].mxu0 %v545
    %v680 = vpop.f32.mrb[0].mxu0
    %v681 = vadd.f32 0.0, %v680
    %v682 = vpop.f32.mrb[0].mxu0
    %683 = vmatprep.mubr.f32.mxu0 0.0
    %684 = vmatmul.mubr.f32.gmra.mrb[0].mxu0 %v548
    %v685 = vpop.f32.mrb[0].mxu0
    %v686 = vadd.f32 0.0, %v685
    %v687 = vpop.f32.mrb[0].mxu0
    %688 = vmatprep.mubr.f32.mxu0 0.0
    %689 = vmatmul.mubr.f32.gmra.mrb[0].mxu0 %v551
    %v690 = vpop.f32.mrb[0].mxu0
    %v691 = vadd.f32 0.0, %v690
    %v692 = vpop.f32.mrb[0].mxu0
    %693 = vmatprep.mubr.f32.mxu0 0.0
    %694 = vmatmul.mubr.f32.gmra.mrb[0].mxu0 %v554
    %v695 = vpop.f32.mrb[0].mxu0
    %v696 = vadd.f32 0.0, %v695
    %v697 = vpop.f32.mrb[0].mxu0
    %698 = vmatprep.mubr.f32.mxu0 0.0
    %699 = vmatmul.mubr.f32.gmra.mrb[0].mxu0 %v557
    %v700 = vpop.f32.mrb[0].mxu0
    %v701 = vadd.f32 0.0, %v700
    %v702 = vpop.f32.mrb[0].mxu0
    %703 = vdwg.mxu0
    %v704 = vld [vmem:[#allocation9] sm:$0xff]
    %v705 = vld [vmem:[#allocation9 + $0x8] sm:$0xff]
    %v706 = vld [vmem:[#allocation9 + $0x10] sm:$0xff]
    %v707 = vld [vmem:[#allocation9 + $0x18] sm:$0xff]
    %v708 = vld [vmem:[#allocation9 + $0x20] sm:$0xff]
    %v709 = vld [vmem:[#allocation9 + $0x28] sm:$0xff]
    %v710 = vld [vmem:[#allocation9 + $0x30] sm:$0xff]
    %v711 = vld [vmem:[#allocation9 + $0x38] sm:$0xff]
    %v712 = vld [vmem:[#allocation9 + $0x40] sm:$0xff]
    %v713 = vld [vmem:[#allocation9 + $0x48] sm:$0xff]
    %v714 = vld [vmem:[#allocation9 + $0x50] sm:$0xff]
    %v715 = vld [vmem:[#allocation9 + $0x58] sm:$0xff]
    %v716 = vld [vmem:[#allocation9 + $0x60] sm:$0xff]
    %v717 = vld [vmem:[#allocation9 + $0x68] sm:$0xff]
    %v718 = vld [vmem:[#allocation9 + $0x70] sm:$0xff]
    %v719 = vld [vmem:[#allocation9 + $0x78] sm:$0xff]
    %v720 = vmul.f32 %v626, %v704
    %v721 = vmul.f32 %v631, %v705
    %v722 = vmul.f32 %v636, %v706
    %v723 = vmul.f32 %v641, %v707
    %v724 = vmul.f32 %v646, %v708
    %v725 = vmul.f32 %v651, %v709
    %v726 = vmul.f32 %v656, %v710
    %v727 = vmul.f32 %v661, %v711
    %v728 = vmul.f32 %v666, %v712
    %v729 = vmul.f32 %v671, %v713
    %v730 = vmul.f32 %v676, %v714
    %v731 = vmul.f32 %v681, %v715
    %v732 = vmul.f32 %v686, %v716
    %v733 = vmul.f32 %v691, %v717
    %v734 = vmul.f32 %v696, %v718
    %v735 = vmul.f32 %v701, %v719
    %736 = vst [vmem:[#allocation2] sm:$0xff] %v720
    %737 = vst [vmem:[#allocation2 + $0x8] sm:$0xff] %v721
    %738 = vst [vmem:[#allocation2 + $0x10] sm:$0xff] %v722
    %739 = vst [vmem:[#allocation2 + $0x18] sm:$0xff] %v723
    %740 = vst [vmem:[#allocation2 + $0x20] sm:$0xff] %v724
    %741 = vst [vmem:[#allocation2 + $0x28] sm:$0xff] %v725
    %742 = vst [vmem:[#allocation2 + $0x30] sm:$0xff] %v726
    %743 = vst [vmem:[#allocation2 + $0x38] sm:$0xff] %v727
    %744 = vst [vmem:[#allocation2 + $0x40] sm:$0xff] %v728
    %745 = vst [vmem:[#allocation2 + $0x48] sm:$0xff] %v729
    %746 = vst [vmem:[#allocation2 + $0x50] sm:$0xff] %v730
    %747 = vst [vmem:[#allocation2 + $0x58] sm:$0xff] %v731
    %748 = vst [vmem:[#allocation2 + $0x60] sm:$0xff] %v732
    %749 = vst [vmem:[#allocation2 + $0x68] sm:$0xff] %v733
    %750 = vst [vmem:[#allocation2 + $0x70] sm:$0xff] %v734
    %751 = vst [vmem:[#allocation2 + $0x78] sm:$0xff] %v735
    %v752 = vld [vmem:[%s4] sm:$0xff]
    %v753 = vld [vmem:[%s4 + $0x8] sm:$0xff]
    %v754 = vld [vmem:[%s4 + $0x10] sm:$0xff]
    %v755 = vld [vmem:[%s4 + $0x18] sm:$0xff]
    %v756 = vld [vmem:[%s4 + $0x20] sm:$0xff]
    %v757 = vld [vmem:[%s4 + $0x28] sm:$0xff]
    %v758 = vld [vmem:[%s4 + $0x30] sm:$0xff]
    %v759 = vld [vmem:[%s4 + $0x38] sm:$0xff]
    %v760 = vld [vmem:[%s4 + $0x40] sm:$0xff]
    %v761 = vld [vmem:[%s4 + $0x48] sm:$0xff]
    %v762 = vld [vmem:[%s4 + $0x50] sm:$0xff]
    %v763 = vld [vmem:[%s4 + $0x58] sm:$0xff]
    %v764 = vld [vmem:[%s4 + $0x60] sm:$0xff]
    %v765 = vld [vmem:[%s4 + $0x68] sm:$0xff]
    %v766 = vld [vmem:[%s4 + $0x70] sm:$0xff]
    %v767 = vld [vmem:[%s4 + $0x78] sm:$0xff]
    %v768 = vld [vmem:[#allocation8] sm:$0xff]
    %v770 = vsel %vm265, %v421, 0
    %772 = vmatprep.subr.mxu0 0.0
    %773 = vmatpush1.msra.mxu0 %v768
    %774 = vmatprep.subr.mxu0 0.0
    %775 = vmatpush1.msra.mxu0 0.0
    %776 = vmatprep.subr.mxu0 0.0
    %777 = vmatpush1.msra.mxu0 0.0
    %778 = vmatprep.subr.mxu0 0.0
    %779 = vmatpush1.msra.mxu0 0.0
    %780 = vmatprep.subr.mxu0 0.0
    %781 = vmatpush1.msra.mxu0 0.0
    %782 = vmatprep.subr.mxu0 0.0
    %783 = vmatpush1.msra.mxu0 0.0
    %784 = vmatprep.subr.mxu0 0.0
    %785 = vmatpush1.msra.mxu0 0.0
    %786 = vmatprep.subr.mxu0 0.0
    %787 = vmatpush1.msra.mxu0 0.0
    %788 = vmatprep.subr.mxu0 0.0
    %789 = vmatpush1.msra.mxu0 0.0
    %790 = vmatprep.subr.mxu0 0.0
    %791 = vmatpush1.msra.mxu0 0.0
    %792 = vmatprep.subr.mxu0 0.0
    %793 = vmatpush1.msra.mxu0 0.0
    %794 = vmatprep.subr.mxu0 0.0
    %795 = vmatpush1.msra.mxu0 0.0
    %796 = vmatprep.subr.mxu0 0.0
    %797 = vmatpush1.msra.mxu0 0.0
    %798 = vmatprep.subr.mxu0 0.0
    %799 = vmatpush1.msra.mxu0 0.0
    %800 = vmatprep.subr.mxu0 0.0
    %801 = vmatpush1.msra.mxu0 0.0
    %802 = vmatprep.subr.mxu0 0.0
    %803 = vmatpush1.msra.mxu0 0.0
    %804 = vmatprep.subr.mxu0 0.0
    %805 = vmatpush1.msra.mxu0 0.0
    %806 = vmatprep.subr.mxu0 0.0
    %807 = vmatpush1.msra.mxu0 0.0
    %808 = vmatprep.subr.mxu0 0.0
    %809 = vmatpush1.msra.mxu0 0.0
    %810 = vmatprep.subr.mxu0 0.0
    %811 = vmatpush1.msra.mxu0 0.0
    %812 = vmatprep.subr.mxu0 0.0
    %813 = vmatpush1.msra.mxu0 0.0
    %814 = vmatprep.subr.mxu0 0.0
    %815 = vmatpush1.msra.mxu0 0.0
    %816 = vmatprep.subr.mxu0 0.0
    %817 = vmatpush1.msra.mxu0 0.0
    %818 = vmatprep.subr.mxu0 0.0
    %819 = vmatpush1.msra.mxu0 0.0
    %820 = vmatprep.subr.mxu0 0.0
    %821 = vmatpush1.msra.mxu0 0.0
    %822 = vmatprep.subr.mxu0 0.0
    %823 = vmatpush1.msra.mxu0 0.0
    %824 = vmatprep.subr.mxu0 0.0
    %825 = vmatpush1.msra.mxu0 0.0
    %826 = vmatprep.subr.mxu0 0.0
    %827 = vmatpush1.msra.mxu0 0.0
    %828 = vmatprep.subr.mxu0 0.0
    %829 = vmatpush1.msra.mxu0 0.0
    %830 = vmatprep.subr.mxu0 0.0
    %831 = vmatpush1.msra.mxu0 0.0
    %832 = vmatprep.subr.mxu0 0.0
    %833 = vmatpush1.msra.mxu0 0.0
    %834 = vmatprep.subr.mxu0 0.0
    %835 = vmatpush1.msra.mxu0 0.0
    %836 = vmatprep.mubr.f32.mxu0 0.0
    %837 = vmatmul.mubr.f32.gmra.mrb[0].mxu0 %v770
    %v838 = vpop.f32.mrb[0].mxu0
    %v839 = vadd.f32 0.0, %v838
    %v840 = vpop.f32.mrb[0].mxu0
    %841 = vdwg.mxu0
    %v843 = vsel %vm265, %v752, 0
    %v846 = vsel %vm265, %v753, 0
    %v849 = vsel %vm265, %v754, 0
    %v852 = vsel %vm265, %v755, 0
    %v855 = vsel %vm265, %v756, 0
    %v858 = vsel %vm265, %v757, 0
    %v861 = vsel %vm265, %v758, 0
    %v864 = vsel %vm265, %v759, 0
    %v867 = vsel %vm265, %v760, 0
    %v870 = vsel %vm265, %v761, 0
    %v873 = vsel %vm265, %v762, 0
    %v876 = vsel %vm265, %v763, 0
    %v879 = vsel %vm265, %v764, 0
    %v882 = vsel %vm265, %v765, 0
    %v885 = vsel %vm265, %v766, 0
    %v888 = vsel %vm265, %v767, 0
    %890 = vmatprep.subr.mxu0 0.0
    %891 = vmatpush1.msra.mxu0 %v839
    %892 = vmatprep.subr.mxu0 0.0
    %893 = vmatpush1.msra.mxu0 0.0
    %894 = vmatprep.subr.mxu0 0.0
    %895 = vmatpush1.msra.mxu0 0.0
    %896 = vmatprep.subr.mxu0 0.0
    %897 = vmatpush1.msra.mxu0 0.0
    %898 = vmatprep.subr.mxu0 0.0
    %899 = vmatpush1.msra.mxu0 0.0
    %900 = vmatprep.subr.mxu0 0.0
    %901 = vmatpush1.msra.mxu0 0.0
    %902 = vmatprep.subr.mxu0 0.0
    %903 = vmatpush1.msra.mxu0 0.0
    %904 = vmatprep.subr.mxu0 0.0
    %905 = vmatpush1.msra.mxu0 0.0
    %906 = vmatprep.subr.mxu0 0.0
    %907 = vmatpush1.msra.mxu0 0.0
    %908 = vmatprep.subr.mxu0 0.0
    %909 = vmatpush1.msra.mxu0 0.0
    %910 = vmatprep.subr.mxu0 0.0
    %911 = vmatpush1.msra.mxu0 0.0
    %912 = vmatprep.subr.mxu0 0.0
    %913 = vmatpush1.msra.mxu0 0.0
    %914 = vmatprep.subr.mxu0 0.0
    %915 = vmatpush1.msra.mxu0 0.0
    %916 = vmatprep.subr.mxu0 0.0
    %917 = vmatpush1.msra.mxu0 0.0
    %918 = vmatprep.subr.mxu0 0.0
    %919 = vmatpush1.msra.mxu0 0.0
    %920 = vmatprep.subr.mxu0 0.0
    %921 = vmatpush1.msra.mxu0 0.0
    %922 = vmatprep.subr.mxu0 0.0
    %923 = vmatpush1.msra.mxu0 0.0
    %924 = vmatprep.subr.mxu0 0.0
    %925 = vmatpush1.msra.mxu0 0.0
    %926 = vmatprep.subr.mxu0 0.0
    %927 = vmatpush1.msra.mxu0 0.0
    %928 = vmatprep.subr.mxu0 0.0
    %929 = vmatpush1.msra.mxu0 0.0
    %930 = vmatprep.subr.mxu0 0.0
    %931 = vmatpush1.msra.mxu0 0.0
    %932 = vmatprep.subr.mxu0 0.0
    %933 = vmatpush1.msra.mxu0 0.0
    %934 = vmatprep.subr.mxu0 0.0
    %935 = vmatpush1.msra.mxu0 0.0
    %936 = vmatprep.subr.mxu0 0.0
    %937 = vmatpush1.msra.mxu0 0.0
    %938 = vmatprep.subr.mxu0 0.0
    %939 = vmatpush1.msra.mxu0 0.0
    %940 = vmatprep.subr.mxu0 0.0
    %941 = vmatpush1.msra.mxu0 0.0
    %942 = vmatprep.subr.mxu0 0.0
    %943 = vmatpush1.msra.mxu0 0.0
    %944 = vmatprep.subr.mxu0 0.0
    %945 = vmatpush1.msra.mxu0 0.0
    %946 = vmatprep.subr.mxu0 0.0
    %947 = vmatpush1.msra.mxu0 0.0
    %948 = vmatprep.subr.mxu0 0.0
    %949 = vmatpush1.msra.mxu0 0.0
    %950 = vmatprep.subr.mxu0 0.0
    %951 = vmatpush1.msra.mxu0 0.0
    %952 = vmatprep.subr.mxu0 0.0
    %953 = vmatpush1.msra.mxu0 0.0
    %954 = vmatprep.mubr.f32.mxu0 0.0
    %955 = vmatmul.mubr.f32.gmra.mrb[0].mxu0 %v843
    %v956 = vpop.f32.mrb[0].mxu0
    %v957 = vadd.f32 0.0, %v956
    %v958 = vpop.f32.mrb[0].mxu0
    %959 = vmatprep.mubr.f32.mxu0 0.0
    %960 = vmatmul.mubr.f32.gmra.mrb[0].mxu0 %v846
    %v961 = vpop.f32.mrb[0].mxu0
    %v962 = vadd.f32 0.0, %v961
    %v963 = vpop.f32.mrb[0].mxu0
    %964 = vmatprep.mubr.f32.mxu0 0.0
    %965 = vmatmul.mubr.f32.gmra.mrb[0].mxu0 %v849
    %v966 = vpop.f32.mrb[0].mxu0
    %v967 = vadd.f32 0.0, %v966
    %v968 = vpop.f32.mrb[0].mxu0
    %969 = vmatprep.mubr.f32.mxu0 0.0
    %970 = vmatmul.mubr.f32.gmra.mrb[0].mxu0 %v852
    %v971 = vpop.f32.mrb[0].mxu0
    %v972 = vadd.f32 0.0, %v971
    %v973 = vpop.f32.mrb[0].mxu0
    %974 = vmatprep.mubr.f32.mxu0 0.0
    %975 = vmatmul.mubr.f32.gmra.mrb[0].mxu0 %v855
    %v976 = vpop.f32.mrb[0].mxu0
    %v977 = vadd.f32 0.0, %v976
    %v978 = vpop.f32.mrb[0].mxu0
    %979 = vmatprep.mubr.f32.mxu0 0.0
    %980 = vmatmul.mubr.f32.gmra.mrb[0].mxu0 %v858
    %v981 = vpop.f32.mrb[0].mxu0
    %v982 = vadd.f32 0.0, %v981
    %v983 = vpop.f32.mrb[0].mxu0
    %984 = vmatprep.mubr.f32.mxu0 0.0
    %985 = vmatmul.mubr.f32.gmra.mrb[0].mxu0 %v861
    %v986 = vpop.f32.mrb[0].mxu0
    %v987 = vadd.f32 0.0, %v986
    %v988 = vpop.f32.mrb[0].mxu0
    %989 = vmatprep.mubr.f32.mxu0 0.0
    %990 = vmatmul.mubr.f32.gmra.mrb[0].mxu0 %v864
    %v991 = vpop.f32.mrb[0].mxu0
    %v992 = vadd.f32 0.0, %v991
    %v993 = vpop.f32.mrb[0].mxu0
    %994 = vmatprep.mubr.f32.mxu0 0.0
    %995 = vmatmul.mubr.f32.gmra.mrb[0].mxu0 %v867
    %v996 = vpop.f32.mrb[0].mxu0
    %v997 = vadd.f32 0.0, %v996
    %v998 = vpop.f32.mrb[0].mxu0
    %999 = vmatprep.mubr.f32.mxu0 0.0
    %1000 = vmatmul.mubr.f32.gmra.mrb[0].mxu0 %v870
    %v1001 = vpop.f32.mrb[0].mxu0
    %v1002 = vadd.f32 0.0, %v1001
    %v1003 = vpop.f32.mrb[0].mxu0
    %1004 = vmatprep.mubr.f32.mxu0 0.0
    %1005 = vmatmul.mubr.f32.gmra.mrb[0].mxu0 %v873
    %v1006 = vpop.f32.mrb[0].mxu0
    %v1007 = vadd.f32 0.0, %v1006
    %v1008 = vpop.f32.mrb[0].mxu0
    %1009 = vmatprep.mubr.f32.mxu0 0.0
    %1010 = vmatmul.mubr.f32.gmra.mrb[0].mxu0 %v876
    %v1011 = vpop.f32.mrb[0].mxu0
    %v1012 = vadd.f32 0.0, %v1011
    %v1013 = vpop.f32.mrb[0].mxu0
    %1014 = vmatprep.mubr.f32.mxu0 0.0
    %1015 = vmatmul.mubr.f32.gmra.mrb[0].mxu0 %v879
    %v1016 = vpop.f32.mrb[0].mxu0
    %v1017 = vadd.f32 0.0, %v1016
    %v1018 = vpop.f32.mrb[0].mxu0
    %1019 = vmatprep.mubr.f32.mxu0 0.0
    %1020 = vmatmul.mubr.f32.gmra.mrb[0].mxu0 %v882
    %v1021 = vpop.f32.mrb[0].mxu0
    %v1022 = vadd.f32 0.0, %v1021
    %v1023 = vpop.f32.mrb[0].mxu0
    %1024 = vmatprep.mubr.f32.mxu0 0.0
    %1025 = vmatmul.mubr.f32.gmra.mrb[0].mxu0 %v885
    %v1026 = vpop.f32.mrb[0].mxu0
    %v1027 = vadd.f32 0.0, %v1026
    %v1028 = vpop.f32.mrb[0].mxu0
    %1029 = vmatprep.mubr.f32.mxu0 0.0
    %1030 = vmatmul.mubr.f32.gmra.mrb[0].mxu0 %v888
    %v1031 = vpop.f32.mrb[0].mxu0
    %v1032 = vadd.f32 0.0, %v1031
    %v1033 = vpop.f32.mrb[0].mxu0
    %1034 = vdwg.mxu0
    %v1035 = vld [vmem:[#allocation9] sm:$0xff]
    %v1036 = vld [vmem:[#allocation9 + $0x8] sm:$0xff]
    %v1037 = vld [vmem:[#allocation9 + $0x10] sm:$0xff]
    %v1038 = vld [vmem:[#allocation9 + $0x18] sm:$0xff]
    %v1039 = vld [vmem:[#allocation9 + $0x20] sm:$0xff]
    %v1040 = vld [vmem:[#allocation9 + $0x28] sm:$0xff]
    %v1041 = vld [vmem:[#allocation9 + $0x30] sm:$0xff]
    %v1042 = vld [vmem:[#allocation9 + $0x38] sm:$0xff]
    %v1043 = vld [vmem:[#allocation9 + $0x40] sm:$0xff]
    %v1044 = vld [vmem:[#allocation9 + $0x48] sm:$0xff]
    %v1045 = vld [vmem:[#allocation9 + $0x50] sm:$0xff]
    %v1046 = vld [vmem:[#allocation9 + $0x58] sm:$0xff]
    %v1047 = vld [vmem:[#allocation9 + $0x60] sm:$0xff]
    %v1048 = vld [vmem:[#allocation9 + $0x68] sm:$0xff]
    %v1049 = vld [vmem:[#allocation9 + $0x70] sm:$0xff]
    %v1050 = vld [vmem:[#allocation9 + $0x78] sm:$0xff]
    %v1051 = vmul.f32 %v957, %v1035
    %v1052 = vmul.f32 %v962, %v1036
    %v1053 = vmul.f32 %v967, %v1037
    %v1054 = vmul.f32 %v972, %v1038
    %v1055 = vmul.f32 %v977, %v1039
    %v1056 = vmul.f32 %v982, %v1040
    %v1057 = vmul.f32 %v987, %v1041
    %v1058 = vmul.f32 %v992, %v1042
    %v1059 = vmul.f32 %v997, %v1043
    %v1060 = vmul.f32 %v1002, %v1044
    %v1061 = vmul.f32 %v1007, %v1045
    %v1062 = vmul.f32 %v1012, %v1046
    %v1063 = vmul.f32 %v1017, %v1047
    %v1064 = vmul.f32 %v1022, %v1048
    %v1065 = vmul.f32 %v1027, %v1049
    %v1066 = vmul.f32 %v1032, %v1050
    %1067 = vst [vmem:[#allocation3] sm:$0xff] %v1051
    %1068 = vst [vmem:[#allocation3 + $0x8] sm:$0xff] %v1052
    %1069 = vst [vmem:[#allocation3 + $0x10] sm:$0xff] %v1053
    %1070 = vst [vmem:[#allocation3 + $0x18] sm:$0xff] %v1054
    %1071 = vst [vmem:[#allocation3 + $0x20] sm:$0xff] %v1055
    %1072 = vst [vmem:[#allocation3 + $0x28] sm:$0xff] %v1056
    %1073 = vst [vmem:[#allocation3 + $0x30] sm:$0xff] %v1057
    %1074 = vst [vmem:[#allocation3 + $0x38] sm:$0xff] %v1058
    %1075 = vst [vmem:[#allocation3 + $0x40] sm:$0xff] %v1059
    %1076 = vst [vmem:[#allocation3 + $0x48] sm:$0xff] %v1060
    %1077 = vst [vmem:[#allocation3 + $0x50] sm:$0xff] %v1061
    %1078 = vst [vmem:[#allocation3 + $0x58] sm:$0xff] %v1062
    %1079 = vst [vmem:[#allocation3 + $0x60] sm:$0xff] %v1063
    %1080 = vst [vmem:[#allocation3 + $0x68] sm:$0xff] %v1064
    %1081 = vst [vmem:[#allocation3 + $0x70] sm:$0xff] %v1065
    %1082 = vst [vmem:[#allocation3 + $0x78] sm:$0xff] %v1066
    %v1083 = vld [vmem:[#allocation11] sm:$0xff]
    %v1084 = vld [vmem:[#allocation12] sm:$0x1]
    %v1085 = vld [vmem:[%s0] sm:$0xff]
    %v1086 = vld [vmem:[%s0 + $0x8] sm:$0x1f]
    %v1088 = vlaneseq
    %v1089 = vshrl.u32 %v1088, 7
    %v1090 = vsub.s32 0, %v1089
    %v1091 = vrot.slane %v1084, %v1090
    %v1094 = vsel %vm265, %v1085, 0
    %v1097 = vsel %vm265, %v1086, 0
    %1099 = vmatprep.subr.mxu0 0.0
    %1100 = vmatpush1.msra.mxu0 %v1083
    %1101 = vmatprep.subr.mxu0 0.0
    %1102 = vmatpush1.msra.mxu0 0.0
    %1103 = vmatprep.subr.mxu0 0.0
    %1104 = vmatpush1.msra.mxu0 0.0
    %1105 = vmatprep.subr.mxu0 0.0
    %1106 = vmatpush1.msra.mxu0 0.0
    %1107 = vmatprep.subr.mxu0 0.0
    %1108 = vmatpush1.msra.mxu0 0.0
    %1109 = vmatprep.subr.mxu0 0.0
    %1110 = vmatpush1.msra.mxu0 0.0
    %1111 = vmatprep.subr.mxu0 0.0
    %1112 = vmatpush1.msra.mxu0 0.0
    %1113 = vmatprep.subr.mxu0 0.0
    %1114 = vmatpush1.msra.mxu0 0.0
    %1115 = vmatprep.subr.mxu0 0.0
    %1116 = vmatpush1.msra.mxu0 0.0
    %1117 = vmatprep.subr.mxu0 0.0
    %1118 = vmatpush1.msra.mxu0 0.0
    %1119 = vmatprep.subr.mxu0 0.0
    %1120 = vmatpush1.msra.mxu0 0.0
    %1121 = vmatprep.subr.mxu0 0.0
    %1122 = vmatpush1.msra.mxu0 0.0
    %1123 = vmatprep.subr.mxu0 0.0
    %1124 = vmatpush1.msra.mxu0 0.0
    %1125 = vmatprep.subr.mxu0 0.0
    %1126 = vmatpush1.msra.mxu0 0.0
    %1127 = vmatprep.subr.mxu0 0.0
    %1128 = vmatpush1.msra.mxu0 0.0
    %1129 = vmatprep.subr.mxu0 0.0
    %1130 = vmatpush1.msra.mxu0 0.0
    %1131 = vmatprep.subr.mxu0 0.0
    %1132 = vmatpush1.msra.mxu0 0.0
    %1133 = vmatprep.subr.mxu0 0.0
    %1134 = vmatpush1.msra.mxu0 0.0
    %1135 = vmatprep.subr.mxu0 0.0
    %1136 = vmatpush1.msra.mxu0 0.0
    %1137 = vmatprep.subr.mxu0 0.0
    %1138 = vmatpush1.msra.mxu0 0.0
    %1139 = vmatprep.subr.mxu0 0.0
    %1140 = vmatpush1.msra.mxu0 0.0
    %1141 = vmatprep.subr.mxu0 0.0
    %1142 = vmatpush1.msra.mxu0 0.0
    %1143 = vmatprep.subr.mxu0 0.0
    %1144 = vmatpush1.msra.mxu0 0.0
    %1145 = vmatprep.subr.mxu0 0.0
    %1146 = vmatpush1.msra.mxu0 0.0
    %1147 = vmatprep.subr.mxu0 0.0
    %1148 = vmatpush1.msra.mxu0 0.0
    %1149 = vmatprep.subr.mxu0 0.0
    %1150 = vmatpush1.msra.mxu0 0.0
    %1151 = vmatprep.subr.mxu0 0.0
    %1152 = vmatpush1.msra.mxu0 0.0
    %1153 = vmatprep.subr.mxu0 0.0
    %1154 = vmatpush1.msra.mxu0 0.0
    %1155 = vmatprep.subr.mxu0 0.0
    %1156 = vmatpush1.msra.mxu0 0.0
    %1157 = vmatprep.subr.mxu0 0.0
    %1158 = vmatpush1.msra.mxu0 0.0
    %1159 = vmatprep.subr.mxu0 0.0
    %1160 = vmatpush1.msra.mxu0 0.0
    %1161 = vmatprep.subr.mxu0 0.0
    %1162 = vmatpush1.msra.mxu0 0.0
    %1163 = vmatprep.mubr.f32.mxu0 0.0
    %1164 = vmatmul.mubr.f32.gmra.mrb[0].mxu0 %v1094
    %v1165 = vpop.f32.mrb[0].mxu0
    %v1166 = vadd.f32 %v1091, %v1165
    %v1167 = vpop.f32.mrb[0].mxu0
    %1168 = vmatprep.mubr.f32.mxu0 0.0
    %1169 = vmatmul.mubr.f32.gmra.mrb[0].mxu0 %v1097
    %v1170 = vpop.f32.mrb[0].mxu0
    %v1171 = vadd.f32 %v1091, %v1170
    %v1172 = vpop.f32.mrb[0].mxu0
    %1173 = vdwg.mxu0
    %vm1176 = vcmask 1046528
    %v1177 = vrot.slane %v1166, 1
    %v1178 = vrot.slane %v1171, 1
    %v1179 = vsel %vm1176, %v1177, %v1178
    %vm1182 = vcmask 1045504
    %v1183 = vrot.slane %v1166, 2
    %v1184 = vrot.slane %v1171, 2
    %v1185 = vsel %vm1182, %v1183, %v1184
    %v1188 = vld [vmem:[#allocation14] sm:$0xff]
    %v1189 = vld [vmem:[#allocation14 + $0x8] sm:$0xff]
    %v1190 = vld [vmem:[#allocation14 + $0x10] sm:$0xff]
    %v1191 = vld [vmem:[#allocation14 + $0x18] sm:$0xff]
    %v1192 = vld [vmem:[#allocation14 + $0x20] sm:$0xff]
    %v1193 = vld [vmem:[#allocation14 + $0x28] sm:$0xff]
    %v1194 = vld [vmem:[#allocation14 + $0x30] sm:$0xff]
    %v1195 = vld [vmem:[#allocation14 + $0x38] sm:$0xff]
    %v1196 = vld [vmem:[#allocation14 + $0x40] sm:$0xff]
    %v1197 = vld [vmem:[#allocation14 + $0x48] sm:$0xff]
    %v1198 = vld [vmem:[#allocation14 + $0x50] sm:$0xff]
    %v1199 = vld [vmem:[#allocation14 + $0x58] sm:$0xff]
    %v1200 = vld [vmem:[#allocation14 + $0x60] sm:$0xff]
    %v1201 = vld [vmem:[#allocation14 + $0x68] sm:$0xff]
    %v1202 = vld [vmem:[#allocation14 + $0x70] sm:$0xff]
    %v1203 = vld [vmem:[#allocation14 + $0x78] sm:$0xff]
    %v1204 = vld [vmem:[#allocation14 + $0x80] sm:$0xff]
    %v1205 = vld [vmem:[#allocation14 + $0x88] sm:$0xff]
    %v1206 = vld [vmem:[#allocation14 + $0x90] sm:$0xff]
    %v1207 = vld [vmem:[#allocation14 + $0x98] sm:$0xff]
    %v1208 = vld [vmem:[#allocation14 + $0xa0] sm:$0xff]
    %v1209 = vld [vmem:[#allocation14 + $0xa8] sm:$0xff]
    %v1210 = vld [vmem:[#allocation14 + $0xb0] sm:$0xff]
    %v1211 = vld [vmem:[#allocation14 + $0xb8] sm:$0xff]
    %v1212 = vld [vmem:[#allocation14 + $0xc0] sm:$0xff]
    %v1213 = vld [vmem:[#allocation14 + $0xc8] sm:$0xff]
    %v1214 = vld [vmem:[#allocation14 + $0xd0] sm:$0xff]
    %v1215 = vld [vmem:[#allocation14 + $0xd8] sm:$0xff]
    %v1216 = vld [vmem:[#allocation14 + $0xe0] sm:$0xff]
    %v1217 = vld [vmem:[#allocation14 + $0xe8] sm:$0xff]
    %v1218 = vld [vmem:[#allocation14 + $0xf0] sm:$0xff]
    %v1219 = vld [vmem:[#allocation14 + $0xf8] sm:$0xff]
    %v1220 = vld [vmem:[#allocation14 + $0x100] sm:$0xff]
    %v1221 = vld [vmem:[#allocation14 + $0x108] sm:$0xff]
    %v1222 = vld [vmem:[#allocation14 + $0x110] sm:$0xff]
    %v1223 = vld [vmem:[#allocation14 + $0x118] sm:$0xff]
    %v1224 = vld [vmem:[#allocation14 + $0x120] sm:$0xff]
    %v1225 = vld [vmem:[#allocation14 + $0x128] sm:$0xff]
    %v1226 = vld [vmem:[#allocation14 + $0x130] sm:$0xff]
    %v1227 = vld [vmem:[#allocation14 + $0x138] sm:$0xff]
    %v1228 = vld [vmem:[#allocation14 + $0x140] sm:$0xff]
    %v1229 = vld [vmem:[#allocation14 + $0x148] sm:$0xff]
    %v1230 = vld [vmem:[#allocation14 + $0x150] sm:$0xff]
    %v1231 = vld [vmem:[#allocation14 + $0x158] sm:$0xff]
    %v1232 = vld [vmem:[#allocation14 + $0x160] sm:$0xff]
    %v1233 = vld [vmem:[#allocation14 + $0x168] sm:$0xff]
    %v1234 = vld [vmem:[#allocation14 + $0x170] sm:$0xff]
    %v1235 = vld [vmem:[#allocation14 + $0x178] sm:$0xff]
    %v1236 = vld [vmem:[#allocation14 + $0x180] sm:$0xff]
    %v1237 = vld [vmem:[#allocation14 + $0x188] sm:$0xff]
    %v1238 = vld [vmem:[#allocation14 + $0x190] sm:$0xff]
    %v1239 = vld [vmem:[#allocation14 + $0x198] sm:$0xff]
    %v1240 = vld [vmem:[#allocation14 + $0x1a0] sm:$0xff]
    %v1241 = vld [vmem:[#allocation14 + $0x1a8] sm:$0xff]
    %v1242 = vld [vmem:[#allocation14 + $0x1b0] sm:$0xff]
    %v1243 = vld [vmem:[#allocation14 + $0x1b8] sm:$0xff]
    %v1244 = vld [vmem:[#allocation14 + $0x1c0] sm:$0xff]
    %v1245 = vld [vmem:[#allocation14 + $0x1c8] sm:$0xff]
    %v1246 = vld [vmem:[#allocation14 + $0x1d0] sm:$0xff]
    %v1247 = vld [vmem:[#allocation14 + $0x1d8] sm:$0xff]
    %v1248 = vld [vmem:[#allocation14 + $0x1e0] sm:$0xff]
    %v1249 = vld [vmem:[#allocation14 + $0x1e8] sm:$0xff]
    %v1250 = vld [vmem:[#allocation14 + $0x1f0] sm:$0xff]
    %v1251 = vld [vmem:[#allocation14 + $0x1f8] sm:$0xff]
    %v1252 = vld [vmem:[#allocation14 + $0x200] sm:$0xff]
    %v1253 = vld [vmem:[#allocation14 + $0x208] sm:$0xff]
    %v1254 = vld [vmem:[#allocation14 + $0x210] sm:$0xff]
    %v1255 = vld [vmem:[#allocation14 + $0x218] sm:$0xff]
    %v1256 = vld [vmem:[#allocation14 + $0x220] sm:$0xff]
    %v1257 = vld [vmem:[#allocation14 + $0x228] sm:$0xff]
    %v1258 = vld [vmem:[#allocation14 + $0x230] sm:$0xff]
    %v1259 = vld [vmem:[#allocation14 + $0x238] sm:$0xff]
    %v1260 = vld [vmem:[#allocation14 + $0x240] sm:$0xff]
    %v1261 = vld [vmem:[#allocation14 + $0x248] sm:$0xff]
    %v1262 = vld [vmem:[#allocation14 + $0x250] sm:$0xff]
    %v1263 = vld [vmem:[#allocation14 + $0x258] sm:$0xff]
    %v1264 = vld [vmem:[#allocation14 + $0x260] sm:$0xff]
    %v1265 = vld [vmem:[#allocation14 + $0x268] sm:$0xff]
    %v1266 = vld [vmem:[#allocation14 + $0x270] sm:$0xff]
    %v1267 = vld [vmem:[#allocation14 + $0x278] sm:$0xff]
    %v1268 = vld [vmem:[#allocation14 + $0x280] sm:$0xff]
    %v1269 = vld [vmem:[#allocation14 + $0x288] sm:$0xff]
    %v1270 = vld [vmem:[#allocation14 + $0x290] sm:$0xff]
    %v1271 = vld [vmem:[#allocation14 + $0x298] sm:$0xff]
    %v1272 = vld [vmem:[#allocation14 + $0x2a0] sm:$0xff]
    %v1273 = vld [vmem:[#allocation14 + $0x2a8] sm:$0xff]
    %v1274 = vld [vmem:[#allocation14 + $0x2b0] sm:$0xff]
    %v1275 = vld [vmem:[#allocation14 + $0x2b8] sm:$0xff]
    %v1276 = vld [vmem:[#allocation14 + $0x2c0] sm:$0xff]
    %v1277 = vld [vmem:[#allocation14 + $0x2c8] sm:$0xff]
    %v1278 = vld [vmem:[#allocation14 + $0x2d0] sm:$0xff]
    %v1279 = vld [vmem:[#allocation14 + $0x2d8] sm:$0xff]
    %v1280 = vld [vmem:[#allocation14 + $0x2e0] sm:$0xff]
    %v1281 = vld [vmem:[#allocation14 + $0x2e8] sm:$0xff]
    %v1282 = vld [vmem:[#allocation14 + $0x2f0] sm:$0xff]
    %v1283 = vld [vmem:[#allocation14 + $0x2f8] sm:$0xff]
    %v1284 = vld [vmem:[#allocation15] sm:$0x3]
    %v1286 = vlaneseq
    %v1287 = vshrl.u32 %v1286, 7
    %v1288 = vsub.s32 0, %v1287
    %v1289 = vrot.slane %v1284, %v1288
    %v1290 = vlaneseq
    %v1291 = vshrl.u32 %v1290, 7
    %v1292 = vsub.s32 1, %v1291
    %v1293 = vrot.slane %v1284, %v1292
    %1296 = vmatprep.subr.mxu0 %v1189
    %1297 = vmatpush1.msra.mxu0 %v1188
    %1298 = vmatprep.subr.mxu0 %v1191
    %1299 = vmatpush1.msra.mxu0 %v1190
    %1300 = vmatprep.subr.mxu0 %v1193
    %1301 = vmatpush1.msra.mxu0 %v1192
    %1302 = vmatprep.subr.mxu0 %v1195
    %1303 = vmatpush1.msra.mxu0 %v1194
    %1304 = vmatprep.subr.mxu0 %v1197
    %1305 = vmatpush1.msra.mxu0 %v1196
    %1306 = vmatprep.subr.mxu0 %v1199
    %1307 = vmatpush1.msra.mxu0 %v1198
    %1308 = vmatprep.subr.mxu0 %v1201
    %1309 = vmatpush1.msra.mxu0 %v1200
    %1310 = vmatprep.subr.mxu0 %v1203
    %1311 = vmatpush1.msra.mxu0 %v1202
    %1312 = vmatprep.subr.mxu0 %v1205
    %1313 = vmatpush1.msra.mxu0 %v1204
    %1314 = vmatprep.subr.mxu0 %v1207
    %1315 = vmatpush1.msra.mxu0 %v1206
    %1316 = vmatprep.subr.mxu0 %v1209
    %1317 = vmatpush1.msra.mxu0 %v1208
    %1318 = vmatprep.subr.mxu0 %v1211
    %1319 = vmatpush1.msra.mxu0 %v1210
    %1320 = vmatprep.subr.mxu0 %v1213
    %1321 = vmatpush1.msra.mxu0 %v1212
    %1322 = vmatprep.subr.mxu0 %v1215
    %1323 = vmatpush1.msra.mxu0 %v1214
    %1324 = vmatprep.subr.mxu0 %v1217
    %1325 = vmatpush1.msra.mxu0 %v1216
    %1326 = vmatprep.subr.mxu0 %v1219
    %1327 = vmatpush1.msra.mxu0 %v1218
    %1328 = vmatprep.subr.mxu0 %v1221
    %1329 = vmatpush1.msra.mxu0 %v1220
    %1330 = vmatprep.subr.mxu0 %v1223
    %1331 = vmatpush1.msra.mxu0 %v1222
    %1332 = vmatprep.subr.mxu0 %v1225
    %1333 = vmatpush1.msra.mxu0 %v1224
    %1334 = vmatprep.subr.mxu0 %v1227
    %1335 = vmatpush1.msra.mxu0 %v1226
    %1336 = vmatprep.subr.mxu0 %v1229
    %1337 = vmatpush1.msra.mxu0 %v1228
    %1338 = vmatprep.subr.mxu0 %v1231
    %1339 = vmatpush1.msra.mxu0 %v1230
    %1340 = vmatprep.subr.mxu0 %v1233
    %1341 = vmatpush1.msra.mxu0 %v1232
    %1342 = vmatprep.subr.mxu0 %v1235
    %1343 = vmatpush1.msra.mxu0 %v1234
    %1344 = vmatprep.subr.mxu0 %v1237
    %1345 = vmatpush1.msra.mxu0 %v1236
    %1346 = vmatprep.subr.mxu0 %v1239
    %1347 = vmatpush1.msra.mxu0 %v1238
    %1348 = vmatprep.subr.mxu0 %v1241
    %1349 = vmatpush1.msra.mxu0 %v1240
    %1350 = vmatprep.subr.mxu0 %v1243
    %1351 = vmatpush1.msra.mxu0 %v1242
    %1352 = vmatprep.subr.mxu0 %v1245
    %1353 = vmatpush1.msra.mxu0 %v1244
    %1354 = vmatprep.subr.mxu0 %v1247
    %1355 = vmatpush1.msra.mxu0 %v1246
    %1356 = vmatprep.subr.mxu0 %v1249
    %1357 = vmatpush1.msra.mxu0 %v1248
    %1358 = vmatprep.subr.mxu0 %v1251
    %1359 = vmatpush1.msra.mxu0 %v1250
    %1360 = vmatprep.mubr.f32.mxu0 %v1179
    %1361 = vmatmul.mubr.f32.gmra.mrb[0].mxu0 %v1166
    %v1362 = vpop.f32.mrb[0].mxu0
    %v1363 = vadd.f32 %v1289, %v1362
    %v1364 = vpop.f32.mrb[0].mxu0
    %v1365 = vadd.f32 %v1293, %v1364
    %1366 = vmatprep.mubr.f32.mxu0 %v1178
    %1367 = vmatmul.mubr.f32.gmra.mrb[0].mxu0 %v1171
    %v1368 = vpop.f32.mrb[0].mxu0
    %v1369 = vadd.f32 %v1289, %v1368
    %v1370 = vpop.f32.mrb[0].mxu0
    %v1371 = vadd.f32 %v1293, %v1370
    %1372 = vdwg.mxu0
    %1373 = vmatprep.subr.mxu0 %v1253
    %1374 = vmatpush1.msra.mxu0 %v1252
    %1375 = vmatprep.subr.mxu0 %v1255
    %1376 = vmatpush1.msra.mxu0 %v1254
    %1377 = vmatprep.subr.mxu0 %v1257
    %1378 = vmatpush1.msra.mxu0 %v1256
    %1379 = vmatprep.subr.mxu0 %v1259
    %1380 = vmatpush1.msra.mxu0 %v1258
    %1381 = vmatprep.subr.mxu0 %v1261
    %1382 = vmatpush1.msra.mxu0 %v1260
    %1383 = vmatprep.subr.mxu0 %v1263
    %1384 = vmatpush1.msra.mxu0 %v1262
    %1385 = vmatprep.subr.mxu0 %v1265
    %1386 = vmatpush1.msra.mxu0 %v1264
    %1387 = vmatprep.subr.mxu0 %v1267
    %1388 = vmatpush1.msra.mxu0 %v1266
    %1389 = vmatprep.subr.mxu0 %v1269
    %1390 = vmatpush1.msra.mxu0 %v1268
    %1391 = vmatprep.subr.mxu0 %v1271
    %1392 = vmatpush1.msra.mxu0 %v1270
    %1393 = vmatprep.subr.mxu0 %v1273
    %1394 = vmatpush1.msra.mxu0 %v1272
    %1395 = vmatprep.subr.mxu0 %v1275
    %1396 = vmatpush1.msra.mxu0 %v1274
    %1397 = vmatprep.subr.mxu0 %v1277
    %1398 = vmatpush1.msra.mxu0 %v1276
    %1399 = vmatprep.subr.mxu0 %v1279
    %1400 = vmatpush1.msra.mxu0 %v1278
    %1401 = vmatprep.subr.mxu0 %v1281
    %1402 = vmatpush1.msra.mxu0 %v1280
    %1403 = vmatprep.subr.mxu0 %v1283
    %1404 = vmatpush1.msra.mxu0 %v1282
    %1405 = vmatprep.subr.mxu0 0.0
    %1406 = vmatpush1.msra.mxu0 0.0
    %1407 = vmatprep.subr.mxu0 0.0
    %1408 = vmatpush1.msra.mxu0 0.0
    %1409 = vmatprep.subr.mxu0 0.0
    %1410 = vmatpush1.msra.mxu0 0.0
    %1411 = vmatprep.subr.mxu0 0.0
    %1412 = vmatpush1.msra.mxu0 0.0
    %1413 = vmatprep.subr.mxu0 0.0
    %1414 = vmatpush1.msra.mxu0 0.0
    %1415 = vmatprep.subr.mxu0 0.0
    %1416 = vmatpush1.msra.mxu0 0.0
    %1417 = vmatprep.subr.mxu0 0.0
    %1418 = vmatpush1.msra.mxu0 0.0
    %1419 = vmatprep.subr.mxu0 0.0
    %1420 = vmatpush1.msra.mxu0 0.0
    %1421 = vmatprep.subr.mxu0 0.0
    %1422 = vmatpush1.msra.mxu0 0.0
    %1423 = vmatprep.subr.mxu0 0.0
    %1424 = vmatpush1.msra.mxu0 0.0
    %1425 = vmatprep.subr.mxu0 0.0
    %1426 = vmatpush1.msra.mxu0 0.0
    %1427 = vmatprep.subr.mxu0 0.0
    %1428 = vmatpush1.msra.mxu0 0.0
    %1429 = vmatprep.subr.mxu0 0.0
    %1430 = vmatpush1.msra.mxu0 0.0
    %1431 = vmatprep.subr.mxu0 0.0
    %1432 = vmatpush1.msra.mxu0 0.0
    %1433 = vmatprep.subr.mxu0 0.0
    %1434 = vmatpush1.msra.mxu0 0.0
    %1435 = vmatprep.subr.mxu0 0.0
    %1436 = vmatpush1.msra.mxu0 0.0
    %1437 = vmatprep.mubr.f32.mxu0 0.0
    %1438 = vmatmul.mubr.f32.gmra.mrb[0].mxu0 %v1185
    %v1439 = vpop.f32.mrb[0].mxu0
    %v1440 = vadd.f32 %v1363, %v1439
    %v1441 = vpop.f32.mrb[0].mxu0
    %v1442 = vadd.f32 %v1365, %v1441
    %1443 = vmatprep.mubr.f32.mxu0 0.0
    %1444 = vmatmul.mubr.f32.gmra.mrb[0].mxu0 %v1184
    %v1445 = vpop.f32.mrb[0].mxu0
    %v1446 = vadd.f32 %v1369, %v1445
    %v1447 = vpop.f32.mrb[0].mxu0
    %v1448 = vadd.f32 %v1371, %v1447
    %1449 = vdwg.mxu0
    %v1450 = vtanh.pop %v1440
    %v1451 = vtanh.pop %v1446
    %v1452 = vxor.u32 %v1442, 2147483648
    %v1453 = vxor.u32 %v1448, 2147483648
    %v1454 = vmul.f32 %v1452, 1.442695
    %v1455 = vpow.pop %v1454
    %v1456 = vmul.f32 %v1453, 1.442695
    %v1457 = vpow.pop %v1456
    %v1458 = vadd.f32 %v1455, 1.0
    %v1459 = vadd.f32 %v1457, 1.0
    %v1460 = vrcp.pop %v1458
    %v1461 = vmul.f32 1.0, %v1460
    %v1462 = vrcp.pop %v1459
    %v1463 = vmul.f32 1.0, %v1462
    %v1464 = vmul.f32 %v1450, %v1461
    %v1465 = vmul.f32 %v1451, %v1463
    %v1466 = vld [vmem:[#allocation17] sm:$0xff]
    %v1467 = vld [vmem:[#allocation17 + $0x8] sm:$0xff]
    %v1468 = vld [vmem:[#allocation17 + $0x10] sm:$0xff]
    %v1469 = vld [vmem:[#allocation17 + $0x18] sm:$0xff]
    %v1470 = vld [vmem:[#allocation17 + $0x20] sm:$0xff]
    %v1471 = vld [vmem:[#allocation17 + $0x28] sm:$0xff]
    %v1472 = vld [vmem:[#allocation17 + $0x30] sm:$0xff]
    %v1473 = vld [vmem:[#allocation17 + $0x38] sm:$0xff]
    %v1474 = vld [vmem:[#allocation17 + $0x40] sm:$0xff]
    %v1475 = vld [vmem:[#allocation17 + $0x48] sm:$0xff]
    %v1476 = vld [vmem:[#allocation17 + $0x50] sm:$0xff]
    %v1477 = vld [vmem:[#allocation17 + $0x58] sm:$0xff]
    %v1478 = vld [vmem:[#allocation17 + $0x60] sm:$0xff]
    %v1479 = vld [vmem:[#allocation17 + $0x68] sm:$0xff]
    %v1480 = vld [vmem:[#allocation17 + $0x70] sm:$0xff]
    %v1481 = vld [vmem:[#allocation17 + $0x78] sm:$0xff]
    %v1482 = vld [vmem:[#allocation17 + $0x80] sm:$0xff]
    %v1483 = vld [vmem:[#allocation17 + $0x88] sm:$0xff]
    %v1484 = vld [vmem:[#allocation17 + $0x90] sm:$0xff]
    %v1485 = vld [vmem:[#allocation17 + $0x98] sm:$0xff]
    %v1486 = vld [vmem:[#allocation17 + $0xa0] sm:$0xff]
    %v1487 = vld [vmem:[#allocation17 + $0xa8] sm:$0xff]
    %v1488 = vld [vmem:[#allocation17 + $0xb0] sm:$0xff]
    %v1489 = vld [vmem:[#allocation17 + $0xb8] sm:$0xff]
    %v1490 = vld [vmem:[#allocation17 + $0xc0] sm:$0xff]
    %v1491 = vld [vmem:[#allocation17 + $0xc8] sm:$0xff]
    %v1492 = vld [vmem:[#allocation17 + $0xd0] sm:$0xff]
    %v1493 = vld [vmem:[#allocation17 + $0xd8] sm:$0xff]
    %v1494 = vld [vmem:[#allocation17 + $0xe0] sm:$0xff]
    %v1495 = vld [vmem:[#allocation17 + $0xe8] sm:$0xff]
    %v1496 = vld [vmem:[#allocation17 + $0xf0] sm:$0xff]
    %v1497 = vld [vmem:[#allocation17 + $0xf8] sm:$0xff]
    %v1498 = vld [vmem:[#allocation18] sm:$0x3]
    %v1500 = vlaneseq
    %v1501 = vshrl.u32 %v1500, 7
    %v1502 = vsub.s32 0, %v1501
    %v1503 = vrot.slane %v1498, %v1502
    %v1504 = vlaneseq
    %v1505 = vshrl.u32 %v1504, 7
    %v1506 = vsub.s32 1, %v1505
    %v1507 = vrot.slane %v1498, %v1506
    %1510 = vmatprep.subr.mxu0 %v1467
    %1511 = vmatpush1.msra.mxu0 %v1466
    %1512 = vmatprep.subr.mxu0 %v1469
    %1513 = vmatpush1.msra.mxu0 %v1468
    %1514 = vmatprep.subr.mxu0 %v1471
    %1515 = vmatpush1.msra.mxu0 %v1470
    %1516 = vmatprep.subr.mxu0 %v1473
    %1517 = vmatpush1.msra.mxu0 %v1472
    %1518 = vmatprep.subr.mxu0 %v1475
    %1519 = vmatpush1.msra.mxu0 %v1474
    %1520 = vmatprep.subr.mxu0 %v1477
    %1521 = vmatpush1.msra.mxu0 %v1476
    %1522 = vmatprep.subr.mxu0 %v1479
    %1523 = vmatpush1.msra.mxu0 %v1478
    %1524 = vmatprep.subr.mxu0 %v1481
    %1525 = vmatpush1.msra.mxu0 %v1480
    %1526 = vmatprep.subr.mxu0 %v1483
    %1527 = vmatpush1.msra.mxu0 %v1482
    %1528 = vmatprep.subr.mxu0 %v1485
    %1529 = vmatpush1.msra.mxu0 %v1484
    %1530 = vmatprep.subr.mxu0 %v1487
    %1531 = vmatpush1.msra.mxu0 %v1486
    %1532 = vmatprep.subr.mxu0 %v1489
    %1533 = vmatpush1.msra.mxu0 %v1488
    %1534 = vmatprep.subr.mxu0 %v1491
    %1535 = vmatpush1.msra.mxu0 %v1490
    %1536 = vmatprep.subr.mxu0 %v1493
    %1537 = vmatpush1.msra.mxu0 %v1492
    %1538 = vmatprep.subr.mxu0 %v1495
    %1539 = vmatpush1.msra.mxu0 %v1494
    %1540 = vmatprep.subr.mxu0 %v1497
    %1541 = vmatpush1.msra.mxu0 %v1496
    %1542 = vmatprep.subr.mxu0 0.0
    %1543 = vmatpush1.msra.mxu0 0.0
    %1544 = vmatprep.subr.mxu0 0.0
    %1545 = vmatpush1.msra.mxu0 0.0
    %1546 = vmatprep.subr.mxu0 0.0
    %1547 = vmatpush1.msra.mxu0 0.0
    %1548 = vmatprep.subr.mxu0 0.0
    %1549 = vmatpush1.msra.mxu0 0.0
    %1550 = vmatprep.subr.mxu0 0.0
    %1551 = vmatpush1.msra.mxu0 0.0
    %1552 = vmatprep.subr.mxu0 0.0
    %1553 = vmatpush1.msra.mxu0 0.0
    %1554 = vmatprep.subr.mxu0 0.0
    %1555 = vmatpush1.msra.mxu0 0.0
    %1556 = vmatprep.subr.mxu0 0.0
    %1557 = vmatpush1.msra.mxu0 0.0
    %1558 = vmatprep.subr.mxu0 0.0
    %1559 = vmatpush1.msra.mxu0 0.0
    %1560 = vmatprep.subr.mxu0 0.0
    %1561 = vmatpush1.msra.mxu0 0.0
    %1562 = vmatprep.subr.mxu0 0.0
    %1563 = vmatpush1.msra.mxu0 0.0
    %1564 = vmatprep.subr.mxu0 0.0
    %1565 = vmatpush1.msra.mxu0 0.0
    %1566 = vmatprep.subr.mxu0 0.0
    %1567 = vmatpush1.msra.mxu0 0.0
    %1568 = vmatprep.subr.mxu0 0.0
    %1569 = vmatpush1.msra.mxu0 0.0
    %1570 = vmatprep.subr.mxu0 0.0
    %1571 = vmatpush1.msra.mxu0 0.0
    %1572 = vmatprep.subr.mxu0 0.0
    %1573 = vmatpush1.msra.mxu0 0.0
    %1574 = vmatprep.mubr.f32.mxu0 0.0
    %1575 = vmatmul.mubr.f32.gmra.mrb[0].mxu0 %v1464
    %v1576 = vpop.f32.mrb[0].mxu0
    %v1577 = vadd.f32 %v1503, %v1576
    %v1578 = vpop.f32.mrb[0].mxu0
    %v1579 = vadd.f32 %v1507, %v1578
    %1580 = vmatprep.mubr.f32.mxu0 0.0
    %1581 = vmatmul.mubr.f32.gmra.mrb[0].mxu0 %v1465
    %v1582 = vpop.f32.mrb[0].mxu0
    %v1583 = vadd.f32 %v1503, %v1582
    %v1584 = vpop.f32.mrb[0].mxu0
    %v1585 = vadd.f32 %v1507, %v1584
    %1586 = vdwg.mxu0
    %v1587 = vld [vmem:[#allocation2] sm:$0xff]
    %v1588 = vld [vmem:[#allocation2 + $0x8] sm:$0xff]
    %v1589 = vld [vmem:[#allocation2 + $0x10] sm:$0xff]
    %v1590 = vld [vmem:[#allocation2 + $0x18] sm:$0xff]
    %v1591 = vld [vmem:[#allocation2 + $0x20] sm:$0xff]
    %v1592 = vld [vmem:[#allocation2 + $0x28] sm:$0xff]
    %v1593 = vld [vmem:[#allocation2 + $0x30] sm:$0xff]
    %v1594 = vld [vmem:[#allocation2 + $0x38] sm:$0xff]
    %v1595 = vld [vmem:[#allocation2 + $0x40] sm:$0xff]
    %v1596 = vld [vmem:[#allocation2 + $0x48] sm:$0xff]
    %v1597 = vld [vmem:[#allocation2 + $0x50] sm:$0xff]
    %v1598 = vld [vmem:[#allocation2 + $0x58] sm:$0xff]
    %v1599 = vld [vmem:[#allocation2 + $0x60] sm:$0xff]
    %v1600 = vld [vmem:[#allocation2 + $0x68] sm:$0xff]
    %v1601 = vld [vmem:[#allocation2 + $0x70] sm:$0xff]
    %v1602 = vld [vmem:[#allocation2 + $0x78] sm:$0xff]
    %1603 = vmatprep.subr.mxu0 0.0
    %1604 = vmatpush1.msra.mxu0 %v1587
    %1605 = vmatprep.subr.mxu0 0.0
    %1606 = vmatpush1.msra.mxu0 %v1588
    %1607 = vmatprep.subr.mxu0 0.0
    %1608 = vmatpush1.msra.mxu0 %v1589
    %1609 = vmatprep.subr.mxu0 0.0
    %1610 = vmatpush1.msra.mxu0 %v1590
    %1611 = vmatprep.subr.mxu0 0.0
    %1612 = vmatpush1.msra.mxu0 %v1591
    %1613 = vmatprep.subr.mxu0 0.0
    %1614 = vmatpush1.msra.mxu0 %v1592
    %1615 = vmatprep.subr.mxu0 0.0
    %1616 = vmatpush1.msra.mxu0 %v1593
    %1617 = vmatprep.subr.mxu0 0.0
    %1618 = vmatpush1.msra.mxu0 %v1594
    %1619 = vmatprep.subr.mxu0 0.0
    %1620 = vmatpush1.msra.mxu0 %v1595
    %1621 = vmatprep.subr.mxu0 0.0
    %1622 = vmatpush1.msra.mxu0 %v1596
    %1623 = vmatprep.subr.mxu0 0.0
    %1624 = vmatpush1.msra.mxu0 %v1597
    %1625 = vmatprep.subr.mxu0 0.0
    %1626 = vmatpush1.msra.mxu0 %v1598
    %1627 = vmatprep.subr.mxu0 0.0
    %1628 = vmatpush1.msra.mxu0 %v1599
    %1629 = vmatprep.subr.mxu0 0.0
    %1630 = vmatpush1.msra.mxu0 %v1600
    %1631 = vmatprep.subr.mxu0 0.0
    %1632 = vmatpush1.msra.mxu0 %v1601
    %1633 = vmatprep.subr.mxu0 0.0
    %1634 = vmatpush1.msra.mxu0 %v1602
    %1635 = vmatprep.subr.mxu0 0.0
    %1636 = vmatpush1.msra.mxu0 0.0
    %1637 = vmatprep.subr.mxu0 0.0
    %1638 = vmatpush1.msra.mxu0 0.0
    %1639 = vmatprep.subr.mxu0 0.0
    %1640 = vmatpush1.msra.mxu0 0.0
    %1641 = vmatprep.subr.mxu0 0.0
    %1642 = vmatpush1.msra.mxu0 0.0
    %1643 = vmatprep.subr.mxu0 0.0
    %1644 = vmatpush1.msra.mxu0 0.0
    %1645 = vmatprep.subr.mxu0 0.0
    %1646 = vmatpush1.msra.mxu0 0.0
    %1647 = vmatprep.subr.mxu0 0.0
    %1648 = vmatpush1.msra.mxu0 0.0
    %1649 = vmatprep.subr.mxu0 0.0
    %1650 = vmatpush1.msra.mxu0 0.0
    %1651 = vmatprep.subr.mxu0 0.0
    %1652 = vmatpush1.msra.mxu0 0.0
    %1653 = vmatprep.subr.mxu0 0.0
    %1654 = vmatpush1.msra.mxu0 0.0
    %1655 = vmatprep.subr.mxu0 0.0
    %1656 = vmatpush1.msra.mxu0 0.0
    %1657 = vmatprep.subr.mxu0 0.0
    %1658 = vmatpush1.msra.mxu0 0.0
    %1659 = vmatprep.subr.mxu0 0.0
    %1660 = vmatpush1.msra.mxu0 0.0
    %1661 = vmatprep.subr.mxu0 0.0
    %1662 = vmatpush1.msra.mxu0 0.0
    %1663 = vmatprep.subr.mxu0 0.0
    %1664 = vmatpush1.msra.mxu0 0.0
    %1665 = vmatprep.subr.mxu0 0.0
    %1666 = vmatpush1.msra.mxu0 0.0
    %1667 = vmatprep.mubr.f32.mxu0 0.0
    %1668 = vmatmul.mubr.f32.gmra.mrb[0].mxu0 %v1464
    %v1669 = vpop.f32.mrb[0].mxu0
    %v1670 = vadd.f32 0.0, %v1669
    %v1671 = vpop.f32.mrb[0].mxu0
    %1672 = vmatprep.mubr.f32.mxu0 0.0
    %1673 = vmatmul.mubr.f32.gmra.mrb[0].mxu0 %v1465
    %v1674 = vpop.f32.mrb[0].mxu0
    %v1675 = vadd.f32 0.0, %v1674
    %v1676 = vpop.f32.mrb[0].mxu0
    %1677 = vdwg.mxu0
    %v1678 = vld [vmem:[#allocation3] sm:$0xff]
    %v1679 = vld [vmem:[#allocation3 + $0x8] sm:$0xff]
    %v1680 = vld [vmem:[#allocation3 + $0x10] sm:$0xff]
    %v1681 = vld [vmem:[#allocation3 + $0x18] sm:$0xff]
    %v1682 = vld [vmem:[#allocation3 + $0x20] sm:$0xff]
    %v1683 = vld [vmem:[#allocation3 + $0x28] sm:$0xff]
    %v1684 = vld [vmem:[#allocation3 + $0x30] sm:$0xff]
    %v1685 = vld [vmem:[#allocation3 + $0x38] sm:$0xff]
    %v1686 = vld [vmem:[#allocation3 + $0x40] sm:$0xff]
    %v1687 = vld [vmem:[#allocation3 + $0x48] sm:$0xff]
    %v1688 = vld [vmem:[#allocation3 + $0x50] sm:$0xff]
    %v1689 = vld [vmem:[#allocation3 + $0x58] sm:$0xff]
    %v1690 = vld [vmem:[#allocation3 + $0x60] sm:$0xff]
    %v1691 = vld [vmem:[#allocation3 + $0x68] sm:$0xff]
    %v1692 = vld [vmem:[#allocation3 + $0x70] sm:$0xff]
    %v1693 = vld [vmem:[#allocation3 + $0x78] sm:$0xff]
    %1694 = vmatprep.subr.mxu0 0.0
    %1695 = vmatpush1.msra.mxu0 %v1678
    %1696 = vmatprep.subr.mxu0 0.0
    %1697 = vmatpush1.msra.mxu0 %v1679
    %1698 = vmatprep.subr.mxu0 0.0
    %1699 = vmatpush1.msra.mxu0 %v1680
    %1700 = vmatprep.subr.mxu0 0.0
    %1701 = vmatpush1.msra.mxu0 %v1681
    %1702 = vmatprep.subr.mxu0 0.0
    %1703 = vmatpush1.msra.mxu0 %v1682
    %1704 = vmatprep.subr.mxu0 0.0
    %1705 = vmatpush1.msra.mxu0 %v1683
    %1706 = vmatprep.subr.mxu0 0.0
    %1707 = vmatpush1.msra.mxu0 %v1684
    %1708 = vmatprep.subr.mxu0 0.0
    %1709 = vmatpush1.msra.mxu0 %v1685
    %1710 = vmatprep.subr.mxu0 0.0
    %1711 = vmatpush1.msra.mxu0 %v1686
    %1712 = vmatprep.subr.mxu0 0.0
    %1713 = vmatpush1.msra.mxu0 %v1687
    %1714 = vmatprep.subr.mxu0 0.0
    %1715 = vmatpush1.msra.mxu0 %v1688
    %1716 = vmatprep.subr.mxu0 0.0
    %1717 = vmatpush1.msra.mxu0 %v1689
    %1718 = vmatprep.subr.mxu0 0.0
    %1719 = vmatpush1.msra.mxu0 %v1690
    %1720 = vmatprep.subr.mxu0 0.0
    %1721 = vmatpush1.msra.mxu0 %v1691
    %1722 = vmatprep.subr.mxu0 0.0
    %1723 = vmatpush1.msra.mxu0 %v1692
    %1724 = vmatprep.subr.mxu0 0.0
    %1725 = vmatpush1.msra.mxu0 %v1693
    %1726 = vmatprep.subr.mxu0 0.0
    %1727 = vmatpush1.msra.mxu0 0.0
    %1728 = vmatprep.subr.mxu0 0.0
    %1729 = vmatpush1.msra.mxu0 0.0
    %1730 = vmatprep.subr.mxu0 0.0
    %1731 = vmatpush1.msra.mxu0 0.0
    %1732 = vmatprep.subr.mxu0 0.0
    %1733 = vmatpush1.msra.mxu0 0.0
    %1734 = vmatprep.subr.mxu0 0.0
    %1735 = vmatpush1.msra.mxu0 0.0
    %1736 = vmatprep.subr.mxu0 0.0
    %1737 = vmatpush1.msra.mxu0 0.0
    %1738 = vmatprep.subr.mxu0 0.0
    %1739 = vmatpush1.msra.mxu0 0.0
    %1740 = vmatprep.subr.mxu0 0.0
    %1741 = vmatpush1.msra.mxu0 0.0
    %1742 = vmatprep.subr.mxu0 0.0
    %1743 = vmatpush1.msra.mxu0 0.0
    %1744 = vmatprep.subr.mxu0 0.0
    %1745 = vmatpush1.msra.mxu0 0.0
    %1746 = vmatprep.subr.mxu0 0.0
    %1747 = vmatpush1.msra.mxu0 0.0
    %1748 = vmatprep.subr.mxu0 0.0
    %1749 = vmatpush1.msra.mxu0 0.0
    %1750 = vmatprep.subr.mxu0 0.0
    %1751 = vmatpush1.msra.mxu0 0.0
    %1752 = vmatprep.subr.mxu0 0.0
    %1753 = vmatpush1.msra.mxu0 0.0
    %1754 = vmatprep.subr.mxu0 0.0
    %1755 = vmatpush1.msra.mxu0 0.0
    %1756 = vmatprep.subr.mxu0 0.0
    %1757 = vmatpush1.msra.mxu0 0.0
    %1758 = vmatprep.mubr.f32.mxu0 0.0
    %1759 = vmatmul.mubr.f32.gmra.mrb[0].mxu0 %v1464
    %v1760 = vpop.f32.mrb[0].mxu0
    %v1761 = vadd.f32 0.0, %v1760
    %v1762 = vpop.f32.mrb[0].mxu0
    %1763 = vmatprep.mubr.f32.mxu0 0.0
    %1764 = vmatmul.mubr.f32.gmra.mrb[0].mxu0 %v1465
    %v1765 = vpop.f32.mrb[0].mxu0
    %v1766 = vadd.f32 0.0, %v1765
    %v1767 = vpop.f32.mrb[0].mxu0
    %1768 = vdwg.mxu0
    %v1769 = vld [vmem:[#allocation20] sm:$0xff]
    %v1770 = vld [vmem:[#allocation20 + $0x8] sm:$0xff]
    %v1771 = vld [vmem:[#allocation20 + $0x10] sm:$0xff]
    %v1772 = vld [vmem:[#allocation20 + $0x18] sm:$0xff]
    %v1773 = vld [vmem:[#allocation20 + $0x20] sm:$0xff]
    %v1774 = vld [vmem:[#allocation20 + $0x28] sm:$0xff]
    %v1775 = vld [vmem:[#allocation20 + $0x30] sm:$0xff]
    %v1776 = vld [vmem:[#allocation20 + $0x38] sm:$0xff]
    %v1777 = vld [vmem:[#allocation20 + $0x40] sm:$0xff]
    %v1778 = vld [vmem:[#allocation20 + $0x48] sm:$0xff]
    %v1779 = vld [vmem:[#allocation20 + $0x50] sm:$0xff]
    %v1780 = vld [vmem:[#allocation20 + $0x58] sm:$0xff]
    %v1781 = vld [vmem:[#allocation20 + $0x60] sm:$0xff]
    %v1782 = vld [vmem:[#allocation20 + $0x68] sm:$0xff]
    %v1783 = vld [vmem:[#allocation20 + $0x70] sm:$0xff]
    %v1784 = vld [vmem:[#allocation20 + $0x78] sm:$0xff]
    %v1785 = vld [vmem:[#allocation20 + $0x80] sm:$0xff]
    %v1786 = vld [vmem:[#allocation20 + $0x88] sm:$0xff]
    %v1787 = vld [vmem:[#allocation20 + $0x90] sm:$0xff]
    %v1788 = vld [vmem:[#allocation20 + $0x98] sm:$0xff]
    %v1789 = vld [vmem:[#allocation20 + $0xa0] sm:$0xff]
    %v1790 = vld [vmem:[#allocation20 + $0xa8] sm:$0xff]
    %v1791 = vld [vmem:[#allocation20 + $0xb0] sm:$0xff]
    %v1792 = vld [vmem:[#allocation20 + $0xb8] sm:$0xff]
    %v1793 = vld [vmem:[#allocation20 + $0xc0] sm:$0xff]
    %v1794 = vld [vmem:[#allocation20 + $0xc8] sm:$0xff]
    %v1795 = vld [vmem:[#allocation20 + $0xd0] sm:$0xff]
    %v1796 = vld [vmem:[#allocation20 + $0xd8] sm:$0xff]
    %v1797 = vld [vmem:[#allocation20 + $0xe0] sm:$0xff]
    %v1798 = vld [vmem:[#allocation20 + $0xe8] sm:$0xff]
    %v1799 = vld [vmem:[#allocation20 + $0xf0] sm:$0xff]
    %v1800 = vld [vmem:[#allocation20 + $0xf8] sm:$0xff]
    %v1801 = vld [vmem:[#allocation20 + $0x100] sm:$0xff]
    %v1802 = vld [vmem:[#allocation20 + $0x108] sm:$0xff]
    %v1803 = vld [vmem:[#allocation20 + $0x110] sm:$0xff]
    %v1804 = vld [vmem:[#allocation20 + $0x118] sm:$0xff]
    %v1805 = vld [vmem:[#allocation20 + $0x120] sm:$0xff]
    %v1806 = vld [vmem:[#allocation20 + $0x128] sm:$0xff]
    %v1807 = vld [vmem:[#allocation20 + $0x130] sm:$0xff]
    %v1808 = vld [vmem:[#allocation20 + $0x138] sm:$0xff]
    %v1809 = vld [vmem:[#allocation20 + $0x140] sm:$0xff]
    %v1810 = vld [vmem:[#allocation20 + $0x148] sm:$0xff]
    %v1811 = vld [vmem:[#allocation20 + $0x150] sm:$0xff]
    %v1812 = vld [vmem:[#allocation20 + $0x158] sm:$0xff]
    %v1813 = vld [vmem:[#allocation20 + $0x160] sm:$0xff]
    %v1814 = vld [vmem:[#allocation20 + $0x168] sm:$0xff]
    %v1815 = vld [vmem:[#allocation20 + $0x170] sm:$0xff]
    %v1816 = vld [vmem:[#allocation20 + $0x178] sm:$0xff]
    %v1817 = vld [vmem:[#allocation21] sm:$0x1]
    %v1819 = vlaneseq
    %v1820 = vshrl.u32 %v1819, 7
    %v1821 = vsub.s32 0, %v1820
    %v1822 = vrot.slane %v1817, %v1821
    %1824 = vmatprep.subr.mxu0 0.0
    %1825 = vmatpush1.msra.mxu0 %v1769
    %1826 = vmatprep.subr.mxu0 0.0
    %1827 = vmatpush1.msra.mxu0 %v1770
    %1828 = vmatprep.subr.mxu0 0.0
    %1829 = vmatpush1.msra.mxu0 %v1771
    %1830 = vmatprep.subr.mxu0 0.0
    %1831 = vmatpush1.msra.mxu0 %v1772
    %1832 = vmatprep.subr.mxu0 0.0
    %1833 = vmatpush1.msra.mxu0 %v1773
    %1834 = vmatprep.subr.mxu0 0.0
    %1835 = vmatpush1.msra.mxu0 %v1774
    %1836 = vmatprep.subr.mxu0 0.0
    %1837 = vmatpush1.msra.mxu0 %v1775
    %1838 = vmatprep.subr.mxu0 0.0
    %1839 = vmatpush1.msra.mxu0 %v1776
    %1840 = vmatprep.subr.mxu0 0.0
    %1841 = vmatpush1.msra.mxu0 %v1777
    %1842 = vmatprep.subr.mxu0 0.0
    %1843 = vmatpush1.msra.mxu0 %v1778
    %1844 = vmatprep.subr.mxu0 0.0
    %1845 = vmatpush1.msra.mxu0 %v1779
    %1846 = vmatprep.subr.mxu0 0.0
    %1847 = vmatpush1.msra.mxu0 %v1780
    %1848 = vmatprep.subr.mxu0 0.0
    %1849 = vmatpush1.msra.mxu0 %v1781
    %1850 = vmatprep.subr.mxu0 0.0
    %1851 = vmatpush1.msra.mxu0 %v1782
    %1852 = vmatprep.subr.mxu0 0.0
    %1853 = vmatpush1.msra.mxu0 %v1783
    %1854 = vmatprep.subr.mxu0 0.0
    %1855 = vmatpush1.msra.mxu0 %v1784
    %1856 = vmatprep.subr.mxu0 0.0
    %1857 = vmatpush1.msra.mxu0 %v1785
    %1858 = vmatprep.subr.mxu0 0.0
    %1859 = vmatpush1.msra.mxu0 %v1786
    %1860 = vmatprep.subr.mxu0 0.0
    %1861 = vmatpush1.msra.mxu0 %v1787
    %1862 = vmatprep.subr.mxu0 0.0
    %1863 = vmatpush1.msra.mxu0 %v1788
    %1864 = vmatprep.subr.mxu0 0.0
    %1865 = vmatpush1.msra.mxu0 %v1789
    %1866 = vmatprep.subr.mxu0 0.0
    %1867 = vmatpush1.msra.mxu0 %v1790
    %1868 = vmatprep.subr.mxu0 0.0
    %1869 = vmatpush1.msra.mxu0 %v1791
    %1870 = vmatprep.subr.mxu0 0.0
    %1871 = vmatpush1.msra.mxu0 %v1792
    %1872 = vmatprep.subr.mxu0 0.0
    %1873 = vmatpush1.msra.mxu0 %v1793
    %1874 = vmatprep.subr.mxu0 0.0
    %1875 = vmatpush1.msra.mxu0 %v1794
    %1876 = vmatprep.subr.mxu0 0.0
    %1877 = vmatpush1.msra.mxu0 %v1795
    %1878 = vmatprep.subr.mxu0 0.0
    %1879 = vmatpush1.msra.mxu0 %v1796
    %1880 = vmatprep.subr.mxu0 0.0
    %1881 = vmatpush1.msra.mxu0 %v1797
    %1882 = vmatprep.subr.mxu0 0.0
    %1883 = vmatpush1.msra.mxu0 %v1798
    %1884 = vmatprep.subr.mxu0 0.0
    %1885 = vmatpush1.msra.mxu0 %v1799
    %1886 = vmatprep.subr.mxu0 0.0
    %1887 = vmatpush1.msra.mxu0 %v1800
    %1888 = vmatprep.mubr.f32.mxu0 %v1670
    %1889 = vmatmul.mubr.f32.gmra.mrb[0].mxu0 %v1464
    %v1890 = vpop.f32.mrb[0].mxu0
    %v1891 = vadd.f32 %v1822, %v1890
    %v1892 = vpop.f32.mrb[0].mxu0
    %1893 = vmatprep.mubr.f32.mxu0 %v1675
    %1894 = vmatmul.mubr.f32.gmra.mrb[0].mxu0 %v1465
    %v1895 = vpop.f32.mrb[0].mxu0
    %v1896 = vadd.f32 %v1822, %v1895
    %v1897 = vpop.f32.mrb[0].mxu0
    %1898 = vdwg.mxu0
    %1899 = vmatprep.subr.mxu0 0.0
    %1900 = vmatpush1.msra.mxu0 %v1801
    %1901 = vmatprep.subr.mxu0 0.0
    %1902 = vmatpush1.msra.mxu0 %v1802
    %1903 = vmatprep.subr.mxu0 0.0
    %1904 = vmatpush1.msra.mxu0 %v1803
    %1905 = vmatprep.subr.mxu0 0.0
    %1906 = vmatpush1.msra.mxu0 %v1804
    %1907 = vmatprep.subr.mxu0 0.0
    %1908 = vmatpush1.msra.mxu0 %v1805
    %1909 = vmatprep.subr.mxu0 0.0
    %1910 = vmatpush1.msra.mxu0 %v1806
    %1911 = vmatprep.subr.mxu0 0.0
    %1912 = vmatpush1.msra.mxu0 %v1807
    %1913 = vmatprep.subr.mxu0 0.0
    %1914 = vmatpush1.msra.mxu0 %v1808
    %1915 = vmatprep.subr.mxu0 0.0
    %1916 = vmatpush1.msra.mxu0 %v1809
    %1917 = vmatprep.subr.mxu0 0.0
    %1918 = vmatpush1.msra.mxu0 %v1810
    %1919 = vmatprep.subr.mxu0 0.0
    %1920 = vmatpush1.msra.mxu0 %v1811
    %1921 = vmatprep.subr.mxu0 0.0
    %1922 = vmatpush1.msra.mxu0 %v1812
    %1923 = vmatprep.subr.mxu0 0.0
    %1924 = vmatpush1.msra.mxu0 %v1813
    %1925 = vmatprep.subr.mxu0 0.0
    %1926 = vmatpush1.msra.mxu0 %v1814
    %1927 = vmatprep.subr.mxu0 0.0
    %1928 = vmatpush1.msra.mxu0 %v1815
    %1929 = vmatprep.subr.mxu0 0.0
    %1930 = vmatpush1.msra.mxu0 %v1816
    %1931 = vmatprep.subr.mxu0 0.0
    %1932 = vmatpush1.msra.mxu0 0.0
    %1933 = vmatprep.subr.mxu0 0.0
    %1934 = vmatpush1.msra.mxu0 0.0
    %1935 = vmatprep.subr.mxu0 0.0
    %1936 = vmatpush1.msra.mxu0 0.0
    %1937 = vmatprep.subr.mxu0 0.0
    %1938 = vmatpush1.msra.mxu0 0.0
    %1939 = vmatprep.subr.mxu0 0.0
    %1940 = vmatpush1.msra.mxu0 0.0
    %1941 = vmatprep.subr.mxu0 0.0
    %1942 = vmatpush1.msra.mxu0 0.0
    %1943 = vmatprep.subr.mxu0 0.0
    %1944 = vmatpush1.msra.mxu0 0.0
    %1945 = vmatprep.subr.mxu0 0.0
    %1946 = vmatpush1.msra.mxu0 0.0
    %1947 = vmatprep.subr.mxu0 0.0
    %1948 = vmatpush1.msra.mxu0 0.0
    %1949 = vmatprep.subr.mxu0 0.0
    %1950 = vmatpush1.msra.mxu0 0.0
    %1951 = vmatprep.subr.mxu0 0.0
    %1952 = vmatpush1.msra.mxu0 0.0
    %1953 = vmatprep.subr.mxu0 0.0
    %1954 = vmatpush1.msra.mxu0 0.0
    %1955 = vmatprep.subr.mxu0 0.0
    %1956 = vmatpush1.msra.mxu0 0.0
    %1957 = vmatprep.subr.mxu0 0.0
    %1958 = vmatpush1.msra.mxu0 0.0
    %1959 = vmatprep.subr.mxu0 0.0
    %1960 = vmatpush1.msra.mxu0 0.0
    %1961 = vmatprep.subr.mxu0 0.0
    %1962 = vmatpush1.msra.mxu0 0.0
    %1963 = vmatprep.mubr.f32.mxu0 0.0
    %1964 = vmatmul.mubr.f32.gmra.mrb[0].mxu0 %v1761
    %v1965 = vpop.f32.mrb[0].mxu0
    %v1966 = vadd.f32 %v1891, %v1965
    %v1967 = vpop.f32.mrb[0].mxu0
    %1968 = vmatprep.mubr.f32.mxu0 0.0
    %1969 = vmatmul.mubr.f32.gmra.mrb[0].mxu0 %v1766
    %v1970 = vpop.f32.mrb[0].mxu0
    %v1971 = vadd.f32 %v1896, %v1970
    %v1972 = vpop.f32.mrb[0].mxu0
    %1973 = vdwg.mxu0
    %v1974 = vld [vmem:[#allocation23] sm:$0x1]
    %v1976 = vlaneseq
    %v1977 = vshrl.u32 %v1976, 7
    %v1978 = vsub.s32 0, %v1977
    %v1979 = vrot.slane %v1974, %v1978
    %v1981 = vmul.f32 %v1166, %v1979
    %v1982 = vmul.f32 %v1171, %v1979
    %v1985 = vrot.slane %v1981, 2
    %v1986 = vrot.slane %v1982, 2
    %v1987 = vsel %vm1182, %v1985, %v1986
    %v1990 = vadd.f32 %v1966, %v1987
    %v1991 = vadd.f32 %v1971, %v1986
    %v1994 = vrot.slane %v1990, 2
    %v1995 = vrot.slane %v1991, 2
    %v1996 = vsel %vm1182, %v1994, %v1995
    %vm1998 = vcmask 1043456
    %v1999 = vrot.slane %v1990, 4
    %v2000 = vrot.slane %v1991, 4
    %v2001 = vsel %vm1998, %v1999, %v2000
    %s2003 = scalar_lea.vmem [#allocation14], 768
    %v2004 = vld [vmem:[%s2003] sm:$0xff]
    %v2005 = vld [vmem:[%s2003 + $0x8] sm:$0xff]
    %v2006 = vld [vmem:[%s2003 + $0x10] sm:$0xff]
    %v2007 = vld [vmem:[%s2003 + $0x18] sm:$0xff]
    %v2008 = vld [vmem:[%s2003 + $0x20] sm:$0xff]
    %v2009 = vld [vmem:[%s2003 + $0x28] sm:$0xff]
    %v2010 = vld [vmem:[%s2003 + $0x30] sm:$0xff]
    %v2011 = vld [vmem:[%s2003 + $0x38] sm:$0xff]
    %v2012 = vld [vmem:[%s2003 + $0x40] sm:$0xff]
    %v2013 = vld [vmem:[%s2003 + $0x48] sm:$0xff]
    %v2014 = vld [vmem:[%s2003 + $0x50] sm:$0xff]
    %v2015 = vld [vmem:[%s2003 + $0x58] sm:$0xff]
    %v2016 = vld [vmem:[%s2003 + $0x60] sm:$0xff]
    %v2017 = vld [vmem:[%s2003 + $0x68] sm:$0xff]
    %v2018 = vld [vmem:[%s2003 + $0x70] sm:$0xff]
    %v2019 = vld [vmem:[%s2003 + $0x78] sm:$0xff]
    %v2020 = vld [vmem:[%s2003 + $0x80] sm:$0xff]
    %v2021 = vld [vmem:[%s2003 + $0x88] sm:$0xff]
    %v2022 = vld [vmem:[%s2003 + $0x90] sm:$0xff]
    %v2023 = vld [vmem:[%s2003 + $0x98] sm:$0xff]
    %v2024 = vld [vmem:[%s2003 + $0xa0] sm:$0xff]
    %v2025 = vld [vmem:[%s2003 + $0xa8] sm:$0xff]
    %v2026 = vld [vmem:[%s2003 + $0xb0] sm:$0xff]
    %v2027 = vld [vmem:[%s2003 + $0xb8] sm:$0xff]
    %v2028 = vld [vmem:[%s2003 + $0xc0] sm:$0xff]
    %v2029 = vld [vmem:[%s2003 + $0xc8] sm:$0xff]
    %v2030 = vld [vmem:[%s2003 + $0xd0] sm:$0xff]
    %v2031 = vld [vmem:[%s2003 + $0xd8] sm:$0xff]
    %v2032 = vld [vmem:[%s2003 + $0xe0] sm:$0xff]
    %v2033 = vld [vmem:[%s2003 + $0xe8] sm:$0xff]
    %v2034 = vld [vmem:[%s2003 + $0xf0] sm:$0xff]
    %v2035 = vld [vmem:[%s2003 + $0xf8] sm:$0xff]
    %v2036 = vld [vmem:[%s2003 + $0x100] sm:$0xff]
    %v2037 = vld [vmem:[%s2003 + $0x108] sm:$0xff]
    %v2038 = vld [vmem:[%s2003 + $0x110] sm:$0xff]
    %v2039 = vld [vmem:[%s2003 + $0x118] sm:$0xff]
    %v2040 = vld [vmem:[%s2003 + $0x120] sm:$0xff]
    %v2041 = vld [vmem:[%s2003 + $0x128] sm:$0xff]
    %v2042 = vld [vmem:[%s2003 + $0x130] sm:$0xff]
    %v2043 = vld [vmem:[%s2003 + $0x138] sm:$0xff]
    %v2044 = vld [vmem:[%s2003 + $0x140] sm:$0xff]
    %v2045 = vld [vmem:[%s2003 + $0x148] sm:$0xff]
    %v2046 = vld [vmem:[%s2003 + $0x150] sm:$0xff]
    %v2047 = vld [vmem:[%s2003 + $0x158] sm:$0xff]
    %v2048 = vld [vmem:[%s2003 + $0x160] sm:$0xff]
    %v2049 = vld [vmem:[%s2003 + $0x168] sm:$0xff]
    %v2050 = vld [vmem:[%s2003 + $0x170] sm:$0xff]
    %v2051 = vld [vmem:[%s2003 + $0x178] sm:$0xff]
    %v2052 = vld [vmem:[%s2003 + $0x180] sm:$0xff]
    %v2053 = vld [vmem:[%s2003 + $0x188] sm:$0xff]
    %v2054 = vld [vmem:[%s2003 + $0x190] sm:$0xff]
    %v2055 = vld [vmem:[%s2003 + $0x198] sm:$0xff]
    %v2056 = vld [vmem:[%s2003 + $0x1a0] sm:$0xff]
    %v2057 = vld [vmem:[%s2003 + $0x1a8] sm:$0xff]
    %v2058 = vld [vmem:[%s2003 + $0x1b0] sm:$0xff]
    %v2059 = vld [vmem:[%s2003 + $0x1b8] sm:$0xff]
    %v2060 = vld [vmem:[%s2003 + $0x1c0] sm:$0xff]
    %v2061 = vld [vmem:[%s2003 + $0x1c8] sm:$0xff]
    %v2062 = vld [vmem:[%s2003 + $0x1d0] sm:$0xff]
    %v2063 = vld [vmem:[%s2003 + $0x1d8] sm:$0xff]
    %v2064 = vld [vmem:[%s2003 + $0x1e0] sm:$0xff]
    %v2065 = vld [vmem:[%s2003 + $0x1e8] sm:$0xff]
    %v2066 = vld [vmem:[%s2003 + $0x1f0] sm:$0xff]
    %v2067 = vld [vmem:[%s2003 + $0x1f8] sm:$0xff]
    %v2068 = vld [vmem:[%s2003 + $0x200] sm:$0xff]
    %v2069 = vld [vmem:[%s2003 + $0x208] sm:$0xff]
    %v2070 = vld [vmem:[%s2003 + $0x210] sm:$0xff]
    %v2071 = vld [vmem:[%s2003 + $0x218] sm:$0xff]
    %v2072 = vld [vmem:[%s2003 + $0x220] sm:$0xff]
    %v2073 = vld [vmem:[%s2003 + $0x228] sm:$0xff]
    %v2074 = vld [vmem:[%s2003 + $0x230] sm:$0xff]
    %v2075 = vld [vmem:[%s2003 + $0x238] sm:$0xff]
    %v2076 = vld [vmem:[%s2003 + $0x240] sm:$0xff]
    %v2077 = vld [vmem:[%s2003 + $0x248] sm:$0xff]
    %v2078 = vld [vmem:[%s2003 + $0x250] sm:$0xff]
    %v2079 = vld [vmem:[%s2003 + $0x258] sm:$0xff]
    %v2080 = vld [vmem:[%s2003 + $0x260] sm:$0xff]
    %v2081 = vld [vmem:[%s2003 + $0x268] sm:$0xff]
    %v2082 = vld [vmem:[%s2003 + $0x270] sm:$0xff]
    %v2083 = vld [vmem:[%s2003 + $0x278] sm:$0xff]
    %v2084 = vld [vmem:[%s2003 + $0x280] sm:$0xff]
    %v2085 = vld [vmem:[%s2003 + $0x288] sm:$0xff]
    %v2086 = vld [vmem:[%s2003 + $0x290] sm:$0xff]
    %v2087 = vld [vmem:[%s2003 + $0x298] sm:$0xff]
    %v2088 = vld [vmem:[%s2003 + $0x2a0] sm:$0xff]
    %v2089 = vld [vmem:[%s2003 + $0x2a8] sm:$0xff]
    %v2090 = vld [vmem:[%s2003 + $0x2b0] sm:$0xff]
    %v2091 = vld [vmem:[%s2003 + $0x2b8] sm:$0xff]
    %v2092 = vld [vmem:[%s2003 + $0x2c0] sm:$0xff]
    %v2093 = vld [vmem:[%s2003 + $0x2c8] sm:$0xff]
    %v2094 = vld [vmem:[%s2003 + $0x2d0] sm:$0xff]
    %v2095 = vld [vmem:[%s2003 + $0x2d8] sm:$0xff]
    %v2096 = vld [vmem:[%s2003 + $0x2e0] sm:$0xff]
    %v2097 = vld [vmem:[%s2003 + $0x2e8] sm:$0xff]
    %v2098 = vld [vmem:[%s2003 + $0x2f0] sm:$0xff]
    %v2099 = vld [vmem:[%s2003 + $0x2f8] sm:$0xff]
    %s2100 = scalar_lea.vmem [#allocation15], 2
    %v2101 = vld [vmem:[%s2100] sm:$0x3]
    %v2103 = vlaneseq
    %v2104 = vshrl.u32 %v2103, 7
    %v2105 = vsub.s32 0, %v2104
    %v2106 = vrot.slane %v2101, %v2105
    %v2107 = vlaneseq
    %v2108 = vshrl.u32 %v2107, 7
    %v2109 = vsub.s32 1, %v2108
    %v2110 = vrot.slane %v2101, %v2109
    %2113 = vmatprep.subr.mxu0 %v2005
    %2114 = vmatpush1.msra.mxu0 %v2004
    %2115 = vmatprep.subr.mxu0 %v2007
    %2116 = vmatpush1.msra.mxu0 %v2006
    %2117 = vmatprep.subr.mxu0 %v2009
    %2118 = vmatpush1.msra.mxu0 %v2008
    %2119 = vmatprep.subr.mxu0 %v2011
    %2120 = vmatpush1.msra.mxu0 %v2010
    %2121 = vmatprep.subr.mxu0 %v2013
    %2122 = vmatpush1.msra.mxu0 %v2012
    %2123 = vmatprep.subr.mxu0 %v2015
    %2124 = vmatpush1.msra.mxu0 %v2014
    %2125 = vmatprep.subr.mxu0 %v2017
    %2126 = vmatpush1.msra.mxu0 %v2016
    %2127 = vmatprep.subr.mxu0 %v2019
    %2128 = vmatpush1.msra.mxu0 %v2018
    %2129 = vmatprep.subr.mxu0 %v2021
    %2130 = vmatpush1.msra.mxu0 %v2020
    %2131 = vmatprep.subr.mxu0 %v2023
    %2132 = vmatpush1.msra.mxu0 %v2022
    %2133 = vmatprep.subr.mxu0 %v2025
    %2134 = vmatpush1.msra.mxu0 %v2024
    %2135 = vmatprep.subr.mxu0 %v2027
    %2136 = vmatpush1.msra.mxu0 %v2026
    %2137 = vmatprep.subr.mxu0 %v2029
    %2138 = vmatpush1.msra.mxu0 %v2028
    %2139 = vmatprep.subr.mxu0 %v2031
    %2140 = vmatpush1.msra.mxu0 %v2030
    %2141 = vmatprep.subr.mxu0 %v2033
    %2142 = vmatpush1.msra.mxu0 %v2032
    %2143 = vmatprep.subr.mxu0 %v2035
    %2144 = vmatpush1.msra.mxu0 %v2034
    %2145 = vmatprep.subr.mxu0 %v2037
    %2146 = vmatpush1.msra.mxu0 %v2036
    %2147 = vmatprep.subr.mxu0 %v2039
    %2148 = vmatpush1.msra.mxu0 %v2038
    %2149 = vmatprep.subr.mxu0 %v2041
    %2150 = vmatpush1.msra.mxu0 %v2040
    %2151 = vmatprep.subr.mxu0 %v2043
    %2152 = vmatpush1.msra.mxu0 %v2042
    %2153 = vmatprep.subr.mxu0 %v2045
    %2154 = vmatpush1.msra.mxu0 %v2044
    %2155 = vmatprep.subr.mxu0 %v2047
    %2156 = vmatpush1.msra.mxu0 %v2046
    %2157 = vmatprep.subr.mxu0 %v2049
    %2158 = vmatpush1.msra.mxu0 %v2048
    %2159 = vmatprep.subr.mxu0 %v2051
    %2160 = vmatpush1.msra.mxu0 %v2050
    %2161 = vmatprep.subr.mxu0 %v2053
    %2162 = vmatpush1.msra.mxu0 %v2052
    %2163 = vmatprep.subr.mxu0 %v2055
    %2164 = vmatpush1.msra.mxu0 %v2054
    %2165 = vmatprep.subr.mxu0 %v2057
    %2166 = vmatpush1.msra.mxu0 %v2056
    %2167 = vmatprep.subr.mxu0 %v2059
    %2168 = vmatpush1.msra.mxu0 %v2058
    %2169 = vmatprep.subr.mxu0 %v2061
    %2170 = vmatpush1.msra.mxu0 %v2060
    %2171 = vmatprep.subr.mxu0 %v2063
    %2172 = vmatpush1.msra.mxu0 %v2062
    %2173 = vmatprep.subr.mxu0 %v2065
    %2174 = vmatpush1.msra.mxu0 %v2064
    %2175 = vmatprep.subr.mxu0 %v2067
    %2176 = vmatpush1.msra.mxu0 %v2066
    %2177 = vmatprep.mubr.f32.mxu0 %v1996
    %2178 = vmatmul.mubr.f32.gmra.mrb[0].mxu0 %v1990
    %v2179 = vpop.f32.mrb[0].mxu0
    %v2180 = vadd.f32 %v2106, %v2179
    %v2181 = vpop.f32.mrb[0].mxu0
    %v2182 = vadd.f32 %v2110, %v2181
    %2183 = vdwg.mxu0
    %2184 = vmatprep.subr.mxu0 %v2069
    %2185 = vmatpush1.msra.mxu0 %v2068
    %2186 = vmatprep.subr.mxu0 %v2071
    %2187 = vmatpush1.msra.mxu0 %v2070
    %2188 = vmatprep.subr.mxu0 %v2073
    %2189 = vmatpush1.msra.mxu0 %v2072
    %2190 = vmatprep.subr.mxu0 %v2075
    %2191 = vmatpush1.msra.mxu0 %v2074
    %2192 = vmatprep.subr.mxu0 %v2077
    %2193 = vmatpush1.msra.mxu0 %v2076
    %2194 = vmatprep.subr.mxu0 %v2079
    %2195 = vmatpush1.msra.mxu0 %v2078
    %2196 = vmatprep.subr.mxu0 %v2081
    %2197 = vmatpush1.msra.mxu0 %v2080
    %2198 = vmatprep.subr.mxu0 %v2083
    %2199 = vmatpush1.msra.mxu0 %v2082
    %2200 = vmatprep.subr.mxu0 %v2085
    %2201 = vmatpush1.msra.mxu0 %v2084
    %2202 = vmatprep.subr.mxu0 %v2087
    %2203 = vmatpush1.msra.mxu0 %v2086
    %2204 = vmatprep.subr.mxu0 %v2089
    %2205 = vmatpush1.msra.mxu0 %v2088
    %2206 = vmatprep.subr.mxu0 %v2091
    %2207 = vmatpush1.msra.mxu0 %v2090
    %2208 = vmatprep.subr.mxu0 %v2093
    %2209 = vmatpush1.msra.mxu0 %v2092
    %2210 = vmatprep.subr.mxu0 %v2095
    %2211 = vmatpush1.msra.mxu0 %v2094
    %2212 = vmatprep.subr.mxu0 %v2097
    %2213 = vmatpush1.msra.mxu0 %v2096
    %2214 = vmatprep.subr.mxu0 %v2099
    %2215 = vmatpush1.msra.mxu0 %v2098
    %2216 = vmatprep.subr.mxu0 0.0
    %2217 = vmatpush1.msra.mxu0 0.0
    %2218 = vmatprep.subr.mxu0 0.0
    %2219 = vmatpush1.msra.mxu0 0.0
    %2220 = vmatprep.subr.mxu0 0.0
    %2221 = vmatpush1.msra.mxu0 0.0
    %2222 = vmatprep.subr.mxu0 0.0
    %2223 = vmatpush1.msra.mxu0 0.0
    %2224 = vmatprep.subr.mxu0 0.0
    %2225 = vmatpush1.msra.mxu0 0.0
    %2226 = vmatprep.subr.mxu0 0.0
    %2227 = vmatpush1.msra.mxu0 0.0
    %2228 = vmatprep.subr.mxu0 0.0
    %2229 = vmatpush1.msra.mxu0 0.0
    %2230 = vmatprep.subr.mxu0 0.0
    %2231 = vmatpush1.msra.mxu0 0.0
    %2232 = vmatprep.subr.mxu0 0.0
    %2233 = vmatpush1.msra.mxu0 0.0
    %2234 = vmatprep.subr.mxu0 0.0
    %2235 = vmatpush1.msra.mxu0 0.0
    %2236 = vmatprep.subr.mxu0 0.0
    %2237 = vmatpush1.msra.mxu0 0.0
    %2238 = vmatprep.subr.mxu0 0.0
    %2239 = vmatpush1.msra.mxu0 0.0
    %2240 = vmatprep.subr.mxu0 0.0
    %2241 = vmatpush1.msra.mxu0 0.0
    %2242 = vmatprep.subr.mxu0 0.0
    %2243 = vmatpush1.msra.mxu0 0.0
    %2244 = vmatprep.subr.mxu0 0.0
    %2245 = vmatpush1.msra.mxu0 0.0
    %2246 = vmatprep.subr.mxu0 0.0
    %2247 = vmatpush1.msra.mxu0 0.0
    %2248 = vmatprep.mubr.f32.mxu0 0.0
    %2249 = vmatmul.mubr.f32.gmra.mrb[0].mxu0 %v2001
    %v2250 = vpop.f32.mrb[0].mxu0
    %v2251 = vadd.f32 %v2180, %v2250
    %v2252 = vpop.f32.mrb[0].mxu0
    %v2253 = vadd.f32 %v2182, %v2252
    %2254 = vdwg.mxu0
    %v2255 = vtanh.pop %v2251
    %v2256 = vxor.u32 %v2253, 2147483648
    %v2257 = vmul.f32 %v2256, 1.442695
    %v2258 = vpow.pop %v2257
    %v2259 = vadd.f32 %v2258, 1.0
    %v2260 = vrcp.pop %v2259
    %v2261 = vmul.f32 1.0, %v2260
    %v2262 = vmul.f32 %v2255, %v2261
    %s2263 = scalar_lea.vmem [#allocation17], 256
    %v2264 = vld [vmem:[%s2263] sm:$0xff]
    %v2265 = vld [vmem:[%s2263 + $0x8] sm:$0xff]
    %v2266 = vld [vmem:[%s2263 + $0x10] sm:$0xff]
    %v2267 = vld [vmem:[%s2263 + $0x18] sm:$0xff]
    %v2268 = vld [vmem:[%s2263 + $0x20] sm:$0xff]
    %v2269 = vld [vmem:[%s2263 + $0x28] sm:$0xff]
    %v2270 = vld [vmem:[%s2263 + $0x30] sm:$0xff]
    %v2271 = vld [vmem:[%s2263 + $0x38] sm:$0xff]
    %v2272 = vld [vmem:[%s2263 + $0x40] sm:$0xff]
    %v2273 = vld [vmem:[%s2263 + $0x48] sm:$0xff]
    %v2274 = vld [vmem:[%s2263 + $0x50] sm:$0xff]
    %v2275 = vld [vmem:[%s2263 + $0x58] sm:$0xff]
    %v2276 = vld [vmem:[%s2263 + $0x60] sm:$0xff]
    %v2277 = vld [vmem:[%s2263 + $0x68] sm:$0xff]
    %v2278 = vld [vmem:[%s2263 + $0x70] sm:$0xff]
    %v2279 = vld [vmem:[%s2263 + $0x78] sm:$0xff]
    %v2280 = vld [vmem:[%s2263 + $0x80] sm:$0xff]
    %v2281 = vld [vmem:[%s2263 + $0x88] sm:$0xff]
    %v2282 = vld [vmem:[%s2263 + $0x90] sm:$0xff]
    %v2283 = vld [vmem:[%s2263 + $0x98] sm:$0xff]
    %v2284 = vld [vmem:[%s2263 + $0xa0] sm:$0xff]
    %v2285 = vld [vmem:[%s2263 + $0xa8] sm:$0xff]
    %v2286 = vld [vmem:[%s2263 + $0xb0] sm:$0xff]
    %v2287 = vld [vmem:[%s2263 + $0xb8] sm:$0xff]
    %v2288 = vld [vmem:[%s2263 + $0xc0] sm:$0xff]
    %v2289 = vld [vmem:[%s2263 + $0xc8] sm:$0xff]
    %v2290 = vld [vmem:[%s2263 + $0xd0] sm:$0xff]
    %v2291 = vld [vmem:[%s2263 + $0xd8] sm:$0xff]
    %v2292 = vld [vmem:[%s2263 + $0xe0] sm:$0xff]
    %v2293 = vld [vmem:[%s2263 + $0xe8] sm:$0xff]
    %v2294 = vld [vmem:[%s2263 + $0xf0] sm:$0xff]
    %v2295 = vld [vmem:[%s2263 + $0xf8] sm:$0xff]
    %s2296 = scalar_lea.vmem [#allocation18], 2
    %v2297 = vld [vmem:[%s2296] sm:$0x3]
    %v2299 = vlaneseq
    %v2300 = vshrl.u32 %v2299, 7
    %v2301 = vsub.s32 0, %v2300
    %v2302 = vrot.slane %v2297, %v2301
    %v2303 = vlaneseq
    %v2304 = vshrl.u32 %v2303, 7
    %v2305 = vsub.s32 1, %v2304
    %v2306 = vrot.slane %v2297, %v2305
    %2309 = vmatprep.subr.mxu0 %v2265
    %2310 = vmatpush1.msra.mxu0 %v2264
    %2311 = vmatprep.subr.mxu0 %v2267
    %2312 = vmatpush1.msra.mxu0 %v2266
    %2313 = vmatprep.subr.mxu0 %v2269
    %2314 = vmatpush1.msra.mxu0 %v2268
    %2315 = vmatprep.subr.mxu0 %v2271
    %2316 = vmatpush1.msra.mxu0 %v2270
    %2317 = vmatprep.subr.mxu0 %v2273
    %2318 = vmatpush1.msra.mxu0 %v2272
    %2319 = vmatprep.subr.mxu0 %v2275
    %2320 = vmatpush1.msra.mxu0 %v2274
    %2321 = vmatprep.subr.mxu0 %v2277
    %2322 = vmatpush1.msra.mxu0 %v2276
    %2323 = vmatprep.subr.mxu0 %v2279
    %2324 = vmatpush1.msra.mxu0 %v2278
    %2325 = vmatprep.subr.mxu0 %v2281
    %2326 = vmatpush1.msra.mxu0 %v2280
    %2327 = vmatprep.subr.mxu0 %v2283
    %2328 = vmatpush1.msra.mxu0 %v2282
    %2329 = vmatprep.subr.mxu0 %v2285
    %2330 = vmatpush1.msra.mxu0 %v2284
    %2331 = vmatprep.subr.mxu0 %v2287
    %2332 = vmatpush1.msra.mxu0 %v2286
    %2333 = vmatprep.subr.mxu0 %v2289
    %2334 = vmatpush1.msra.mxu0 %v2288
    %2335 = vmatprep.subr.mxu0 %v2291
    %2336 = vmatpush1.msra.mxu0 %v2290
    %2337 = vmatprep.subr.mxu0 %v2293
    %2338 = vmatpush1.msra.mxu0 %v2292
    %2339 = vmatprep.subr.mxu0 %v2295
    %2340 = vmatpush1.msra.mxu0 %v2294
    %2341 = vmatprep.subr.mxu0 0.0
    %2342 = vmatpush1.msra.mxu0 0.0
    %2343 = vmatprep.subr.mxu0 0.0
    %2344 = vmatpush1.msra.mxu0 0.0
    %2345 = vmatprep.subr.mxu0 0.0
    %2346 = vmatpush1.msra.mxu0 0.0
    %2347 = vmatprep.subr.mxu0 0.0
    %2348 = vmatpush1.msra.mxu0 0.0
    %2349 = vmatprep.subr.mxu0 0.0
    %2350 = vmatpush1.msra.mxu0 0.0
    %2351 = vmatprep.subr.mxu0 0.0
    %2352 = vmatpush1.msra.mxu0 0.0
    %2353 = vmatprep.subr.mxu0 0.0
    %2354 = vmatpush1.msra.mxu0 0.0
    %2355 = vmatprep.subr.mxu0 0.0
    %2356 = vmatpush1.msra.mxu0 0.0
    %2357 = vmatprep.subr.mxu0 0.0
    %2358 = vmatpush1.msra.mxu0 0.0
    %2359 = vmatprep.subr.mxu0 0.0
    %2360 = vmatpush1.msra.mxu0 0.0
    %2361 = vmatprep.subr.mxu0 0.0
    %2362 = vmatpush1.msra.mxu0 0.0
    %2363 = vmatprep.subr.mxu0 0.0
    %2364 = vmatpush1.msra.mxu0 0.0
    %2365 = vmatprep.subr.mxu0 0.0
    %2366 = vmatpush1.msra.mxu0 0.0
    %2367 = vmatprep.subr.mxu0 0.0
    %2368 = vmatpush1.msra.mxu0 0.0
    %2369 = vmatprep.subr.mxu0 0.0
    %2370 = vmatpush1.msra.mxu0 0.0
    %2371 = vmatprep.subr.mxu0 0.0
    %2372 = vmatpush1.msra.mxu0 0.0
    %2373 = vmatprep.mubr.f32.mxu0 0.0
    %2374 = vmatmul.mubr.f32.gmra.mrb[0].mxu0 %v2262
    %v2375 = vpop.f32.mrb[0].mxu0
    %v2376 = vadd.f32 %v2302, %v2375
    %v2377 = vpop.f32.mrb[0].mxu0
    %v2378 = vadd.f32 %v2306, %v2377
    %2379 = vdwg.mxu0
    %v2384 = vrot.slane %v1577, 4
    %v2385 = vrot.slane %v1583, 4
    %v2386 = vsel %vm1998, %v2384, %v2385
    %v2387 = vrot.slane %v1579, 4
    %v2388 = vrot.slane %v1585, 4
    %v2389 = vsel %vm1998, %v2387, %v2388
    %v2392 = vadd.f32 %v2376, %v2386
    %v2393 = vadd.f32 %v2378, %v2389
    %2394 = vmatprep.subr.mxu0 0.0
    %2395 = vmatpush1.msra.mxu0 %v1587
    %2396 = vmatprep.subr.mxu0 0.0
    %2397 = vmatpush1.msra.mxu0 %v1588
    %2398 = vmatprep.subr.mxu0 0.0
    %2399 = vmatpush1.msra.mxu0 %v1589
    %2400 = vmatprep.subr.mxu0 0.0
    %2401 = vmatpush1.msra.mxu0 %v1590
    %2402 = vmatprep.subr.mxu0 0.0
    %2403 = vmatpush1.msra.mxu0 %v1591
    %2404 = vmatprep.subr.mxu0 0.0
    %2405 = vmatpush1.msra.mxu0 %v1592
    %2406 = vmatprep.subr.mxu0 0.0
    %2407 = vmatpush1.msra.mxu0 %v1593
    %2408 = vmatprep.subr.mxu0 0.0
    %2409 = vmatpush1.msra.mxu0 %v1594
    %2410 = vmatprep.subr.mxu0 0.0
    %2411 = vmatpush1.msra.mxu0 %v1595
    %2412 = vmatprep.subr.mxu0 0.0
    %2413 = vmatpush1.msra.mxu0 %v1596
    %2414 = vmatprep.subr.mxu0 0.0
    %2415 = vmatpush1.msra.mxu0 %v1597
    %2416 = vmatprep.subr.mxu0 0.0
    %2417 = vmatpush1.msra.mxu0 %v1598
    %2418 = vmatprep.subr.mxu0 0.0
    %2419 = vmatpush1.msra.mxu0 %v1599
    %2420 = vmatprep.subr.mxu0 0.0
    %2421 = vmatpush1.msra.mxu0 %v1600
    %2422 = vmatprep.subr.mxu0 0.0
    %2423 = vmatpush1.msra.mxu0 %v1601
    %2424 = vmatprep.subr.mxu0 0.0
    %2425 = vmatpush1.msra.mxu0 %v1602
    %2426 = vmatprep.subr.mxu0 0.0
    %2427 = vmatpush1.msra.mxu0 0.0
    %2428 = vmatprep.subr.mxu0 0.0
    %2429 = vmatpush1.msra.mxu0 0.0
    %2430 = vmatprep.subr.mxu0 0.0
    %2431 = vmatpush1.msra.mxu0 0.0
    %2432 = vmatprep.subr.mxu0 0.0
    %2433 = vmatpush1.msra.mxu0 0.0
    %2434 = vmatprep.subr.mxu0 0.0
    %2435 = vmatpush1.msra.mxu0 0.0
    %2436 = vmatprep.subr.mxu0 0.0
    %2437 = vmatpush1.msra.mxu0 0.0
    %2438 = vmatprep.subr.mxu0 0.0
    %2439 = vmatpush1.msra.mxu0 0.0
    %2440 = vmatprep.subr.mxu0 0.0
    %2441 = vmatpush1.msra.mxu0 0.0
    %2442 = vmatprep.subr.mxu0 0.0
    %2443 = vmatpush1.msra.mxu0 0.0
    %2444 = vmatprep.subr.mxu0 0.0
    %2445 = vmatpush1.msra.mxu0 0.0
    %2446 = vmatprep.subr.mxu0 0.0
    %2447 = vmatpush1.msra.mxu0 0.0
    %2448 = vmatprep.subr.mxu0 0.0
    %2449 = vmatpush1.msra.mxu0 0.0
    %2450 = vmatprep.subr.mxu0 0.0
    %2451 = vmatpush1.msra.mxu0 0.0
    %2452 = vmatprep.subr.mxu0 0.0
    %2453 = vmatpush1.msra.mxu0 0.0
    %2454 = vmatprep.subr.mxu0 0.0
    %2455 = vmatpush1.msra.mxu0 0.0
    %2456 = vmatprep.subr.mxu0 0.0
    %2457 = vmatpush1.msra.mxu0 0.0
    %2458 = vmatprep.mubr.f32.mxu0 0.0
    %2459 = vmatmul.mubr.f32.gmra.mrb[0].mxu0 %v2262
    %v2460 = vpop.f32.mrb[0].mxu0
    %v2461 = vadd.f32 0.0, %v2460
    %v2462 = vpop.f32.mrb[0].mxu0
    %2463 = vdwg.mxu0
    %2464 = vmatprep.subr.mxu0 0.0
    %2465 = vmatpush1.msra.mxu0 %v1678
    %2466 = vmatprep.subr.mxu0 0.0
    %2467 = vmatpush1.msra.mxu0 %v1679
    %2468 = vmatprep.subr.mxu0 0.0
    %2469 = vmatpush1.msra.mxu0 %v1680
    %2470 = vmatprep.subr.mxu0 0.0
    %2471 = vmatpush1.msra.mxu0 %v1681
    %2472 = vmatprep.subr.mxu0 0.0
    %2473 = vmatpush1.msra.mxu0 %v1682
    %2474 = vmatprep.subr.mxu0 0.0
    %2475 = vmatpush1.msra.mxu0 %v1683
    %2476 = vmatprep.subr.mxu0 0.0
    %2477 = vmatpush1.msra.mxu0 %v1684
    %2478 = vmatprep.subr.mxu0 0.0
    %2479 = vmatpush1.msra.mxu0 %v1685
    %2480 = vmatprep.subr.mxu0 0.0
    %2481 = vmatpush1.msra.mxu0 %v1686
    %2482 = vmatprep.subr.mxu0 0.0
    %2483 = vmatpush1.msra.mxu0 %v1687
    %2484 = vmatprep.subr.mxu0 0.0
    %2485 = vmatpush1.msra.mxu0 %v1688
    %2486 = vmatprep.subr.mxu0 0.0
    %2487 = vmatpush1.msra.mxu0 %v1689
    %2488 = vmatprep.subr.mxu0 0.0
    %2489 = vmatpush1.msra.mxu0 %v1690
    %2490 = vmatprep.subr.mxu0 0.0
    %2491 = vmatpush1.msra.mxu0 %v1691
    %2492 = vmatprep.subr.mxu0 0.0
    %2493 = vmatpush1.msra.mxu0 %v1692
    %2494 = vmatprep.subr.mxu0 0.0
    %2495 = vmatpush1.msra.mxu0 %v1693
    %2496 = vmatprep.subr.mxu0 0.0
    %2497 = vmatpush1.msra.mxu0 0.0
    %2498 = vmatprep.subr.mxu0 0.0
    %2499 = vmatpush1.msra.mxu0 0.0
    %2500 = vmatprep.subr.mxu0 0.0
    %2501 = vmatpush1.msra.mxu0 0.0
    %2502 = vmatprep.subr.mxu0 0.0
    %2503 = vmatpush1.msra.mxu0 0.0
    %2504 = vmatprep.subr.mxu0 0.0
    %2505 = vmatpush1.msra.mxu0 0.0
    %2506 = vmatprep.subr.mxu0 0.0
    %2507 = vmatpush1.msra.mxu0 0.0
    %2508 = vmatprep.subr.mxu0 0.0
    %2509 = vmatpush1.msra.mxu0 0.0
    %2510 = vmatprep.subr.mxu0 0.0
    %2511 = vmatpush1.msra.mxu0 0.0
    %2512 = vmatprep.subr.mxu0 0.0
    %2513 = vmatpush1.msra.mxu0 0.0
    %2514 = vmatprep.subr.mxu0 0.0
    %2515 = vmatpush1.msra.mxu0 0.0
    %2516 = vmatprep.subr.mxu0 0.0
    %2517 = vmatpush1.msra.mxu0 0.0
    %2518 = vmatprep.subr.mxu0 0.0
    %2519 = vmatpush1.msra.mxu0 0.0
    %2520 = vmatprep.subr.mxu0 0.0
    %2521 = vmatpush1.msra.mxu0 0.0
    %2522 = vmatprep.subr.mxu0 0.0
    %2523 = vmatpush1.msra.mxu0 0.0
    %2524 = vmatprep.subr.mxu0 0.0
    %2525 = vmatpush1.msra.mxu0 0.0
    %2526 = vmatprep.subr.mxu0 0.0
    %2527 = vmatpush1.msra.mxu0 0.0
    %2528 = vmatprep.mubr.f32.mxu0 0.0
    %2529 = vmatmul.mubr.f32.gmra.mrb[0].mxu0 %v2262
    %v2530 = vpop.f32.mrb[0].mxu0
    %v2531 = vadd.f32 0.0, %v2530
    %v2532 = vpop.f32.mrb[0].mxu0
    %2533 = vdwg.mxu0
    %s2534 = scalar_lea.vmem [#allocation20], 384
    %v2535 = vld [vmem:[%s2534] sm:$0xff]
    %v2536 = vld [vmem:[%s2534 + $0x8] sm:$0xff]
    %v2537 = vld [vmem:[%s2534 + $0x10] sm:$0xff]
    %v2538 = vld [vmem:[%s2534 + $0x18] sm:$0xff]
    %v2539 = vld [vmem:[%s2534 + $0x20] sm:$0xff]
    %v2540 = vld [vmem:[%s2534 + $0x28] sm:$0xff]
    %v2541 = vld [vmem:[%s2534 + $0x30] sm:$0xff]
    %v2542 = vld [vmem:[%s2534 + $0x38] sm:$0xff]
    %v2543 = vld [vmem:[%s2534 + $0x40] sm:$0xff]
    %v2544 = vld [vmem:[%s2534 + $0x48] sm:$0xff]
    %v2545 = vld [vmem:[%s2534 + $0x50] sm:$0xff]
    %v2546 = vld [vmem:[%s2534 + $0x58] sm:$0xff]
    %v2547 = vld [vmem:[%s2534 + $0x60] sm:$0xff]
    %v2548 = vld [vmem:[%s2534 + $0x68] sm:$0xff]
    %v2549 = vld [vmem:[%s2534 + $0x70] sm:$0xff]
    %v2550 = vld [vmem:[%s2534 + $0x78] sm:$0xff]
    %v2551 = vld [vmem:[%s2534 + $0x80] sm:$0xff]
    %v2552 = vld [vmem:[%s2534 + $0x88] sm:$0xff]
    %v2553 = vld [vmem:[%s2534 + $0x90] sm:$0xff]
    %v2554 = vld [vmem:[%s2534 + $0x98] sm:$0xff]
    %v2555 = vld [vmem:[%s2534 + $0xa0] sm:$0xff]
    %v2556 = vld [vmem:[%s2534 + $0xa8] sm:$0xff]
    %v2557 = vld [vmem:[%s2534 + $0xb0] sm:$0xff]
    %v2558 = vld [vmem:[%s2534 + $0xb8] sm:$0xff]
    %v2559 = vld [vmem:[%s2534 + $0xc0] sm:$0xff]
    %v2560 = vld [vmem:[%s2534 + $0xc8] sm:$0xff]
    %v2561 = vld [vmem:[%s2534 + $0xd0] sm:$0xff]
    %v2562 = vld [vmem:[%s2534 + $0xd8] sm:$0xff]
    %v2563 = vld [vmem:[%s2534 + $0xe0] sm:$0xff]
    %v2564 = vld [vmem:[%s2534 + $0xe8] sm:$0xff]
    %v2565 = vld [vmem:[%s2534 + $0xf0] sm:$0xff]
    %v2566 = vld [vmem:[%s2534 + $0xf8] sm:$0xff]
    %v2567 = vld [vmem:[%s2534 + $0x100] sm:$0xff]
    %v2568 = vld [vmem:[%s2534 + $0x108] sm:$0xff]
    %v2569 = vld [vmem:[%s2534 + $0x110] sm:$0xff]
    %v2570 = vld [vmem:[%s2534 + $0x118] sm:$0xff]
    %v2571 = vld [vmem:[%s2534 + $0x120] sm:$0xff]
    %v2572 = vld [vmem:[%s2534 + $0x128] sm:$0xff]
    %v2573 = vld [vmem:[%s2534 + $0x130] sm:$0xff]
    %v2574 = vld [vmem:[%s2534 + $0x138] sm:$0xff]
    %v2575 = vld [vmem:[%s2534 + $0x140] sm:$0xff]
    %v2576 = vld [vmem:[%s2534 + $0x148] sm:$0xff]
    %v2577 = vld [vmem:[%s2534 + $0x150] sm:$0xff]
    %v2578 = vld [vmem:[%s2534 + $0x158] sm:$0xff]
    %v2579 = vld [vmem:[%s2534 + $0x160] sm:$0xff]
    %v2580 = vld [vmem:[%s2534 + $0x168] sm:$0xff]
    %v2581 = vld [vmem:[%s2534 + $0x170] sm:$0xff]
    %v2582 = vld [vmem:[%s2534 + $0x178] sm:$0xff]
    %s2583 = scalar_lea.vmem [#allocation21], 1
    %v2584 = vld [vmem:[%s2583] sm:$0x1]
    %v2586 = vlaneseq
    %v2587 = vshrl.u32 %v2586, 7
    %v2588 = vsub.s32 0, %v2587
    %v2589 = vrot.slane %v2584, %v2588
    %2591 = vmatprep.subr.mxu0 0.0
    %2592 = vmatpush1.msra.mxu0 %v2535
    %2593 = vmatprep.subr.mxu0 0.0
    %2594 = vmatpush1.msra.mxu0 %v2536
    %2595 = vmatprep.subr.mxu0 0.0
    %2596 = vmatpush1.msra.mxu0 %v2537
    %2597 = vmatprep.subr.mxu0 0.0
    %2598 = vmatpush1.msra.mxu0 %v2538
    %2599 = vmatprep.subr.mxu0 0.0
    %2600 = vmatpush1.msra.mxu0 %v2539
    %2601 = vmatprep.subr.mxu0 0.0
    %2602 = vmatpush1.msra.mxu0 %v2540
    %2603 = vmatprep.subr.mxu0 0.0
    %2604 = vmatpush1.msra.mxu0 %v2541
    %2605 = vmatprep.subr.mxu0 0.0
    %2606 = vmatpush1.msra.mxu0 %v2542
    %2607 = vmatprep.subr.mxu0 0.0
    %2608 = vmatpush1.msra.mxu0 %v2543
    %2609 = vmatprep.subr.mxu0 0.0
    %2610 = vmatpush1.msra.mxu0 %v2544
    %2611 = vmatprep.subr.mxu0 0.0
    %2612 = vmatpush1.msra.mxu0 %v2545
    %2613 = vmatprep.subr.mxu0 0.0
    %2614 = vmatpush1.msra.mxu0 %v2546
    %2615 = vmatprep.subr.mxu0 0.0
    %2616 = vmatpush1.msra.mxu0 %v2547
    %2617 = vmatprep.subr.mxu0 0.0
    %2618 = vmatpush1.msra.mxu0 %v2548
    %2619 = vmatprep.subr.mxu0 0.0
    %2620 = vmatpush1.msra.mxu0 %v2549
    %2621 = vmatprep.subr.mxu0 0.0
    %2622 = vmatpush1.msra.mxu0 %v2550
    %2623 = vmatprep.subr.mxu0 0.0
    %2624 = vmatpush1.msra.mxu0 %v2551
    %2625 = vmatprep.subr.mxu0 0.0
    %2626 = vmatpush1.msra.mxu0 %v2552
    %2627 = vmatprep.subr.mxu0 0.0
    %2628 = vmatpush1.msra.mxu0 %v2553
    %2629 = vmatprep.subr.mxu0 0.0
    %2630 = vmatpush1.msra.mxu0 %v2554
    %2631 = vmatprep.subr.mxu0 0.0
    %2632 = vmatpush1.msra.mxu0 %v2555
    %2633 = vmatprep.subr.mxu0 0.0
    %2634 = vmatpush1.msra.mxu0 %v2556
    %2635 = vmatprep.subr.mxu0 0.0
    %2636 = vmatpush1.msra.mxu0 %v2557
    %2637 = vmatprep.subr.mxu0 0.0
    %2638 = vmatpush1.msra.mxu0 %v2558
    %2639 = vmatprep.subr.mxu0 0.0
    %2640 = vmatpush1.msra.mxu0 %v2559
    %2641 = vmatprep.subr.mxu0 0.0
    %2642 = vmatpush1.msra.mxu0 %v2560
    %2643 = vmatprep.subr.mxu0 0.0
    %2644 = vmatpush1.msra.mxu0 %v2561
    %2645 = vmatprep.subr.mxu0 0.0
    %2646 = vmatpush1.msra.mxu0 %v2562
    %2647 = vmatprep.subr.mxu0 0.0
    %2648 = vmatpush1.msra.mxu0 %v2563
    %2649 = vmatprep.subr.mxu0 0.0
    %2650 = vmatpush1.msra.mxu0 %v2564
    %2651 = vmatprep.subr.mxu0 0.0
    %2652 = vmatpush1.msra.mxu0 %v2565
    %2653 = vmatprep.subr.mxu0 0.0
    %2654 = vmatpush1.msra.mxu0 %v2566
    %2655 = vmatprep.mubr.f32.mxu0 %v2461
    %2656 = vmatmul.mubr.f32.gmra.mrb[0].mxu0 %v2262
    %v2657 = vpop.f32.mrb[0].mxu0
    %v2658 = vadd.f32 %v2589, %v2657
    %v2659 = vpop.f32.mrb[0].mxu0
    %2660 = vdwg.mxu0
    %2661 = vmatprep.subr.mxu0 0.0
    %2662 = vmatpush1.msra.mxu0 %v2567
    %2663 = vmatprep.subr.mxu0 0.0
    %2664 = vmatpush1.msra.mxu0 %v2568
    %2665 = vmatprep.subr.mxu0 0.0
    %2666 = vmatpush1.msra.mxu0 %v2569
    %2667 = vmatprep.subr.mxu0 0.0
    %2668 = vmatpush1.msra.mxu0 %v2570
    %2669 = vmatprep.subr.mxu0 0.0
    %2670 = vmatpush1.msra.mxu0 %v2571
    %2671 = vmatprep.subr.mxu0 0.0
    %2672 = vmatpush1.msra.mxu0 %v2572
    %2673 = vmatprep.subr.mxu0 0.0
    %2674 = vmatpush1.msra.mxu0 %v2573
    %2675 = vmatprep.subr.mxu0 0.0
    %2676 = vmatpush1.msra.mxu0 %v2574
    %2677 = vmatprep.subr.mxu0 0.0
    %2678 = vmatpush1.msra.mxu0 %v2575
    %2679 = vmatprep.subr.mxu0 0.0
    %2680 = vmatpush1.msra.mxu0 %v2576
    %2681 = vmatprep.subr.mxu0 0.0
    %2682 = vmatpush1.msra.mxu0 %v2577
    %2683 = vmatprep.subr.mxu0 0.0
    %2684 = vmatpush1.msra.mxu0 %v2578
    %2685 = vmatprep.subr.mxu0 0.0
    %2686 = vmatpush1.msra.mxu0 %v2579
    %2687 = vmatprep.subr.mxu0 0.0
    %2688 = vmatpush1.msra.mxu0 %v2580
    %2689 = vmatprep.subr.mxu0 0.0
    %2690 = vmatpush1.msra.mxu0 %v2581
    %2691 = vmatprep.subr.mxu0 0.0
    %2692 = vmatpush1.msra.mxu0 %v2582
    %2693 = vmatprep.subr.mxu0 0.0
    %2694 = vmatpush1.msra.mxu0 0.0
    %2695 = vmatprep.subr.mxu0 0.0
    %2696 = vmatpush1.msra.mxu0 0.0
    %2697 = vmatprep.subr.mxu0 0.0
    %2698 = vmatpush1.msra.mxu0 0.0
    %2699 = vmatprep.subr.mxu0 0.0
    %2700 = vmatpush1.msra.mxu0 0.0
    %2701 = vmatprep.subr.mxu0 0.0
    %2702 = vmatpush1.msra.mxu0 0.0
    %2703 = vmatprep.subr.mxu0 0.0
    %2704 = vmatpush1.msra.mxu0 0.0
    %2705 = vmatprep.subr.mxu0 0.0
    %2706 = vmatpush1.msra.mxu0 0.0
    %2707 = vmatprep.subr.mxu0 0.0
    %2708 = vmatpush1.msra.mxu0 0.0
    %2709 = vmatprep.subr.mxu0 0.0
    %2710 = vmatpush1.msra.mxu0 0.0
    %2711 = vmatprep.subr.mxu0 0.0
    %2712 = vmatpush1.msra.mxu0 0.0
    %2713 = vmatprep.subr.mxu0 0.0
    %2714 = vmatpush1.msra.mxu0 0.0
    %2715 = vmatprep.subr.mxu0 0.0
    %2716 = vmatpush1.msra.mxu0 0.0
    %2717 = vmatprep.subr.mxu0 0.0
    %2718 = vmatpush1.msra.mxu0 0.0
    %2719 = vmatprep.subr.mxu0 0.0
    %2720 = vmatpush1.msra.mxu0 0.0
    %2721 = vmatprep.subr.mxu0 0.0
    %2722 = vmatpush1.msra.mxu0 0.0
    %2723 = vmatprep.subr.mxu0 0.0
    %2724 = vmatpush1.msra.mxu0 0.0
    %2725 = vmatprep.mubr.f32.mxu0 0.0
    %2726 = vmatmul.mubr.f32.gmra.mrb[0].mxu0 %v2531
    %v2727 = vpop.f32.mrb[0].mxu0
    %v2728 = vadd.f32 %v2658, %v2727
    %v2729 = vpop.f32.mrb[0].mxu0
    %2730 = vdwg.mxu0
    %s2731 = scalar_lea.vmem [#allocation23], 1
    %v2732 = vld [vmem:[%s2731] sm:$0x1]
    %v2734 = vlaneseq
    %v2735 = vshrl.u32 %v2734, 7
    %v2736 = vsub.s32 0, %v2735
    %v2737 = vrot.slane %v2732, %v2736
    %v2739 = vmul.f32 %v1990, %v2737
    %v2740 = vmul.f32 %v1991, %v2737
    %v2743 = vrot.slane %v2739, 4
    %v2744 = vrot.slane %v2740, 4
    %v2745 = vsel %vm1998, %v2743, %v2744
    %v2747 = vadd.f32 %v2728, %v2745
    %v2749 = vrot.slane %v2747, 1
    %v2751 = vrot.slane %v2747, 2
    %s2753 = scalar_lea.vmem [#allocation14], 1536
    %v2754 = vld [vmem:[%s2753] sm:$0xff]
    %v2755 = vld [vmem:[%s2753 + $0x8] sm:$0xff]
    %v2756 = vld [vmem:[%s2753 + $0x10] sm:$0xff]
    %v2757 = vld [vmem:[%s2753 + $0x18] sm:$0xff]
    %v2758 = vld [vmem:[%s2753 + $0x20] sm:$0xff]
    %v2759 = vld [vmem:[%s2753 + $0x28] sm:$0xff]
    %v2760 = vld [vmem:[%s2753 + $0x30] sm:$0xff]
    %v2761 = vld [vmem:[%s2753 + $0x38] sm:$0xff]
    %v2762 = vld [vmem:[%s2753 + $0x40] sm:$0xff]
    %v2763 = vld [vmem:[%s2753 + $0x48] sm:$0xff]
    %v2764 = vld [vmem:[%s2753 + $0x50] sm:$0xff]
    %v2765 = vld [vmem:[%s2753 + $0x58] sm:$0xff]
    %v2766 = vld [vmem:[%s2753 + $0x60] sm:$0xff]
    %v2767 = vld [vmem:[%s2753 + $0x68] sm:$0xff]
    %v2768 = vld [vmem:[%s2753 + $0x70] sm:$0xff]
    %v2769 = vld [vmem:[%s2753 + $0x78] sm:$0xff]
    %v2770 = vld [vmem:[%s2753 + $0x80] sm:$0xff]
    %v2771 = vld [vmem:[%s2753 + $0x88] sm:$0xff]
    %v2772 = vld [vmem:[%s2753 + $0x90] sm:$0xff]
    %v2773 = vld [vmem:[%s2753 + $0x98] sm:$0xff]
    %v2774 = vld [vmem:[%s2753 + $0xa0] sm:$0xff]
    %v2775 = vld [vmem:[%s2753 + $0xa8] sm:$0xff]
    %v2776 = vld [vmem:[%s2753 + $0xb0] sm:$0xff]
    %v2777 = vld [vmem:[%s2753 + $0xb8] sm:$0xff]
    %v2778 = vld [vmem:[%s2753 + $0xc0] sm:$0xff]
    %v2779 = vld [vmem:[%s2753 + $0xc8] sm:$0xff]
    %v2780 = vld [vmem:[%s2753 + $0xd0] sm:$0xff]
    %v2781 = vld [vmem:[%s2753 + $0xd8] sm:$0xff]
    %v2782 = vld [vmem:[%s2753 + $0xe0] sm:$0xff]
    %v2783 = vld [vmem:[%s2753 + $0xe8] sm:$0xff]
    %v2784 = vld [vmem:[%s2753 + $0xf0] sm:$0xff]
    %v2785 = vld [vmem:[%s2753 + $0xf8] sm:$0xff]
    %v2786 = vld [vmem:[%s2753 + $0x100] sm:$0xff]
    %v2787 = vld [vmem:[%s2753 + $0x108] sm:$0xff]
    %v2788 = vld [vmem:[%s2753 + $0x110] sm:$0xff]
    %v2789 = vld [vmem:[%s2753 + $0x118] sm:$0xff]
    %v2790 = vld [vmem:[%s2753 + $0x120] sm:$0xff]
    %v2791 = vld [vmem:[%s2753 + $0x128] sm:$0xff]
    %v2792 = vld [vmem:[%s2753 + $0x130] sm:$0xff]
    %v2793 = vld [vmem:[%s2753 + $0x138] sm:$0xff]
    %v2794 = vld [vmem:[%s2753 + $0x140] sm:$0xff]
    %v2795 = vld [vmem:[%s2753 + $0x148] sm:$0xff]
    %v2796 = vld [vmem:[%s2753 + $0x150] sm:$0xff]
    %v2797 = vld [vmem:[%s2753 + $0x158] sm:$0xff]
    %v2798 = vld [vmem:[%s2753 + $0x160] sm:$0xff]
    %v2799 = vld [vmem:[%s2753 + $0x168] sm:$0xff]
    %v2800 = vld [vmem:[%s2753 + $0x170] sm:$0xff]
    %v2801 = vld [vmem:[%s2753 + $0x178] sm:$0xff]
    %v2802 = vld [vmem:[%s2753 + $0x180] sm:$0xff]
    %v2803 = vld [vmem:[%s2753 + $0x188] sm:$0xff]
    %v2804 = vld [vmem:[%s2753 + $0x190] sm:$0xff]
    %v2805 = vld [vmem:[%s2753 + $0x198] sm:$0xff]
    %v2806 = vld [vmem:[%s2753 + $0x1a0] sm:$0xff]
    %v2807 = vld [vmem:[%s2753 + $0x1a8] sm:$0xff]
    %v2808 = vld [vmem:[%s2753 + $0x1b0] sm:$0xff]
    %v2809 = vld [vmem:[%s2753 + $0x1b8] sm:$0xff]
    %v2810 = vld [vmem:[%s2753 + $0x1c0] sm:$0xff]
    %v2811 = vld [vmem:[%s2753 + $0x1c8] sm:$0xff]
    %v2812 = vld [vmem:[%s2753 + $0x1d0] sm:$0xff]
    %v2813 = vld [vmem:[%s2753 + $0x1d8] sm:$0xff]
    %v2814 = vld [vmem:[%s2753 + $0x1e0] sm:$0xff]
    %v2815 = vld [vmem:[%s2753 + $0x1e8] sm:$0xff]
    %v2816 = vld [vmem:[%s2753 + $0x1f0] sm:$0xff]
    %v2817 = vld [vmem:[%s2753 + $0x1f8] sm:$0xff]
    %v2818 = vld [vmem:[%s2753 + $0x200] sm:$0xff]
    %v2819 = vld [vmem:[%s2753 + $0x208] sm:$0xff]
    %v2820 = vld [vmem:[%s2753 + $0x210] sm:$0xff]
    %v2821 = vld [vmem:[%s2753 + $0x218] sm:$0xff]
    %v2822 = vld [vmem:[%s2753 + $0x220] sm:$0xff]
    %v2823 = vld [vmem:[%s2753 + $0x228] sm:$0xff]
    %v2824 = vld [vmem:[%s2753 + $0x230] sm:$0xff]
    %v2825 = vld [vmem:[%s2753 + $0x238] sm:$0xff]
    %v2826 = vld [vmem:[%s2753 + $0x240] sm:$0xff]
    %v2827 = vld [vmem:[%s2753 + $0x248] sm:$0xff]
    %v2828 = vld [vmem:[%s2753 + $0x250] sm:$0xff]
    %v2829 = vld [vmem:[%s2753 + $0x258] sm:$0xff]
    %v2830 = vld [vmem:[%s2753 + $0x260] sm:$0xff]
    %v2831 = vld [vmem:[%s2753 + $0x268] sm:$0xff]
    %v2832 = vld [vmem:[%s2753 + $0x270] sm:$0xff]
    %v2833 = vld [vmem:[%s2753 + $0x278] sm:$0xff]
    %v2834 = vld [vmem:[%s2753 + $0x280] sm:$0xff]
    %v2835 = vld [vmem:[%s2753 + $0x288] sm:$0xff]
    %v2836 = vld [vmem:[%s2753 + $0x290] sm:$0xff]
    %v2837 = vld [vmem:[%s2753 + $0x298] sm:$0xff]
    %v2838 = vld [vmem:[%s2753 + $0x2a0] sm:$0xff]
    %v2839 = vld [vmem:[%s2753 + $0x2a8] sm:$0xff]
    %v2840 = vld [vmem:[%s2753 + $0x2b0] sm:$0xff]
    %v2841 = vld [vmem:[%s2753 + $0x2b8] sm:$0xff]
    %v2842 = vld [vmem:[%s2753 + $0x2c0] sm:$0xff]
    %v2843 = vld [vmem:[%s2753 + $0x2c8] sm:$0xff]
    %v2844 = vld [vmem:[%s2753 + $0x2d0] sm:$0xff]
    %v2845 = vld [vmem:[%s2753 + $0x2d8] sm:$0xff]
    %v2846 = vld [vmem:[%s2753 + $0x2e0] sm:$0xff]
    %v2847 = vld [vmem:[%s2753 + $0x2e8] sm:$0xff]
    %v2848 = vld [vmem:[%s2753 + $0x2f0] sm:$0xff]
    %v2849 = vld [vmem:[%s2753 + $0x2f8] sm:$0xff]
    %s2850 = scalar_lea.vmem [#allocation15], 4
    %v2851 = vld [vmem:[%s2850] sm:$0x3]
    %v2853 = vlaneseq
    %v2854 = vshrl.u32 %v2853, 7
    %v2855 = vsub.s32 0, %v2854
    %v2856 = vrot.slane %v2851, %v2855
    %v2857 = vlaneseq
    %v2858 = vshrl.u32 %v2857, 7
    %v2859 = vsub.s32 1, %v2858
    %v2860 = vrot.slane %v2851, %v2859
    %2863 = vmatprep.subr.mxu0 %v2755
    %2864 = vmatpush1.msra.mxu0 %v2754
    %2865 = vmatprep.subr.mxu0 %v2757
    %2866 = vmatpush1.msra.mxu0 %v2756
    %2867 = vmatprep.subr.mxu0 %v2759
    %2868 = vmatpush1.msra.mxu0 %v2758
    %2869 = vmatprep.subr.mxu0 %v2761
    %2870 = vmatpush1.msra.mxu0 %v2760
    %2871 = vmatprep.subr.mxu0 %v2763
    %2872 = vmatpush1.msra.mxu0 %v2762
    %2873 = vmatprep.subr.mxu0 %v2765
    %2874 = vmatpush1.msra.mxu0 %v2764
    %2875 = vmatprep.subr.mxu0 %v2767
    %2876 = vmatpush1.msra.mxu0 %v2766
    %2877 = vmatprep.subr.mxu0 %v2769
    %2878 = vmatpush1.msra.mxu0 %v2768
    %2879 = vmatprep.subr.mxu0 %v2771
    %2880 = vmatpush1.msra.mxu0 %v2770
    %2881 = vmatprep.subr.mxu0 %v2773
    %2882 = vmatpush1.msra.mxu0 %v2772
    %2883 = vmatprep.subr.mxu0 %v2775
    %2884 = vmatpush1.msra.mxu0 %v2774
    %2885 = vmatprep.subr.mxu0 %v2777
    %2886 = vmatpush1.msra.mxu0 %v2776
    %2887 = vmatprep.subr.mxu0 %v2779
    %2888 = vmatpush1.msra.mxu0 %v2778
    %2889 = vmatprep.subr.mxu0 %v2781
    %2890 = vmatpush1.msra.mxu0 %v2780
    %2891 = vmatprep.subr.mxu0 %v2783
    %2892 = vmatpush1.msra.mxu0 %v2782
    %2893 = vmatprep.subr.mxu0 %v2785
    %2894 = vmatpush1.msra.mxu0 %v2784
    %2895 = vmatprep.subr.mxu0 %v2787
    %2896 = vmatpush1.msra.mxu0 %v2786
    %2897 = vmatprep.subr.mxu0 %v2789
    %2898 = vmatpush1.msra.mxu0 %v2788
    %2899 = vmatprep.subr.mxu0 %v2791
    %2900 = vmatpush1.msra.mxu0 %v2790
    %2901 = vmatprep.subr.mxu0 %v2793
    %2902 = vmatpush1.msra.mxu0 %v2792
    %2903 = vmatprep.subr.mxu0 %v2795
    %2904 = vmatpush1.msra.mxu0 %v2794
    %2905 = vmatprep.subr.mxu0 %v2797
    %2906 = vmatpush1.msra.mxu0 %v2796
    %2907 = vmatprep.subr.mxu0 %v2799
    %2908 = vmatpush1.msra.mxu0 %v2798
    %2909 = vmatprep.subr.mxu0 %v2801
    %2910 = vmatpush1.msra.mxu0 %v2800
    %2911 = vmatprep.subr.mxu0 %v2803
    %2912 = vmatpush1.msra.mxu0 %v2802
    %2913 = vmatprep.subr.mxu0 %v2805
    %2914 = vmatpush1.msra.mxu0 %v2804
    %2915 = vmatprep.subr.mxu0 %v2807
    %2916 = vmatpush1.msra.mxu0 %v2806
    %2917 = vmatprep.subr.mxu0 %v2809
    %2918 = vmatpush1.msra.mxu0 %v2808
    %2919 = vmatprep.subr.mxu0 %v2811
    %2920 = vmatpush1.msra.mxu0 %v2810
    %2921 = vmatprep.subr.mxu0 %v2813
    %2922 = vmatpush1.msra.mxu0 %v2812
    %2923 = vmatprep.subr.mxu0 %v2815
    %2924 = vmatpush1.msra.mxu0 %v2814
    %2925 = vmatprep.subr.mxu0 %v2817
    %2926 = vmatpush1.msra.mxu0 %v2816
    %2927 = vmatprep.mubr.f32.mxu0 %v2749
    %2928 = vmatmul.mubr.f32.gmra.mrb[0].mxu0 %v2747
    %v2929 = vpop.f32.mrb[0].mxu0
    %v2930 = vadd.f32 %v2856, %v2929
    %v2931 = vpop.f32.mrb[0].mxu0
    %v2932 = vadd.f32 %v2860, %v2931
    %2933 = vdwg.mxu0
    %2934 = vmatprep.subr.mxu0 %v2819
    %2935 = vmatpush1.msra.mxu0 %v2818
    %2936 = vmatprep.subr.mxu0 %v2821
    %2937 = vmatpush1.msra.mxu0 %v2820
    %2938 = vmatprep.subr.mxu0 %v2823
    %2939 = vmatpush1.msra.mxu0 %v2822
    %2940 = vmatprep.subr.mxu0 %v2825
    %2941 = vmatpush1.msra.mxu0 %v2824
    %2942 = vmatprep.subr.mxu0 %v2827
    %2943 = vmatpush1.msra.mxu0 %v2826
    %2944 = vmatprep.subr.mxu0 %v2829
    %2945 = vmatpush1.msra.mxu0 %v2828
    %2946 = vmatprep.subr.mxu0 %v2831
    %2947 = vmatpush1.msra.mxu0 %v2830
    %2948 = vmatprep.subr.mxu0 %v2833
    %2949 = vmatpush1.msra.mxu0 %v2832
    %2950 = vmatprep.subr.mxu0 %v2835
    %2951 = vmatpush1.msra.mxu0 %v2834
    %2952 = vmatprep.subr.mxu0 %v2837
    %2953 = vmatpush1.msra.mxu0 %v2836
    %2954 = vmatprep.subr.mxu0 %v2839
    %2955 = vmatpush1.msra.mxu0 %v2838
    %2956 = vmatprep.subr.mxu0 %v2841
    %2957 = vmatpush1.msra.mxu0 %v2840
    %2958 = vmatprep.subr.mxu0 %v2843
    %2959 = vmatpush1.msra.mxu0 %v2842
    %2960 = vmatprep.subr.mxu0 %v2845
    %2961 = vmatpush1.msra.mxu0 %v2844
    %2962 = vmatprep.subr.mxu0 %v2847
    %2963 = vmatpush1.msra.mxu0 %v2846
    %2964 = vmatprep.subr.mxu0 %v2849
    %2965 = vmatpush1.msra.mxu0 %v2848
    %2966 = vmatprep.subr.mxu0 0.0
    %2967 = vmatpush1.msra.mxu0 0.0
    %2968 = vmatprep.subr.mxu0 0.0
    %2969 = vmatpush1.msra.mxu0 0.0
    %2970 = vmatprep.subr.mxu0 0.0
    %2971 = vmatpush1.msra.mxu0 0.0
    %2972 = vmatprep.subr.mxu0 0.0
    %2973 = vmatpush1.msra.mxu0 0.0
    %2974 = vmatprep.subr.mxu0 0.0
    %2975 = vmatpush1.msra.mxu0 0.0
    %2976 = vmatprep.subr.mxu0 0.0
    %2977 = vmatpush1.msra.mxu0 0.0
    %2978 = vmatprep.subr.mxu0 0.0
    %2979 = vmatpush1.msra.mxu0 0.0
    %2980 = vmatprep.subr.mxu0 0.0
    %2981 = vmatpush1.msra.mxu0 0.0
    %2982 = vmatprep.subr.mxu0 0.0
    %2983 = vmatpush1.msra.mxu0 0.0
    %2984 = vmatprep.subr.mxu0 0.0
    %2985 = vmatpush1.msra.mxu0 0.0
    %2986 = vmatprep.subr.mxu0 0.0
    %2987 = vmatpush1.msra.mxu0 0.0
    %2988 = vmatprep.subr.mxu0 0.0
    %2989 = vmatpush1.msra.mxu0 0.0
    %2990 = vmatprep.subr.mxu0 0.0
    %2991 = vmatpush1.msra.mxu0 0.0
    %2992 = vmatprep.subr.mxu0 0.0
    %2993 = vmatpush1.msra.mxu0 0.0
    %2994 = vmatprep.subr.mxu0 0.0
    %2995 = vmatpush1.msra.mxu0 0.0
    %2996 = vmatprep.subr.mxu0 0.0
    %2997 = vmatpush1.msra.mxu0 0.0
    %2998 = vmatprep.mubr.f32.mxu0 0.0
    %2999 = vmatmul.mubr.f32.gmra.mrb[0].mxu0 %v2751
    %v3000 = vpop.f32.mrb[0].mxu0
    %v3001 = vadd.f32 %v2930, %v3000
    %v3002 = vpop.f32.mrb[0].mxu0
    %v3003 = vadd.f32 %v2932, %v3002
    %3004 = vdwg.mxu0
    %v3005 = vtanh.pop %v3001
    %v3006 = vxor.u32 %v3003, 2147483648
    %v3007 = vmul.f32 %v3006, 1.442695
    %v3008 = vpow.pop %v3007
    %v3009 = vadd.f32 %v3008, 1.0
    %v3010 = vrcp.pop %v3009
    %v3011 = vmul.f32 1.0, %v3010
    %v3012 = vmul.f32 %v3005, %v3011
    %s3013 = scalar_lea.vmem [#allocation17], 512
    %v3014 = vld [vmem:[%s3013] sm:$0xff]
    %v3015 = vld [vmem:[%s3013 + $0x8] sm:$0xff]
    %v3016 = vld [vmem:[%s3013 + $0x10] sm:$0xff]
    %v3017 = vld [vmem:[%s3013 + $0x18] sm:$0xff]
    %v3018 = vld [vmem:[%s3013 + $0x20] sm:$0xff]
    %v3019 = vld [vmem:[%s3013 + $0x28] sm:$0xff]
    %v3020 = vld [vmem:[%s3013 + $0x30] sm:$0xff]
    %v3021 = vld [vmem:[%s3013 + $0x38] sm:$0xff]
    %v3022 = vld [vmem:[%s3013 + $0x40] sm:$0xff]
    %v3023 = vld [vmem:[%s3013 + $0x48] sm:$0xff]
    %v3024 = vld [vmem:[%s3013 + $0x50] sm:$0xff]
    %v3025 = vld [vmem:[%s3013 + $0x58] sm:$0xff]
    %v3026 = vld [vmem:[%s3013 + $0x60] sm:$0xff]
    %v3027 = vld [vmem:[%s3013 + $0x68] sm:$0xff]
    %v3028 = vld [vmem:[%s3013 + $0x70] sm:$0xff]
    %v3029 = vld [vmem:[%s3013 + $0x78] sm:$0xff]
    %v3030 = vld [vmem:[%s3013 + $0x80] sm:$0xff]
    %v3031 = vld [vmem:[%s3013 + $0x88] sm:$0xff]
    %v3032 = vld [vmem:[%s3013 + $0x90] sm:$0xff]
    %v3033 = vld [vmem:[%s3013 + $0x98] sm:$0xff]
    %v3034 = vld [vmem:[%s3013 + $0xa0] sm:$0xff]
    %v3035 = vld [vmem:[%s3013 + $0xa8] sm:$0xff]
    %v3036 = vld [vmem:[%s3013 + $0xb0] sm:$0xff]
    %v3037 = vld [vmem:[%s3013 + $0xb8] sm:$0xff]
    %v3038 = vld [vmem:[%s3013 + $0xc0] sm:$0xff]
    %v3039 = vld [vmem:[%s3013 + $0xc8] sm:$0xff]
    %v3040 = vld [vmem:[%s3013 + $0xd0] sm:$0xff]
    %v3041 = vld [vmem:[%s3013 + $0xd8] sm:$0xff]
    %v3042 = vld [vmem:[%s3013 + $0xe0] sm:$0xff]
    %v3043 = vld [vmem:[%s3013 + $0xe8] sm:$0xff]
    %v3044 = vld [vmem:[%s3013 + $0xf0] sm:$0xff]
    %v3045 = vld [vmem:[%s3013 + $0xf8] sm:$0xff]
    %s3046 = scalar_lea.vmem [#allocation18], 4
    %v3047 = vld [vmem:[%s3046] sm:$0x3]
    %v3049 = vlaneseq
    %v3050 = vshrl.u32 %v3049, 7
    %v3051 = vsub.s32 0, %v3050
    %v3052 = vrot.slane %v3047, %v3051
    %v3053 = vlaneseq
    %v3054 = vshrl.u32 %v3053, 7
    %v3055 = vsub.s32 1, %v3054
    %v3056 = vrot.slane %v3047, %v3055
    %3059 = vmatprep.subr.mxu0 %v3015
    %3060 = vmatpush1.msra.mxu0 %v3014
    %3061 = vmatprep.subr.mxu0 %v3017
    %3062 = vmatpush1.msra.mxu0 %v3016
    %3063 = vmatprep.subr.mxu0 %v3019
    %3064 = vmatpush1.msra.mxu0 %v3018
    %3065 = vmatprep.subr.mxu0 %v3021
    %3066 = vmatpush1.msra.mxu0 %v3020
    %3067 = vmatprep.subr.mxu0 %v3023
    %3068 = vmatpush1.msra.mxu0 %v3022
    %3069 = vmatprep.subr.mxu0 %v3025
    %3070 = vmatpush1.msra.mxu0 %v3024
    %3071 = vmatprep.subr.mxu0 %v3027
    %3072 = vmatpush1.msra.mxu0 %v3026
    %3073 = vmatprep.subr.mxu0 %v3029
    %3074 = vmatpush1.msra.mxu0 %v3028
    %3075 = vmatprep.subr.mxu0 %v3031
    %3076 = vmatpush1.msra.mxu0 %v3030
    %3077 = vmatprep.subr.mxu0 %v3033
    %3078 = vmatpush1.msra.mxu0 %v3032
    %3079 = vmatprep.subr.mxu0 %v3035
    %3080 = vmatpush1.msra.mxu0 %v3034
    %3081 = vmatprep.subr.mxu0 %v3037
    %3082 = vmatpush1.msra.mxu0 %v3036
    %3083 = vmatprep.subr.mxu0 %v3039
    %3084 = vmatpush1.msra.mxu0 %v3038
    %3085 = vmatprep.subr.mxu0 %v3041
    %3086 = vmatpush1.msra.mxu0 %v3040
    %3087 = vmatprep.subr.mxu0 %v3043
    %3088 = vmatpush1.msra.mxu0 %v3042
    %3089 = vmatprep.subr.mxu0 %v3045
    %3090 = vmatpush1.msra.mxu0 %v3044
    %3091 = vmatprep.subr.mxu0 0.0
    %3092 = vmatpush1.msra.mxu0 0.0
    %3093 = vmatprep.subr.mxu0 0.0
    %3094 = vmatpush1.msra.mxu0 0.0
    %3095 = vmatprep.subr.mxu0 0.0
    %3096 = vmatpush1.msra.mxu0 0.0
    %3097 = vmatprep.subr.mxu0 0.0
    %3098 = vmatpush1.msra.mxu0 0.0
    %3099 = vmatprep.subr.mxu0 0.0
    %3100 = vmatpush1.msra.mxu0 0.0
    %3101 = vmatprep.subr.mxu0 0.0
    %3102 = vmatpush1.msra.mxu0 0.0
    %3103 = vmatprep.subr.mxu0 0.0
    %3104 = vmatpush1.msra.mxu0 0.0
    %3105 = vmatprep.subr.mxu0 0.0
    %3106 = vmatpush1.msra.mxu0 0.0
    %3107 = vmatprep.subr.mxu0 0.0
    %3108 = vmatpush1.msra.mxu0 0.0
    %3109 = vmatprep.subr.mxu0 0.0
    %3110 = vmatpush1.msra.mxu0 0.0
    %3111 = vmatprep.subr.mxu0 0.0
    %3112 = vmatpush1.msra.mxu0 0.0
    %3113 = vmatprep.subr.mxu0 0.0
    %3114 = vmatpush1.msra.mxu0 0.0
    %3115 = vmatprep.subr.mxu0 0.0
    %3116 = vmatpush1.msra.mxu0 0.0
    %3117 = vmatprep.subr.mxu0 0.0
    %3118 = vmatpush1.msra.mxu0 0.0
    %3119 = vmatprep.subr.mxu0 0.0
    %3120 = vmatpush1.msra.mxu0 0.0
    %3121 = vmatprep.subr.mxu0 0.0
    %3122 = vmatpush1.msra.mxu0 0.0
    %3123 = vmatprep.mubr.f32.mxu0 0.0
    %3124 = vmatmul.mubr.f32.gmra.mrb[0].mxu0 %v3012
    %v3125 = vpop.f32.mrb[0].mxu0
    %v3126 = vadd.f32 %v3052, %v3125
    %v3127 = vpop.f32.mrb[0].mxu0
    %v3128 = vadd.f32 %v3056, %v3127
    %3129 = vdwg.mxu0
    %v3132 = vrot.slane %v2392, 2
    %v3133 = vrot.slane %v2393, 2
    %v3136 = vadd.f32 %v3126, %v3132
    %v3137 = vadd.f32 %v3128, %v3133
    %3138 = vmatprep.subr.mxu0 0.0
    %3139 = vmatpush1.msra.mxu0 %v1587
    %3140 = vmatprep.subr.mxu0 0.0
    %3141 = vmatpush1.msra.mxu0 %v1588
    %3142 = vmatprep.subr.mxu0 0.0
    %3143 = vmatpush1.msra.mxu0 %v1589
    %3144 = vmatprep.subr.mxu0 0.0
    %3145 = vmatpush1.msra.mxu0 %v1590
    %3146 = vmatprep.subr.mxu0 0.0
    %3147 = vmatpush1.msra.mxu0 %v1591
    %3148 = vmatprep.subr.mxu0 0.0
    %3149 = vmatpush1.msra.mxu0 %v1592
    %3150 = vmatprep.subr.mxu0 0.0
    %3151 = vmatpush1.msra.mxu0 %v1593
    %3152 = vmatprep.subr.mxu0 0.0
    %3153 = vmatpush1.msra.mxu0 %v1594
    %3154 = vmatprep.subr.mxu0 0.0
    %3155 = vmatpush1.msra.mxu0 %v1595
    %3156 = vmatprep.subr.mxu0 0.0
    %3157 = vmatpush1.msra.mxu0 %v1596
    %3158 = vmatprep.subr.mxu0 0.0
    %3159 = vmatpush1.msra.mxu0 %v1597
    %3160 = vmatprep.subr.mxu0 0.0
    %3161 = vmatpush1.msra.mxu0 %v1598
    %3162 = vmatprep.subr.mxu0 0.0
    %3163 = vmatpush1.msra.mxu0 %v1599
    %3164 = vmatprep.subr.mxu0 0.0
    %3165 = vmatpush1.msra.mxu0 %v1600
    %3166 = vmatprep.subr.mxu0 0.0
    %3167 = vmatpush1.msra.mxu0 %v1601
    %3168 = vmatprep.subr.mxu0 0.0
    %3169 = vmatpush1.msra.mxu0 %v1602
    %3170 = vmatprep.subr.mxu0 0.0
    %3171 = vmatpush1.msra.mxu0 0.0
    %3172 = vmatprep.subr.mxu0 0.0
    %3173 = vmatpush1.msra.mxu0 0.0
    %3174 = vmatprep.subr.mxu0 0.0
    %3175 = vmatpush1.msra.mxu0 0.0
    %3176 = vmatprep.subr.mxu0 0.0
    %3177 = vmatpush1.msra.mxu0 0.0
    %3178 = vmatprep.subr.mxu0 0.0
    %3179 = vmatpush1.msra.mxu0 0.0
    %3180 = vmatprep.subr.mxu0 0.0
    %3181 = vmatpush1.msra.mxu0 0.0
    %3182 = vmatprep.subr.mxu0 0.0
    %3183 = vmatpush1.msra.mxu0 0.0
    %3184 = vmatprep.subr.mxu0 0.0
    %3185 = vmatpush1.msra.mxu0 0.0
    %3186 = vmatprep.subr.mxu0 0.0
    %3187 = vmatpush1.msra.mxu0 0.0
    %3188 = vmatprep.subr.mxu0 0.0
    %3189 = vmatpush1.msra.mxu0 0.0
    %3190 = vmatprep.subr.mxu0 0.0
    %3191 = vmatpush1.msra.mxu0 0.0
    %3192 = vmatprep.subr.mxu0 0.0
    %3193 = vmatpush1.msra.mxu0 0.0
    %3194 = vmatprep.subr.mxu0 0.0
    %3195 = vmatpush1.msra.mxu0 0.0
    %3196 = vmatprep.subr.mxu0 0.0
    %3197 = vmatpush1.msra.mxu0 0.0
    %3198 = vmatprep.subr.mxu0 0.0
    %3199 = vmatpush1.msra.mxu0 0.0
    %3200 = vmatprep.subr.mxu0 0.0
    %3201 = vmatpush1.msra.mxu0 0.0
    %3202 = vmatprep.mubr.f32.mxu0 0.0
    %3203 = vmatmul.mubr.f32.gmra.mrb[0].mxu0 %v3012
    %v3204 = vpop.f32.mrb[0].mxu0
    %v3205 = vadd.f32 0.0, %v3204
    %v3206 = vpop.f32.mrb[0].mxu0
    %3207 = vdwg.mxu0
    %3208 = vmatprep.subr.mxu0 0.0
    %3209 = vmatpush1.msra.mxu0 %v1678
    %3210 = vmatprep.subr.mxu0 0.0
    %3211 = vmatpush1.msra.mxu0 %v1679
    %3212 = vmatprep.subr.mxu0 0.0
    %3213 = vmatpush1.msra.mxu0 %v1680
    %3214 = vmatprep.subr.mxu0 0.0
    %3215 = vmatpush1.msra.mxu0 %v1681
    %3216 = vmatprep.subr.mxu0 0.0
    %3217 = vmatpush1.msra.mxu0 %v1682
    %3218 = vmatprep.subr.mxu0 0.0
    %3219 = vmatpush1.msra.mxu0 %v1683
    %3220 = vmatprep.subr.mxu0 0.0
    %3221 = vmatpush1.msra.mxu0 %v1684
    %3222 = vmatprep.subr.mxu0 0.0
    %3223 = vmatpush1.msra.mxu0 %v1685
    %3224 = vmatprep.subr.mxu0 0.0
    %3225 = vmatpush1.msra.mxu0 %v1686
    %3226 = vmatprep.subr.mxu0 0.0
    %3227 = vmatpush1.msra.mxu0 %v1687
    %3228 = vmatprep.subr.mxu0 0.0
    %3229 = vmatpush1.msra.mxu0 %v1688
    %3230 = vmatprep.subr.mxu0 0.0
    %3231 = vmatpush1.msra.mxu0 %v1689
    %3232 = vmatprep.subr.mxu0 0.0
    %3233 = vmatpush1.msra.mxu0 %v1690
    %3234 = vmatprep.subr.mxu0 0.0
    %3235 = vmatpush1.msra.mxu0 %v1691
    %3236 = vmatprep.subr.mxu0 0.0
    %3237 = vmatpush1.msra.mxu0 %v1692
    %3238 = vmatprep.subr.mxu0 0.0
    %3239 = vmatpush1.msra.mxu0 %v1693
    %3240 = vmatprep.subr.mxu0 0.0
    %3241 = vmatpush1.msra.mxu0 0.0
    %3242 = vmatprep.subr.mxu0 0.0
    %3243 = vmatpush1.msra.mxu0 0.0
    %3244 = vmatprep.subr.mxu0 0.0
    %3245 = vmatpush1.msra.mxu0 0.0
    %3246 = vmatprep.subr.mxu0 0.0
    %3247 = vmatpush1.msra.mxu0 0.0
    %3248 = vmatprep.subr.mxu0 0.0
    %3249 = vmatpush1.msra.mxu0 0.0
    %3250 = vmatprep.subr.mxu0 0.0
    %3251 = vmatpush1.msra.mxu0 0.0
    %3252 = vmatprep.subr.mxu0 0.0
    %3253 = vmatpush1.msra.mxu0 0.0
    %3254 = vmatprep.subr.mxu0 0.0
    %3255 = vmatpush1.msra.mxu0 0.0
    %3256 = vmatprep.subr.mxu0 0.0
    %3257 = vmatpush1.msra.mxu0 0.0
    %3258 = vmatprep.subr.mxu0 0.0
    %3259 = vmatpush1.msra.mxu0 0.0
    %3260 = vmatprep.subr.mxu0 0.0
    %3261 = vmatpush1.msra.mxu0 0.0
    %3262 = vmatprep.subr.mxu0 0.0
    %3263 = vmatpush1.msra.mxu0 0.0
    %3264 = vmatprep.subr.mxu0 0.0
    %3265 = vmatpush1.msra.mxu0 0.0
    %3266 = vmatprep.subr.mxu0 0.0
    %3267 = vmatpush1.msra.mxu0 0.0
    %3268 = vmatprep.subr.mxu0 0.0
    %3269 = vmatpush1.msra.mxu0 0.0
    %3270 = vmatprep.subr.mxu0 0.0
    %3271 = vmatpush1.msra.mxu0 0.0
    %3272 = vmatprep.mubr.f32.mxu0 0.0
    %3273 = vmatmul.mubr.f32.gmra.mrb[0].mxu0 %v3012
    %v3274 = vpop.f32.mrb[0].mxu0
    %v3275 = vadd.f32 0.0, %v3274
    %v3276 = vpop.f32.mrb[0].mxu0
    %3277 = vdwg.mxu0
    %s3278 = scalar_lea.vmem [#allocation20], 768
    %v3279 = vld [vmem:[%s3278] sm:$0xff]
    %v3280 = vld [vmem:[%s3278 + $0x8] sm:$0xff]
    %v3281 = vld [vmem:[%s3278 + $0x10] sm:$0xff]
    %v3282 = vld [vmem:[%s3278 + $0x18] sm:$0xff]
    %v3283 = vld [vmem:[%s3278 + $0x20] sm:$0xff]
    %v3284 = vld [vmem:[%s3278 + $0x28] sm:$0xff]
    %v3285 = vld [vmem:[%s3278 + $0x30] sm:$0xff]
    %v3286 = vld [vmem:[%s3278 + $0x38] sm:$0xff]
    %v3287 = vld [vmem:[%s3278 + $0x40] sm:$0xff]
    %v3288 = vld [vmem:[%s3278 + $0x48] sm:$0xff]
    %v3289 = vld [vmem:[%s3278 + $0x50] sm:$0xff]
    %v3290 = vld [vmem:[%s3278 + $0x58] sm:$0xff]
    %v3291 = vld [vmem:[%s3278 + $0x60] sm:$0xff]
    %v3292 = vld [vmem:[%s3278 + $0x68] sm:$0xff]
    %v3293 = vld [vmem:[%s3278 + $0x70] sm:$0xff]
    %v3294 = vld [vmem:[%s3278 + $0x78] sm:$0xff]
    %v3295 = vld [vmem:[%s3278 + $0x80] sm:$0xff]
    %v3296 = vld [vmem:[%s3278 + $0x88] sm:$0xff]
    %v3297 = vld [vmem:[%s3278 + $0x90] sm:$0xff]
    %v3298 = vld [vmem:[%s3278 + $0x98] sm:$0xff]
    %v3299 = vld [vmem:[%s3278 + $0xa0] sm:$0xff]
    %v3300 = vld [vmem:[%s3278 + $0xa8] sm:$0xff]
    %v3301 = vld [vmem:[%s3278 + $0xb0] sm:$0xff]
    %v3302 = vld [vmem:[%s3278 + $0xb8] sm:$0xff]
    %v3303 = vld [vmem:[%s3278 + $0xc0] sm:$0xff]
    %v3304 = vld [vmem:[%s3278 + $0xc8] sm:$0xff]
    %v3305 = vld [vmem:[%s3278 + $0xd0] sm:$0xff]
    %v3306 = vld [vmem:[%s3278 + $0xd8] sm:$0xff]
    %v3307 = vld [vmem:[%s3278 + $0xe0] sm:$0xff]
    %v3308 = vld [vmem:[%s3278 + $0xe8] sm:$0xff]
    %v3309 = vld [vmem:[%s3278 + $0xf0] sm:$0xff]
    %v3310 = vld [vmem:[%s3278 + $0xf8] sm:$0xff]
    %v3311 = vld [vmem:[%s3278 + $0x100] sm:$0xff]
    %v3312 = vld [vmem:[%s3278 + $0x108] sm:$0xff]
    %v3313 = vld [vmem:[%s3278 + $0x110] sm:$0xff]
    %v3314 = vld [vmem:[%s3278 + $0x118] sm:$0xff]
    %v3315 = vld [vmem:[%s3278 + $0x120] sm:$0xff]
    %v3316 = vld [vmem:[%s3278 + $0x128] sm:$0xff]
    %v3317 = vld [vmem:[%s3278 + $0x130] sm:$0xff]
    %v3318 = vld [vmem:[%s3278 + $0x138] sm:$0xff]
    %v3319 = vld [vmem:[%s3278 + $0x140] sm:$0xff]
    %v3320 = vld [vmem:[%s3278 + $0x148] sm:$0xff]
    %v3321 = vld [vmem:[%s3278 + $0x150] sm:$0xff]
    %v3322 = vld [vmem:[%s3278 + $0x158] sm:$0xff]
    %v3323 = vld [vmem:[%s3278 + $0x160] sm:$0xff]
    %v3324 = vld [vmem:[%s3278 + $0x168] sm:$0xff]
    %v3325 = vld [vmem:[%s3278 + $0x170] sm:$0xff]
    %v3326 = vld [vmem:[%s3278 + $0x178] sm:$0xff]
    %s3327 = scalar_lea.vmem [#allocation21], 2
    %v3328 = vld [vmem:[%s3327] sm:$0x1]
    %v3330 = vlaneseq
    %v3331 = vshrl.u32 %v3330, 7
    %v3332 = vsub.s32 0, %v3331
    %v3333 = vrot.slane %v3328, %v3332
    %3335 = vmatprep.subr.mxu0 0.0
    %3336 = vmatpush1.msra.mxu0 %v3279
    %3337 = vmatprep.subr.mxu0 0.0
    %3338 = vmatpush1.msra.mxu0 %v3280
    %3339 = vmatprep.subr.mxu0 0.0
    %3340 = vmatpush1.msra.mxu0 %v3281
    %3341 = vmatprep.subr.mxu0 0.0
    %3342 = vmatpush1.msra.mxu0 %v3282
    %3343 = vmatprep.subr.mxu0 0.0
    %3344 = vmatpush1.msra.mxu0 %v3283
    %3345 = vmatprep.subr.mxu0 0.0
    %3346 = vmatpush1.msra.mxu0 %v3284
    %3347 = vmatprep.subr.mxu0 0.0
    %3348 = vmatpush1.msra.mxu0 %v3285
    %3349 = vmatprep.subr.mxu0 0.0
    %3350 = vmatpush1.msra.mxu0 %v3286
    %3351 = vmatprep.subr.mxu0 0.0
    %3352 = vmatpush1.msra.mxu0 %v3287
    %3353 = vmatprep.subr.mxu0 0.0
    %3354 = vmatpush1.msra.mxu0 %v3288
    %3355 = vmatprep.subr.mxu0 0.0
    %3356 = vmatpush1.msra.mxu0 %v3289
    %3357 = vmatprep.subr.mxu0 0.0
    %3358 = vmatpush1.msra.mxu0 %v3290
    %3359 = vmatprep.subr.mxu0 0.0
    %3360 = vmatpush1.msra.mxu0 %v3291
    %3361 = vmatprep.subr.mxu0 0.0
    %3362 = vmatpush1.msra.mxu0 %v3292
    %3363 = vmatprep.subr.mxu0 0.0
    %3364 = vmatpush1.msra.mxu0 %v3293
    %3365 = vmatprep.subr.mxu0 0.0
    %3366 = vmatpush1.msra.mxu0 %v3294
    %3367 = vmatprep.subr.mxu0 0.0
    %3368 = vmatpush1.msra.mxu0 %v3295
    %3369 = vmatprep.subr.mxu0 0.0
    %3370 = vmatpush1.msra.mxu0 %v3296
    %3371 = vmatprep.subr.mxu0 0.0
    %3372 = vmatpush1.msra.mxu0 %v3297
    %3373 = vmatprep.subr.mxu0 0.0
    %3374 = vmatpush1.msra.mxu0 %v3298
    %3375 = vmatprep.subr.mxu0 0.0
    %3376 = vmatpush1.msra.mxu0 %v3299
    %3377 = vmatprep.subr.mxu0 0.0
    %3378 = vmatpush1.msra.mxu0 %v3300
    %3379 = vmatprep.subr.mxu0 0.0
    %3380 = vmatpush1.msra.mxu0 %v3301
    %3381 = vmatprep.subr.mxu0 0.0
    %3382 = vmatpush1.msra.mxu0 %v3302
    %3383 = vmatprep.subr.mxu0 0.0
    %3384 = vmatpush1.msra.mxu0 %v3303
    %3385 = vmatprep.subr.mxu0 0.0
    %3386 = vmatpush1.msra.mxu0 %v3304
    %3387 = vmatprep.subr.mxu0 0.0
    %3388 = vmatpush1.msra.mxu0 %v3305
    %3389 = vmatprep.subr.mxu0 0.0
    %3390 = vmatpush1.msra.mxu0 %v3306
    %3391 = vmatprep.subr.mxu0 0.0
    %3392 = vmatpush1.msra.mxu0 %v3307
    %3393 = vmatprep.subr.mxu0 0.0
    %3394 = vmatpush1.msra.mxu0 %v3308
    %3395 = vmatprep.subr.mxu0 0.0
    %3396 = vmatpush1.msra.mxu0 %v3309
    %3397 = vmatprep.subr.mxu0 0.0
    %3398 = vmatpush1.msra.mxu0 %v3310
    %3399 = vmatprep.mubr.f32.mxu0 %v3205
    %3400 = vmatmul.mubr.f32.gmra.mrb[0].mxu0 %v3012
    %v3401 = vpop.f32.mrb[0].mxu0
    %v3402 = vadd.f32 %v3333, %v3401
    %v3403 = vpop.f32.mrb[0].mxu0
    %3404 = vdwg.mxu0
    %3405 = vmatprep.subr.mxu0 0.0
    %3406 = vmatpush1.msra.mxu0 %v3311
    %3407 = vmatprep.subr.mxu0 0.0
    %3408 = vmatpush1.msra.mxu0 %v3312
    %3409 = vmatprep.subr.mxu0 0.0
    %3410 = vmatpush1.msra.mxu0 %v3313
    %3411 = vmatprep.subr.mxu0 0.0
    %3412 = vmatpush1.msra.mxu0 %v3314
    %3413 = vmatprep.subr.mxu0 0.0
    %3414 = vmatpush1.msra.mxu0 %v3315
    %3415 = vmatprep.subr.mxu0 0.0
    %3416 = vmatpush1.msra.mxu0 %v3316
    %3417 = vmatprep.subr.mxu0 0.0
    %3418 = vmatpush1.msra.mxu0 %v3317
    %3419 = vmatprep.subr.mxu0 0.0
    %3420 = vmatpush1.msra.mxu0 %v3318
    %3421 = vmatprep.subr.mxu0 0.0
    %3422 = vmatpush1.msra.mxu0 %v3319
    %3423 = vmatprep.subr.mxu0 0.0
    %3424 = vmatpush1.msra.mxu0 %v3320
    %3425 = vmatprep.subr.mxu0 0.0
    %3426 = vmatpush1.msra.mxu0 %v3321
    %3427 = vmatprep.subr.mxu0 0.0
    %3428 = vmatpush1.msra.mxu0 %v3322
    %3429 = vmatprep.subr.mxu0 0.0
    %3430 = vmatpush1.msra.mxu0 %v3323
    %3431 = vmatprep.subr.mxu0 0.0
    %3432 = vmatpush1.msra.mxu0 %v3324
    %3433 = vmatprep.subr.mxu0 0.0
    %3434 = vmatpush1.msra.mxu0 %v3325
    %3435 = vmatprep.subr.mxu0 0.0
    %3436 = vmatpush1.msra.mxu0 %v3326
    %3437 = vmatprep.subr.mxu0 0.0
    %3438 = vmatpush1.msra.mxu0 0.0
    %3439 = vmatprep.subr.mxu0 0.0
    %3440 = vmatpush1.msra.mxu0 0.0
    %3441 = vmatprep.subr.mxu0 0.0
    %3442 = vmatpush1.msra.mxu0 0.0
    %3443 = vmatprep.subr.mxu0 0.0
    %3444 = vmatpush1.msra.mxu0 0.0
    %3445 = vmatprep.subr.mxu0 0.0
    %3446 = vmatpush1.msra.mxu0 0.0
    %3447 = vmatprep.subr.mxu0 0.0
    %3448 = vmatpush1.msra.mxu0 0.0
    %3449 = vmatprep.subr.mxu0 0.0
    %3450 = vmatpush1.msra.mxu0 0.0
    %3451 = vmatprep.subr.mxu0 0.0
    %3452 = vmatpush1.msra.mxu0 0.0
    %3453 = vmatprep.subr.mxu0 0.0
    %3454 = vmatpush1.msra.mxu0 0.0
    %3455 = vmatprep.subr.mxu0 0.0
    %3456 = vmatpush1.msra.mxu0 0.0
    %3457 = vmatprep.subr.mxu0 0.0
    %3458 = vmatpush1.msra.mxu0 0.0
    %3459 = vmatprep.subr.mxu0 0.0
    %3460 = vmatpush1.msra.mxu0 0.0
    %3461 = vmatprep.subr.mxu0 0.0
    %3462 = vmatpush1.msra.mxu0 0.0
    %3463 = vmatprep.subr.mxu0 0.0
    %3464 = vmatpush1.msra.mxu0 0.0
    %3465 = vmatprep.subr.mxu0 0.0
    %3466 = vmatpush1.msra.mxu0 0.0
    %3467 = vmatprep.subr.mxu0 0.0
    %3468 = vmatpush1.msra.mxu0 0.0
    %3469 = vmatprep.mubr.f32.mxu0 0.0
    %3470 = vmatmul.mubr.f32.gmra.mrb[0].mxu0 %v3275
    %v3471 = vpop.f32.mrb[0].mxu0
    %v3472 = vadd.f32 %v3402, %v3471
    %v3473 = vpop.f32.mrb[0].mxu0
    %3474 = vdwg.mxu0
    %s3475 = scalar_lea.vmem [#allocation23], 2
    %v3476 = vld [vmem:[%s3475] sm:$0x1]
    %v3478 = vlaneseq
    %v3479 = vshrl.u32 %v3478, 7
    %v3480 = vsub.s32 0, %v3479
    %v3481 = vrot.slane %v3476, %v3480
    %v3483 = vmul.f32 %v2747, %v3481
    %v3485 = vrot.slane %v3483, 2
    %v3487 = vadd.f32 %v3472, %v3485
    %v3489 = vrot.slane %v3487, 2
    %v3491 = vrot.slane %v3487, 4
    %s3493 = scalar_lea.vmem [#allocation14], 2304
    %v3494 = vld [vmem:[%s3493] sm:$0xff]
    %v3495 = vld [vmem:[%s3493 + $0x8] sm:$0xff]
    %v3496 = vld [vmem:[%s3493 + $0x10] sm:$0xff]
    %v3497 = vld [vmem:[%s3493 + $0x18] sm:$0xff]
    %v3498 = vld [vmem:[%s3493 + $0x20] sm:$0xff]
    %v3499 = vld [vmem:[%s3493 + $0x28] sm:$0xff]
    %v3500 = vld [vmem:[%s3493 + $0x30] sm:$0xff]
    %v3501 = vld [vmem:[%s3493 + $0x38] sm:$0xff]
    %v3502 = vld [vmem:[%s3493 + $0x40] sm:$0xff]
    %v3503 = vld [vmem:[%s3493 + $0x48] sm:$0xff]
    %v3504 = vld [vmem:[%s3493 + $0x50] sm:$0xff]
    %v3505 = vld [vmem:[%s3493 + $0x58] sm:$0xff]
    %v3506 = vld [vmem:[%s3493 + $0x60] sm:$0xff]
    %v3507 = vld [vmem:[%s3493 + $0x68] sm:$0xff]
    %v3508 = vld [vmem:[%s3493 + $0x70] sm:$0xff]
    %v3509 = vld [vmem:[%s3493 + $0x78] sm:$0xff]
    %v3510 = vld [vmem:[%s3493 + $0x80] sm:$0xff]
    %v3511 = vld [vmem:[%s3493 + $0x88] sm:$0xff]
    %v3512 = vld [vmem:[%s3493 + $0x90] sm:$0xff]
    %v3513 = vld [vmem:[%s3493 + $0x98] sm:$0xff]
    %v3514 = vld [vmem:[%s3493 + $0xa0] sm:$0xff]
    %v3515 = vld [vmem:[%s3493 + $0xa8] sm:$0xff]
    %v3516 = vld [vmem:[%s3493 + $0xb0] sm:$0xff]
    %v3517 = vld [vmem:[%s3493 + $0xb8] sm:$0xff]
    %v3518 = vld [vmem:[%s3493 + $0xc0] sm:$0xff]
    %v3519 = vld [vmem:[%s3493 + $0xc8] sm:$0xff]
    %v3520 = vld [vmem:[%s3493 + $0xd0] sm:$0xff]
    %v3521 = vld [vmem:[%s3493 + $0xd8] sm:$0xff]
    %v3522 = vld [vmem:[%s3493 + $0xe0] sm:$0xff]
    %v3523 = vld [vmem:[%s3493 + $0xe8] sm:$0xff]
    %v3524 = vld [vmem:[%s3493 + $0xf0] sm:$0xff]
    %v3525 = vld [vmem:[%s3493 + $0xf8] sm:$0xff]
    %v3526 = vld [vmem:[%s3493 + $0x100] sm:$0xff]
    %v3527 = vld [vmem:[%s3493 + $0x108] sm:$0xff]
    %v3528 = vld [vmem:[%s3493 + $0x110] sm:$0xff]
    %v3529 = vld [vmem:[%s3493 + $0x118] sm:$0xff]
    %v3530 = vld [vmem:[%s3493 + $0x120] sm:$0xff]
    %v3531 = vld [vmem:[%s3493 + $0x128] sm:$0xff]
    %v3532 = vld [vmem:[%s3493 + $0x130] sm:$0xff]
    %v3533 = vld [vmem:[%s3493 + $0x138] sm:$0xff]
    %v3534 = vld [vmem:[%s3493 + $0x140] sm:$0xff]
    %v3535 = vld [vmem:[%s3493 + $0x148] sm:$0xff]
    %v3536 = vld [vmem:[%s3493 + $0x150] sm:$0xff]
    %v3537 = vld [vmem:[%s3493 + $0x158] sm:$0xff]
    %v3538 = vld [vmem:[%s3493 + $0x160] sm:$0xff]
    %v3539 = vld [vmem:[%s3493 + $0x168] sm:$0xff]
    %v3540 = vld [vmem:[%s3493 + $0x170] sm:$0xff]
    %v3541 = vld [vmem:[%s3493 + $0x178] sm:$0xff]
    %v3542 = vld [vmem:[%s3493 + $0x180] sm:$0xff]
    %v3543 = vld [vmem:[%s3493 + $0x188] sm:$0xff]
    %v3544 = vld [vmem:[%s3493 + $0x190] sm:$0xff]
    %v3545 = vld [vmem:[%s3493 + $0x198] sm:$0xff]
    %v3546 = vld [vmem:[%s3493 + $0x1a0] sm:$0xff]
    %v3547 = vld [vmem:[%s3493 + $0x1a8] sm:$0xff]
    %v3548 = vld [vmem:[%s3493 + $0x1b0] sm:$0xff]
    %v3549 = vld [vmem:[%s3493 + $0x1b8] sm:$0xff]
    %v3550 = vld [vmem:[%s3493 + $0x1c0] sm:$0xff]
    %v3551 = vld [vmem:[%s3493 + $0x1c8] sm:$0xff]
    %v3552 = vld [vmem:[%s3493 + $0x1d0] sm:$0xff]
    %v3553 = vld [vmem:[%s3493 + $0x1d8] sm:$0xff]
    %v3554 = vld [vmem:[%s3493 + $0x1e0] sm:$0xff]
    %v3555 = vld [vmem:[%s3493 + $0x1e8] sm:$0xff]
    %v3556 = vld [vmem:[%s3493 + $0x1f0] sm:$0xff]
    %v3557 = vld [vmem:[%s3493 + $0x1f8] sm:$0xff]
    %v3558 = vld [vmem:[%s3493 + $0x200] sm:$0xff]
    %v3559 = vld [vmem:[%s3493 + $0x208] sm:$0xff]
    %v3560 = vld [vmem:[%s3493 + $0x210] sm:$0xff]
    %v3561 = vld [vmem:[%s3493 + $0x218] sm:$0xff]
    %v3562 = vld [vmem:[%s3493 + $0x220] sm:$0xff]
    %v3563 = vld [vmem:[%s3493 + $0x228] sm:$0xff]
    %v3564 = vld [vmem:[%s3493 + $0x230] sm:$0xff]
    %v3565 = vld [vmem:[%s3493 + $0x238] sm:$0xff]
    %v3566 = vld [vmem:[%s3493 + $0x240] sm:$0xff]
    %v3567 = vld [vmem:[%s3493 + $0x248] sm:$0xff]
    %v3568 = vld [vmem:[%s3493 + $0x250] sm:$0xff]
    %v3569 = vld [vmem:[%s3493 + $0x258] sm:$0xff]
    %v3570 = vld [vmem:[%s3493 + $0x260] sm:$0xff]
    %v3571 = vld [vmem:[%s3493 + $0x268] sm:$0xff]
    %v3572 = vld [vmem:[%s3493 + $0x270] sm:$0xff]
    %v3573 = vld [vmem:[%s3493 + $0x278] sm:$0xff]
    %v3574 = vld [vmem:[%s3493 + $0x280] sm:$0xff]
    %v3575 = vld [vmem:[%s3493 + $0x288] sm:$0xff]
    %v3576 = vld [vmem:[%s3493 + $0x290] sm:$0xff]
    %v3577 = vld [vmem:[%s3493 + $0x298] sm:$0xff]
    %v3578 = vld [vmem:[%s3493 + $0x2a0] sm:$0xff]
    %v3579 = vld [vmem:[%s3493 + $0x2a8] sm:$0xff]
    %v3580 = vld [vmem:[%s3493 + $0x2b0] sm:$0xff]
    %v3581 = vld [vmem:[%s3493 + $0x2b8] sm:$0xff]
    %v3582 = vld [vmem:[%s3493 + $0x2c0] sm:$0xff]
    %v3583 = vld [vmem:[%s3493 + $0x2c8] sm:$0xff]
    %v3584 = vld [vmem:[%s3493 + $0x2d0] sm:$0xff]
    %v3585 = vld [vmem:[%s3493 + $0x2d8] sm:$0xff]
    %v3586 = vld [vmem:[%s3493 + $0x2e0] sm:$0xff]
    %v3587 = vld [vmem:[%s3493 + $0x2e8] sm:$0xff]
    %v3588 = vld [vmem:[%s3493 + $0x2f0] sm:$0xff]
    %v3589 = vld [vmem:[%s3493 + $0x2f8] sm:$0xff]
    %s3590 = scalar_lea.vmem [#allocation15], 6
    %v3591 = vld [vmem:[%s3590] sm:$0x3]
    %v3593 = vlaneseq
    %v3594 = vshrl.u32 %v3593, 7
    %v3595 = vsub.s32 0, %v3594
    %v3596 = vrot.slane %v3591, %v3595
    %v3597 = vlaneseq
    %v3598 = vshrl.u32 %v3597, 7
    %v3599 = vsub.s32 1, %v3598
    %v3600 = vrot.slane %v3591, %v3599
    %3603 = vmatprep.subr.mxu0 %v3495
    %3604 = vmatpush1.msra.mxu0 %v3494
    %3605 = vmatprep.subr.mxu0 %v3497
    %3606 = vmatpush1.msra.mxu0 %v3496
    %3607 = vmatprep.subr.mxu0 %v3499
    %3608 = vmatpush1.msra.mxu0 %v3498
    %3609 = vmatprep.subr.mxu0 %v3501
    %3610 = vmatpush1.msra.mxu0 %v3500
    %3611 = vmatprep.subr.mxu0 %v3503
    %3612 = vmatpush1.msra.mxu0 %v3502
    %3613 = vmatprep.subr.mxu0 %v3505
    %3614 = vmatpush1.msra.mxu0 %v3504
    %3615 = vmatprep.subr.mxu0 %v3507
    %3616 = vmatpush1.msra.mxu0 %v3506
    %3617 = vmatprep.subr.mxu0 %v3509
    %3618 = vmatpush1.msra.mxu0 %v3508
    %3619 = vmatprep.subr.mxu0 %v3511
    %3620 = vmatpush1.msra.mxu0 %v3510
    %3621 = vmatprep.subr.mxu0 %v3513
    %3622 = vmatpush1.msra.mxu0 %v3512
    %3623 = vmatprep.subr.mxu0 %v3515
    %3624 = vmatpush1.msra.mxu0 %v3514
    %3625 = vmatprep.subr.mxu0 %v3517
    %3626 = vmatpush1.msra.mxu0 %v3516
    %3627 = vmatprep.subr.mxu0 %v3519
    %3628 = vmatpush1.msra.mxu0 %v3518
    %3629 = vmatprep.subr.mxu0 %v3521
    %3630 = vmatpush1.msra.mxu0 %v3520
    %3631 = vmatprep.subr.mxu0 %v3523
    %3632 = vmatpush1.msra.mxu0 %v3522
    %3633 = vmatprep.subr.mxu0 %v3525
    %3634 = vmatpush1.msra.mxu0 %v3524
    %3635 = vmatprep.subr.mxu0 %v3527
    %3636 = vmatpush1.msra.mxu0 %v3526
    %3637 = vmatprep.subr.mxu0 %v3529
    %3638 = vmatpush1.msra.mxu0 %v3528
    %3639 = vmatprep.subr.mxu0 %v3531
    %3640 = vmatpush1.msra.mxu0 %v3530
    %3641 = vmatprep.subr.mxu0 %v3533
    %3642 = vmatpush1.msra.mxu0 %v3532
    %3643 = vmatprep.subr.mxu0 %v3535
    %3644 = vmatpush1.msra.mxu0 %v3534
    %3645 = vmatprep.subr.mxu0 %v3537
    %3646 = vmatpush1.msra.mxu0 %v3536
    %3647 = vmatprep.subr.mxu0 %v3539
    %3648 = vmatpush1.msra.mxu0 %v3538
    %3649 = vmatprep.subr.mxu0 %v3541
    %3650 = vmatpush1.msra.mxu0 %v3540
    %3651 = vmatprep.subr.mxu0 %v3543
    %3652 = vmatpush1.msra.mxu0 %v3542
    %3653 = vmatprep.subr.mxu0 %v3545
    %3654 = vmatpush1.msra.mxu0 %v3544
    %3655 = vmatprep.subr.mxu0 %v3547
    %3656 = vmatpush1.msra.mxu0 %v3546
    %3657 = vmatprep.subr.mxu0 %v3549
    %3658 = vmatpush1.msra.mxu0 %v3548
    %3659 = vmatprep.subr.mxu0 %v3551
    %3660 = vmatpush1.msra.mxu0 %v3550
    %3661 = vmatprep.subr.mxu0 %v3553
    %3662 = vmatpush1.msra.mxu0 %v3552
    %3663 = vmatprep.subr.mxu0 %v3555
    %3664 = vmatpush1.msra.mxu0 %v3554
    %3665 = vmatprep.subr.mxu0 %v3557
    %3666 = vmatpush1.msra.mxu0 %v3556
    %3667 = vmatprep.mubr.f32.mxu0 %v3489
    %3668 = vmatmul.mubr.f32.gmra.mrb[0].mxu0 %v3487
    %v3669 = vpop.f32.mrb[0].mxu0
    %v3670 = vadd.f32 %v3596, %v3669
    %v3671 = vpop.f32.mrb[0].mxu0
    %v3672 = vadd.f32 %v3600, %v3671
    %3673 = vdwg.mxu0
    %3674 = vmatprep.subr.mxu0 %v3559
    %3675 = vmatpush1.msra.mxu0 %v3558
    %3676 = vmatprep.subr.mxu0 %v3561
    %3677 = vmatpush1.msra.mxu0 %v3560
    %3678 = vmatprep.subr.mxu0 %v3563
    %3679 = vmatpush1.msra.mxu0 %v3562
    %3680 = vmatprep.subr.mxu0 %v3565
    %3681 = vmatpush1.msra.mxu0 %v3564
    %3682 = vmatprep.subr.mxu0 %v3567
    %3683 = vmatpush1.msra.mxu0 %v3566
    %3684 = vmatprep.subr.mxu0 %v3569
    %3685 = vmatpush1.msra.mxu0 %v3568
    %3686 = vmatprep.subr.mxu0 %v3571
    %3687 = vmatpush1.msra.mxu0 %v3570
    %3688 = vmatprep.subr.mxu0 %v3573
    %3689 = vmatpush1.msra.mxu0 %v3572
    %3690 = vmatprep.subr.mxu0 %v3575
    %3691 = vmatpush1.msra.mxu0 %v3574
    %3692 = vmatprep.subr.mxu0 %v3577
    %3693 = vmatpush1.msra.mxu0 %v3576
    %3694 = vmatprep.subr.mxu0 %v3579
    %3695 = vmatpush1.msra.mxu0 %v3578
    %3696 = vmatprep.subr.mxu0 %v3581
    %3697 = vmatpush1.msra.mxu0 %v3580
    %3698 = vmatprep.subr.mxu0 %v3583
    %3699 = vmatpush1.msra.mxu0 %v3582
    %3700 = vmatprep.subr.mxu0 %v3585
    %3701 = vmatpush1.msra.mxu0 %v3584
    %3702 = vmatprep.subr.mxu0 %v3587
    %3703 = vmatpush1.msra.mxu0 %v3586
    %3704 = vmatprep.subr.mxu0 %v3589
    %3705 = vmatpush1.msra.mxu0 %v3588
    %3706 = vmatprep.subr.mxu0 0.0
    %3707 = vmatpush1.msra.mxu0 0.0
    %3708 = vmatprep.subr.mxu0 0.0
    %3709 = vmatpush1.msra.mxu0 0.0
    %3710 = vmatprep.subr.mxu0 0.0
    %3711 = vmatpush1.msra.mxu0 0.0
    %3712 = vmatprep.subr.mxu0 0.0
    %3713 = vmatpush1.msra.mxu0 0.0
    %3714 = vmatprep.subr.mxu0 0.0
    %3715 = vmatpush1.msra.mxu0 0.0
    %3716 = vmatprep.subr.mxu0 0.0
    %3717 = vmatpush1.msra.mxu0 0.0
    %3718 = vmatprep.subr.mxu0 0.0
    %3719 = vmatpush1.msra.mxu0 0.0
    %3720 = vmatprep.subr.mxu0 0.0
    %3721 = vmatpush1.msra.mxu0 0.0
    %3722 = vmatprep.subr.mxu0 0.0
    %3723 = vmatpush1.msra.mxu0 0.0
    %3724 = vmatprep.subr.mxu0 0.0
    %3725 = vmatpush1.msra.mxu0 0.0
    %3726 = vmatprep.subr.mxu0 0.0
    %3727 = vmatpush1.msra.mxu0 0.0
    %3728 = vmatprep.subr.mxu0 0.0
    %3729 = vmatpush1.msra.mxu0 0.0
    %3730 = vmatprep.subr.mxu0 0.0
    %3731 = vmatpush1.msra.mxu0 0.0
    %3732 = vmatprep.subr.mxu0 0.0
    %3733 = vmatpush1.msra.mxu0 0.0
    %3734 = vmatprep.subr.mxu0 0.0
    %3735 = vmatpush1.msra.mxu0 0.0
    %3736 = vmatprep.subr.mxu0 0.0
    %3737 = vmatpush1.msra.mxu0 0.0
    %3738 = vmatprep.mubr.f32.mxu0 0.0
    %3739 = vmatmul.mubr.f32.gmra.mrb[0].mxu0 %v3491
    %v3740 = vpop.f32.mrb[0].mxu0
    %v3741 = vadd.f32 %v3670, %v3740
    %v3742 = vpop.f32.mrb[0].mxu0
    %v3743 = vadd.f32 %v3672, %v3742
    %3744 = vdwg.mxu0
    %v3745 = vtanh.pop %v3741
    %v3746 = vxor.u32 %v3743, 2147483648
    %v3747 = vmul.f32 %v3746, 1.442695
    %v3748 = vpow.pop %v3747
    %v3749 = vadd.f32 %v3748, 1.0
    %v3750 = vrcp.pop %v3749
    %v3751 = vmul.f32 1.0, %v3750
    %v3752 = vmul.f32 %v3745, %v3751
    %s3753 = scalar_lea.vmem [#allocation17], 768
    %v3754 = vld [vmem:[%s3753] sm:$0xff]
    %v3755 = vld [vmem:[%s3753 + $0x8] sm:$0xff]
    %v3756 = vld [vmem:[%s3753 + $0x10] sm:$0xff]
    %v3757 = vld [vmem:[%s3753 + $0x18] sm:$0xff]
    %v3758 = vld [vmem:[%s3753 + $0x20] sm:$0xff]
    %v3759 = vld [vmem:[%s3753 + $0x28] sm:$0xff]
    %v3760 = vld [vmem:[%s3753 + $0x30] sm:$0xff]
    %v3761 = vld [vmem:[%s3753 + $0x38] sm:$0xff]
    %v3762 = vld [vmem:[%s3753 + $0x40] sm:$0xff]
    %v3763 = vld [vmem:[%s3753 + $0x48] sm:$0xff]
    %v3764 = vld [vmem:[%s3753 + $0x50] sm:$0xff]
    %v3765 = vld [vmem:[%s3753 + $0x58] sm:$0xff]
    %v3766 = vld [vmem:[%s3753 + $0x60] sm:$0xff]
    %v3767 = vld [vmem:[%s3753 + $0x68] sm:$0xff]
    %v3768 = vld [vmem:[%s3753 + $0x70] sm:$0xff]
    %v3769 = vld [vmem:[%s3753 + $0x78] sm:$0xff]
    %v3770 = vld [vmem:[%s3753 + $0x80] sm:$0xff]
    %v3771 = vld [vmem:[%s3753 + $0x88] sm:$0xff]
    %v3772 = vld [vmem:[%s3753 + $0x90] sm:$0xff]
    %v3773 = vld [vmem:[%s3753 + $0x98] sm:$0xff]
    %v3774 = vld [vmem:[%s3753 + $0xa0] sm:$0xff]
    %v3775 = vld [vmem:[%s3753 + $0xa8] sm:$0xff]
    %v3776 = vld [vmem:[%s3753 + $0xb0] sm:$0xff]
    %v3777 = vld [vmem:[%s3753 + $0xb8] sm:$0xff]
    %v3778 = vld [vmem:[%s3753 + $0xc0] sm:$0xff]
    %v3779 = vld [vmem:[%s3753 + $0xc8] sm:$0xff]
    %v3780 = vld [vmem:[%s3753 + $0xd0] sm:$0xff]
    %v3781 = vld [vmem:[%s3753 + $0xd8] sm:$0xff]
    %v3782 = vld [vmem:[%s3753 + $0xe0] sm:$0xff]
    %v3783 = vld [vmem:[%s3753 + $0xe8] sm:$0xff]
    %v3784 = vld [vmem:[%s3753 + $0xf0] sm:$0xff]
    %v3785 = vld [vmem:[%s3753 + $0xf8] sm:$0xff]
    %s3786 = scalar_lea.vmem [#allocation18], 6
    %v3787 = vld [vmem:[%s3786] sm:$0x3]
    %v3789 = vlaneseq
    %v3790 = vshrl.u32 %v3789, 7
    %v3791 = vsub.s32 0, %v3790
    %v3792 = vrot.slane %v3787, %v3791
    %v3793 = vlaneseq
    %v3794 = vshrl.u32 %v3793, 7
    %v3795 = vsub.s32 1, %v3794
    %v3796 = vrot.slane %v3787, %v3795
    %3799 = vmatprep.subr.mxu0 %v3755
    %3800 = vmatpush1.msra.mxu0 %v3754
    %3801 = vmatprep.subr.mxu0 %v3757
    %3802 = vmatpush1.msra.mxu0 %v3756
    %3803 = vmatprep.subr.mxu0 %v3759
    %3804 = vmatpush1.msra.mxu0 %v3758
    %3805 = vmatprep.subr.mxu0 %v3761
    %3806 = vmatpush1.msra.mxu0 %v3760
    %3807 = vmatprep.subr.mxu0 %v3763
    %3808 = vmatpush1.msra.mxu0 %v3762
    %3809 = vmatprep.subr.mxu0 %v3765
    %3810 = vmatpush1.msra.mxu0 %v3764
    %3811 = vmatprep.subr.mxu0 %v3767
    %3812 = vmatpush1.msra.mxu0 %v3766
    %3813 = vmatprep.subr.mxu0 %v3769
    %3814 = vmatpush1.msra.mxu0 %v3768
    %3815 = vmatprep.subr.mxu0 %v3771
    %3816 = vmatpush1.msra.mxu0 %v3770
    %3817 = vmatprep.subr.mxu0 %v3773
    %3818 = vmatpush1.msra.mxu0 %v3772
    %3819 = vmatprep.subr.mxu0 %v3775
    %3820 = vmatpush1.msra.mxu0 %v3774
    %3821 = vmatprep.subr.mxu0 %v3777
    %3822 = vmatpush1.msra.mxu0 %v3776
    %3823 = vmatprep.subr.mxu0 %v3779
    %3824 = vmatpush1.msra.mxu0 %v3778
    %3825 = vmatprep.subr.mxu0 %v3781
    %3826 = vmatpush1.msra.mxu0 %v3780
    %3827 = vmatprep.subr.mxu0 %v3783
    %3828 = vmatpush1.msra.mxu0 %v3782
    %3829 = vmatprep.subr.mxu0 %v3785
    %3830 = vmatpush1.msra.mxu0 %v3784
    %3831 = vmatprep.subr.mxu0 0.0
    %3832 = vmatpush1.msra.mxu0 0.0
    %3833 = vmatprep.subr.mxu0 0.0
    %3834 = vmatpush1.msra.mxu0 0.0
    %3835 = vmatprep.subr.mxu0 0.0
    %3836 = vmatpush1.msra.mxu0 0.0
    %3837 = vmatprep.subr.mxu0 0.0
    %3838 = vmatpush1.msra.mxu0 0.0
    %3839 = vmatprep.subr.mxu0 0.0
    %3840 = vmatpush1.msra.mxu0 0.0
    %3841 = vmatprep.subr.mxu0 0.0
    %3842 = vmatpush1.msra.mxu0 0.0
    %3843 = vmatprep.subr.mxu0 0.0
    %3844 = vmatpush1.msra.mxu0 0.0
    %3845 = vmatprep.subr.mxu0 0.0
    %3846 = vmatpush1.msra.mxu0 0.0
    %3847 = vmatprep.subr.mxu0 0.0
    %3848 = vmatpush1.msra.mxu0 0.0
    %3849 = vmatprep.subr.mxu0 0.0
    %3850 = vmatpush1.msra.mxu0 0.0
    %3851 = vmatprep.subr.mxu0 0.0
    %3852 = vmatpush1.msra.mxu0 0.0
    %3853 = vmatprep.subr.mxu0 0.0
    %3854 = vmatpush1.msra.mxu0 0.0
    %3855 = vmatprep.subr.mxu0 0.0
    %3856 = vmatpush1.msra.mxu0 0.0
    %3857 = vmatprep.subr.mxu0 0.0
    %3858 = vmatpush1.msra.mxu0 0.0
    %3859 = vmatprep.subr.mxu0 0.0
    %3860 = vmatpush1.msra.mxu0 0.0
    %3861 = vmatprep.subr.mxu0 0.0
    %3862 = vmatpush1.msra.mxu0 0.0
    %3863 = vmatprep.mubr.f32.mxu0 0.0
    %3864 = vmatmul.mubr.f32.gmra.mrb[0].mxu0 %v3752
    %v3865 = vpop.f32.mrb[0].mxu0
    %v3866 = vadd.f32 %v3792, %v3865
    %v3867 = vpop.f32.mrb[0].mxu0
    %v3868 = vadd.f32 %v3796, %v3867
    %3869 = vdwg.mxu0
    %v3872 = vrot.slane %v3136, 4
    %v3873 = vrot.slane %v3137, 4
    %v3876 = vadd.f32 %v3866, %v3872
    %v3877 = vadd.f32 %v3868, %v3873
    %s3878 = scalar_lea.vmem %s0, 16
    %v3879 = vld [vmem:[%s3878] sm:$0xff]
    %v3880 = vld [vmem:[%s3878 + $0x8] sm:$0x1f]
    %v3882 = vsel %vm265, %v3879, 0
    %v3885 = vsel %vm265, %v3880, 0
    %3887 = vmatprep.subr.mxu0 0.0
    %3888 = vmatpush1.msra.mxu0 %v1083
    %3889 = vmatprep.subr.mxu0 0.0
    %3890 = vmatpush1.msra.mxu0 0.0
    %3891 = vmatprep.subr.mxu0 0.0
    %3892 = vmatpush1.msra.mxu0 0.0
    %3893 = vmatprep.subr.mxu0 0.0
    %3894 = vmatpush1.msra.mxu0 0.0
    %3895 = vmatprep.subr.mxu0 0.0
    %3896 = vmatpush1.msra.mxu0 0.0
    %3897 = vmatprep.subr.mxu0 0.0
    %3898 = vmatpush1.msra.mxu0 0.0
    %3899 = vmatprep.subr.mxu0 0.0
    %3900 = vmatpush1.msra.mxu0 0.0
    %3901 = vmatprep.subr.mxu0 0.0
    %3902 = vmatpush1.msra.mxu0 0.0
    %3903 = vmatprep.subr.mxu0 0.0
    %3904 = vmatpush1.msra.mxu0 0.0
    %3905 = vmatprep.subr.mxu0 0.0
    %3906 = vmatpush1.msra.mxu0 0.0
    %3907 = vmatprep.subr.mxu0 0.0
    %3908 = vmatpush1.msra.mxu0 0.0
    %3909 = vmatprep.subr.mxu0 0.0
    %3910 = vmatpush1.msra.mxu0 0.0
    %3911 = vmatprep.subr.mxu0 0.0
    %3912 = vmatpush1.msra.mxu0 0.0
    %3913 = vmatprep.subr.mxu0 0.0
    %3914 = vmatpush1.msra.mxu0 0.0
    %3915 = vmatprep.subr.mxu0 0.0
    %3916 = vmatpush1.msra.mxu0 0.0
    %3917 = vmatprep.subr.mxu0 0.0
    %3918 = vmatpush1.msra.mxu0 0.0
    %3919 = vmatprep.subr.mxu0 0.0
    %3920 = vmatpush1.msra.mxu0 0.0
    %3921 = vmatprep.subr.mxu0 0.0
    %3922 = vmatpush1.msra.mxu0 0.0
    %3923 = vmatprep.subr.mxu0 0.0
    %3924 = vmatpush1.msra.mxu0 0.0
    %3925 = vmatprep.subr.mxu0 0.0
    %3926 = vmatpush1.msra.mxu0 0.0
    %3927 = vmatprep.subr.mxu0 0.0
    %3928 = vmatpush1.msra.mxu0 0.0
    %3929 = vmatprep.subr.mxu0 0.0
    %3930 = vmatpush1.msra.mxu0 0.0
    %3931 = vmatprep.subr.mxu0 0.0
    %3932 = vmatpush1.msra.mxu0 0.0
    %3933 = vmatprep.subr.mxu0 0.0
    %3934 = vmatpush1.msra.mxu0 0.0
    %3935 = vmatprep.subr.mxu0 0.0
    %3936 = vmatpush1.msra.mxu0 0.0
    %3937 = vmatprep.subr.mxu0 0.0
    %3938 = vmatpush1.msra.mxu0 0.0
    %3939 = vmatprep.subr.mxu0 0.0
    %3940 = vmatpush1.msra.mxu0 0.0
    %3941 = vmatprep.subr.mxu0 0.0
    %3942 = vmatpush1.msra.mxu0 0.0
    %3943 = vmatprep.subr.mxu0 0.0
    %3944 = vmatpush1.msra.mxu0 0.0
    %3945 = vmatprep.subr.mxu0 0.0
    %3946 = vmatpush1.msra.mxu0 0.0
    %3947 = vmatprep.subr.mxu0 0.0
    %3948 = vmatpush1.msra.mxu0 0.0
    %3949 = vmatprep.subr.mxu0 0.0
    %3950 = vmatpush1.msra.mxu0 0.0
    %3951 = vmatprep.mubr.f32.mxu0 0.0
    %3952 = vmatmul.mubr.f32.gmra.mrb[0].mxu0 %v3882
    %v3953 = vpop.f32.mrb[0].mxu0
    %v3954 = vadd.f32 %v1091, %v3953
    %v3955 = vpop.f32.mrb[0].mxu0
    %3956 = vmatprep.mubr.f32.mxu0 0.0
    %3957 = vmatmul.mubr.f32.gmra.mrb[0].mxu0 %v3885
    %v3958 = vpop.f32.mrb[0].mxu0
    %v3959 = vadd.f32 %v1091, %v3958
    %v3960 = vpop.f32.mrb[0].mxu0
    %3961 = vdwg.mxu0
    %v3964 = vrot.slane %v3954, 1
    %v3965 = vrot.slane %v3959, 1
    %v3966 = vsel %vm1176, %v3964, %v3965
    %v3969 = vrot.slane %v3954, 2
    %v3970 = vrot.slane %v3959, 2
    %v3971 = vsel %vm1182, %v3969, %v3970
    %3974 = vmatprep.subr.mxu0 %v1189
    %3975 = vmatpush1.msra.mxu0 %v1188
    %3976 = vmatprep.subr.mxu0 %v1191
    %3977 = vmatpush1.msra.mxu0 %v1190
    %3978 = vmatprep.subr.mxu0 %v1193
    %3979 = vmatpush1.msra.mxu0 %v1192
    %3980 = vmatprep.subr.mxu0 %v1195
    %3981 = vmatpush1.msra.mxu0 %v1194
    %3982 = vmatprep.subr.mxu0 %v1197
    %3983 = vmatpush1.msra.mxu0 %v1196
    %3984 = vmatprep.subr.mxu0 %v1199
    %3985 = vmatpush1.msra.mxu0 %v1198
    %3986 = vmatprep.subr.mxu0 %v1201
    %3987 = vmatpush1.msra.mxu0 %v1200
    %3988 = vmatprep.subr.mxu0 %v1203
    %3989 = vmatpush1.msra.mxu0 %v1202
    %3990 = vmatprep.subr.mxu0 %v1205
    %3991 = vmatpush1.msra.mxu0 %v1204
    %3992 = vmatprep.subr.mxu0 %v1207
    %3993 = vmatpush1.msra.mxu0 %v1206
    %3994 = vmatprep.subr.mxu0 %v1209
    %3995 = vmatpush1.msra.mxu0 %v1208
    %3996 = vmatprep.subr.mxu0 %v1211
    %3997 = vmatpush1.msra.mxu0 %v1210
    %3998 = vmatprep.subr.mxu0 %v1213
    %3999 = vmatpush1.msra.mxu0 %v1212
    %4000 = vmatprep.subr.mxu0 %v1215
    %4001 = vmatpush1.msra.mxu0 %v1214
    %4002 = vmatprep.subr.mxu0 %v1217
    %4003 = vmatpush1.msra.mxu0 %v1216
    %4004 = vmatprep.subr.mxu0 %v1219
    %4005 = vmatpush1.msra.mxu0 %v1218
    %4006 = vmatprep.subr.mxu0 %v1221
    %4007 = vmatpush1.msra.mxu0 %v1220
    %4008 = vmatprep.subr.mxu0 %v1223
    %4009 = vmatpush1.msra.mxu0 %v1222
    %4010 = vmatprep.subr.mxu0 %v1225
    %4011 = vmatpush1.msra.mxu0 %v1224
    %4012 = vmatprep.subr.mxu0 %v1227
    %4013 = vmatpush1.msra.mxu0 %v1226
    %4014 = vmatprep.subr.mxu0 %v1229
    %4015 = vmatpush1.msra.mxu0 %v1228
    %4016 = vmatprep.subr.mxu0 %v1231
    %4017 = vmatpush1.msra.mxu0 %v1230
    %4018 = vmatprep.subr.mxu0 %v1233
    %4019 = vmatpush1.msra.mxu0 %v1232
    %4020 = vmatprep.subr.mxu0 %v1235
    %4021 = vmatpush1.msra.mxu0 %v1234
    %4022 = vmatprep.subr.mxu0 %v1237
    %4023 = vmatpush1.msra.mxu0 %v1236
    %4024 = vmatprep.subr.mxu0 %v1239
    %4025 = vmatpush1.msra.mxu0 %v1238
    %4026 = vmatprep.subr.mxu0 %v1241
    %4027 = vmatpush1.msra.mxu0 %v1240
    %4028 = vmatprep.subr.mxu0 %v1243
    %4029 = vmatpush1.msra.mxu0 %v1242
    %4030 = vmatprep.subr.mxu0 %v1245
    %4031 = vmatpush1.msra.mxu0 %v1244
    %4032 = vmatprep.subr.mxu0 %v1247
    %4033 = vmatpush1.msra.mxu0 %v1246
    %4034 = vmatprep.subr.mxu0 %v1249
    %4035 = vmatpush1.msra.mxu0 %v1248
    %4036 = vmatprep.subr.mxu0 %v1251
    %4037 = vmatpush1.msra.mxu0 %v1250
    %4038 = vmatprep.mubr.f32.mxu0 %v3966
    %4039 = vmatmul.mubr.f32.gmra.mrb[0].mxu0 %v3954
    %v4040 = vpop.f32.mrb[0].mxu0
    %v4041 = vadd.f32 %v1289, %v4040
    %v4042 = vpop.f32.mrb[0].mxu0
    %v4043 = vadd.f32 %v1293, %v4042
    %4044 = vmatprep.mubr.f32.mxu0 %v3965
    %4045 = vmatmul.mubr.f32.gmra.mrb[0].mxu0 %v3959
    %v4046 = vpop.f32.mrb[0].mxu0
    %v4047 = vadd.f32 %v1289, %v4046
    %v4048 = vpop.f32.mrb[0].mxu0
    %v4049 = vadd.f32 %v1293, %v4048
    %4050 = vdwg.mxu0
    %4051 = vmatprep.subr.mxu0 %v1253
    %4052 = vmatpush1.msra.mxu0 %v1252
    %4053 = vmatprep.subr.mxu0 %v1255
    %4054 = vmatpush1.msra.mxu0 %v1254
    %4055 = vmatprep.subr.mxu0 %v1257
    %4056 = vmatpush1.msra.mxu0 %v1256
    %4057 = vmatprep.subr.mxu0 %v1259
    %4058 = vmatpush1.msra.mxu0 %v1258
    %4059 = vmatprep.subr.mxu0 %v1261
    %4060 = vmatpush1.msra.mxu0 %v1260
    %4061 = vmatprep.subr.mxu0 %v1263
    %4062 = vmatpush1.msra.mxu0 %v1262
    %4063 = vmatprep.subr.mxu0 %v1265
    %4064 = vmatpush1.msra.mxu0 %v1264
    %4065 = vmatprep.subr.mxu0 %v1267
    %4066 = vmatpush1.msra.mxu0 %v1266
    %4067 = vmatprep.subr.mxu0 %v1269
    %4068 = vmatpush1.msra.mxu0 %v1268
    %4069 = vmatprep.subr.mxu0 %v1271
    %4070 = vmatpush1.msra.mxu0 %v1270
    %4071 = vmatprep.subr.mxu0 %v1273
    %4072 = vmatpush1.msra.mxu0 %v1272
    %4073 = vmatprep.subr.mxu0 %v1275
    %4074 = vmatpush1.msra.mxu0 %v1274
    %4075 = vmatprep.subr.mxu0 %v1277
    %4076 = vmatpush1.msra.mxu0 %v1276
    %4077 = vmatprep.subr.mxu0 %v1279
    %4078 = vmatpush1.msra.mxu0 %v1278
    %4079 = vmatprep.subr.mxu0 %v1281
    %4080 = vmatpush1.msra.mxu0 %v1280
    %4081 = vmatprep.subr.mxu0 %v1283
    %4082 = vmatpush1.msra.mxu0 %v1282
    %4083 = vmatprep.subr.mxu0 0.0
    %4084 = vmatpush1.msra.mxu0 0.0
    %4085 = vmatprep.subr.mxu0 0.0
    %4086 = vmatpush1.msra.mxu0 0.0
    %4087 = vmatprep.subr.mxu0 0.0
    %4088 = vmatpush1.msra.mxu0 0.0
    %4089 = vmatprep.subr.mxu0 0.0
    %4090 = vmatpush1.msra.mxu0 0.0
    %4091 = vmatprep.subr.mxu0 0.0
    %4092 = vmatpush1.msra.mxu0 0.0
    %4093 = vmatprep.subr.mxu0 0.0
    %4094 = vmatpush1.msra.mxu0 0.0
    %4095 = vmatprep.subr.mxu0 0.0
    %4096 = vmatpush1.msra.mxu0 0.0
    %4097 = vmatprep.subr.mxu0 0.0
    %4098 = vmatpush1.msra.mxu0 0.0
    %4099 = vmatprep.subr.mxu0 0.0
    %4100 = vmatpush1.msra.mxu0 0.0
    %4101 = vmatprep.subr.mxu0 0.0
    %4102 = vmatpush1.msra.mxu0 0.0
    %4103 = vmatprep.subr.mxu0 0.0
    %4104 = vmatpush1.msra.mxu0 0.0
    %4105 = vmatprep.subr.mxu0 0.0
    %4106 = vmatpush1.msra.mxu0 0.0
    %4107 = vmatprep.subr.mxu0 0.0
    %4108 = vmatpush1.msra.mxu0 0.0
    %4109 = vmatprep.subr.mxu0 0.0
    %4110 = vmatpush1.msra.mxu0 0.0
    %4111 = vmatprep.subr.mxu0 0.0
    %4112 = vmatpush1.msra.mxu0 0.0
    %4113 = vmatprep.subr.mxu0 0.0
    %4114 = vmatpush1.msra.mxu0 0.0
    %4115 = vmatprep.mubr.f32.mxu0 0.0
    %4116 = vmatmul.mubr.f32.gmra.mrb[0].mxu0 %v3971
    %v4117 = vpop.f32.mrb[0].mxu0
    %v4118 = vadd.f32 %v4041, %v4117
    %v4119 = vpop.f32.mrb[0].mxu0
    %v4120 = vadd.f32 %v4043, %v4119
    %4121 = vmatprep.mubr.f32.mxu0 0.0
    %4122 = vmatmul.mubr.f32.gmra.mrb[0].mxu0 %v3970
    %v4123 = vpop.f32.mrb[0].mxu0
    %v4124 = vadd.f32 %v4047, %v4123
    %v4125 = vpop.f32.mrb[0].mxu0
    %v4126 = vadd.f32 %v4049, %v4125
    %4127 = vdwg.mxu0
    %v4128 = vtanh.pop %v4118
    %v4129 = vtanh.pop %v4124
    %v4130 = vxor.u32 %v4120, 2147483648
    %v4131 = vxor.u32 %v4126, 2147483648
    %v4132 = vmul.f32 %v4130, 1.442695
    %v4133 = vpow.pop %v4132
    %v4134 = vmul.f32 %v4131, 1.442695
    %v4135 = vpow.pop %v4134
    %v4136 = vadd.f32 %v4133, 1.0
    %v4137 = vadd.f32 %v4135, 1.0
    %v4138 = vrcp.pop %v4136
    %v4139 = vmul.f32 1.0, %v4138
    %v4140 = vrcp.pop %v4137
    %v4141 = vmul.f32 1.0, %v4140
    %v4142 = vmul.f32 %v4128, %v4139
    %v4143 = vmul.f32 %v4129, %v4141
    %4144 = vmatprep.subr.mxu0 %v1467
    %4145 = vmatpush1.msra.mxu0 %v1466
    %4146 = vmatprep.subr.mxu0 %v1469
    %4147 = vmatpush1.msra.mxu0 %v1468
    %4148 = vmatprep.subr.mxu0 %v1471
    %4149 = vmatpush1.msra.mxu0 %v1470
    %4150 = vmatprep.subr.mxu0 %v1473
    %4151 = vmatpush1.msra.mxu0 %v1472
    %4152 = vmatprep.subr.mxu0 %v1475
    %4153 = vmatpush1.msra.mxu0 %v1474
    %4154 = vmatprep.subr.mxu0 %v1477
    %4155 = vmatpush1.msra.mxu0 %v1476
    %4156 = vmatprep.subr.mxu0 %v1479
    %4157 = vmatpush1.msra.mxu0 %v1478
    %4158 = vmatprep.subr.mxu0 %v1481
    %4159 = vmatpush1.msra.mxu0 %v1480
    %4160 = vmatprep.subr.mxu0 %v1483
    %4161 = vmatpush1.msra.mxu0 %v1482
    %4162 = vmatprep.subr.mxu0 %v1485
    %4163 = vmatpush1.msra.mxu0 %v1484
    %4164 = vmatprep.subr.mxu0 %v1487
    %4165 = vmatpush1.msra.mxu0 %v1486
    %4166 = vmatprep.subr.mxu0 %v1489
    %4167 = vmatpush1.msra.mxu0 %v1488
    %4168 = vmatprep.subr.mxu0 %v1491
    %4169 = vmatpush1.msra.mxu0 %v1490
    %4170 = vmatprep.subr.mxu0 %v1493
    %4171 = vmatpush1.msra.mxu0 %v1492
    %4172 = vmatprep.subr.mxu0 %v1495
    %4173 = vmatpush1.msra.mxu0 %v1494
    %4174 = vmatprep.subr.mxu0 %v1497
    %4175 = vmatpush1.msra.mxu0 %v1496
    %4176 = vmatprep.subr.mxu0 0.0
    %4177 = vmatpush1.msra.mxu0 0.0
    %4178 = vmatprep.subr.mxu0 0.0
    %4179 = vmatpush1.msra.mxu0 0.0
    %4180 = vmatprep.subr.mxu0 0.0
    %4181 = vmatpush1.msra.mxu0 0.0
    %4182 = vmatprep.subr.mxu0 0.0
    %4183 = vmatpush1.msra.mxu0 0.0
    %4184 = vmatprep.subr.mxu0 0.0
    %4185 = vmatpush1.msra.mxu0 0.0
    %4186 = vmatprep.subr.mxu0 0.0
    %4187 = vmatpush1.msra.mxu0 0.0
    %4188 = vmatprep.subr.mxu0 0.0
    %4189 = vmatpush1.msra.mxu0 0.0
    %4190 = vmatprep.subr.mxu0 0.0
    %4191 = vmatpush1.msra.mxu0 0.0
    %4192 = vmatprep.subr.mxu0 0.0
    %4193 = vmatpush1.msra.mxu0 0.0
    %4194 = vmatprep.subr.mxu0 0.0
    %4195 = vmatpush1.msra.mxu0 0.0
    %4196 = vmatprep.subr.mxu0 0.0
    %4197 = vmatpush1.msra.mxu0 0.0
    %4198 = vmatprep.subr.mxu0 0.0
    %4199 = vmatpush1.msra.mxu0 0.0
    %4200 = vmatprep.subr.mxu0 0.0
    %4201 = vmatpush1.msra.mxu0 0.0
    %4202 = vmatprep.subr.mxu0 0.0
    %4203 = vmatpush1.msra.mxu0 0.0
    %4204 = vmatprep.subr.mxu0 0.0
    %4205 = vmatpush1.msra.mxu0 0.0
    %4206 = vmatprep.subr.mxu0 0.0
    %4207 = vmatpush1.msra.mxu0 0.0
    %4208 = vmatprep.mubr.f32.mxu0 0.0
    %4209 = vmatmul.mubr.f32.gmra.mrb[0].mxu0 %v4142
    %v4210 = vpop.f32.mrb[0].mxu0
    %v4211 = vadd.f32 %v1503, %v4210
    %v4212 = vpop.f32.mrb[0].mxu0
    %v4213 = vadd.f32 %v1507, %v4212
    %4214 = vmatprep.mubr.f32.mxu0 0.0
    %4215 = vmatmul.mubr.f32.gmra.mrb[0].mxu0 %v4143
    %v4216 = vpop.f32.mrb[0].mxu0
    %v4217 = vadd.f32 %v1503, %v4216
    %v4218 = vpop.f32.mrb[0].mxu0
    %v4219 = vadd.f32 %v1507, %v4218
    %4220 = vdwg.mxu0
    %4221 = vmatprep.subr.mxu0 0.0
    %4222 = vmatpush1.msra.mxu0 %v1587
    %4223 = vmatprep.subr.mxu0 0.0
    %4224 = vmatpush1.msra.mxu0 %v1588
    %4225 = vmatprep.subr.mxu0 0.0
    %4226 = vmatpush1.msra.mxu0 %v1589
    %4227 = vmatprep.subr.mxu0 0.0
    %4228 = vmatpush1.msra.mxu0 %v1590
    %4229 = vmatprep.subr.mxu0 0.0
    %4230 = vmatpush1.msra.mxu0 %v1591
    %4231 = vmatprep.subr.mxu0 0.0
    %4232 = vmatpush1.msra.mxu0 %v1592
    %4233 = vmatprep.subr.mxu0 0.0
    %4234 = vmatpush1.msra.mxu0 %v1593
    %4235 = vmatprep.subr.mxu0 0.0
    %4236 = vmatpush1.msra.mxu0 %v1594
    %4237 = vmatprep.subr.mxu0 0.0
    %4238 = vmatpush1.msra.mxu0 %v1595
    %4239 = vmatprep.subr.mxu0 0.0
    %4240 = vmatpush1.msra.mxu0 %v1596
    %4241 = vmatprep.subr.mxu0 0.0
    %4242 = vmatpush1.msra.mxu0 %v1597
    %4243 = vmatprep.subr.mxu0 0.0
    %4244 = vmatpush1.msra.mxu0 %v1598
    %4245 = vmatprep.subr.mxu0 0.0
    %4246 = vmatpush1.msra.mxu0 %v1599
    %4247 = vmatprep.subr.mxu0 0.0
    %4248 = vmatpush1.msra.mxu0 %v1600
    %4249 = vmatprep.subr.mxu0 0.0
    %4250 = vmatpush1.msra.mxu0 %v1601
    %4251 = vmatprep.subr.mxu0 0.0
    %4252 = vmatpush1.msra.mxu0 %v1602
    %4253 = vmatprep.subr.mxu0 0.0
    %4254 = vmatpush1.msra.mxu0 0.0
    %4255 = vmatprep.subr.mxu0 0.0
    %4256 = vmatpush1.msra.mxu0 0.0
    %4257 = vmatprep.subr.mxu0 0.0
    %4258 = vmatpush1.msra.mxu0 0.0
    %4259 = vmatprep.subr.mxu0 0.0
    %4260 = vmatpush1.msra.mxu0 0.0
    %4261 = vmatprep.subr.mxu0 0.0
    %4262 = vmatpush1.msra.mxu0 0.0
    %4263 = vmatprep.subr.mxu0 0.0
    %4264 = vmatpush1.msra.mxu0 0.0
    %4265 = vmatprep.subr.mxu0 0.0
    %4266 = vmatpush1.msra.mxu0 0.0
    %4267 = vmatprep.subr.mxu0 0.0
    %4268 = vmatpush1.msra.mxu0 0.0
    %4269 = vmatprep.subr.mxu0 0.0
    %4270 = vmatpush1.msra.mxu0 0.0
    %4271 = vmatprep.subr.mxu0 0.0
    %4272 = vmatpush1.msra.mxu0 0.0
    %4273 = vmatprep.subr.mxu0 0.0
    %4274 = vmatpush1.msra.mxu0 0.0
    %4275 = vmatprep.subr.mxu0 0.0
    %4276 = vmatpush1.msra.mxu0 0.0
    %4277 = vmatprep.subr.mxu0 0.0
    %4278 = vmatpush1.msra.mxu0 0.0
    %4279 = vmatprep.subr.mxu0 0.0
    %4280 = vmatpush1.msra.mxu0 0.0
    %4281 = vmatprep.subr.mxu0 0.0
    %4282 = vmatpush1.msra.mxu0 0.0
    %4283 = vmatprep.subr.mxu0 0.0
    %4284 = vmatpush1.msra.mxu0 0.0
    %4285 = vmatprep.mubr.f32.mxu0 0.0
    %4286 = vmatmul.mubr.f32.gmra.mrb[0].mxu0 %v4142
    %v4287 = vpop.f32.mrb[0].mxu0
    %v4288 = vadd.f32 0.0, %v4287
    %v4289 = vpop.f32.mrb[0].mxu0
    %4290 = vmatprep.mubr.f32.mxu0 0.0
    %4291 = vmatmul.mubr.f32.gmra.mrb[0].mxu0 %v4143
    %v4292 = vpop.f32.mrb[0].mxu0
    %v4293 = vadd.f32 0.0, %v4292
    %v4294 = vpop.f32.mrb[0].mxu0
    %4295 = vdwg.mxu0
    %4296 = vmatprep.subr.mxu0 0.0
    %4297 = vmatpush1.msra.mxu0 %v1678
    %4298 = vmatprep.subr.mxu0 0.0
    %4299 = vmatpush1.msra.mxu0 %v1679
    %4300 = vmatprep.subr.mxu0 0.0
    %4301 = vmatpush1.msra.mxu0 %v1680
    %4302 = vmatprep.subr.mxu0 0.0
    %4303 = vmatpush1.msra.mxu0 %v1681
    %4304 = vmatprep.subr.mxu0 0.0
    %4305 = vmatpush1.msra.mxu0 %v1682
    %4306 = vmatprep.subr.mxu0 0.0
    %4307 = vmatpush1.msra.mxu0 %v1683
    %4308 = vmatprep.subr.mxu0 0.0
    %4309 = vmatpush1.msra.mxu0 %v1684
    %4310 = vmatprep.subr.mxu0 0.0
    %4311 = vmatpush1.msra.mxu0 %v1685
    %4312 = vmatprep.subr.mxu0 0.0
    %4313 = vmatpush1.msra.mxu0 %v1686
    %4314 = vmatprep.subr.mxu0 0.0
    %4315 = vmatpush1.msra.mxu0 %v1687
    %4316 = vmatprep.subr.mxu0 0.0
    %4317 = vmatpush1.msra.mxu0 %v1688
    %4318 = vmatprep.subr.mxu0 0.0
    %4319 = vmatpush1.msra.mxu0 %v1689
    %4320 = vmatprep.subr.mxu0 0.0
    %4321 = vmatpush1.msra.mxu0 %v1690
    %4322 = vmatprep.subr.mxu0 0.0
    %4323 = vmatpush1.msra.mxu0 %v1691
    %4324 = vmatprep.subr.mxu0 0.0
    %4325 = vmatpush1.msra.mxu0 %v1692
    %4326 = vmatprep.subr.mxu0 0.0
    %4327 = vmatpush1.msra.mxu0 %v1693
    %4328 = vmatprep.subr.mxu0 0.0
    %4329 = vmatpush1.msra.mxu0 0.0
    %4330 = vmatprep.subr.mxu0 0.0
    %4331 = vmatpush1.msra.mxu0 0.0
    %4332 = vmatprep.subr.mxu0 0.0
    %4333 = vmatpush1.msra.mxu0 0.0
    %4334 = vmatprep.subr.mxu0 0.0
    %4335 = vmatpush1.msra.mxu0 0.0
    %4336 = vmatprep.subr.mxu0 0.0
    %4337 = vmatpush1.msra.mxu0 0.0
    %4338 = vmatprep.subr.mxu0 0.0
    %4339 = vmatpush1.msra.mxu0 0.0
    %4340 = vmatprep.subr.mxu0 0.0
    %4341 = vmatpush1.msra.mxu0 0.0
    %4342 = vmatprep.subr.mxu0 0.0
    %4343 = vmatpush1.msra.mxu0 0.0
    %4344 = vmatprep.subr.mxu0 0.0
    %4345 = vmatpush1.msra.mxu0 0.0
    %4346 = vmatprep.subr.mxu0 0.0
    %4347 = vmatpush1.msra.mxu0 0.0
    %4348 = vmatprep.subr.mxu0 0.0
    %4349 = vmatpush1.msra.mxu0 0.0
    %4350 = vmatprep.subr.mxu0 0.0
    %4351 = vmatpush1.msra.mxu0 0.0
    %4352 = vmatprep.subr.mxu0 0.0
    %4353 = vmatpush1.msra.mxu0 0.0
    %4354 = vmatprep.subr.mxu0 0.0
    %4355 = vmatpush1.msra.mxu0 0.0
    %4356 = vmatprep.subr.mxu0 0.0
    %4357 = vmatpush1.msra.mxu0 0.0
    %4358 = vmatprep.subr.mxu0 0.0
    %4359 = vmatpush1.msra.mxu0 0.0
    %4360 = vmatprep.mubr.f32.mxu0 0.0
    %4361 = vmatmul.mubr.f32.gmra.mrb[0].mxu0 %v4142
    %v4362 = vpop.f32.mrb[0].mxu0
    %v4363 = vadd.f32 0.0, %v4362
    %v4364 = vpop.f32.mrb[0].mxu0
    %4365 = vmatprep.mubr.f32.mxu0 0.0
    %4366 = vmatmul.mubr.f32.gmra.mrb[0].mxu0 %v4143
    %v4367 = vpop.f32.mrb[0].mxu0
    %v4368 = vadd.f32 0.0, %v4367
    %v4369 = vpop.f32.mrb[0].mxu0
    %4370 = vdwg.mxu0
    %4371 = vmatprep.subr.mxu0 0.0
    %4372 = vmatpush1.msra.mxu0 %v1769
    %4373 = vmatprep.subr.mxu0 0.0
    %4374 = vmatpush1.msra.mxu0 %v1770
    %4375 = vmatprep.subr.mxu0 0.0
    %4376 = vmatpush1.msra.mxu0 %v1771
    %4377 = vmatprep.subr.mxu0 0.0
    %4378 = vmatpush1.msra.mxu0 %v1772
    %4379 = vmatprep.subr.mxu0 0.0
    %4380 = vmatpush1.msra.mxu0 %v1773
    %4381 = vmatprep.subr.mxu0 0.0
    %4382 = vmatpush1.msra.mxu0 %v1774
    %4383 = vmatprep.subr.mxu0 0.0
    %4384 = vmatpush1.msra.mxu0 %v1775
    %4385 = vmatprep.subr.mxu0 0.0
    %4386 = vmatpush1.msra.mxu0 %v1776
    %4387 = vmatprep.subr.mxu0 0.0
    %4388 = vmatpush1.msra.mxu0 %v1777
    %4389 = vmatprep.subr.mxu0 0.0
    %4390 = vmatpush1.msra.mxu0 %v1778
    %4391 = vmatprep.subr.mxu0 0.0
    %4392 = vmatpush1.msra.mxu0 %v1779
    %4393 = vmatprep.subr.mxu0 0.0
    %4394 = vmatpush1.msra.mxu0 %v1780
    %4395 = vmatprep.subr.mxu0 0.0
    %4396 = vmatpush1.msra.mxu0 %v1781
    %4397 = vmatprep.subr.mxu0 0.0
    %4398 = vmatpush1.msra.mxu0 %v1782
    %4399 = vmatprep.subr.mxu0 0.0
    %4400 = vmatpush1.msra.mxu0 %v1783
    %4401 = vmatprep.subr.mxu0 0.0
    %4402 = vmatpush1.msra.mxu0 %v1784
    %4403 = vmatprep.subr.mxu0 0.0
    %4404 = vmatpush1.msra.mxu0 %v1785
    %4405 = vmatprep.subr.mxu0 0.0
    %4406 = vmatpush1.msra.mxu0 %v1786
    %4407 = vmatprep.subr.mxu0 0.0
    %4408 = vmatpush1.msra.mxu0 %v1787
    %4409 = vmatprep.subr.mxu0 0.0
    %4410 = vmatpush1.msra.mxu0 %v1788
    %4411 = vmatprep.subr.mxu0 0.0
    %4412 = vmatpush1.msra.mxu0 %v1789
    %4413 = vmatprep.subr.mxu0 0.0
    %4414 = vmatpush1.msra.mxu0 %v1790
    %4415 = vmatprep.subr.mxu0 0.0
    %4416 = vmatpush1.msra.mxu0 %v1791
    %4417 = vmatprep.subr.mxu0 0.0
    %4418 = vmatpush1.msra.mxu0 %v1792
    %4419 = vmatprep.subr.mxu0 0.0
    %4420 = vmatpush1.msra.mxu0 %v1793
    %4421 = vmatprep.subr.mxu0 0.0
    %4422 = vmatpush1.msra.mxu0 %v1794
    %4423 = vmatprep.subr.mxu0 0.0
    %4424 = vmatpush1.msra.mxu0 %v1795
    %4425 = vmatprep.subr.mxu0 0.0
    %4426 = vmatpush1.msra.mxu0 %v1796
    %4427 = vmatprep.subr.mxu0 0.0
    %4428 = vmatpush1.msra.mxu0 %v1797
    %4429 = vmatprep.subr.mxu0 0.0
    %4430 = vmatpush1.msra.mxu0 %v1798
    %4431 = vmatprep.subr.mxu0 0.0
    %4432 = vmatpush1.msra.mxu0 %v1799
    %4433 = vmatprep.subr.mxu0 0.0
    %4434 = vmatpush1.msra.mxu0 %v1800
    %4435 = vmatprep.mubr.f32.mxu0 %v4288
    %4436 = vmatmul.mubr.f32.gmra.mrb[0].mxu0 %v4142
    %v4437 = vpop.f32.mrb[0].mxu0
    %v4438 = vadd.f32 %v1822, %v4437
    %v4439 = vpop.f32.mrb[0].mxu0
    %4440 = vmatprep.mubr.f32.mxu0 %v4293
    %4441 = vmatmul.mubr.f32.gmra.mrb[0].mxu0 %v4143
    %v4442 = vpop.f32.mrb[0].mxu0
    %v4443 = vadd.f32 %v1822, %v4442
    %v4444 = vpop.f32.mrb[0].mxu0
    %4445 = vdwg.mxu0
    %4446 = vmatprep.subr.mxu0 0.0
    %4447 = vmatpush1.msra.mxu0 %v1801
    %4448 = vmatprep.subr.mxu0 0.0
    %4449 = vmatpush1.msra.mxu0 %v1802
    %4450 = vmatprep.subr.mxu0 0.0
    %4451 = vmatpush1.msra.mxu0 %v1803
    %4452 = vmatprep.subr.mxu0 0.0
    %4453 = vmatpush1.msra.mxu0 %v1804
    %4454 = vmatprep.subr.mxu0 0.0
    %4455 = vmatpush1.msra.mxu0 %v1805
    %4456 = vmatprep.subr.mxu0 0.0
    %4457 = vmatpush1.msra.mxu0 %v1806
    %4458 = vmatprep.subr.mxu0 0.0
    %4459 = vmatpush1.msra.mxu0 %v1807
    %4460 = vmatprep.subr.mxu0 0.0
    %4461 = vmatpush1.msra.mxu0 %v1808
    %4462 = vmatprep.subr.mxu0 0.0
    %4463 = vmatpush1.msra.mxu0 %v1809
    %4464 = vmatprep.subr.mxu0 0.0
    %4465 = vmatpush1.msra.mxu0 %v1810
    %4466 = vmatprep.subr.mxu0 0.0
    %4467 = vmatpush1.msra.mxu0 %v1811
    %4468 = vmatprep.subr.mxu0 0.0
    %4469 = vmatpush1.msra.mxu0 %v1812
    %4470 = vmatprep.subr.mxu0 0.0
    %4471 = vmatpush1.msra.mxu0 %v1813
    %4472 = vmatprep.subr.mxu0 0.0
    %4473 = vmatpush1.msra.mxu0 %v1814
    %4474 = vmatprep.subr.mxu0 0.0
    %4475 = vmatpush1.msra.mxu0 %v1815
    %4476 = vmatprep.subr.mxu0 0.0
    %4477 = vmatpush1.msra.mxu0 %v1816
    %4478 = vmatprep.subr.mxu0 0.0
    %4479 = vmatpush1.msra.mxu0 0.0
    %4480 = vmatprep.subr.mxu0 0.0
    %4481 = vmatpush1.msra.mxu0 0.0
    %4482 = vmatprep.subr.mxu0 0.0
    %4483 = vmatpush1.msra.mxu0 0.0
    %4484 = vmatprep.subr.mxu0 0.0
    %4485 = vmatpush1.msra.mxu0 0.0
    %4486 = vmatprep.subr.mxu0 0.0
    %4487 = vmatpush1.msra.mxu0 0.0
    %4488 = vmatprep.subr.mxu0 0.0
    %4489 = vmatpush1.msra.mxu0 0.0
    %4490 = vmatprep.subr.mxu0 0.0
    %4491 = vmatpush1.msra.mxu0 0.0
    %4492 = vmatprep.subr.mxu0 0.0
    %4493 = vmatpush1.msra.mxu0 0.0
    %4494 = vmatprep.subr.mxu0 0.0
    %4495 = vmatpush1.msra.mxu0 0.0
    %4496 = vmatprep.subr.mxu0 0.0
    %4497 = vmatpush1.msra.mxu0 0.0
    %4498 = vmatprep.subr.mxu0 0.0
    %4499 = vmatpush1.msra.mxu0 0.0
    %4500 = vmatprep.subr.mxu0 0.0
    %4501 = vmatpush1.msra.mxu0 0.0
    %4502 = vmatprep.subr.mxu0 0.0
    %4503 = vmatpush1.msra.mxu0 0.0
    %4504 = vmatprep.subr.mxu0 0.0
    %4505 = vmatpush1.msra.mxu0 0.0
    %4506 = vmatprep.subr.mxu0 0.0
    %4507 = vmatpush1.msra.mxu0 0.0
    %4508 = vmatprep.subr.mxu0 0.0
    %4509 = vmatpush1.msra.mxu0 0.0
    %4510 = vmatprep.mubr.f32.mxu0 0.0
    %4511 = vmatmul.mubr.f32.gmra.mrb[0].mxu0 %v4363
    %v4512 = vpop.f32.mrb[0].mxu0
    %v4513 = vadd.f32 %v4438, %v4512
    %v4514 = vpop.f32.mrb[0].mxu0
    %4515 = vmatprep.mubr.f32.mxu0 0.0
    %4516 = vmatmul.mubr.f32.gmra.mrb[0].mxu0 %v4368
    %v4517 = vpop.f32.mrb[0].mxu0
    %v4518 = vadd.f32 %v4443, %v4517
    %v4519 = vpop.f32.mrb[0].mxu0
    %4520 = vdwg.mxu0
    %v4521 = vmul.f32 %v3954, %v1979
    %v4522 = vmul.f32 %v3959, %v1979
    %v4525 = vrot.slane %v4521, 2
    %v4526 = vrot.slane %v4522, 2
    %v4527 = vsel %vm1182, %v4525, %v4526
    %v4530 = vadd.f32 %v4513, %v4527
    %v4531 = vadd.f32 %v4518, %v4526
    %v4534 = vrot.slane %v4530, 2
    %v4535 = vrot.slane %v4531, 2
    %v4536 = vsel %vm1182, %v4534, %v4535
    %v4538 = vrot.slane %v4530, 4
    %v4539 = vrot.slane %v4531, 4
    %v4540 = vsel %vm1998, %v4538, %v4539
    %4542 = vmatprep.subr.mxu0 %v2005
    %4543 = vmatpush1.msra.mxu0 %v2004
    %4544 = vmatprep.subr.mxu0 %v2007
    %4545 = vmatpush1.msra.mxu0 %v2006
    %4546 = vmatprep.subr.mxu0 %v2009
    %4547 = vmatpush1.msra.mxu0 %v2008
    %4548 = vmatprep.subr.mxu0 %v2011
    %4549 = vmatpush1.msra.mxu0 %v2010
    %4550 = vmatprep.subr.mxu0 %v2013
    %4551 = vmatpush1.msra.mxu0 %v2012
    %4552 = vmatprep.subr.mxu0 %v2015
    %4553 = vmatpush1.msra.mxu0 %v2014
    %4554 = vmatprep.subr.mxu0 %v2017
    %4555 = vmatpush1.msra.mxu0 %v2016
    %4556 = vmatprep.subr.mxu0 %v2019
    %4557 = vmatpush1.msra.mxu0 %v2018
    %4558 = vmatprep.subr.mxu0 %v2021
    %4559 = vmatpush1.msra.mxu0 %v2020
    %4560 = vmatprep.subr.mxu0 %v2023
    %4561 = vmatpush1.msra.mxu0 %v2022
    %4562 = vmatprep.subr.mxu0 %v2025
    %4563 = vmatpush1.msra.mxu0 %v2024
    %4564 = vmatprep.subr.mxu0 %v2027
    %4565 = vmatpush1.msra.mxu0 %v2026
    %4566 = vmatprep.subr.mxu0 %v2029
    %4567 = vmatpush1.msra.mxu0 %v2028
    %4568 = vmatprep.subr.mxu0 %v2031
    %4569 = vmatpush1.msra.mxu0 %v2030
    %4570 = vmatprep.subr.mxu0 %v2033
    %4571 = vmatpush1.msra.mxu0 %v2032
    %4572 = vmatprep.subr.mxu0 %v2035
    %4573 = vmatpush1.msra.mxu0 %v2034
    %4574 = vmatprep.subr.mxu0 %v2037
    %4575 = vmatpush1.msra.mxu0 %v2036
    %4576 = vmatprep.subr.mxu0 %v2039
    %4577 = vmatpush1.msra.mxu0 %v2038
    %4578 = vmatprep.subr.mxu0 %v2041
    %4579 = vmatpush1.msra.mxu0 %v2040
    %4580 = vmatprep.subr.mxu0 %v2043
    %4581 = vmatpush1.msra.mxu0 %v2042
    %4582 = vmatprep.subr.mxu0 %v2045
    %4583 = vmatpush1.msra.mxu0 %v2044
    %4584 = vmatprep.subr.mxu0 %v2047
    %4585 = vmatpush1.msra.mxu0 %v2046
    %4586 = vmatprep.subr.mxu0 %v2049
    %4587 = vmatpush1.msra.mxu0 %v2048
    %4588 = vmatprep.subr.mxu0 %v2051
    %4589 = vmatpush1.msra.mxu0 %v2050
    %4590 = vmatprep.subr.mxu0 %v2053
    %4591 = vmatpush1.msra.mxu0 %v2052
    %4592 = vmatprep.subr.mxu0 %v2055
    %4593 = vmatpush1.msra.mxu0 %v2054
    %4594 = vmatprep.subr.mxu0 %v2057
    %4595 = vmatpush1.msra.mxu0 %v2056
    %4596 = vmatprep.subr.mxu0 %v2059
    %4597 = vmatpush1.msra.mxu0 %v2058
    %4598 = vmatprep.subr.mxu0 %v2061
    %4599 = vmatpush1.msra.mxu0 %v2060
    %4600 = vmatprep.subr.mxu0 %v2063
    %4601 = vmatpush1.msra.mxu0 %v2062
    %4602 = vmatprep.subr.mxu0 %v2065
    %4603 = vmatpush1.msra.mxu0 %v2064
    %4604 = vmatprep.subr.mxu0 %v2067
    %4605 = vmatpush1.msra.mxu0 %v2066
    %4606 = vmatprep.mubr.f32.mxu0 %v4536
    %4607 = vmatmul.mubr.f32.gmra.mrb[0].mxu0 %v4530
    %v4608 = vpop.f32.mrb[0].mxu0
    %v4609 = vadd.f32 %v2106, %v4608
    %v4610 = vpop.f32.mrb[0].mxu0
    %v4611 = vadd.f32 %v2110, %v4610
    %4612 = vdwg.mxu0
    %4613 = vmatprep.subr.mxu0 %v2069
    %4614 = vmatpush1.msra.mxu0 %v2068
    %4615 = vmatprep.subr.mxu0 %v2071
    %4616 = vmatpush1.msra.mxu0 %v2070
    %4617 = vmatprep.subr.mxu0 %v2073
    %4618 = vmatpush1.msra.mxu0 %v2072
    %4619 = vmatprep.subr.mxu0 %v2075
    %4620 = vmatpush1.msra.mxu0 %v2074
    %4621 = vmatprep.subr.mxu0 %v2077
    %4622 = vmatpush1.msra.mxu0 %v2076
    %4623 = vmatprep.subr.mxu0 %v2079
    %4624 = vmatpush1.msra.mxu0 %v2078
    %4625 = vmatprep.subr.mxu0 %v2081
    %4626 = vmatpush1.msra.mxu0 %v2080
    %4627 = vmatprep.subr.mxu0 %v2083
    %4628 = vmatpush1.msra.mxu0 %v2082
    %4629 = vmatprep.subr.mxu0 %v2085
    %4630 = vmatpush1.msra.mxu0 %v2084
    %4631 = vmatprep.subr.mxu0 %v2087
    %4632 = vmatpush1.msra.mxu0 %v2086
    %4633 = vmatprep.subr.mxu0 %v2089
    %4634 = vmatpush1.msra.mxu0 %v2088
    %4635 = vmatprep.subr.mxu0 %v2091
    %4636 = vmatpush1.msra.mxu0 %v2090
    %4637 = vmatprep.subr.mxu0 %v2093
    %4638 = vmatpush1.msra.mxu0 %v2092
    %4639 = vmatprep.subr.mxu0 %v2095
    %4640 = vmatpush1.msra.mxu0 %v2094
    %4641 = vmatprep.subr.mxu0 %v2097
    %4642 = vmatpush1.msra.mxu0 %v2096
    %4643 = vmatprep.subr.mxu0 %v2099
    %4644 = vmatpush1.msra.mxu0 %v2098
    %4645 = vmatprep.subr.mxu0 0.0
    %4646 = vmatpush1.msra.mxu0 0.0
    %4647 = vmatprep.subr.mxu0 0.0
    %4648 = vmatpush1.msra.mxu0 0.0
    %4649 = vmatprep.subr.mxu0 0.0
    %4650 = vmatpush1.msra.mxu0 0.0
    %4651 = vmatprep.subr.mxu0 0.0
    %4652 = vmatpush1.msra.mxu0 0.0
    %4653 = vmatprep.subr.mxu0 0.0
    %4654 = vmatpush1.msra.mxu0 0.0
    %4655 = vmatprep.subr.mxu0 0.0
    %4656 = vmatpush1.msra.mxu0 0.0
    %4657 = vmatprep.subr.mxu0 0.0
    %4658 = vmatpush1.msra.mxu0 0.0
    %4659 = vmatprep.subr.mxu0 0.0
    %4660 = vmatpush1.msra.mxu0 0.0
    %4661 = vmatprep.subr.mxu0 0.0
    %4662 = vmatpush1.msra.mxu0 0.0
    %4663 = vmatprep.subr.mxu0 0.0
    %4664 = vmatpush1.msra.mxu0 0.0
    %4665 = vmatprep.subr.mxu0 0.0
    %4666 = vmatpush1.msra.mxu0 0.0
    %4667 = vmatprep.subr.mxu0 0.0
    %4668 = vmatpush1.msra.mxu0 0.0
    %4669 = vmatprep.subr.mxu0 0.0
    %4670 = vmatpush1.msra.mxu0 0.0
    %4671 = vmatprep.subr.mxu0 0.0
    %4672 = vmatpush1.msra.mxu0 0.0
    %4673 = vmatprep.subr.mxu0 0.0
    %4674 = vmatpush1.msra.mxu0 0.0
    %4675 = vmatprep.subr.mxu0 0.0
    %4676 = vmatpush1.msra.mxu0 0.0
    %4677 = vmatprep.mubr.f32.mxu0 0.0
    %4678 = vmatmul.mubr.f32.gmra.mrb[0].mxu0 %v4540
    %v4679 = vpop.f32.mrb[0].mxu0
    %v4680 = vadd.f32 %v4609, %v4679
    %v4681 = vpop.f32.mrb[0].mxu0
    %v4682 = vadd.f32 %v4611, %v4681
    %4683 = vdwg.mxu0
    %v4684 = vtanh.pop %v4680
    %v4685 = vxor.u32 %v4682, 2147483648
    %v4686 = vmul.f32 %v4685, 1.442695
    %v4687 = vpow.pop %v4686
    %v4688 = vadd.f32 %v4687, 1.0
    %v4689 = vrcp.pop %v4688
    %v4690 = vmul.f32 1.0, %v4689
    %v4691 = vmul.f32 %v4684, %v4690
    %4692 = vmatprep.subr.mxu0 %v2265
    %4693 = vmatpush1.msra.mxu0 %v2264
    %4694 = vmatprep.subr.mxu0 %v2267
    %4695 = vmatpush1.msra.mxu0 %v2266
    %4696 = vmatprep.subr.mxu0 %v2269
    %4697 = vmatpush1.msra.mxu0 %v2268
    %4698 = vmatprep.subr.mxu0 %v2271
    %4699 = vmatpush1.msra.mxu0 %v2270
    %4700 = vmatprep.subr.mxu0 %v2273
    %4701 = vmatpush1.msra.mxu0 %v2272
    %4702 = vmatprep.subr.mxu0 %v2275
    %4703 = vmatpush1.msra.mxu0 %v2274
    %4704 = vmatprep.subr.mxu0 %v2277
    %4705 = vmatpush1.msra.mxu0 %v2276
    %4706 = vmatprep.subr.mxu0 %v2279
    %4707 = vmatpush1.msra.mxu0 %v2278
    %4708 = vmatprep.subr.mxu0 %v2281
    %4709 = vmatpush1.msra.mxu0 %v2280
    %4710 = vmatprep.subr.mxu0 %v2283
    %4711 = vmatpush1.msra.mxu0 %v2282
    %4712 = vmatprep.subr.mxu0 %v2285
    %4713 = vmatpush1.msra.mxu0 %v2284
    %4714 = vmatprep.subr.mxu0 %v2287
    %4715 = vmatpush1.msra.mxu0 %v2286
    %4716 = vmatprep.subr.mxu0 %v2289
    %4717 = vmatpush1.msra.mxu0 %v2288
    %4718 = vmatprep.subr.mxu0 %v2291
    %4719 = vmatpush1.msra.mxu0 %v2290
    %4720 = vmatprep.subr.mxu0 %v2293
    %4721 = vmatpush1.msra.mxu0 %v2292
    %4722 = vmatprep.subr.mxu0 %v2295
    %4723 = vmatpush1.msra.mxu0 %v2294
    %4724 = vmatprep.subr.mxu0 0.0
    %4725 = vmatpush1.msra.mxu0 0.0
    %4726 = vmatprep.subr.mxu0 0.0
    %4727 = vmatpush1.msra.mxu0 0.0
    %4728 = vmatprep.subr.mxu0 0.0
    %4729 = vmatpush1.msra.mxu0 0.0
    %4730 = vmatprep.subr.mxu0 0.0
    %4731 = vmatpush1.msra.mxu0 0.0
    %4732 = vmatprep.subr.mxu0 0.0
    %4733 = vmatpush1.msra.mxu0 0.0
    %4734 = vmatprep.subr.mxu0 0.0
    %4735 = vmatpush1.msra.mxu0 0.0
    %4736 = vmatprep.subr.mxu0 0.0
    %4737 = vmatpush1.msra.mxu0 0.0
    %4738 = vmatprep.subr.mxu0 0.0
    %4739 = vmatpush1.msra.mxu0 0.0
    %4740 = vmatprep.subr.mxu0 0.0
    %4741 = vmatpush1.msra.mxu0 0.0
    %4742 = vmatprep.subr.mxu0 0.0
    %4743 = vmatpush1.msra.mxu0 0.0
    %4744 = vmatprep.subr.mxu0 0.0
    %4745 = vmatpush1.msra.mxu0 0.0
    %4746 = vmatprep.subr.mxu0 0.0
    %4747 = vmatpush1.msra.mxu0 0.0
    %4748 = vmatprep.subr.mxu0 0.0
    %4749 = vmatpush1.msra.mxu0 0.0
    %4750 = vmatprep.subr.mxu0 0.0
    %4751 = vmatpush1.msra.mxu0 0.0
    %4752 = vmatprep.subr.mxu0 0.0
    %4753 = vmatpush1.msra.mxu0 0.0
    %4754 = vmatprep.subr.mxu0 0.0
    %4755 = vmatpush1.msra.mxu0 0.0
    %4756 = vmatprep.mubr.f32.mxu0 0.0
    %4757 = vmatmul.mubr.f32.gmra.mrb[0].mxu0 %v4691
    %v4758 = vpop.f32.mrb[0].mxu0
    %v4759 = vadd.f32 %v2302, %v4758
    %v4760 = vpop.f32.mrb[0].mxu0
    %v4761 = vadd.f32 %v2306, %v4760
    %4762 = vdwg.mxu0
    %v4767 = vrot.slane %v4211, 4
    %v4768 = vrot.slane %v4217, 4
    %v4769 = vsel %vm1998, %v4767, %v4768
    %v4770 = vrot.slane %v4213, 4
    %v4771 = vrot.slane %v4219, 4
    %v4772 = vsel %vm1998, %v4770, %v4771
    %v4775 = vadd.f32 %v4759, %v4769
    %v4776 = vadd.f32 %v4761, %v4772
    %4777 = vmatprep.subr.mxu0 0.0
    %4778 = vmatpush1.msra.mxu0 %v1587
    %4779 = vmatprep.subr.mxu0 0.0
    %4780 = vmatpush1.msra.mxu0 %v1588
    %4781 = vmatprep.subr.mxu0 0.0
    %4782 = vmatpush1.msra.mxu0 %v1589
    %4783 = vmatprep.subr.mxu0 0.0
    %4784 = vmatpush1.msra.mxu0 %v1590
    %4785 = vmatprep.subr.mxu0 0.0
    %4786 = vmatpush1.msra.mxu0 %v1591
    %4787 = vmatprep.subr.mxu0 0.0
    %4788 = vmatpush1.msra.mxu0 %v1592
    %4789 = vmatprep.subr.mxu0 0.0
    %4790 = vmatpush1.msra.mxu0 %v1593
    %4791 = vmatprep.subr.mxu0 0.0
    %4792 = vmatpush1.msra.mxu0 %v1594
    %4793 = vmatprep.subr.mxu0 0.0
    %4794 = vmatpush1.msra.mxu0 %v1595
    %4795 = vmatprep.subr.mxu0 0.0
    %4796 = vmatpush1.msra.mxu0 %v1596
    %4797 = vmatprep.subr.mxu0 0.0
    %4798 = vmatpush1.msra.mxu0 %v1597
    %4799 = vmatprep.subr.mxu0 0.0
    %4800 = vmatpush1.msra.mxu0 %v1598
    %4801 = vmatprep.subr.mxu0 0.0
    %4802 = vmatpush1.msra.mxu0 %v1599
    %4803 = vmatprep.subr.mxu0 0.0
    %4804 = vmatpush1.msra.mxu0 %v1600
    %4805 = vmatprep.subr.mxu0 0.0
    %4806 = vmatpush1.msra.mxu0 %v1601
    %4807 = vmatprep.subr.mxu0 0.0
    %4808 = vmatpush1.msra.mxu0 %v1602
    %4809 = vmatprep.subr.mxu0 0.0
    %4810 = vmatpush1.msra.mxu0 0.0
    %4811 = vmatprep.subr.mxu0 0.0
    %4812 = vmatpush1.msra.mxu0 0.0
    %4813 = vmatprep.subr.mxu0 0.0
    %4814 = vmatpush1.msra.mxu0 0.0
    %4815 = vmatprep.subr.mxu0 0.0
    %4816 = vmatpush1.msra.mxu0 0.0
    %4817 = vmatprep.subr.mxu0 0.0
    %4818 = vmatpush1.msra.mxu0 0.0
    %4819 = vmatprep.subr.mxu0 0.0
    %4820 = vmatpush1.msra.mxu0 0.0
    %4821 = vmatprep.subr.mxu0 0.0
    %4822 = vmatpush1.msra.mxu0 0.0
    %4823 = vmatprep.subr.mxu0 0.0
    %4824 = vmatpush1.msra.mxu0 0.0
    %4825 = vmatprep.subr.mxu0 0.0
    %4826 = vmatpush1.msra.mxu0 0.0
    %4827 = vmatprep.subr.mxu0 0.0
    %4828 = vmatpush1.msra.mxu0 0.0
    %4829 = vmatprep.subr.mxu0 0.0
    %4830 = vmatpush1.msra.mxu0 0.0
    %4831 = vmatprep.subr.mxu0 0.0
    %4832 = vmatpush1.msra.mxu0 0.0
    %4833 = vmatprep.subr.mxu0 0.0
    %4834 = vmatpush1.msra.mxu0 0.0
    %4835 = vmatprep.subr.mxu0 0.0
    %4836 = vmatpush1.msra.mxu0 0.0
    %4837 = vmatprep.subr.mxu0 0.0
    %4838 = vmatpush1.msra.mxu0 0.0
    %4839 = vmatprep.subr.mxu0 0.0
    %4840 = vmatpush1.msra.mxu0 0.0
    %4841 = vmatprep.mubr.f32.mxu0 0.0
    %4842 = vmatmul.mubr.f32.gmra.mrb[0].mxu0 %v4691
    %v4843 = vpop.f32.mrb[0].mxu0
    %v4844 = vadd.f32 0.0, %v4843
    %v4845 = vpop.f32.mrb[0].mxu0
    %4846 = vdwg.mxu0
    %4847 = vmatprep.subr.mxu0 0.0
    %4848 = vmatpush1.msra.mxu0 %v1678
    %4849 = vmatprep.subr.mxu0 0.0
    %4850 = vmatpush1.msra.mxu0 %v1679
    %4851 = vmatprep.subr.mxu0 0.0
    %4852 = vmatpush1.msra.mxu0 %v1680
    %4853 = vmatprep.subr.mxu0 0.0
    %4854 = vmatpush1.msra.mxu0 %v1681
    %4855 = vmatprep.subr.mxu0 0.0
    %4856 = vmatpush1.msra.mxu0 %v1682
    %4857 = vmatprep.subr.mxu0 0.0
    %4858 = vmatpush1.msra.mxu0 %v1683
    %4859 = vmatprep.subr.mxu0 0.0
    %4860 = vmatpush1.msra.mxu0 %v1684
    %4861 = vmatprep.subr.mxu0 0.0
    %4862 = vmatpush1.msra.mxu0 %v1685
    %4863 = vmatprep.subr.mxu0 0.0
    %4864 = vmatpush1.msra.mxu0 %v1686
    %4865 = vmatprep.subr.mxu0 0.0
    %4866 = vmatpush1.msra.mxu0 %v1687
    %4867 = vmatprep.subr.mxu0 0.0
    %4868 = vmatpush1.msra.mxu0 %v1688
    %4869 = vmatprep.subr.mxu0 0.0
    %4870 = vmatpush1.msra.mxu0 %v1689
    %4871 = vmatprep.subr.mxu0 0.0
    %4872 = vmatpush1.msra.mxu0 %v1690
    %4873 = vmatprep.subr.mxu0 0.0
    %4874 = vmatpush1.msra.mxu0 %v1691
    %4875 = vmatprep.subr.mxu0 0.0
    %4876 = vmatpush1.msra.mxu0 %v1692
    %4877 = vmatprep.subr.mxu0 0.0
    %4878 = vmatpush1.msra.mxu0 %v1693
    %4879 = vmatprep.subr.mxu0 0.0
    %4880 = vmatpush1.msra.mxu0 0.0
    %4881 = vmatprep.subr.mxu0 0.0
    %4882 = vmatpush1.msra.mxu0 0.0
    %4883 = vmatprep.subr.mxu0 0.0
    %4884 = vmatpush1.msra.mxu0 0.0
    %4885 = vmatprep.subr.mxu0 0.0
    %4886 = vmatpush1.msra.mxu0 0.0
    %4887 = vmatprep.subr.mxu0 0.0
    %4888 = vmatpush1.msra.mxu0 0.0
    %4889 = vmatprep.subr.mxu0 0.0
    %4890 = vmatpush1.msra.mxu0 0.0
    %4891 = vmatprep.subr.mxu0 0.0
    %4892 = vmatpush1.msra.mxu0 0.0
    %4893 = vmatprep.subr.mxu0 0.0
    %4894 = vmatpush1.msra.mxu0 0.0
    %4895 = vmatprep.subr.mxu0 0.0
    %4896 = vmatpush1.msra.mxu0 0.0
    %4897 = vmatprep.subr.mxu0 0.0
    %4898 = vmatpush1.msra.mxu0 0.0
    %4899 = vmatprep.subr.mxu0 0.0
    %4900 = vmatpush1.msra.mxu0 0.0
    %4901 = vmatprep.subr.mxu0 0.0
    %4902 = vmatpush1.msra.mxu0 0.0
    %4903 = vmatprep.subr.mxu0 0.0
    %4904 = vmatpush1.msra.mxu0 0.0
    %4905 = vmatprep.subr.mxu0 0.0
    %4906 = vmatpush1.msra.mxu0 0.0
    %4907 = vmatprep.subr.mxu0 0.0
    %4908 = vmatpush1.msra.mxu0 0.0
    %4909 = vmatprep.subr.mxu0 0.0
    %4910 = vmatpush1.msra.mxu0 0.0
    %4911 = vmatprep.mubr.f32.mxu0 0.0
    %4912 = vmatmul.mubr.f32.gmra.mrb[0].mxu0 %v4691
    %v4913 = vpop.f32.mrb[0].mxu0
    %v4914 = vadd.f32 0.0, %v4913
    %v4915 = vpop.f32.mrb[0].mxu0
    %4916 = vdwg.mxu0
    %4917 = vmatprep.subr.mxu0 0.0
    %4918 = vmatpush1.msra.mxu0 %v2535
    %4919 = vmatprep.subr.mxu0 0.0
    %4920 = vmatpush1.msra.mxu0 %v2536
    %4921 = vmatprep.subr.mxu0 0.0
    %4922 = vmatpush1.msra.mxu0 %v2537
    %4923 = vmatprep.subr.mxu0 0.0
    %4924 = vmatpush1.msra.mxu0 %v2538
    %4925 = vmatprep.subr.mxu0 0.0
    %4926 = vmatpush1.msra.mxu0 %v2539
    %4927 = vmatprep.subr.mxu0 0.0
    %4928 = vmatpush1.msra.mxu0 %v2540
    %4929 = vmatprep.subr.mxu0 0.0
    %4930 = vmatpush1.msra.mxu0 %v2541
    %4931 = vmatprep.subr.mxu0 0.0
    %4932 = vmatpush1.msra.mxu0 %v2542
    %4933 = vmatprep.subr.mxu0 0.0
    %4934 = vmatpush1.msra.mxu0 %v2543
    %4935 = vmatprep.subr.mxu0 0.0
    %4936 = vmatpush1.msra.mxu0 %v2544
    %4937 = vmatprep.subr.mxu0 0.0
    %4938 = vmatpush1.msra.mxu0 %v2545
    %4939 = vmatprep.subr.mxu0 0.0
    %4940 = vmatpush1.msra.mxu0 %v2546
    %4941 = vmatprep.subr.mxu0 0.0
    %4942 = vmatpush1.msra.mxu0 %v2547
    %4943 = vmatprep.subr.mxu0 0.0
    %4944 = vmatpush1.msra.mxu0 %v2548
    %4945 = vmatprep.subr.mxu0 0.0
    %4946 = vmatpush1.msra.mxu0 %v2549
    %4947 = vmatprep.subr.mxu0 0.0
    %4948 = vmatpush1.msra.mxu0 %v2550
    %4949 = vmatprep.subr.mxu0 0.0
    %4950 = vmatpush1.msra.mxu0 %v2551
    %4951 = vmatprep.subr.mxu0 0.0
    %4952 = vmatpush1.msra.mxu0 %v2552
    %4953 = vmatprep.subr.mxu0 0.0
    %4954 = vmatpush1.msra.mxu0 %v2553
    %4955 = vmatprep.subr.mxu0 0.0
    %4956 = vmatpush1.msra.mxu0 %v2554
    %4957 = vmatprep.subr.mxu0 0.0
    %4958 = vmatpush1.msra.mxu0 %v2555
    %4959 = vmatprep.subr.mxu0 0.0
    %4960 = vmatpush1.msra.mxu0 %v2556
    %4961 = vmatprep.subr.mxu0 0.0
    %4962 = vmatpush1.msra.mxu0 %v2557
    %4963 = vmatprep.subr.mxu0 0.0
    %4964 = vmatpush1.msra.mxu0 %v2558
    %4965 = vmatprep.subr.mxu0 0.0
    %4966 = vmatpush1.msra.mxu0 %v2559
    %4967 = vmatprep.subr.mxu0 0.0
    %4968 = vmatpush1.msra.mxu0 %v2560
    %4969 = vmatprep.subr.mxu0 0.0
    %4970 = vmatpush1.msra.mxu0 %v2561
    %4971 = vmatprep.subr.mxu0 0.0
    %4972 = vmatpush1.msra.mxu0 %v2562
    %4973 = vmatprep.subr.mxu0 0.0
    %4974 = vmatpush1.msra.mxu0 %v2563
    %4975 = vmatprep.subr.mxu0 0.0
    %4976 = vmatpush1.msra.mxu0 %v2564
    %4977 = vmatprep.subr.mxu0 0.0
    %4978 = vmatpush1.msra.mxu0 %v2565
    %4979 = vmatprep.subr.mxu0 0.0
    %4980 = vmatpush1.msra.mxu0 %v2566
    %4981 = vmatprep.mubr.f32.mxu0 %v4844
    %4982 = vmatmul.mubr.f32.gmra.mrb[0].mxu0 %v4691
    %v4983 = vpop.f32.mrb[0].mxu0
    %v4984 = vadd.f32 %v2589, %v4983
    %v4985 = vpop.f32.mrb[0].mxu0
    %4986 = vdwg.mxu0
    %4987 = vmatprep.subr.mxu0 0.0
    %4988 = vmatpush1.msra.mxu0 %v2567
    %4989 = vmatprep.subr.mxu0 0.0
    %4990 = vmatpush1.msra.mxu0 %v2568
    %4991 = vmatprep.subr.mxu0 0.0
    %4992 = vmatpush1.msra.mxu0 %v2569
    %4993 = vmatprep.subr.mxu0 0.0
    %4994 = vmatpush1.msra.mxu0 %v2570
    %4995 = vmatprep.subr.mxu0 0.0
    %4996 = vmatpush1.msra.mxu0 %v2571
    %4997 = vmatprep.subr.mxu0 0.0
    %4998 = vmatpush1.msra.mxu0 %v2572
    %4999 = vmatprep.subr.mxu0 0.0
    %5000 = vmatpush1.msra.mxu0 %v2573
    %5001 = vmatprep.subr.mxu0 0.0
    %5002 = vmatpush1.msra.mxu0 %v2574
    %5003 = vmatprep.subr.mxu0 0.0
    %5004 = vmatpush1.msra.mxu0 %v2575
    %5005 = vmatprep.subr.mxu0 0.0
    %5006 = vmatpush1.msra.mxu0 %v2576
    %5007 = vmatprep.subr.mxu0 0.0
    %5008 = vmatpush1.msra.mxu0 %v2577
    %5009 = vmatprep.subr.mxu0 0.0
    %5010 = vmatpush1.msra.mxu0 %v2578
    %5011 = vmatprep.subr.mxu0 0.0
    %5012 = vmatpush1.msra.mxu0 %v2579
    %5013 = vmatprep.subr.mxu0 0.0
    %5014 = vmatpush1.msra.mxu0 %v2580
    %5015 = vmatprep.subr.mxu0 0.0
    %5016 = vmatpush1.msra.mxu0 %v2581
    %5017 = vmatprep.subr.mxu0 0.0
    %5018 = vmatpush1.msra.mxu0 %v2582
    %5019 = vmatprep.subr.mxu0 0.0
    %5020 = vmatpush1.msra.mxu0 0.0
    %5021 = vmatprep.subr.mxu0 0.0
    %5022 = vmatpush1.msra.mxu0 0.0
    %5023 = vmatprep.subr.mxu0 0.0
    %5024 = vmatpush1.msra.mxu0 0.0
    %5025 = vmatprep.subr.mxu0 0.0
    %5026 = vmatpush1.msra.mxu0 0.0
    %5027 = vmatprep.subr.mxu0 0.0
    %5028 = vmatpush1.msra.mxu0 0.0
    %5029 = vmatprep.subr.mxu0 0.0
    %5030 = vmatpush1.msra.mxu0 0.0
    %5031 = vmatprep.subr.mxu0 0.0
    %5032 = vmatpush1.msra.mxu0 0.0
    %5033 = vmatprep.subr.mxu0 0.0
    %5034 = vmatpush1.msra.mxu0 0.0
    %5035 = vmatprep.subr.mxu0 0.0
    %5036 = vmatpush1.msra.mxu0 0.0
    %5037 = vmatprep.subr.mxu0 0.0
    %5038 = vmatpush1.msra.mxu0 0.0
    %5039 = vmatprep.subr.mxu0 0.0
    %5040 = vmatpush1.msra.mxu0 0.0
    %5041 = vmatprep.subr.mxu0 0.0
    %5042 = vmatpush1.msra.mxu0 0.0
    %5043 = vmatprep.subr.mxu0 0.0
    %5044 = vmatpush1.msra.mxu0 0.0
    %5045 = vmatprep.subr.mxu0 0.0
    %5046 = vmatpush1.msra.mxu0 0.0
    %5047 = vmatprep.subr.mxu0 0.0
    %5048 = vmatpush1.msra.mxu0 0.0
    %5049 = vmatprep.subr.mxu0 0.0
    %5050 = vmatpush1.msra.mxu0 0.0
    %5051 = vmatprep.mubr.f32.mxu0 0.0
    %5052 = vmatmul.mubr.f32.gmra.mrb[0].mxu0 %v4914
    %v5053 = vpop.f32.mrb[0].mxu0
    %v5054 = vadd.f32 %v4984, %v5053
    %v5055 = vpop.f32.mrb[0].mxu0
    %5056 = vdwg.mxu0
    %v5057 = vmul.f32 %v4530, %v2737
    %v5058 = vmul.f32 %v4531, %v2737
    %v5061 = vrot.slane %v5057, 4
    %v5062 = vrot.slane %v5058, 4
    %v5063 = vsel %vm1998, %v5061, %v5062
    %v5065 = vadd.f32 %v5054, %v5063
    %v5067 = vrot.slane %v5065, 1
    %v5069 = vrot.slane %v5065, 2
    %5071 = vmatprep.subr.mxu0 %v2755
    %5072 = vmatpush1.msra.mxu0 %v2754
    %5073 = vmatprep.subr.mxu0 %v2757
    %5074 = vmatpush1.msra.mxu0 %v2756
    %5075 = vmatprep.subr.mxu0 %v2759
    %5076 = vmatpush1.msra.mxu0 %v2758
    %5077 = vmatprep.subr.mxu0 %v2761
    %5078 = vmatpush1.msra.mxu0 %v2760
    %5079 = vmatprep.subr.mxu0 %v2763
    %5080 = vmatpush1.msra.mxu0 %v2762
    %5081 = vmatprep.subr.mxu0 %v2765
    %5082 = vmatpush1.msra.mxu0 %v2764
    %5083 = vmatprep.subr.mxu0 %v2767
    %5084 = vmatpush1.msra.mxu0 %v2766
    %5085 = vmatprep.subr.mxu0 %v2769
    %5086 = vmatpush1.msra.mxu0 %v2768
    %5087 = vmatprep.subr.mxu0 %v2771
    %5088 = vmatpush1.msra.mxu0 %v2770
    %5089 = vmatprep.subr.mxu0 %v2773
    %5090 = vmatpush1.msra.mxu0 %v2772
    %5091 = vmatprep.subr.mxu0 %v2775
    %5092 = vmatpush1.msra.mxu0 %v2774
    %5093 = vmatprep.subr.mxu0 %v2777
    %5094 = vmatpush1.msra.mxu0 %v2776
    %5095 = vmatprep.subr.mxu0 %v2779
    %5096 = vmatpush1.msra.mxu0 %v2778
    %5097 = vmatprep.subr.mxu0 %v2781
    %5098 = vmatpush1.msra.mxu0 %v2780
    %5099 = vmatprep.subr.mxu0 %v2783
    %5100 = vmatpush1.msra.mxu0 %v2782
    %5101 = vmatprep.subr.mxu0 %v2785
    %5102 = vmatpush1.msra.mxu0 %v2784
    %5103 = vmatprep.subr.mxu0 %v2787
    %5104 = vmatpush1.msra.mxu0 %v2786
    %5105 = vmatprep.subr.mxu0 %v2789
    %5106 = vmatpush1.msra.mxu0 %v2788
    %5107 = vmatprep.subr.mxu0 %v2791
    %5108 = vmatpush1.msra.mxu0 %v2790
    %5109 = vmatprep.subr.mxu0 %v2793
    %5110 = vmatpush1.msra.mxu0 %v2792
    %5111 = vmatprep.subr.mxu0 %v2795
    %5112 = vmatpush1.msra.mxu0 %v2794
    %5113 = vmatprep.subr.mxu0 %v2797
    %5114 = vmatpush1.msra.mxu0 %v2796
    %5115 = vmatprep.subr.mxu0 %v2799
    %5116 = vmatpush1.msra.mxu0 %v2798
    %5117 = vmatprep.subr.mxu0 %v2801
    %5118 = vmatpush1.msra.mxu0 %v2800
    %5119 = vmatprep.subr.mxu0 %v2803
    %5120 = vmatpush1.msra.mxu0 %v2802
    %5121 = vmatprep.subr.mxu0 %v2805
    %5122 = vmatpush1.msra.mxu0 %v2804
    %5123 = vmatprep.subr.mxu0 %v2807
    %5124 = vmatpush1.msra.mxu0 %v2806
    %5125 = vmatprep.subr.mxu0 %v2809
    %5126 = vmatpush1.msra.mxu0 %v2808
    %5127 = vmatprep.subr.mxu0 %v2811
    %5128 = vmatpush1.msra.mxu0 %v2810
    %5129 = vmatprep.subr.mxu0 %v2813
    %5130 = vmatpush1.msra.mxu0 %v2812
    %5131 = vmatprep.subr.mxu0 %v2815
    %5132 = vmatpush1.msra.mxu0 %v2814
    %5133 = vmatprep.subr.mxu0 %v2817
    %5134 = vmatpush1.msra.mxu0 %v2816
    %5135 = vmatprep.mubr.f32.mxu0 %v5067
    %5136 = vmatmul.mubr.f32.gmra.mrb[0].mxu0 %v5065
    %v5137 = vpop.f32.mrb[0].mxu0
    %v5138 = vadd.f32 %v2856, %v5137
    %v5139 = vpop.f32.mrb[0].mxu0
    %v5140 = vadd.f32 %v2860, %v5139
    %5141 = vdwg.mxu0
    %5142 = vmatprep.subr.mxu0 %v2819
    %5143 = vmatpush1.msra.mxu0 %v2818
    %5144 = vmatprep.subr.mxu0 %v2821
    %5145 = vmatpush1.msra.mxu0 %v2820
    %5146 = vmatprep.subr.mxu0 %v2823
    %5147 = vmatpush1.msra.mxu0 %v2822
    %5148 = vmatprep.subr.mxu0 %v2825
    %5149 = vmatpush1.msra.mxu0 %v2824
    %5150 = vmatprep.subr.mxu0 %v2827
    %5151 = vmatpush1.msra.mxu0 %v2826
    %5152 = vmatprep.subr.mxu0 %v2829
    %5153 = vmatpush1.msra.mxu0 %v2828
    %5154 = vmatprep.subr.mxu0 %v2831
    %5155 = vmatpush1.msra.mxu0 %v2830
    %5156 = vmatprep.subr.mxu0 %v2833
    %5157 = vmatpush1.msra.mxu0 %v2832
    %5158 = vmatprep.subr.mxu0 %v2835
    %5159 = vmatpush1.msra.mxu0 %v2834
    %5160 = vmatprep.subr.mxu0 %v2837
    %5161 = vmatpush1.msra.mxu0 %v2836
    %5162 = vmatprep.subr.mxu0 %v2839
    %5163 = vmatpush1.msra.mxu0 %v2838
    %5164 = vmatprep.subr.mxu0 %v2841
    %5165 = vmatpush1.msra.mxu0 %v2840
    %5166 = vmatprep.subr.mxu0 %v2843
    %5167 = vmatpush1.msra.mxu0 %v2842
    %5168 = vmatprep.subr.mxu0 %v2845
    %5169 = vmatpush1.msra.mxu0 %v2844
    %5170 = vmatprep.subr.mxu0 %v2847
    %5171 = vmatpush1.msra.mxu0 %v2846
    %5172 = vmatprep.subr.mxu0 %v2849
    %5173 = vmatpush1.msra.mxu0 %v2848
    %5174 = vmatprep.subr.mxu0 0.0
    %5175 = vmatpush1.msra.mxu0 0.0
    %5176 = vmatprep.subr.mxu0 0.0
    %5177 = vmatpush1.msra.mxu0 0.0
    %5178 = vmatprep.subr.mxu0 0.0
    %5179 = vmatpush1.msra.mxu0 0.0
    %5180 = vmatprep.subr.mxu0 0.0
    %5181 = vmatpush1.msra.mxu0 0.0
    %5182 = vmatprep.subr.mxu0 0.0
    %5183 = vmatpush1.msra.mxu0 0.0
    %5184 = vmatprep.subr.mxu0 0.0
    %5185 = vmatpush1.msra.mxu0 0.0
    %5186 = vmatprep.subr.mxu0 0.0
    %5187 = vmatpush1.msra.mxu0 0.0
    %5188 = vmatprep.subr.mxu0 0.0
    %5189 = vmatpush1.msra.mxu0 0.0
    %5190 = vmatprep.subr.mxu0 0.0
    %5191 = vmatpush1.msra.mxu0 0.0
    %5192 = vmatprep.subr.mxu0 0.0
    %5193 = vmatpush1.msra.mxu0 0.0
    %5194 = vmatprep.subr.mxu0 0.0
    %5195 = vmatpush1.msra.mxu0 0.0
    %5196 = vmatprep.subr.mxu0 0.0
    %5197 = vmatpush1.msra.mxu0 0.0
    %5198 = vmatprep.subr.mxu0 0.0
    %5199 = vmatpush1.msra.mxu0 0.0
    %5200 = vmatprep.subr.mxu0 0.0
    %5201 = vmatpush1.msra.mxu0 0.0
    %5202 = vmatprep.subr.mxu0 0.0
    %5203 = vmatpush1.msra.mxu0 0.0
    %5204 = vmatprep.subr.mxu0 0.0
    %5205 = vmatpush1.msra.mxu0 0.0
    %5206 = vmatprep.mubr.f32.mxu0 0.0
    %5207 = vmatmul.mubr.f32.gmra.mrb[0].mxu0 %v5069
    %v5208 = vpop.f32.mrb[0].mxu0
    %v5209 = vadd.f32 %v5138, %v5208
    %v5210 = vpop.f32.mrb[0].mxu0
    %v5211 = vadd.f32 %v5140, %v5210
    %5212 = vdwg.mxu0
    %v5213 = vtanh.pop %v5209
    %v5214 = vxor.u32 %v5211, 2147483648
    %v5215 = vmul.f32 %v5214, 1.442695
    %v5216 = vpow.pop %v5215
    %v5217 = vadd.f32 %v5216, 1.0
    %v5218 = vrcp.pop %v5217
    %v5219 = vmul.f32 1.0, %v5218
    %v5220 = vmul.f32 %v5213, %v5219
    %5221 = vmatprep.subr.mxu0 %v3015
    %5222 = vmatpush1.msra.mxu0 %v3014
    %5223 = vmatprep.subr.mxu0 %v3017
    %5224 = vmatpush1.msra.mxu0 %v3016
    %5225 = vmatprep.subr.mxu0 %v3019
    %5226 = vmatpush1.msra.mxu0 %v3018
    %5227 = vmatprep.subr.mxu0 %v3021
    %5228 = vmatpush1.msra.mxu0 %v3020
    %5229 = vmatprep.subr.mxu0 %v3023
    %5230 = vmatpush1.msra.mxu0 %v3022
    %5231 = vmatprep.subr.mxu0 %v3025
    %5232 = vmatpush1.msra.mxu0 %v3024
    %5233 = vmatprep.subr.mxu0 %v3027
    %5234 = vmatpush1.msra.mxu0 %v3026
    %5235 = vmatprep.subr.mxu0 %v3029
    %5236 = vmatpush1.msra.mxu0 %v3028
    %5237 = vmatprep.subr.mxu0 %v3031
    %5238 = vmatpush1.msra.mxu0 %v3030
    %5239 = vmatprep.subr.mxu0 %v3033
    %5240 = vmatpush1.msra.mxu0 %v3032
    %5241 = vmatprep.subr.mxu0 %v3035
    %5242 = vmatpush1.msra.mxu0 %v3034
    %5243 = vmatprep.subr.mxu0 %v3037
    %5244 = vmatpush1.msra.mxu0 %v3036
    %5245 = vmatprep.subr.mxu0 %v3039
    %5246 = vmatpush1.msra.mxu0 %v3038
    %5247 = vmatprep.subr.mxu0 %v3041
    %5248 = vmatpush1.msra.mxu0 %v3040
    %5249 = vmatprep.subr.mxu0 %v3043
    %5250 = vmatpush1.msra.mxu0 %v3042
    %5251 = vmatprep.subr.mxu0 %v3045
    %5252 = vmatpush1.msra.mxu0 %v3044
    %5253 = vmatprep.subr.mxu0 0.0
    %5254 = vmatpush1.msra.mxu0 0.0
    %5255 = vmatprep.subr.mxu0 0.0
    %5256 = vmatpush1.msra.mxu0 0.0
    %5257 = vmatprep.subr.mxu0 0.0
    %5258 = vmatpush1.msra.mxu0 0.0
    %5259 = vmatprep.subr.mxu0 0.0
    %5260 = vmatpush1.msra.mxu0 0.0
    %5261 = vmatprep.subr.mxu0 0.0
    %5262 = vmatpush1.msra.mxu0 0.0
    %5263 = vmatprep.subr.mxu0 0.0
    %5264 = vmatpush1.msra.mxu0 0.0
    %5265 = vmatprep.subr.mxu0 0.0
    %5266 = vmatpush1.msra.mxu0 0.0
    %5267 = vmatprep.subr.mxu0 0.0
    %5268 = vmatpush1.msra.mxu0 0.0
    %5269 = vmatprep.subr.mxu0 0.0
    %5270 = vmatpush1.msra.mxu0 0.0
    %5271 = vmatprep.subr.mxu0 0.0
    %5272 = vmatpush1.msra.mxu0 0.0
    %5273 = vmatprep.subr.mxu0 0.0
    %5274 = vmatpush1.msra.mxu0 0.0
    %5275 = vmatprep.subr.mxu0 0.0
    %5276 = vmatpush1.msra.mxu0 0.0
    %5277 = vmatprep.subr.mxu0 0.0
    %5278 = vmatpush1.msra.mxu0 0.0
    %5279 = vmatprep.subr.mxu0 0.0
    %5280 = vmatpush1.msra.mxu0 0.0
    %5281 = vmatprep.subr.mxu0 0.0
    %5282 = vmatpush1.msra.mxu0 0.0
    %5283 = vmatprep.subr.mxu0 0.0
    %5284 = vmatpush1.msra.mxu0 0.0
    %5285 = vmatprep.mubr.f32.mxu0 0.0
    %5286 = vmatmul.mubr.f32.gmra.mrb[0].mxu0 %v5220
    %v5287 = vpop.f32.mrb[0].mxu0
    %v5288 = vadd.f32 %v3052, %v5287
    %v5289 = vpop.f32.mrb[0].mxu0
    %v5290 = vadd.f32 %v3056, %v5289
    %5291 = vdwg.mxu0
    %v5294 = vrot.slane %v4775, 2
    %v5295 = vrot.slane %v4776, 2
    %v5298 = vadd.f32 %v5288, %v5294
    %v5299 = vadd.f32 %v5290, %v5295
    %5300 = vmatprep.subr.mxu0 0.0
    %5301 = vmatpush1.msra.mxu0 %v1587
    %5302 = vmatprep.subr.mxu0 0.0
    %5303 = vmatpush1.msra.mxu0 %v1588
    %5304 = vmatprep.subr.mxu0 0.0
    %5305 = vmatpush1.msra.mxu0 %v1589
    %5306 = vmatprep.subr.mxu0 0.0
    %5307 = vmatpush1.msra.mxu0 %v1590
    %5308 = vmatprep.subr.mxu0 0.0
    %5309 = vmatpush1.msra.mxu0 %v1591
    %5310 = vmatprep.subr.mxu0 0.0
    %5311 = vmatpush1.msra.mxu0 %v1592
    %5312 = vmatprep.subr.mxu0 0.0
    %5313 = vmatpush1.msra.mxu0 %v1593
    %5314 = vmatprep.subr.mxu0 0.0
    %5315 = vmatpush1.msra.mxu0 %v1594
    %5316 = vmatprep.subr.mxu0 0.0
    %5317 = vmatpush1.msra.mxu0 %v1595
    %5318 = vmatprep.subr.mxu0 0.0
    %5319 = vmatpush1.msra.mxu0 %v1596
    %5320 = vmatprep.subr.mxu0 0.0
    %5321 = vmatpush1.msra.mxu0 %v1597
    %5322 = vmatprep.subr.mxu0 0.0
    %5323 = vmatpush1.msra.mxu0 %v1598
    %5324 = vmatprep.subr.mxu0 0.0
    %5325 = vmatpush1.msra.mxu0 %v1599
    %5326 = vmatprep.subr.mxu0 0.0
    %5327 = vmatpush1.msra.mxu0 %v1600
    %5328 = vmatprep.subr.mxu0 0.0
    %5329 = vmatpush1.msra.mxu0 %v1601
    %5330 = vmatprep.subr.mxu0 0.0
    %5331 = vmatpush1.msra.mxu0 %v1602
    %5332 = vmatprep.subr.mxu0 0.0
    %5333 = vmatpush1.msra.mxu0 0.0
    %5334 = vmatprep.subr.mxu0 0.0
    %5335 = vmatpush1.msra.mxu0 0.0
    %5336 = vmatprep.subr.mxu0 0.0
    %5337 = vmatpush1.msra.mxu0 0.0
    %5338 = vmatprep.subr.mxu0 0.0
    %5339 = vmatpush1.msra.mxu0 0.0
    %5340 = vmatprep.subr.mxu0 0.0
    %5341 = vmatpush1.msra.mxu0 0.0
    %5342 = vmatprep.subr.mxu0 0.0
    %5343 = vmatpush1.msra.mxu0 0.0
    %5344 = vmatprep.subr.mxu0 0.0
    %5345 = vmatpush1.msra.mxu0 0.0
    %5346 = vmatprep.subr.mxu0 0.0
    %5347 = vmatpush1.msra.mxu0 0.0
    %5348 = vmatprep.subr.mxu0 0.0
    %5349 = vmatpush1.msra.mxu0 0.0
    %5350 = vmatprep.subr.mxu0 0.0
    %5351 = vmatpush1.msra.mxu0 0.0
    %5352 = vmatprep.subr.mxu0 0.0
    %5353 = vmatpush1.msra.mxu0 0.0
    %5354 = vmatprep.subr.mxu0 0.0
    %5355 = vmatpush1.msra.mxu0 0.0
    %5356 = vmatprep.subr.mxu0 0.0
    %5357 = vmatpush1.msra.mxu0 0.0
    %5358 = vmatprep.subr.mxu0 0.0
    %5359 = vmatpush1.msra.mxu0 0.0
    %5360 = vmatprep.subr.mxu0 0.0
    %5361 = vmatpush1.msra.mxu0 0.0
    %5362 = vmatprep.subr.mxu0 0.0
    %5363 = vmatpush1.msra.mxu0 0.0
    %5364 = vmatprep.mubr.f32.mxu0 0.0
    %5365 = vmatmul.mubr.f32.gmra.mrb[0].mxu0 %v5220
    %v5366 = vpop.f32.mrb[0].mxu0
    %v5367 = vadd.f32 0.0, %v5366
    %v5368 = vpop.f32.mrb[0].mxu0
    %5369 = vdwg.mxu0
    %5370 = vmatprep.subr.mxu0 0.0
    %5371 = vmatpush1.msra.mxu0 %v1678
    %5372 = vmatprep.subr.mxu0 0.0
    %5373 = vmatpush1.msra.mxu0 %v1679
    %5374 = vmatprep.subr.mxu0 0.0
    %5375 = vmatpush1.msra.mxu0 %v1680
    %5376 = vmatprep.subr.mxu0 0.0
    %5377 = vmatpush1.msra.mxu0 %v1681
    %5378 = vmatprep.subr.mxu0 0.0
    %5379 = vmatpush1.msra.mxu0 %v1682
    %5380 = vmatprep.subr.mxu0 0.0
    %5381 = vmatpush1.msra.mxu0 %v1683
    %5382 = vmatprep.subr.mxu0 0.0
    %5383 = vmatpush1.msra.mxu0 %v1684
    %5384 = vmatprep.subr.mxu0 0.0
    %5385 = vmatpush1.msra.mxu0 %v1685
    %5386 = vmatprep.subr.mxu0 0.0
    %5387 = vmatpush1.msra.mxu0 %v1686
    %5388 = vmatprep.subr.mxu0 0.0
    %5389 = vmatpush1.msra.mxu0 %v1687
    %5390 = vmatprep.subr.mxu0 0.0
    %5391 = vmatpush1.msra.mxu0 %v1688
    %5392 = vmatprep.subr.mxu0 0.0
    %5393 = vmatpush1.msra.mxu0 %v1689
    %5394 = vmatprep.subr.mxu0 0.0
    %5395 = vmatpush1.msra.mxu0 %v1690
    %5396 = vmatprep.subr.mxu0 0.0
    %5397 = vmatpush1.msra.mxu0 %v1691
    %5398 = vmatprep.subr.mxu0 0.0
    %5399 = vmatpush1.msra.mxu0 %v1692
    %5400 = vmatprep.subr.mxu0 0.0
    %5401 = vmatpush1.msra.mxu0 %v1693
    %5402 = vmatprep.subr.mxu0 0.0
    %5403 = vmatpush1.msra.mxu0 0.0
    %5404 = vmatprep.subr.mxu0 0.0
    %5405 = vmatpush1.msra.mxu0 0.0
    %5406 = vmatprep.subr.mxu0 0.0
    %5407 = vmatpush1.msra.mxu0 0.0
    %5408 = vmatprep.subr.mxu0 0.0
    %5409 = vmatpush1.msra.mxu0 0.0
    %5410 = vmatprep.subr.mxu0 0.0
    %5411 = vmatpush1.msra.mxu0 0.0
    %5412 = vmatprep.subr.mxu0 0.0
    %5413 = vmatpush1.msra.mxu0 0.0
    %5414 = vmatprep.subr.mxu0 0.0
    %5415 = vmatpush1.msra.mxu0 0.0
    %5416 = vmatprep.subr.mxu0 0.0
    %5417 = vmatpush1.msra.mxu0 0.0
    %5418 = vmatprep.subr.mxu0 0.0
    %5419 = vmatpush1.msra.mxu0 0.0
    %5420 = vmatprep.subr.mxu0 0.0
    %5421 = vmatpush1.msra.mxu0 0.0
    %5422 = vmatprep.subr.mxu0 0.0
    %5423 = vmatpush1.msra.mxu0 0.0
    %5424 = vmatprep.subr.mxu0 0.0
    %5425 = vmatpush1.msra.mxu0 0.0
    %5426 = vmatprep.subr.mxu0 0.0
    %5427 = vmatpush1.msra.mxu0 0.0
    %5428 = vmatprep.subr.mxu0 0.0
    %5429 = vmatpush1.msra.mxu0 0.0
    %5430 = vmatprep.subr.mxu0 0.0
    %5431 = vmatpush1.msra.mxu0 0.0
    %5432 = vmatprep.subr.mxu0 0.0
    %5433 = vmatpush1.msra.mxu0 0.0
    %5434 = vmatprep.mubr.f32.mxu0 0.0
    %5435 = vmatmul.mubr.f32.gmra.mrb[0].mxu0 %v5220
    %v5436 = vpop.f32.mrb[0].mxu0
    %v5437 = vadd.f32 0.0, %v5436
    %v5438 = vpop.f32.mrb[0].mxu0
    %5439 = vdwg.mxu0
    %5440 = vmatprep.subr.mxu0 0.0
    %5441 = vmatpush1.msra.mxu0 %v3279
    %5442 = vmatprep.subr.mxu0 0.0
    %5443 = vmatpush1.msra.mxu0 %v3280
    %5444 = vmatprep.subr.mxu0 0.0
    %5445 = vmatpush1.msra.mxu0 %v3281
    %5446 = vmatprep.subr.mxu0 0.0
    %5447 = vmatpush1.msra.mxu0 %v3282
    %5448 = vmatprep.subr.mxu0 0.0
    %5449 = vmatpush1.msra.mxu0 %v3283
    %5450 = vmatprep.subr.mxu0 0.0
    %5451 = vmatpush1.msra.mxu0 %v3284
    %5452 = vmatprep.subr.mxu0 0.0
    %5453 = vmatpush1.msra.mxu0 %v3285
    %5454 = vmatprep.subr.mxu0 0.0
    %5455 = vmatpush1.msra.mxu0 %v3286
    %5456 = vmatprep.subr.mxu0 0.0
    %5457 = vmatpush1.msra.mxu0 %v3287
    %5458 = vmatprep.subr.mxu0 0.0
    %5459 = vmatpush1.msra.mxu0 %v3288
    %5460 = vmatprep.subr.mxu0 0.0
    %5461 = vmatpush1.msra.mxu0 %v3289
    %5462 = vmatprep.subr.mxu0 0.0
    %5463 = vmatpush1.msra.mxu0 %v3290
    %5464 = vmatprep.subr.mxu0 0.0
    %5465 = vmatpush1.msra.mxu0 %v3291
    %5466 = vmatprep.subr.mxu0 0.0
    %5467 = vmatpush1.msra.mxu0 %v3292
    %5468 = vmatprep.subr.mxu0 0.0
    %5469 = vmatpush1.msra.mxu0 %v3293
    %5470 = vmatprep.subr.mxu0 0.0
    %5471 = vmatpush1.msra.mxu0 %v3294
    %5472 = vmatprep.subr.mxu0 0.0
    %5473 = vmatpush1.msra.mxu0 %v3295
    %5474 = vmatprep.subr.mxu0 0.0
    %5475 = vmatpush1.msra.mxu0 %v3296
    %5476 = vmatprep.subr.mxu0 0.0
    %5477 = vmatpush1.msra.mxu0 %v3297
    %5478 = vmatprep.subr.mxu0 0.0
    %5479 = vmatpush1.msra.mxu0 %v3298
    %5480 = vmatprep.subr.mxu0 0.0
    %5481 = vmatpush1.msra.mxu0 %v3299
    %5482 = vmatprep.subr.mxu0 0.0
    %5483 = vmatpush1.msra.mxu0 %v3300
    %5484 = vmatprep.subr.mxu0 0.0
    %5485 = vmatpush1.msra.mxu0 %v3301
    %5486 = vmatprep.subr.mxu0 0.0
    %5487 = vmatpush1.msra.mxu0 %v3302
    %5488 = vmatprep.subr.mxu0 0.0
    %5489 = vmatpush1.msra.mxu0 %v3303
    %5490 = vmatprep.subr.mxu0 0.0
    %5491 = vmatpush1.msra.mxu0 %v3304
    %5492 = vmatprep.subr.mxu0 0.0
    %5493 = vmatpush1.msra.mxu0 %v3305
    %5494 = vmatprep.subr.mxu0 0.0
    %5495 = vmatpush1.msra.mxu0 %v3306
    %5496 = vmatprep.subr.mxu0 0.0
    %5497 = vmatpush1.msra.mxu0 %v3307
    %5498 = vmatprep.subr.mxu0 0.0
    %5499 = vmatpush1.msra.mxu0 %v3308
    %5500 = vmatprep.subr.mxu0 0.0
    %5501 = vmatpush1.msra.mxu0 %v3309
    %5502 = vmatprep.subr.mxu0 0.0
    %5503 = vmatpush1.msra.mxu0 %v3310
    %5504 = vmatprep.mubr.f32.mxu0 %v5367
    %5505 = vmatmul.mubr.f32.gmra.mrb[0].mxu0 %v5220
    %v5506 = vpop.f32.mrb[0].mxu0
    %v5507 = vadd.f32 %v3333, %v5506
    %v5508 = vpop.f32.mrb[0].mxu0
    %5509 = vdwg.mxu0
    %5510 = vmatprep.subr.mxu0 0.0
    %5511 = vmatpush1.msra.mxu0 %v3311
    %5512 = vmatprep.subr.mxu0 0.0
    %5513 = vmatpush1.msra.mxu0 %v3312
    %5514 = vmatprep.subr.mxu0 0.0
    %5515 = vmatpush1.msra.mxu0 %v3313
    %5516 = vmatprep.subr.mxu0 0.0
    %5517 = vmatpush1.msra.mxu0 %v3314
    %5518 = vmatprep.subr.mxu0 0.0
    %5519 = vmatpush1.msra.mxu0 %v3315
    %5520 = vmatprep.subr.mxu0 0.0
    %5521 = vmatpush1.msra.mxu0 %v3316
    %5522 = vmatprep.subr.mxu0 0.0
    %5523 = vmatpush1.msra.mxu0 %v3317
    %5524 = vmatprep.subr.mxu0 0.0
    %5525 = vmatpush1.msra.mxu0 %v3318
    %5526 = vmatprep.subr.mxu0 0.0
    %5527 = vmatpush1.msra.mxu0 %v3319
    %5528 = vmatprep.subr.mxu0 0.0
    %5529 = vmatpush1.msra.mxu0 %v3320
    %5530 = vmatprep.subr.mxu0 0.0
    %5531 = vmatpush1.msra.mxu0 %v3321
    %5532 = vmatprep.subr.mxu0 0.0
    %5533 = vmatpush1.msra.mxu0 %v3322
    %5534 = vmatprep.subr.mxu0 0.0
    %5535 = vmatpush1.msra.mxu0 %v3323
    %5536 = vmatprep.subr.mxu0 0.0
    %5537 = vmatpush1.msra.mxu0 %v3324
    %5538 = vmatprep.subr.mxu0 0.0
    %5539 = vmatpush1.msra.mxu0 %v3325
    %5540 = vmatprep.subr.mxu0 0.0
    %5541 = vmatpush1.msra.mxu0 %v3326
    %5542 = vmatprep.subr.mxu0 0.0
    %5543 = vmatpush1.msra.mxu0 0.0
    %5544 = vmatprep.subr.mxu0 0.0
    %5545 = vmatpush1.msra.mxu0 0.0
    %5546 = vmatprep.subr.mxu0 0.0
    %5547 = vmatpush1.msra.mxu0 0.0
    %5548 = vmatprep.subr.mxu0 0.0
    %5549 = vmatpush1.msra.mxu0 0.0
    %5550 = vmatprep.subr.mxu0 0.0
    %5551 = vmatpush1.msra.mxu0 0.0
    %5552 = vmatprep.subr.mxu0 0.0
    %5553 = vmatpush1.msra.mxu0 0.0
    %5554 = vmatprep.subr.mxu0 0.0
    %5555 = vmatpush1.msra.mxu0 0.0
    %5556 = vmatprep.subr.mxu0 0.0
    %5557 = vmatpush1.msra.mxu0 0.0
    %5558 = vmatprep.subr.mxu0 0.0
    %5559 = vmatpush1.msra.mxu0 0.0
    %5560 = vmatprep.subr.mxu0 0.0
    %5561 = vmatpush1.msra.mxu0 0.0
    %5562 = vmatprep.subr.mxu0 0.0
    %5563 = vmatpush1.msra.mxu0 0.0
    %5564 = vmatprep.subr.mxu0 0.0
    %5565 = vmatpush1.msra.mxu0 0.0
    %5566 = vmatprep.subr.mxu0 0.0
    %5567 = vmatpush1.msra.mxu0 0.0
    %5568 = vmatprep.subr.mxu0 0.0
    %5569 = vmatpush1.msra.mxu0 0.0
    %5570 = vmatprep.subr.mxu0 0.0
    %5571 = vmatpush1.msra.mxu0 0.0
    %5572 = vmatprep.subr.mxu0 0.0
    %5573 = vmatpush1.msra.mxu0 0.0
    %5574 = vmatprep.mubr.f32.mxu0 0.0
    %5575 = vmatmul.mubr.f32.gmra.mrb[0].mxu0 %v5437
    %v5576 = vpop.f32.mrb[0].mxu0
    %v5577 = vadd.f32 %v5507, %v5576
    %v5578 = vpop.f32.mrb[0].mxu0
    %5579 = vdwg.mxu0
    %v5580 = vmul.f32 %v5065, %v3481
    %v5582 = vrot.slane %v5580, 2
    %v5584 = vadd.f32 %v5577, %v5582
    %v5586 = vrot.slane %v5584, 2
    %v5588 = vrot.slane %v5584, 4
    %5590 = vmatprep.subr.mxu0 %v3495
    %5591 = vmatpush1.msra.mxu0 %v3494
    %5592 = vmatprep.subr.mxu0 %v3497
    %5593 = vmatpush1.msra.mxu0 %v3496
    %5594 = vmatprep.subr.mxu0 %v3499
    %5595 = vmatpush1.msra.mxu0 %v3498
    %5596 = vmatprep.subr.mxu0 %v3501
    %5597 = vmatpush1.msra.mxu0 %v3500
    %5598 = vmatprep.subr.mxu0 %v3503
    %5599 = vmatpush1.msra.mxu0 %v3502
    %5600 = vmatprep.subr.mxu0 %v3505
    %5601 = vmatpush1.msra.mxu0 %v3504
    %5602 = vmatprep.subr.mxu0 %v3507
    %5603 = vmatpush1.msra.mxu0 %v3506
    %5604 = vmatprep.subr.mxu0 %v3509
    %5605 = vmatpush1.msra.mxu0 %v3508
    %5606 = vmatprep.subr.mxu0 %v3511
    %5607 = vmatpush1.msra.mxu0 %v3510
    %5608 = vmatprep.subr.mxu0 %v3513
    %5609 = vmatpush1.msra.mxu0 %v3512
    %5610 = vmatprep.subr.mxu0 %v3515
    %5611 = vmatpush1.msra.mxu0 %v3514
    %5612 = vmatprep.subr.mxu0 %v3517
    %5613 = vmatpush1.msra.mxu0 %v3516
    %5614 = vmatprep.subr.mxu0 %v3519
    %5615 = vmatpush1.msra.mxu0 %v3518
    %5616 = vmatprep.subr.mxu0 %v3521
    %5617 = vmatpush1.msra.mxu0 %v3520
    %5618 = vmatprep.subr.mxu0 %v3523
    %5619 = vmatpush1.msra.mxu0 %v3522
    %5620 = vmatprep.subr.mxu0 %v3525
    %5621 = vmatpush1.msra.mxu0 %v3524
    %5622 = vmatprep.subr.mxu0 %v3527
    %5623 = vmatpush1.msra.mxu0 %v3526
    %5624 = vmatprep.subr.mxu0 %v3529
    %5625 = vmatpush1.msra.mxu0 %v3528
    %5626 = vmatprep.subr.mxu0 %v3531
    %5627 = vmatpush1.msra.mxu0 %v3530
    %5628 = vmatprep.subr.mxu0 %v3533
    %5629 = vmatpush1.msra.mxu0 %v3532
    %5630 = vmatprep.subr.mxu0 %v3535
    %5631 = vmatpush1.msra.mxu0 %v3534
    %5632 = vmatprep.subr.mxu0 %v3537
    %5633 = vmatpush1.msra.mxu0 %v3536
    %5634 = vmatprep.subr.mxu0 %v3539
    %5635 = vmatpush1.msra.mxu0 %v3538
    %5636 = vmatprep.subr.mxu0 %v3541
    %5637 = vmatpush1.msra.mxu0 %v3540
    %5638 = vmatprep.subr.mxu0 %v3543
    %5639 = vmatpush1.msra.mxu0 %v3542
    %5640 = vmatprep.subr.mxu0 %v3545
    %5641 = vmatpush1.msra.mxu0 %v3544
    %5642 = vmatprep.subr.mxu0 %v3547
    %5643 = vmatpush1.msra.mxu0 %v3546
    %5644 = vmatprep.subr.mxu0 %v3549
    %5645 = vmatpush1.msra.mxu0 %v3548
    %5646 = vmatprep.subr.mxu0 %v3551
    %5647 = vmatpush1.msra.mxu0 %v3550
    %5648 = vmatprep.subr.mxu0 %v3553
    %5649 = vmatpush1.msra.mxu0 %v3552
    %5650 = vmatprep.subr.mxu0 %v3555
    %5651 = vmatpush1.msra.mxu0 %v3554
    %5652 = vmatprep.subr.mxu0 %v3557
    %5653 = vmatpush1.msra.mxu0 %v3556
    %5654 = vmatprep.mubr.f32.mxu0 %v5586
    %5655 = vmatmul.mubr.f32.gmra.mrb[0].mxu0 %v5584
    %v5656 = vpop.f32.mrb[0].mxu0
    %v5657 = vadd.f32 %v3596, %v5656
    %v5658 = vpop.f32.mrb[0].mxu0
    %v5659 = vadd.f32 %v3600, %v5658
    %5660 = vdwg.mxu0
    %5661 = vmatprep.subr.mxu0 %v3559
    %5662 = vmatpush1.msra.mxu0 %v3558
    %5663 = vmatprep.subr.mxu0 %v3561
    %5664 = vmatpush1.msra.mxu0 %v3560
    %5665 = vmatprep.subr.mxu0 %v3563
    %5666 = vmatpush1.msra.mxu0 %v3562
    %5667 = vmatprep.subr.mxu0 %v3565
    %5668 = vmatpush1.msra.mxu0 %v3564
    %5669 = vmatprep.subr.mxu0 %v3567
    %5670 = vmatpush1.msra.mxu0 %v3566
    %5671 = vmatprep.subr.mxu0 %v3569
    %5672 = vmatpush1.msra.mxu0 %v3568
    %5673 = vmatprep.subr.mxu0 %v3571
    %5674 = vmatpush1.msra.mxu0 %v3570
    %5675 = vmatprep.subr.mxu0 %v3573
    %5676 = vmatpush1.msra.mxu0 %v3572
    %5677 = vmatprep.subr.mxu0 %v3575
    %5678 = vmatpush1.msra.mxu0 %v3574
    %5679 = vmatprep.subr.mxu0 %v3577
    %5680 = vmatpush1.msra.mxu0 %v3576
    %5681 = vmatprep.subr.mxu0 %v3579
    %5682 = vmatpush1.msra.mxu0 %v3578
    %5683 = vmatprep.subr.mxu0 %v3581
    %5684 = vmatpush1.msra.mxu0 %v3580
    %5685 = vmatprep.subr.mxu0 %v3583
    %5686 = vmatpush1.msra.mxu0 %v3582
    %5687 = vmatprep.subr.mxu0 %v3585
    %5688 = vmatpush1.msra.mxu0 %v3584
    %5689 = vmatprep.subr.mxu0 %v3587
    %5690 = vmatpush1.msra.mxu0 %v3586
    %5691 = vmatprep.subr.mxu0 %v3589
    %5692 = vmatpush1.msra.mxu0 %v3588
    %5693 = vmatprep.subr.mxu0 0.0
    %5694 = vmatpush1.msra.mxu0 0.0
    %5695 = vmatprep.subr.mxu0 0.0
    %5696 = vmatpush1.msra.mxu0 0.0
    %5697 = vmatprep.subr.mxu0 0.0
    %5698 = vmatpush1.msra.mxu0 0.0
    %5699 = vmatprep.subr.mxu0 0.0
    %5700 = vmatpush1.msra.mxu0 0.0
    %5701 = vmatprep.subr.mxu0 0.0
    %5702 = vmatpush1.msra.mxu0 0.0
    %5703 = vmatprep.subr.mxu0 0.0
    %5704 = vmatpush1.msra.mxu0 0.0
    %5705 = vmatprep.subr.mxu0 0.0
    %5706 = vmatpush1.msra.mxu0 0.0
    %5707 = vmatprep.subr.mxu0 0.0
    %5708 = vmatpush1.msra.mxu0 0.0
    %5709 = vmatprep.subr.mxu0 0.0
    %5710 = vmatpush1.msra.mxu0 0.0
    %5711 = vmatprep.subr.mxu0 0.0
    %5712 = vmatpush1.msra.mxu0 0.0
    %5713 = vmatprep.subr.mxu0 0.0
    %5714 = vmatpush1.msra.mxu0 0.0
    %5715 = vmatprep.subr.mxu0 0.0
    %5716 = vmatpush1.msra.mxu0 0.0
    %5717 = vmatprep.subr.mxu0 0.0
    %5718 = vmatpush1.msra.mxu0 0.0
    %5719 = vmatprep.subr.mxu0 0.0
    %5720 = vmatpush1.msra.mxu0 0.0
    %5721 = vmatprep.subr.mxu0 0.0
    %5722 = vmatpush1.msra.mxu0 0.0
    %5723 = vmatprep.subr.mxu0 0.0
    %5724 = vmatpush1.msra.mxu0 0.0
    %5725 = vmatprep.mubr.f32.mxu0 0.0
    %5726 = vmatmul.mubr.f32.gmra.mrb[0].mxu0 %v5588
    %v5727 = vpop.f32.mrb[0].mxu0
    %v5728 = vadd.f32 %v5657, %v5727
    %v5729 = vpop.f32.mrb[0].mxu0
    %v5730 = vadd.f32 %v5659, %v5729
    %5731 = vdwg.mxu0
    %v5732 = vtanh.pop %v5728
    %v5733 = vxor.u32 %v5730, 2147483648
    %v5734 = vmul.f32 %v5733, 1.442695
    %v5735 = vpow.pop %v5734
    %v5736 = vadd.f32 %v5735, 1.0
    %v5737 = vrcp.pop %v5736
    %v5738 = vmul.f32 1.0, %v5737
    %v5739 = vmul.f32 %v5732, %v5738
    %5740 = vmatprep.subr.mxu0 %v3755
    %5741 = vmatpush1.msra.mxu0 %v3754
    %5742 = vmatprep.subr.mxu0 %v3757
    %5743 = vmatpush1.msra.mxu0 %v3756
    %5744 = vmatprep.subr.mxu0 %v3759
    %5745 = vmatpush1.msra.mxu0 %v3758
    %5746 = vmatprep.subr.mxu0 %v3761
    %5747 = vmatpush1.msra.mxu0 %v3760
    %5748 = vmatprep.subr.mxu0 %v3763
    %5749 = vmatpush1.msra.mxu0 %v3762
    %5750 = vmatprep.subr.mxu0 %v3765
    %5751 = vmatpush1.msra.mxu0 %v3764
    %5752 = vmatprep.subr.mxu0 %v3767
    %5753 = vmatpush1.msra.mxu0 %v3766
    %5754 = vmatprep.subr.mxu0 %v3769
    %5755 = vmatpush1.msra.mxu0 %v3768
    %5756 = vmatprep.subr.mxu0 %v3771
    %5757 = vmatpush1.msra.mxu0 %v3770
    %5758 = vmatprep.subr.mxu0 %v3773
    %5759 = vmatpush1.msra.mxu0 %v3772
    %5760 = vmatprep.subr.mxu0 %v3775
    %5761 = vmatpush1.msra.mxu0 %v3774
    %5762 = vmatprep.subr.mxu0 %v3777
    %5763 = vmatpush1.msra.mxu0 %v3776
    %5764 = vmatprep.subr.mxu0 %v3779
    %5765 = vmatpush1.msra.mxu0 %v3778
    %5766 = vmatprep.subr.mxu0 %v3781
    %5767 = vmatpush1.msra.mxu0 %v3780
    %5768 = vmatprep.subr.mxu0 %v3783
    %5769 = vmatpush1.msra.mxu0 %v3782
    %5770 = vmatprep.subr.mxu0 %v3785
    %5771 = vmatpush1.msra.mxu0 %v3784
    %5772 = vmatprep.subr.mxu0 0.0
    %5773 = vmatpush1.msra.mxu0 0.0
    %5774 = vmatprep.subr.mxu0 0.0
    %5775 = vmatpush1.msra.mxu0 0.0
    %5776 = vmatprep.subr.mxu0 0.0
    %5777 = vmatpush1.msra.mxu0 0.0
    %5778 = vmatprep.subr.mxu0 0.0
    %5779 = vmatpush1.msra.mxu0 0.0
    %5780 = vmatprep.subr.mxu0 0.0
    %5781 = vmatpush1.msra.mxu0 0.0
    %5782 = vmatprep.subr.mxu0 0.0
    %5783 = vmatpush1.msra.mxu0 0.0
    %5784 = vmatprep.subr.mxu0 0.0
    %5785 = vmatpush1.msra.mxu0 0.0
    %5786 = vmatprep.subr.mxu0 0.0
    %5787 = vmatpush1.msra.mxu0 0.0
    %5788 = vmatprep.subr.mxu0 0.0
    %5789 = vmatpush1.msra.mxu0 0.0
    %5790 = vmatprep.subr.mxu0 0.0
    %5791 = vmatpush1.msra.mxu0 0.0
    %5792 = vmatprep.subr.mxu0 0.0
    %5793 = vmatpush1.msra.mxu0 0.0
    %5794 = vmatprep.subr.mxu0 0.0
    %5795 = vmatpush1.msra.mxu0 0.0
    %5796 = vmatprep.subr.mxu0 0.0
    %5797 = vmatpush1.msra.mxu0 0.0
    %5798 = vmatprep.subr.mxu0 0.0
    %5799 = vmatpush1.msra.mxu0 0.0
    %5800 = vmatprep.subr.mxu0 0.0
    %5801 = vmatpush1.msra.mxu0 0.0
    %5802 = vmatprep.subr.mxu0 0.0
    %5803 = vmatpush1.msra.mxu0 0.0
    %5804 = vmatprep.mubr.f32.mxu0 0.0
    %5805 = vmatmul.mubr.f32.gmra.mrb[0].mxu0 %v5739
    %v5806 = vpop.f32.mrb[0].mxu0
    %v5807 = vadd.f32 %v3792, %v5806
    %v5808 = vpop.f32.mrb[0].mxu0
    %v5809 = vadd.f32 %v3796, %v5808
    %5810 = vdwg.mxu0
    %v5813 = vrot.slane %v5298, 4
    %v5814 = vrot.slane %v5299, 4
    %v5817 = vadd.f32 %v5807, %v5813
    %v5818 = vadd.f32 %v5809, %v5814
    %v5821 = vrot.slane %v5817, 7
    %v5822 = vrot.slane %v5818, 7
    %vm5825 = vcmask 1040384
    %v5826 = vsel %vm5825, %v3876, %v5821
    %v5827 = vsel %vm5825, %v3877, %v5822
    %vm5828 = vcmp.gt.f32.partialorder %v5826, 0.0
    %vm5829 = vcmp.gt.f32.partialorder %v5827, 0.0
    %v5830 = vmul.f32 %v5826, 0.01
    %v5831 = vmul.f32 %v5827, 0.01
    %v5832 = vsel %vm5828, %v5826, %v5830
    %v5833 = vsel %vm5829, %v5827, %v5831
    %v5834 = vld [vmem:[%s15] sm:$0xff]
    %v5835 = vld [vmem:[%s15 + $0x8] sm:$0xff]
    %v5836 = vld [vmem:[%s15 + $0x10] sm:$0xff]
    %v5837 = vld [vmem:[%s15 + $0x18] sm:$0xff]
    %v5838 = vld [vmem:[%s15 + $0x20] sm:$0xff]
    %v5839 = vld [vmem:[%s15 + $0x28] sm:$0xff]
    %v5840 = vld [vmem:[%s15 + $0x30] sm:$0xff]
    %v5841 = vld [vmem:[%s15 + $0x38] sm:$0xff]
    %v5842 = vld [vmem:[%s15 + $0x40] sm:$0xff]
    %v5843 = vld [vmem:[%s15 + $0x48] sm:$0xff]
    %v5844 = vld [vmem:[%s15 + $0x50] sm:$0xff]
    %v5845 = vld [vmem:[%s15 + $0x58] sm:$0xff]
    %v5846 = vld [vmem:[%s15 + $0x60] sm:$0xff]
    %v5847 = vld [vmem:[%s15 + $0x68] sm:$0xff]
    %v5848 = vld [vmem:[%s15 + $0x70] sm:$0xff]
    %v5849 = vld [vmem:[%s15 + $0x78] sm:$0xff]
    %v5850 = vld [vmem:[%s15 + $0x80] sm:$0xff]
    %v5851 = vld [vmem:[%s15 + $0x88] sm:$0xff]
    %v5852 = vld [vmem:[%s15 + $0x90] sm:$0xff]
    %v5853 = vld [vmem:[%s15 + $0x98] sm:$0xff]
    %v5854 = vld [vmem:[%s15 + $0xa0] sm:$0xff]
    %v5855 = vld [vmem:[%s15 + $0xa8] sm:$0xff]
    %v5856 = vld [vmem:[%s15 + $0xb0] sm:$0xff]
    %v5857 = vld [vmem:[%s15 + $0xb8] sm:$0xff]
    %v5858 = vld [vmem:[%s15 + $0xc0] sm:$0xff]
    %v5859 = vld [vmem:[%s15 + $0xc8] sm:$0xff]
    %v5860 = vld [vmem:[%s15 + $0xd0] sm:$0xff]
    %v5861 = vld [vmem:[%s15 + $0xd8] sm:$0xff]
    %v5862 = vld [vmem:[%s15 + $0xe0] sm:$0xff]
    %v5863 = vld [vmem:[%s15 + $0xe8] sm:$0xff]
    %v5864 = vld [vmem:[%s15 + $0xf0] sm:$0xff]
    %v5865 = vld [vmem:[%s15 + $0xf8] sm:$0xff]
    %v5866 = vld [vmem:[#allocation24] sm:$0x1]
    %v5868 = vlaneseq
    %v5869 = vshrl.u32 %v5868, 7
    %v5870 = vsub.s32 0, %v5869
    %v5871 = vrot.slane %v5866, %v5870
    %5873 = vmatprep.subr.mxu0 0.0
    %5874 = vmatpush1.msra.mxu0 %v5834
    %5875 = vmatprep.subr.mxu0 0.0
    %5876 = vmatpush1.msra.mxu0 %v5835
    %5877 = vmatprep.subr.mxu0 0.0
    %5878 = vmatpush1.msra.mxu0 %v5836
    %5879 = vmatprep.subr.mxu0 0.0
    %5880 = vmatpush1.msra.mxu0 %v5837
    %5881 = vmatprep.subr.mxu0 0.0
    %5882 = vmatpush1.msra.mxu0 %v5838
    %5883 = vmatprep.subr.mxu0 0.0
    %5884 = vmatpush1.msra.mxu0 %v5839
    %5885 = vmatprep.subr.mxu0 0.0
    %5886 = vmatpush1.msra.mxu0 %v5840
    %5887 = vmatprep.subr.mxu0 0.0
    %5888 = vmatpush1.msra.mxu0 %v5841
    %5889 = vmatprep.subr.mxu0 0.0
    %5890 = vmatpush1.msra.mxu0 %v5842
    %5891 = vmatprep.subr.mxu0 0.0
    %5892 = vmatpush1.msra.mxu0 %v5843
    %5893 = vmatprep.subr.mxu0 0.0
    %5894 = vmatpush1.msra.mxu0 %v5844
    %5895 = vmatprep.subr.mxu0 0.0
    %5896 = vmatpush1.msra.mxu0 %v5845
    %5897 = vmatprep.subr.mxu0 0.0
    %5898 = vmatpush1.msra.mxu0 %v5846
    %5899 = vmatprep.subr.mxu0 0.0
    %5900 = vmatpush1.msra.mxu0 %v5847
    %5901 = vmatprep.subr.mxu0 0.0
    %5902 = vmatpush1.msra.mxu0 %v5848
    %5903 = vmatprep.subr.mxu0 0.0
    %5904 = vmatpush1.msra.mxu0 %v5849
    %5905 = vmatprep.subr.mxu0 0.0
    %5906 = vmatpush1.msra.mxu0 %v5850
    %5907 = vmatprep.subr.mxu0 0.0
    %5908 = vmatpush1.msra.mxu0 %v5851
    %5909 = vmatprep.subr.mxu0 0.0
    %5910 = vmatpush1.msra.mxu0 %v5852
    %5911 = vmatprep.subr.mxu0 0.0
    %5912 = vmatpush1.msra.mxu0 %v5853
    %5913 = vmatprep.subr.mxu0 0.0
    %5914 = vmatpush1.msra.mxu0 %v5854
    %5915 = vmatprep.subr.mxu0 0.0
    %5916 = vmatpush1.msra.mxu0 %v5855
    %5917 = vmatprep.subr.mxu0 0.0
    %5918 = vmatpush1.msra.mxu0 %v5856
    %5919 = vmatprep.subr.mxu0 0.0
    %5920 = vmatpush1.msra.mxu0 %v5857
    %5921 = vmatprep.subr.mxu0 0.0
    %5922 = vmatpush1.msra.mxu0 %v5858
    %5923 = vmatprep.subr.mxu0 0.0
    %5924 = vmatpush1.msra.mxu0 %v5859
    %5925 = vmatprep.subr.mxu0 0.0
    %5926 = vmatpush1.msra.mxu0 %v5860
    %5927 = vmatprep.subr.mxu0 0.0
    %5928 = vmatpush1.msra.mxu0 %v5861
    %5929 = vmatprep.subr.mxu0 0.0
    %5930 = vmatpush1.msra.mxu0 %v5862
    %5931 = vmatprep.subr.mxu0 0.0
    %5932 = vmatpush1.msra.mxu0 %v5863
    %5933 = vmatprep.subr.mxu0 0.0
    %5934 = vmatpush1.msra.mxu0 %v5864
    %5935 = vmatprep.subr.mxu0 0.0
    %5936 = vmatpush1.msra.mxu0 %v5865
    %5937 = vmatprep.mubr.f32.mxu0 %v5833
    %5938 = vmatmul.mubr.f32.gmra.mrb[0].mxu0 %v5832
    %v5939 = vpop.f32.mrb[0].mxu0
    %v5940 = vadd.f32 %v5871, %v5939
    %v5941 = vpop.f32.mrb[0].mxu0
    %5942 = vdwg.mxu0
    %vm5943 = vcmp.gt.f32.partialorder %v5940, 0.0
    %v5944 = vmul.f32 %v5940, 0.01
    %v5945 = vsel %vm5943, %v5940, %v5944
    %v5946 = vld [vmem:[#allocation26] sm:$0xff]
    %v5947 = vld [vmem:[#allocation27] sm:$0x1]
    %v5949 = vlaneseq
    %v5950 = vshrl.u32 %v5949, 7
    %v5951 = vsub.s32 0, %v5950
    %v5952 = vrot.slane %v5947, %v5951
    %v5955 = vsel %vm265, %v5945, 0
    %5957 = vmatprep.subr.mxu0 0.0
    %5958 = vmatpush1.msra.mxu0 %v5946
    %5959 = vmatprep.subr.mxu0 0.0
    %5960 = vmatpush1.msra.mxu0 0.0
    %5961 = vmatprep.subr.mxu0 0.0
    %5962 = vmatpush1.msra.mxu0 0.0
    %5963 = vmatprep.subr.mxu0 0.0
    %5964 = vmatpush1.msra.mxu0 0.0
    %5965 = vmatprep.subr.mxu0 0.0
    %5966 = vmatpush1.msra.mxu0 0.0
    %5967 = vmatprep.subr.mxu0 0.0
    %5968 = vmatpush1.msra.mxu0 0.0
    %5969 = vmatprep.subr.mxu0 0.0
    %5970 = vmatpush1.msra.mxu0 0.0
    %5971 = vmatprep.subr.mxu0 0.0
    %5972 = vmatpush1.msra.mxu0 0.0
    %5973 = vmatprep.subr.mxu0 0.0
    %5974 = vmatpush1.msra.mxu0 0.0
    %5975 = vmatprep.subr.mxu0 0.0
    %5976 = vmatpush1.msra.mxu0 0.0
    %5977 = vmatprep.subr.mxu0 0.0
    %5978 = vmatpush1.msra.mxu0 0.0
    %5979 = vmatprep.subr.mxu0 0.0
    %5980 = vmatpush1.msra.mxu0 0.0
    %5981 = vmatprep.subr.mxu0 0.0
    %5982 = vmatpush1.msra.mxu0 0.0
    %5983 = vmatprep.subr.mxu0 0.0
    %5984 = vmatpush1.msra.mxu0 0.0
    %5985 = vmatprep.subr.mxu0 0.0
    %5986 = vmatpush1.msra.mxu0 0.0
    %5987 = vmatprep.subr.mxu0 0.0
    %5988 = vmatpush1.msra.mxu0 0.0
    %5989 = vmatprep.subr.mxu0 0.0
    %5990 = vmatpush1.msra.mxu0 0.0
    %5991 = vmatprep.subr.mxu0 0.0
    %5992 = vmatpush1.msra.mxu0 0.0
    %5993 = vmatprep.subr.mxu0 0.0
    %5994 = vmatpush1.msra.mxu0 0.0
    %5995 = vmatprep.subr.mxu0 0.0
    %5996 = vmatpush1.msra.mxu0 0.0
    %5997 = vmatprep.subr.mxu0 0.0
    %5998 = vmatpush1.msra.mxu0 0.0
    %5999 = vmatprep.subr.mxu0 0.0
    %6000 = vmatpush1.msra.mxu0 0.0
    %6001 = vmatprep.subr.mxu0 0.0
    %6002 = vmatpush1.msra.mxu0 0.0
    %6003 = vmatprep.subr.mxu0 0.0
    %6004 = vmatpush1.msra.mxu0 0.0
    %6005 = vmatprep.subr.mxu0 0.0
    %6006 = vmatpush1.msra.mxu0 0.0
    %6007 = vmatprep.subr.mxu0 0.0
    %6008 = vmatpush1.msra.mxu0 0.0
    %6009 = vmatprep.subr.mxu0 0.0
    %6010 = vmatpush1.msra.mxu0 0.0
    %6011 = vmatprep.subr.mxu0 0.0
    %6012 = vmatpush1.msra.mxu0 0.0
    %6013 = vmatprep.subr.mxu0 0.0
    %6014 = vmatpush1.msra.mxu0 0.0
    %6015 = vmatprep.subr.mxu0 0.0
    %6016 = vmatpush1.msra.mxu0 0.0
    %6017 = vmatprep.subr.mxu0 0.0
    %6018 = vmatpush1.msra.mxu0 0.0
    %6019 = vmatprep.subr.mxu0 0.0
    %6020 = vmatpush1.msra.mxu0 0.0
    %6021 = vmatprep.mubr.f32.mxu0 0.0
    %6022 = vmatmul.mubr.f32.gmra.mrb[0].mxu0 %v5955
    %v6023 = vpop.f32.mrb[0].mxu0
    %v6024 = vadd.f32 %v5952, %v6023
    %v6025 = vpop.f32.mrb[0].mxu0
    %6026 = vdwg.mxu0
    %vm6027 = vcmask 123904
    %6028 = vst.msk [vmem:[%s19] sm:$0x3] %vm6027, %v6024
    // Predicated region
    $region142: #{gwnet_forward.1} parent=1 // pred_check
      _
    $region143: #{gwnet_forward.1} parent=1 // pred_check_branch
      %6030 = sbr.rel (0) target = $region145
    $region144: #{gwnet_forward.1} parent=1 // pred_region
      _
    $region145: #{gwnet_forward.1} parent=1 // pred_fallthru
      _
    // Predicated region
    $region146: #{gwnet_forward.1} parent=1 // pred_check
      _
    $region147: #{gwnet_forward.1} parent=1 // pred_check_branch
      %6032 = sbr.rel (0) target = $region149
    $region148: #{gwnet_forward.1} parent=1 // pred_region
      _
    $region149: #{gwnet_forward.1} parent=1 // pred_fallthru
      _
    %6033 = vsyncpa [#allocation5], 1
    %6034 = vsyncpa [#allocation7], 1
    %6035 = vsyncpa [#allocation10], 1
    %6036 = vsyncpa [#allocation13], 1
    %6037 = vsyncpa [#allocation16], 1
    %6038 = vsyncpa [#allocation19], 1
    %6039 = vsyncpa [#allocation22], 1
    %6040 = vsyncpa [#allocation25], 1
    %6041 = vsyncpa [#allocation28], 1

</llo_original>
